<compile_context>
chip_gen: v7x
topology: tpu7x:2x2x1
jax: 0.10.0
libtpu: 0.0.40
codegen_flags: <defaults>
</compile_context>

<pallas_src>
import jax
import jax.numpy as jnp
from jax.experimental import pallas as pl
from jax.experimental.pallas import tpu as pltpu

_LANE = 128
_BN_EPS = 1e-5  # PyTorch BatchNorm2d default


def _round_up(x, m):
    return (x + m - 1) // m * m


def _pad_channels(c):
    """Small channel counts stay small (padding 4->128 costs ~9x MXU passes
    and up to 32x HBM traffic); counts >= 128 round up to a multiple of 128."""
    if c >= _LANE:
        return _round_up(c, _LANE)
    return _round_up(c, 8)


def _pick_tile_co(cp_out):
    """Output-channel tile: aim for the 256-wide MXU on v6e/v7x."""
    if cp_out % 256 == 0:
        return 256
    if cp_out % _LANE == 0:
        return _LANE
    return cp_out  # small-channel case (< 128): single tile


def _vmem_budget_bytes():
    """Per-generation VMEM budget (v5e/v6e: 128 MiB physical, v7x: 64 MiB)."""
    phys = 64 * 1024 * 1024  # conservative default (v7x)
    try:
        phys = int(getattr(pltpu.get_tpu_info(), "vmem_capacity_bytes", phys))
    except Exception:
        pass
    return min(phys * 3 // 4, 96 * 1024 * 1024)


def _conv_vmem_estimate(tile_h, width, cp_in, tile_co):
    """Generous per-step estimate: double-buffered body/halo/weight/z blocks
    + f32 accumulator (x2 for the centered-stats temp) + the register-held
    window and its two column-shifted variants (counted at f32 to also cover
    the fused-BN intermediates)."""
    body = tile_h * width * cp_in * 2
    halo = 2 * width * cp_in * 2
    wgt = 9 * cp_in * tile_co * 2
    zout = tile_h * width * tile_co * 2
    acc = tile_h * width * tile_co * 4
    temps = 3 * (tile_h + 2) * width * cp_in * 4
    return 2 * (body + halo + wgt + zout) + 2 * acc + temps


def _pick_tile_h(h, n_batch, width, cp_in, tile_co, budget):
    """Largest divisor of H whose per-step VMEM estimate fits the budget;
    prefers >= 2 total grid steps so v7x's two TensorCores both get work."""
    divisors = sorted((d for d in range(1, h + 1) if h % d == 0), reverse=True)
    fallback = None
    for th in divisors:
        if _conv_vmem_estimate(th, width, cp_in, tile_co) > budget:
            continue
        if fallback is None:
            fallback = th
        if n_batch * (h // th) >= 2:
            return th
    # TODO(synk): if even tile_h=1 exceeds the budget (huge W*C), a W tile
    # axis would be needed; fall back to the smallest tile instead of failing.
    return fallback if fallback is not None else 1


def _make_conv_kernel(tile_h, width, cp_in, tile_co, fuse_bn_relu):
    """3x3 conv (stride 1, zero pad 1) for one (tile_h, W) row tile and one
    tile_co-wide slab of output channels.

    If `fuse_bn_relu`, the previous stage's BatchNorm+ReLU is applied to the
    input window first (y = relu(x*scale + shift)).  Emits per-tile centered
    BN partials (sum, sum of squared deviations from the tile mean) of the raw
    conv output for an exact, numerically stable global reduction.
    """
    rows = tile_h * width
    win_rows = (tile_h + 2) * width
    inv_rows = 1.0 / rows

    def kernel(*refs):
        if fuse_bn_relu:
            (scale_ref, shift_ref, top_ref, body_ref, bot_ref, w_ref,
             z_ref, stats_ref) = refs
        else:
            top_ref, body_ref, bot_ref, w_ref, z_ref, stats_ref = refs
            scale_ref = shift_ref = None

        j = pl.program_id(1)
        nj = pl.num_programs(1)

        top = top_ref[...]       # (1, 1,      W, cp_in) bf16
        body = body_ref[...]     # (1, tile_h, W, cp_in) bf16
        bot = bot_ref[...]       # (1, 1,      W, cp_in) bf16

        if fuse_bn_relu:
            sc = scale_ref[...]  # (1, cp_in) f32
            sh = shift_ref[...]

            def act(t):
                y = t.astype(jnp.float32) * sc + sh
                return jnp.maximum(y, 0.0).astype(jnp.bfloat16)

            top, body, bot = act(top), act(body), act(bot)

        # Halo rows outside the image are true conv zero padding (zeroed AFTER
        # the fused activation, which is what zero-padding the activation
        # means).  These selects touch a single row each -> negligible.
        top = jnp.where(j == 0, jnp.zeros_like(top), top)
        bot = jnp.where(j == nj - 1, jnp.zeros_like(bot), bot)

        # (tile_h+2, W, cp_in) window assembled as a register value — no
        # scratch store/reload round trip.
        win = jnp.concatenate([top, body, bot], axis=1)[0]

        # dx = -1 / +1 column shifts, hoisted: built once for the whole
        # window instead of per-dy (3x fewer shifted-tile copies).
        if width > 1:
            zcol = jnp.zeros((tile_h + 2, 1, cp_in), win.dtype)
            left = jnp.concatenate([zcol, win[:, :width - 1, :]], axis=1)
            right = jnp.concatenate([win[:, 1:, :], zcol], axis=1)
        else:
            left = jnp.zeros_like(win)
            right = jnp.zeros_like(win)

        # Flatten (row, col) -> one sublane axis once; the 9 per-tap operands
        # are then aligned row-slices of these views (no im2col buffer).
        flat = tuple(v.reshape(win_rows, cp_in) for v in (left, win, right))

        w = w_ref[...]                                  # (9, cp_in, tile_co)
        acc = jnp.zeros((rows, tile_co), jnp.float32)
        for dy in range(3):
            for dx in range(3):
                xs = flat[dx][dy * width:dy * width + rows]   # (rows, cp_in)
                acc = acc + jnp.dot(xs, w[dy * 3 + dx],
                                    preferred_element_type=jnp.float32)

        # Per-tile centered BN partials: sum and sum of squared deviations
        # from the tile mean (avoids E[x^2]-E[x]^2 cancellation globally).
        s = jnp.sum(acc, axis=0, keepdims=True)               # (1, tile_co)
        d = acc - s * inv_rows
        m2 = jnp.sum(d * d, axis=0, keepdims=True)            # (1, tile_co)
        stats_ref[:, :, 0:1, :] = s.reshape(1, 1, 1, tile_co)
        stats_ref[:, :, 1:2, :] = m2.reshape(1, 1, 1, tile_co)

        z_ref[...] = acc.reshape(1, tile_h, width, tile_co).astype(z_ref.dtype)

    return kernel


def _conv_stage(x, w, in_scale, in_shift, tile_h, tile_co, vmem_limit):
    """x: (N, H, W, cp_in) bf16; w: (9, cp_in, cp_out) bf16.

    Returns (z, stats): raw conv output (bf16, NHWC) and per-tile centered BN
    partials of shape (N, H//tile_h, 2, cp_out) f32.
    """
    n, h, width, cp_in = x.shape
    cp_out = w.shape[-1]
    nht = h // tile_h
    n_co = cp_out // tile_co
    fuse = in_scale is not None

    kernel = _make_conv_kernel(tile_h, width, cp_in, tile_co, fuse)

    body_spec = pl.BlockSpec((1, tile_h, width, cp_in),
                             lambda b, j, c: (b, j, 0, 0))
    top_spec = pl.BlockSpec(
        (1, 1, width, cp_in),
        lambda b, j, c: (b, jnp.maximum(j * tile_h - 1, 0), 0, 0))
    bot_spec = pl.BlockSpec(
        (1, 1, width, cp_in),
        lambda b, j, c: (b, jnp.minimum((j + 1) * tile_h, h - 1), 0, 0))
    w_spec = pl.BlockSpec((9, cp_in, tile_co), lambda b, j, c: (0, 0, c))
    vec_spec = pl.BlockSpec((1, cp_in), lambda b, j, c: (0, 0))

    in_specs, args = [], []
    if fuse:
        in_specs += [vec_spec, vec_spec]
        args += [in_scale, in_shift]
    in_specs += [top_spec, body_spec, bot_spec, w_spec]
    args += [x, x, x, w]

    z, stats = pl.pallas_call(
        kernel,
        grid=(n, nht, n_co),  # co innermost: x blocks stay resident across it
        in_specs=in_specs,
        out_specs=(
            pl.BlockSpec((1, tile_h, width, tile_co),
                         lambda b, j, c: (b, j, 0, c)),
            pl.BlockSpec((1, 1, 2, tile_co), lambda b, j, c: (b, j, 0, c)),
        ),
        out_shape=(
            jax.ShapeDtypeStruct((n, h, width, cp_out), jnp.bfloat16),
            jax.ShapeDtypeStruct((n, nht, 2, cp_out), jnp.float32),
        ),
        compiler_params=pltpu.CompilerParams(
            dimension_semantics=("parallel", "parallel", "parallel"),
            vmem_limit_bytes=vmem_limit),
    )(*args)
    return z, stats


def _bn_relu(z, scale, shift, cout, tile_h, out_dtype, vmem_limit):
    """Final BN + ReLU: reads the bf16 conv output, writes ONLY the real cout
    channels in the caller dtype (this pass is purely HBM-bound)."""
    n, h, width, cp = z.shape
    nht = h // tile_h

    def kernel(scale_ref, shift_ref, z_ref, o_ref):
        zt = z_ref[...].astype(jnp.float32)
        y = jnp.maximum(zt * scale_ref[...] + shift_ref[...], 0.0)
        if cout != cp:
            y = y[..., :cout]
        o_ref[...] = y.astype(o_ref.dtype)

    blk_in = pl.BlockSpec((1, tile_h, width, cp), lambda b, j: (b, j, 0, 0))
    blk_out = pl.BlockSpec((1, tile_h, width, cout), lambda b, j: (b, j, 0, 0))
    vec = pl.BlockSpec((1, cp), lambda b, j: (0, 0))
    return pl.pallas_call(
        kernel,
        grid=(n, nht),
        in_specs=[vec, vec, blk_in],
        out_specs=blk_out,
        out_shape=jax.ShapeDtypeStruct((n, h, width, cout), out_dtype),
        compiler_params=pltpu.CompilerParams(
            dimension_semantics=("parallel", "parallel"),
            vmem_limit_bytes=vmem_limit),
    )(scale, shift, z)


def _bn_scale_shift(stats, gamma, beta, rows_per_tile, count):
    """Exact global batch statistics via Chan's parallel-variance combination
    of per-tile centered partial sums."""
    s_t = stats[:, :, 0, :]      # (N, nht, C) per-tile sums
    m2_t = stats[:, :, 1, :]     # (N, nht, C) per-tile centered sum of squares
    total = jnp.sum(s_t, axis=(0, 1))
    mean = total / count
    mean_t = s_t / rows_per_tile
    m2 = jnp.sum(m2_t, axis=(0, 1)) + rows_per_tile * jnp.sum(
        jnp.square(mean_t - mean), axis=(0, 1))
    var = jnp.maximum(m2 / count, 0.0)
    inv = jax.lax.rsqrt(var + _BN_EPS)
    scale = gamma * inv
    shift = beta - mean * scale
    return (scale.reshape(1, -1).astype(jnp.float32),
            shift.reshape(1, -1).astype(jnp.float32))


def downsample_forward(x_nchw, params):
    """Pallas implementation of DownSample.forward. Input/output are NCHW."""
    n, cin, h, w = x_nchw.shape
    cout = params["w1"].shape[-1]
    out_dtype = x_nchw.dtype

    cp_in = _pad_channels(cin)
    cp_out = _pad_channels(cout)
    tile_co = _pick_tile_co(cp_out)
    budget = _vmem_budget_bytes()

    # NCHW -> NHWC (channels on the lane axis), bf16 MXU operands.
    x = jnp.transpose(x_nchw, (0, 2, 3, 1))
    if cp_in != cin:
        x = jnp.pad(x, ((0, 0), (0, 0), (0, 0), (0, cp_in - cin)))
    x = x.astype(jnp.bfloat16)

    def prep_w(wk, ci, cpi):  # HWIO -> (9, cpi, cp_out), zero-padded channels
        wp = jnp.pad(wk, ((0, 0), (0, 0), (0, cpi - ci), (0, cp_out - cout)))
        return wp.reshape(9, cpi, cp_out).astype(jnp.bfloat16)

    w1 = prep_w(params["w1"], cin, cp_in)
    w2 = prep_w(params["w2"], cout, cp_out)
    g1 = jnp.pad(params["g1"], (0, cp_out - cout))
    b1 = jnp.pad(params["b1"], (0, cp_out - cout))
    g2 = jnp.pad(params["g2"], (0, cp_out - cout))
    b2 = jnp.pad(params["b2"], (0, cp_out - cout))

    count = n * h * w  # BN reduction size per channel

    # Stage 1: conv1 + per-tile BN1 partials.
    th1 = _pick_tile_h(h, n, w, cp_in, tile_co, budget)
    z1, st1 = _conv_stage(x, w1, None, None, th1, tile_co, budget)
    scale1, shift1 = _bn_scale_shift(st1, g1, b1, th1 * w, count)

    # Stage 2: (BN1+ReLU fused on the input window) conv2 + BN2 partials.
    # The bf16 intermediate must round-trip HBM once because training-mode BN
    # needs GLOBAL statistics before the next conv can consume the activation.
    th2 = _pick_tile_h(h, n, w, cp_out, tile_co, budget)
    z2, st2 = _conv_stage(z1, w2, scale1, shift1, th2, tile_co, budget)
    scale2, shift2 = _bn_scale_shift(st2, g2, b2, th2 * w, count)

    # Final BN2 + ReLU, writing only the real cout channels in caller dtype.
    y = _bn_relu(z2, scale2, shift2, cout, th2, out_dtype, budget)
    return jnp.transpose(y, (0, 3, 1, 2))  # NHWC -> NCHW


def init_params(key, in_channels, out_channels):
    k1, k2 = jax.random.split(key)
    # Conv2d weights (no bias), stored as HWIO = (3, 3, Cin, Cout).
    w1 = 0.1 * jax.random.normal(k1, (3, 3, in_channels, out_channels), jnp.float32)
    w2 = 0.1 * jax.random.normal(k2, (3, 3, out_channels, out_channels), jnp.float32)
    # BatchNorm2d default init: gamma=1, beta=0.
    g1 = jnp.ones((out_channels,), jnp.float32)
    b1 = jnp.zeros((out_channels,), jnp.float32)
    g2 = jnp.ones((out_channels,), jnp.float32)
    b2 = jnp.zeros((out_channels,), jnp.float32)
    # TODO(synk): BatchNorm running_mean/running_var momentum updates are a
    # training-time side effect and do not affect the returned forward value.
    return {"w1": w1, "g1": g1, "b1": b1, "w2": w2, "g2": g2, "b2": b2}


def _ref_forward(x_nchw, params):
    """Pure-JAX f32 reference mirroring the PyTorch module (training-mode BN)."""
    def conv(x, w):
        return jax.lax.conv_general_dilated(
            x, w, window_strides=(1, 1), padding="SAME",
            dimension_numbers=("NCHW", "HWIO", "NCHW"),
            precision=jax.lax.Precision.HIGHEST)

    def bn_relu(x, g, b):
        mean = jnp.mean(x, axis=(0, 2, 3), keepdims=True)
        var = jnp.mean(jnp.square(x - mean), axis=(0, 2, 3), keepdims=True)
        y = (x - mean) * jax.lax.rsqrt(var + _BN_EPS)
        y = y * g.reshape(1, -1, 1, 1) + b.reshape(1, -1, 1, 1)
        return jnp.maximum(y, 0.0)

    h = bn_relu(conv(x_nchw, params["w1"]), params["g1"], params["b1"])
    return bn_relu(conv(h, params["w2"]), params["g2"], params["b2"])


if __name__ == "__main__":
    key = jax.random.PRNGKey(0)
    kx, kp = jax.random.split(key)

    N, Cin, Cout, H, W = 2, 4, 8, 16, 16
    x = jax.random.normal(kx, (N, Cin, H, W), jnp.float32)
    params = init_params(kp, Cin, Cout)

    fwd = jax.jit(downsample_forward)
    out = jax.block_until_ready(fwd(x, params))
    assert out.shape == (N, Cout, H, W), out.shape

    ref = jax.block_until_ready(_ref_forward(x, params))
    err = jnp.abs(out - ref)
    # bf16 MXU operands + bf16 intermediate vs. an f32 reference -> loosened
    # tolerance; f32 accumulation + centered BN stats keep the error small.
    assert jnp.allclose(out, ref, rtol=5e-2, atol=5e-2), float(jnp.max(err))
    assert float(jnp.mean(err)) < 2e-2, float(jnp.mean(err))

    print("KERNEL_OK")
</pallas_src>

<mosaic_0001>
module attributes {stable_mosaic.version = 11 : i64} {
  func.func @kernel(%arg0: i32, %arg1: i32, %arg2: i32, %arg3: memref<1x1x16x8xbf16, #tpu.memory_space<vmem>>, %arg4: memref<1x16x16x8xbf16, #tpu.memory_space<vmem>>, %arg5: memref<1x1x16x8xbf16, #tpu.memory_space<vmem>>, %arg6: memref<9x8x8xbf16, #tpu.memory_space<vmem>>, %arg7: memref<1x16x16x8xbf16, #tpu.memory_space<vmem>>, %arg8: memref<1x1x2x8xf32, #tpu.memory_space<vmem>>) attributes {dimension_semantics = [#tpu.dimension_semantics<parallel>, #tpu.dimension_semantics<parallel>, #tpu.dimension_semantics<parallel>], iteration_bounds = array<i64: 2, 1, 1>, scalar_prefetch = 0 : i64, scratch_operands = 0 : i64, tpu.core_type = #tpu.core_type<tc>, window_params = [{transform_indices = @transform_0, window_bounds = array<i64: 1, 1, 16, 8>}, {transform_indices = @transform_1, window_bounds = array<i64: 1, 16, 16, 8>}, {transform_indices = @transform_2, window_bounds = array<i64: 1, 1, 16, 8>}, {transform_indices = @transform_3, window_bounds = array<i64: 9, 8, 8>}, {transform_indices = @transform_4, window_bounds = array<i64: 1, 16, 16, 8>}, {transform_indices = @transform_5, window_bounds = array<i64: 1, 1, 2, 8>}]} {
    %c0 = arith.constant 0 : index
    %c0_0 = arith.constant 0 : index
    %c0_1 = arith.constant 0 : index
    %c0_2 = arith.constant 0 : index
    %0 = vector.load %arg3[%c0, %c0_0, %c0_1, %c0_2] : memref<1x1x16x8xbf16, #tpu.memory_space<vmem>>, vector<1x1x16x8xbf16>
    %c0_3 = arith.constant 0 : index
    %c0_4 = arith.constant 0 : index
    %c0_5 = arith.constant 0 : index
    %c0_6 = arith.constant 0 : index
    %1 = vector.load %arg4[%c0_3, %c0_4, %c0_5, %c0_6] : memref<1x16x16x8xbf16, #tpu.memory_space<vmem>>, vector<1x16x16x8xbf16>
    %c0_7 = arith.constant 0 : index
    %c0_8 = arith.constant 0 : index
    %c0_9 = arith.constant 0 : index
    %c0_10 = arith.constant 0 : index
    %2 = vector.load %arg5[%c0_7, %c0_8, %c0_9, %c0_10] : memref<1x1x16x8xbf16, #tpu.memory_space<vmem>>, vector<1x1x16x8xbf16>
    %c0_i32 = arith.constant 0 : i32
    %3 = arith.cmpi eq, %arg1, %c0_i32 : i32
    %cst = arith.constant 0.000000e+00 : bf16
    %4 = vector.broadcast %cst : bf16 to vector<1x1x16x8xbf16>
    %5 = arith.select %3, %4, %0 : vector<1x1x16x8xbf16>
    %c0_i32_11 = arith.constant 0 : i32
    %6 = arith.cmpi eq, %arg1, %c0_i32_11 : i32
    %cst_12 = arith.constant 0.000000e+00 : bf16
    %7 = vector.broadcast %cst_12 : bf16 to vector<1x1x16x8xbf16>
    %8 = arith.select %6, %7, %2 : vector<1x1x16x8xbf16>
    %9 = tpu.concatenate %5, %1, %8 in 1 : vector<1x1x16x8xbf16>, vector<1x16x16x8xbf16>, vector<1x1x16x8xbf16> -> vector<1x18x16x8xbf16>
    %10 = vector.shape_cast %9 : vector<1x18x16x8xbf16> to vector<18x16x8xbf16>
    %cst_13 = arith.constant 0.000000e+00 : bf16
    %11 = vector.broadcast %cst_13 : bf16 to vector<18x1x8xbf16>
    %12 = vector.extract_strided_slice %10 {offsets = [0, 0, 0], sizes = [18, 15, 8], strides = [1, 1, 1]} : vector<18x16x8xbf16> to vector<18x15x8xbf16>
    %13 = tpu.concatenate %11, %12 in 1 : vector<18x1x8xbf16>, vector<18x15x8xbf16> -> vector<18x16x8xbf16>
    %14 = vector.extract_strided_slice %10 {offsets = [0, 1, 0], sizes = [18, 15, 8], strides = [1, 1, 1]} : vector<18x16x8xbf16> to vector<18x15x8xbf16>
    %15 = tpu.concatenate %14, %11 in 1 : vector<18x15x8xbf16>, vector<18x1x8xbf16> -> vector<18x16x8xbf16>
    %16 = vector.shape_cast %13 : vector<18x16x8xbf16> to vector<288x8xbf16>
    %17 = vector.shape_cast %10 : vector<18x16x8xbf16> to vector<288x8xbf16>
    %18 = vector.shape_cast %15 : vector<18x16x8xbf16> to vector<288x8xbf16>
    %c0_14 = arith.constant 0 : index
    %c0_15 = arith.constant 0 : index
    %c0_16 = arith.constant 0 : index
    %19 = vector.load %arg6[%c0_14, %c0_15, %c0_16] : memref<9x8x8xbf16, #tpu.memory_space<vmem>>, vector<9x8x8xbf16>
    %cst_17 = arith.constant 0.000000e+00 : f32
    %20 = vector.broadcast %cst_17 : f32 to vector<256x8xf32>
    %21 = vector.extract_strided_slice %16 {offsets = [0, 0], sizes = [256, 8], strides = [1, 1]} : vector<288x8xbf16> to vector<256x8xbf16>
    %22 = vector.extract_strided_slice %19 {offsets = [0, 0, 0], sizes = [1, 8, 8], strides = [1, 1, 1]} : vector<9x8x8xbf16> to vector<1x8x8xbf16>
    %23 = vector.shape_cast %22 : vector<1x8x8xbf16> to vector<8x8xbf16>
    %cst_18 = arith.constant dense<0.000000e+00> : vector<256x8xf32>
    %24 = tpu.matmul %21, %23, %cst_18 {dimension_numbers = #tpu.dot_dimension_numbers<[1], [0], [0], [1], [0, 0, 1, 1], [], []>} : vector<256x8xbf16>, vector<8x8xbf16>, vector<256x8xf32> -> vector<256x8xf32>
    %25 = arith.addf %20, %24 : vector<256x8xf32>
    %26 = vector.extract_strided_slice %17 {offsets = [0, 0], sizes = [256, 8], strides = [1, 1]} : vector<288x8xbf16> to vector<256x8xbf16>
    %27 = vector.extract_strided_slice %19 {offsets = [1, 0, 0], sizes = [1, 8, 8], strides = [1, 1, 1]} : vector<9x8x8xbf16> to vector<1x8x8xbf16>
    %28 = vector.shape_cast %27 : vector<1x8x8xbf16> to vector<8x8xbf16>
    %cst_19 = arith.constant dense<0.000000e+00> : vector<256x8xf32>
    %29 = tpu.matmul %26, %28, %cst_19 {dimension_numbers = #tpu.dot_dimension_numbers<[1], [0], [0], [1], [0, 0, 1, 1], [], []>} : vector<256x8xbf16>, vector<8x8xbf16>, vector<256x8xf32> -> vector<256x8xf32>
    %30 = arith.addf %25, %29 : vector<256x8xf32>
    %31 = vector.extract_strided_slice %18 {offsets = [0, 0], sizes = [256, 8], strides = [1, 1]} : vector<288x8xbf16> to vector<256x8xbf16>
    %32 = vector.extract_strided_slice %19 {offsets = [2, 0, 0], sizes = [1, 8, 8], strides = [1, 1, 1]} : vector<9x8x8xbf16> to vector<1x8x8xbf16>
    %33 = vector.shape_cast %32 : vector<1x8x8xbf16> to vector<8x8xbf16>
    %cst_20 = arith.constant dense<0.000000e+00> : vector<256x8xf32>
    %34 = tpu.matmul %31, %33, %cst_20 {dimension_numbers = #tpu.dot_dimension_numbers<[1], [0], [0], [1], [0, 0, 1, 1], [], []>} : vector<256x8xbf16>, vector<8x8xbf16>, vector<256x8xf32> -> vector<256x8xf32>
    %35 = arith.addf %30, %34 : vector<256x8xf32>
    %36 = vector.extract_strided_slice %16 {offsets = [16, 0], sizes = [256, 8], strides = [1, 1]} : vector<288x8xbf16> to vector<256x8xbf16>
    %37 = vector.extract_strided_slice %19 {offsets = [3, 0, 0], sizes = [1, 8, 8], strides = [1, 1, 1]} : vector<9x8x8xbf16> to vector<1x8x8xbf16>
    %38 = vector.shape_cast %37 : vector<1x8x8xbf16> to vector<8x8xbf16>
    %cst_21 = arith.constant dense<0.000000e+00> : vector<256x8xf32>
    %39 = tpu.matmul %36, %38, %cst_21 {dimension_numbers = #tpu.dot_dimension_numbers<[1], [0], [0], [1], [0, 0, 1, 1], [], []>} : vector<256x8xbf16>, vector<8x8xbf16>, vector<256x8xf32> -> vector<256x8xf32>
    %40 = arith.addf %35, %39 : vector<256x8xf32>
    %41 = vector.extract_strided_slice %17 {offsets = [16, 0], sizes = [256, 8], strides = [1, 1]} : vector<288x8xbf16> to vector<256x8xbf16>
    %42 = vector.extract_strided_slice %19 {offsets = [4, 0, 0], sizes = [1, 8, 8], strides = [1, 1, 1]} : vector<9x8x8xbf16> to vector<1x8x8xbf16>
    %43 = vector.shape_cast %42 : vector<1x8x8xbf16> to vector<8x8xbf16>
    %cst_22 = arith.constant dense<0.000000e+00> : vector<256x8xf32>
    %44 = tpu.matmul %41, %43, %cst_22 {dimension_numbers = #tpu.dot_dimension_numbers<[1], [0], [0], [1], [0, 0, 1, 1], [], []>} : vector<256x8xbf16>, vector<8x8xbf16>, vector<256x8xf32> -> vector<256x8xf32>
    %45 = arith.addf %40, %44 : vector<256x8xf32>
    %46 = vector.extract_strided_slice %18 {offsets = [16, 0], sizes = [256, 8], strides = [1, 1]} : vector<288x8xbf16> to vector<256x8xbf16>
    %47 = vector.extract_strided_slice %19 {offsets = [5, 0, 0], sizes = [1, 8, 8], strides = [1, 1, 1]} : vector<9x8x8xbf16> to vector<1x8x8xbf16>
    %48 = vector.shape_cast %47 : vector<1x8x8xbf16> to vector<8x8xbf16>
    %cst_23 = arith.constant dense<0.000000e+00> : vector<256x8xf32>
    %49 = tpu.matmul %46, %48, %cst_23 {dimension_numbers = #tpu.dot_dimension_numbers<[1], [0], [0], [1], [0, 0, 1, 1], [], []>} : vector<256x8xbf16>, vector<8x8xbf16>, vector<256x8xf32> -> vector<256x8xf32>
    %50 = arith.addf %45, %49 : vector<256x8xf32>
    %51 = vector.extract_strided_slice %16 {offsets = [32, 0], sizes = [256, 8], strides = [1, 1]} : vector<288x8xbf16> to vector<256x8xbf16>
    %52 = vector.extract_strided_slice %19 {offsets = [6, 0, 0], sizes = [1, 8, 8], strides = [1, 1, 1]} : vector<9x8x8xbf16> to vector<1x8x8xbf16>
    %53 = vector.shape_cast %52 : vector<1x8x8xbf16> to vector<8x8xbf16>
    %cst_24 = arith.constant dense<0.000000e+00> : vector<256x8xf32>
    %54 = tpu.matmul %51, %53, %cst_24 {dimension_numbers = #tpu.dot_dimension_numbers<[1], [0], [0], [1], [0, 0, 1, 1], [], []>} : vector<256x8xbf16>, vector<8x8xbf16>, vector<256x8xf32> -> vector<256x8xf32>
    %55 = arith.addf %50, %54 : vector<256x8xf32>
    %56 = vector.extract_strided_slice %17 {offsets = [32, 0], sizes = [256, 8], strides = [1, 1]} : vector<288x8xbf16> to vector<256x8xbf16>
    %57 = vector.extract_strided_slice %19 {offsets = [7, 0, 0], sizes = [1, 8, 8], strides = [1, 1, 1]} : vector<9x8x8xbf16> to vector<1x8x8xbf16>
    %58 = vector.shape_cast %57 : vector<1x8x8xbf16> to vector<8x8xbf16>
    %cst_25 = arith.constant dense<0.000000e+00> : vector<256x8xf32>
    %59 = tpu.matmul %56, %58, %cst_25 {dimension_numbers = #tpu.dot_dimension_numbers<[1], [0], [0], [1], [0, 0, 1, 1], [], []>} : vector<256x8xbf16>, vector<8x8xbf16>, vector<256x8xf32> -> vector<256x8xf32>
    %60 = arith.addf %55, %59 : vector<256x8xf32>
    %61 = vector.extract_strided_slice %18 {offsets = [32, 0], sizes = [256, 8], strides = [1, 1]} : vector<288x8xbf16> to vector<256x8xbf16>
    %62 = vector.extract_strided_slice %19 {offsets = [8, 0, 0], sizes = [1, 8, 8], strides = [1, 1, 1]} : vector<9x8x8xbf16> to vector<1x8x8xbf16>
    %63 = vector.shape_cast %62 : vector<1x8x8xbf16> to vector<8x8xbf16>
    %cst_26 = arith.constant dense<0.000000e+00> : vector<256x8xf32>
    %64 = tpu.matmul %61, %63, %cst_26 {dimension_numbers = #tpu.dot_dimension_numbers<[1], [0], [0], [1], [0, 0, 1, 1], [], []>} : vector<256x8xbf16>, vector<8x8xbf16>, vector<256x8xf32> -> vector<256x8xf32>
    %65 = arith.addf %60, %64 : vector<256x8xf32>
    %cst_27 = arith.constant dense<0.000000e+00> : vector<8xf32>
    %66 = vector.multi_reduction <add>, %65, %cst_27 [0] : vector<256x8xf32> to vector<8xf32>
    %67 = vector.shape_cast %66 : vector<8xf32> to vector<1x8xf32>
    %cst_28 = arith.constant 3.906250e-03 : f32
    %68 = vector.broadcast %cst_28 : f32 to vector<1x8xf32>
    %69 = arith.mulf %67, %68 : vector<1x8xf32>
    %70 = vector.broadcast %69 : vector<1x8xf32> to vector<256x8xf32>
    %71 = arith.subf %65, %70 : vector<256x8xf32>
    %72 = arith.mulf %71, %71 : vector<256x8xf32>
    %cst_29 = arith.constant dense<0.000000e+00> : vector<8xf32>
    %73 = vector.multi_reduction <add>, %72, %cst_29 [0] : vector<256x8xf32> to vector<8xf32>
    %74 = vector.shape_cast %73 : vector<8xf32> to vector<1x8xf32>
    %75 = vector.shape_cast %67 : vector<1x8xf32> to vector<1x1x1x8xf32>
    %c0_30 = arith.constant 0 : index
    %c0_31 = arith.constant 0 : index
    %c0_32 = arith.constant 0 : index
    %c0_33 = arith.constant 0 : index
    %76 = vector.load %arg8[%c0_30, %c0_31, %c0_32, %c0_33] : memref<1x1x2x8xf32, #tpu.memory_space<vmem>>, vector<1x1x1x8xf32>
    tpu.vector_store %arg8[%c0_30, %c0_31, %c0_32, %c0_33], %75 {strides = array<i32>} : memref<1x1x2x8xf32, #tpu.memory_space<vmem>>, vector<1x1x1x8xf32>,
    %77 = vector.shape_cast %74 : vector<1x8xf32> to vector<1x1x1x8xf32>
    %c0_34 = arith.constant 0 : index
    %c0_35 = arith.constant 0 : index
    %c1 = arith.constant 1 : index
    %c0_36 = arith.constant 0 : index
    %78 = vector.load %arg8[%c0_34, %c0_35, %c1, %c0_36] : memref<1x1x2x8xf32, #tpu.memory_space<vmem>>, vector<1x1x1x8xf32>
    tpu.vector_store %arg8[%c0_34, %c0_35, %c1, %c0_36], %77 {strides = array<i32>} : memref<1x1x2x8xf32, #tpu.memory_space<vmem>>, vector<1x1x1x8xf32>,
    %79 = vector.shape_cast %65 : vector<256x8xf32> to vector<1x16x16x8xf32>
    %80 = arith.truncf %79 : vector<1x16x16x8xf32> to vector<1x16x16x8xbf16>
    %c0_37 = arith.constant 0 : index
    %c0_38 = arith.constant 0 : index
    %c0_39 = arith.constant 0 : index
    %c0_40 = arith.constant 0 : index
    %81 = vector.load %arg7[%c0_37, %c0_38, %c0_39, %c0_40] : memref<1x16x16x8xbf16, #tpu.memory_space<vmem>>, vector<1x16x16x8xbf16>
    tpu.vector_store %arg7[%c0_37, %c0_38, %c0_39, %c0_40], %80 {strides = array<i32>} : memref<1x16x16x8xbf16, #tpu.memory_space<vmem>>, vector<1x16x16x8xbf16>,
    return
  }
  func.func @transform_0(%arg0: i32, %arg1: i32, %arg2: i32) -> (i32, i32, i32, i32) {
    %c16_i32 = arith.constant 16 : i32
    %0 = arith.muli %arg1, %c16_i32 : i32
    %c1_i32 = arith.constant 1 : i32
    %1 = arith.subi %0, %c1_i32 : i32
    %c0_i32 = arith.constant 0 : i32
    %2 = arith.maxsi %1, %c0_i32 : i32
    %c0_i32_0 = arith.constant 0 : i32
    %c0_i32_1 = arith.constant 0 : i32
    %c0_i32_2 = arith.constant 0 : i32
    return %arg0, %2, %c0_i32_0, %c0_i32_1 : i32, i32, i32, i32
  }
  func.func @transform_1(%arg0: i32, %arg1: i32, %arg2: i32) -> (i32, i32, i32, i32) {
    %c0_i32 = arith.constant 0 : i32
    %c0_i32_0 = arith.constant 0 : i32
    %c0_i32_1 = arith.constant 0 : i32
    return %arg0, %arg1, %c0_i32, %c0_i32_0 : i32, i32, i32, i32
  }
  func.func @transform_2(%arg0: i32, %arg1: i32, %arg2: i32) -> (i32, i32, i32, i32) {
    %c1_i32 = arith.constant 1 : i32
    %0 = arith.addi %arg1, %c1_i32 : i32
    %c16_i32 = arith.constant 16 : i32
    %1 = arith.muli %0, %c16_i32 : i32
    %c15_i32 = arith.constant 15 : i32
    %2 = arith.minsi %1, %c15_i32 : i32
    %c0_i32 = arith.constant 0 : i32
    %c0_i32_0 = arith.constant 0 : i32
    %c0_i32_1 = arith.constant 0 : i32
    return %arg0, %2, %c0_i32, %c0_i32_0 : i32, i32, i32, i32
  }
  func.func @transform_3(%arg0: i32, %arg1: i32, %arg2: i32) -> (i32, i32, i32) {
    %c0_i32 = arith.constant 0 : i32
    %c0_i32_0 = arith.constant 0 : i32
    %c0_i32_1 = arith.constant 0 : i32
    return %c0_i32, %c0_i32_0, %arg2 : i32, i32, i32
  }
  func.func @transform_4(%arg0: i32, %arg1: i32, %arg2: i32) -> (i32, i32, i32, i32) {
    %c0_i32 = arith.constant 0 : i32
    %c0_i32_0 = arith.constant 0 : i32
    return %arg0, %arg1, %c0_i32, %arg2 : i32, i32, i32, i32
  }
  func.func @transform_5(%arg0: i32, %arg1: i32, %arg2: i32) -> (i32, i32, i32, i32) {
    %c0_i32 = arith.constant 0 : i32
    %c0_i32_0 = arith.constant 0 : i32
    return %arg0, %arg1, %c0_i32, %arg2 : i32, i32, i32, i32
  }
}

module attributes {stable_mosaic.version = 11 : i64} {
  func.func @kernel(%arg0: i32, %arg1: i32, %arg2: memref<1x8xf32, #tpu.memory_space<vmem>>, %arg3: memref<1x8xf32, #tpu.memory_space<vmem>>, %arg4: memref<1x16x16x8xbf16, #tpu.memory_space<vmem>>, %arg5: memref<1x16x16x8xf32, #tpu.memory_space<vmem>>) attributes {dimension_semantics = [#tpu.dimension_semantics<parallel>, #tpu.dimension_semantics<parallel>], iteration_bounds = array<i64: 2, 1>, scalar_prefetch = 0 : i64, scratch_operands = 0 : i64, tpu.core_type = #tpu.core_type<tc>, window_params = [{pipeline_mode = #tpu.pipeline_mode<synchronous>, transform_indices = @transform_0, window_bounds = array<i64: 1, 8>}, {pipeline_mode = #tpu.pipeline_mode<synchronous>, transform_indices = @transform_1, window_bounds = array<i64: 1, 8>}, {transform_indices = @transform_2, window_bounds = array<i64: 1, 16, 16, 8>}, {transform_indices = @transform_3, window_bounds = array<i64: 1, 16, 16, 8>}]} {
    %c0 = arith.constant 0 : index
    %c0_0 = arith.constant 0 : index
    %c0_1 = arith.constant 0 : index
    %c0_2 = arith.constant 0 : index
    %0 = vector.load %arg4[%c0, %c0_0, %c0_1, %c0_2] : memref<1x16x16x8xbf16, #tpu.memory_space<vmem>>, vector<1x16x16x8xbf16>
    %1 = arith.extf %0 : vector<1x16x16x8xbf16> to vector<1x16x16x8xf32>
    %c0_3 = arith.constant 0 : index
    %c0_4 = arith.constant 0 : index
    %2 = vector.load %arg2[%c0_3, %c0_4] : memref<1x8xf32, #tpu.memory_space<vmem>>, vector<1x8xf32>
    %3 = vector.shape_cast %2 : vector<1x8xf32> to vector<1x1x1x8xf32>
    %4 = vector.broadcast %3 : vector<1x1x1x8xf32> to vector<1x16x16x8xf32>
    %5 = arith.mulf %1, %4 : vector<1x16x16x8xf32>
    %c0_5 = arith.constant 0 : index
    %c0_6 = arith.constant 0 : index
    %6 = vector.load %arg3[%c0_5, %c0_6] : memref<1x8xf32, #tpu.memory_space<vmem>>, vector<1x8xf32>
    %7 = vector.shape_cast %6 : vector<1x8xf32> to vector<1x1x1x8xf32>
    %8 = vector.broadcast %7 : vector<1x1x1x8xf32> to vector<1x16x16x8xf32>
    %9 = arith.addf %5, %8 : vector<1x16x16x8xf32>
    %cst = arith.constant 0.000000e+00 : f32
    %10 = vector.broadcast %cst : f32 to vector<1x16x16x8xf32>
    %11 = arith.maximumf %9, %10 : vector<1x16x16x8xf32>
    %c0_7 = arith.constant 0 : index
    %c0_8 = arith.constant 0 : index
    %c0_9 = arith.constant 0 : index
    %c0_10 = arith.constant 0 : index
    %12 = vector.load %arg5[%c0_7, %c0_8, %c0_9, %c0_10] : memref<1x16x16x8xf32, #tpu.memory_space<vmem>>, vector<1x16x16x8xf32>
    tpu.vector_store %arg5[%c0_7, %c0_8, %c0_9, %c0_10], %11 {strides = array<i32>} : memref<1x16x16x8xf32, #tpu.memory_space<vmem>>, vector<1x16x16x8xf32>,
    return
  }
  func.func @transform_0(%arg0: i32, %arg1: i32) -> (i32, i32) {
    %c0_i32 = arith.constant 0 : i32
    %c0_i32_0 = arith.constant 0 : i32
    %c0_i32_1 = arith.constant 0 : i32
    return %c0_i32, %c0_i32_0 : i32, i32
  }
  func.func @transform_1(%arg0: i32, %arg1: i32) -> (i32, i32) {
    %c0_i32 = arith.constant 0 : i32
    %c0_i32_0 = arith.constant 0 : i32
    %c0_i32_1 = arith.constant 0 : i32
    return %c0_i32, %c0_i32_0 : i32, i32
  }
  func.func @transform_2(%arg0: i32, %arg1: i32) -> (i32, i32, i32, i32) {
    %c0_i32 = arith.constant 0 : i32
    %c0_i32_0 = arith.constant 0 : i32
    %c0_i32_1 = arith.constant 0 : i32
    return %arg0, %arg1, %c0_i32, %c0_i32_0 : i32, i32, i32, i32
  }
  func.func @transform_3(%arg0: i32, %arg1: i32) -> (i32, i32, i32, i32) {
    %c0_i32 = arith.constant 0 : i32
    %c0_i32_0 = arith.constant 0 : i32
    %c0_i32_1 = arith.constant 0 : i32
    return %arg0, %arg1, %c0_i32, %c0_i32_0 : i32, i32, i32, i32
  }
}

module attributes {stable_mosaic.version = 11 : i64} {
  func.func @kernel(%arg0: i32, %arg1: i32, %arg2: i32, %arg3: memref<1x8xf32, #tpu.memory_space<vmem>>, %arg4: memref<1x8xf32, #tpu.memory_space<vmem>>, %arg5: memref<1x1x16x8xbf16, #tpu.memory_space<vmem>>, %arg6: memref<1x16x16x8xbf16, #tpu.memory_space<vmem>>, %arg7: memref<1x1x16x8xbf16, #tpu.memory_space<vmem>>, %arg8: memref<9x8x8xbf16, #tpu.memory_space<vmem>>, %arg9: memref<1x16x16x8xbf16, #tpu.memory_space<vmem>>, %arg10: memref<1x1x2x8xf32, #tpu.memory_space<vmem>>) attributes {dimension_semantics = [#tpu.dimension_semantics<parallel>, #tpu.dimension_semantics<parallel>, #tpu.dimension_semantics<parallel>], iteration_bounds = array<i64: 2, 1, 1>, scalar_prefetch = 0 : i64, scratch_operands = 0 : i64, tpu.core_type = #tpu.core_type<tc>, window_params = [{pipeline_mode = #tpu.pipeline_mode<synchronous>, transform_indices = @transform_0, window_bounds = array<i64: 1, 8>}, {pipeline_mode = #tpu.pipeline_mode<synchronous>, transform_indices = @transform_1, window_bounds = array<i64: 1, 8>}, {transform_indices = @transform_2, window_bounds = array<i64: 1, 1, 16, 8>}, {transform_indices = @transform_3, window_bounds = array<i64: 1, 16, 16, 8>}, {transform_indices = @transform_4, window_bounds = array<i64: 1, 1, 16, 8>}, {transform_indices = @transform_5, window_bounds = array<i64: 9, 8, 8>}, {transform_indices = @transform_6, window_bounds = array<i64: 1, 16, 16, 8>}, {transform_indices = @transform_7, window_bounds = array<i64: 1, 1, 2, 8>}]} {
    %c0 = arith.constant 0 : index
    %c0_0 = arith.constant 0 : index
    %c0_1 = arith.constant 0 : index
    %c0_2 = arith.constant 0 : index
    %0 = vector.load %arg5[%c0, %c0_0, %c0_1, %c0_2] : memref<1x1x16x8xbf16, #tpu.memory_space<vmem>>, vector<1x1x16x8xbf16>
    %c0_3 = arith.constant 0 : index
    %c0_4 = arith.constant 0 : index
    %c0_5 = arith.constant 0 : index
    %c0_6 = arith.constant 0 : index
    %1 = vector.load %arg6[%c0_3, %c0_4, %c0_5, %c0_6] : memref<1x16x16x8xbf16, #tpu.memory_space<vmem>>, vector<1x16x16x8xbf16>
    %c0_7 = arith.constant 0 : index
    %c0_8 = arith.constant 0 : index
    %c0_9 = arith.constant 0 : index
    %c0_10 = arith.constant 0 : index
    %2 = vector.load %arg7[%c0_7, %c0_8, %c0_9, %c0_10] : memref<1x1x16x8xbf16, #tpu.memory_space<vmem>>, vector<1x1x16x8xbf16>
    %c0_11 = arith.constant 0 : index
    %c0_12 = arith.constant 0 : index
    %3 = vector.load %arg3[%c0_11, %c0_12] : memref<1x8xf32, #tpu.memory_space<vmem>>, vector<1x8xf32>
    %c0_13 = arith.constant 0 : index
    %c0_14 = arith.constant 0 : index
    %4 = vector.load %arg4[%c0_13, %c0_14] : memref<1x8xf32, #tpu.memory_space<vmem>>, vector<1x8xf32>
    %5 = arith.extf %0 : vector<1x1x16x8xbf16> to vector<1x1x16x8xf32>
    %6 = vector.shape_cast %3 : vector<1x8xf32> to vector<1x1x1x8xf32>
    %7 = vector.broadcast %6 : vector<1x1x1x8xf32> to vector<1x1x16x8xf32>
    %8 = arith.mulf %5, %7 : vector<1x1x16x8xf32>
    %9 = vector.shape_cast %4 : vector<1x8xf32> to vector<1x1x1x8xf32>
    %10 = vector.broadcast %9 : vector<1x1x1x8xf32> to vector<1x1x16x8xf32>
    %11 = arith.addf %8, %10 : vector<1x1x16x8xf32>
    %cst = arith.constant 0.000000e+00 : f32
    %12 = vector.broadcast %cst : f32 to vector<1x1x16x8xf32>
    %13 = arith.maximumf %11, %12 : vector<1x1x16x8xf32>
    %14 = arith.truncf %13 : vector<1x1x16x8xf32> to vector<1x1x16x8xbf16>
    %15 = arith.extf %1 : vector<1x16x16x8xbf16> to vector<1x16x16x8xf32>
    %16 = vector.shape_cast %3 : vector<1x8xf32> to vector<1x1x1x8xf32>
    %17 = vector.broadcast %16 : vector<1x1x1x8xf32> to vector<1x16x16x8xf32>
    %18 = arith.mulf %15, %17 : vector<1x16x16x8xf32>
    %19 = vector.shape_cast %4 : vector<1x8xf32> to vector<1x1x1x8xf32>
    %20 = vector.broadcast %19 : vector<1x1x1x8xf32> to vector<1x16x16x8xf32>
    %21 = arith.addf %18, %20 : vector<1x16x16x8xf32>
    %cst_15 = arith.constant 0.000000e+00 : f32
    %22 = vector.broadcast %cst_15 : f32 to vector<1x16x16x8xf32>
    %23 = arith.maximumf %21, %22 : vector<1x16x16x8xf32>
    %24 = arith.truncf %23 : vector<1x16x16x8xf32> to vector<1x16x16x8xbf16>
    %25 = arith.extf %2 : vector<1x1x16x8xbf16> to vector<1x1x16x8xf32>
    %26 = vector.shape_cast %3 : vector<1x8xf32> to vector<1x1x1x8xf32>
    %27 = vector.broadcast %26 : vector<1x1x1x8xf32> to vector<1x1x16x8xf32>
    %28 = arith.mulf %25, %27 : vector<1x1x16x8xf32>
    %29 = vector.shape_cast %4 : vector<1x8xf32> to vector<1x1x1x8xf32>
    %30 = vector.broadcast %29 : vector<1x1x1x8xf32> to vector<1x1x16x8xf32>
    %31 = arith.addf %28, %30 : vector<1x1x16x8xf32>
    %cst_16 = arith.constant 0.000000e+00 : f32
    %32 = vector.broadcast %cst_16 : f32 to vector<1x1x16x8xf32>
    %33 = arith.maximumf %31, %32 : vector<1x1x16x8xf32>
    %34 = arith.truncf %33 : vector<1x1x16x8xf32> to vector<1x1x16x8xbf16>
    %c0_i32 = arith.constant 0 : i32
    %35 = arith.cmpi eq, %arg1, %c0_i32 : i32
    %cst_17 = arith.constant 0.000000e+00 : bf16
    %36 = vector.broadcast %cst_17 : bf16 to vector<1x1x16x8xbf16>
    %37 = arith.select %35, %36, %14 : vector<1x1x16x8xbf16>
    %c0_i32_18 = arith.constant 0 : i32
    %38 = arith.cmpi eq, %arg1, %c0_i32_18 : i32
    %cst_19 = arith.constant 0.000000e+00 : bf16
    %39 = vector.broadcast %cst_19 : bf16 to vector<1x1x16x8xbf16>
    %40 = arith.select %38, %39, %34 : vector<1x1x16x8xbf16>
    %41 = tpu.concatenate %37, %24, %40 in 1 : vector<1x1x16x8xbf16>, vector<1x16x16x8xbf16>, vector<1x1x16x8xbf16> -> vector<1x18x16x8xbf16>
    %42 = vector.shape_cast %41 : vector<1x18x16x8xbf16> to vector<18x16x8xbf16>
    %cst_20 = arith.constant 0.000000e+00 : bf16
    %43 = vector.broadcast %cst_20 : bf16 to vector<18x1x8xbf16>
    %44 = vector.extract_strided_slice %42 {offsets = [0, 0, 0], sizes = [18, 15, 8], strides = [1, 1, 1]} : vector<18x16x8xbf16> to vector<18x15x8xbf16>
    %45 = tpu.concatenate %43, %44 in 1 : vector<18x1x8xbf16>, vector<18x15x8xbf16> -> vector<18x16x8xbf16>
    %46 = vector.extract_strided_slice %42 {offsets = [0, 1, 0], sizes = [18, 15, 8], strides = [1, 1, 1]} : vector<18x16x8xbf16> to vector<18x15x8xbf16>
    %47 = tpu.concatenate %46, %43 in 1 : vector<18x15x8xbf16>, vector<18x1x8xbf16> -> vector<18x16x8xbf16>
    %48 = vector.shape_cast %45 : vector<18x16x8xbf16> to vector<288x8xbf16>
    %49 = vector.shape_cast %42 : vector<18x16x8xbf16> to vector<288x8xbf16>
    %50 = vector.shape_cast %47 : vector<18x16x8xbf16> to vector<288x8xbf16>
    %c0_21 = arith.constant 0 : index
    %c0_22 = arith.constant 0 : index
    %c0_23 = arith.constant 0 : index
    %51 = vector.load %arg8[%c0_21, %c0_22, %c0_23] : memref<9x8x8xbf16, #tpu.memory_space<vmem>>, vector<9x8x8xbf16>
    %cst_24 = arith.constant 0.000000e+00 : f32
    %52 = vector.broadcast %cst_24 : f32 to vector<256x8xf32>
    %53 = vector.extract_strided_slice %48 {offsets = [0, 0], sizes = [256, 8], strides = [1, 1]} : vector<288x8xbf16> to vector<256x8xbf16>
    %54 = vector.extract_strided_slice %51 {offsets = [0, 0, 0], sizes = [1, 8, 8], strides = [1, 1, 1]} : vector<9x8x8xbf16> to vector<1x8x8xbf16>
    %55 = vector.shape_cast %54 : vector<1x8x8xbf16> to vector<8x8xbf16>
    %cst_25 = arith.constant dense<0.000000e+00> : vector<256x8xf32>
    %56 = tpu.matmul %53, %55, %cst_25 {dimension_numbers = #tpu.dot_dimension_numbers<[1], [0], [0], [1], [0, 0, 1, 1], [], []>} : vector<256x8xbf16>, vector<8x8xbf16>, vector<256x8xf32> -> vector<256x8xf32>
    %57 = arith.addf %52, %56 : vector<256x8xf32>
    %58 = vector.extract_strided_slice %49 {offsets = [0, 0], sizes = [256, 8], strides = [1, 1]} : vector<288x8xbf16> to vector<256x8xbf16>
    %59 = vector.extract_strided_slice %51 {offsets = [1, 0, 0], sizes = [1, 8, 8], strides = [1, 1, 1]} : vector<9x8x8xbf16> to vector<1x8x8xbf16>
    %60 = vector.shape_cast %59 : vector<1x8x8xbf16> to vector<8x8xbf16>
    %cst_26 = arith.constant dense<0.000000e+00> : vector<256x8xf32>
    %61 = tpu.matmul %58, %60, %cst_26 {dimension_numbers = #tpu.dot_dimension_numbers<[1], [0], [0], [1], [0, 0, 1, 1], [], []>} : vector<256x8xbf16>, vector<8x8xbf16>, vector<256x8xf32> -> vector<256x8xf32>
    %62 = arith.addf %57, %61 : vector<256x8xf32>
    %63 = vector.extract_strided_slice %50 {offsets = [0, 0], sizes = [256, 8], strides = [1, 1]} : vector<288x8xbf16> to vector<256x8xbf16>
    %64 = vector.extract_strided_slice %51 {offsets = [2, 0, 0], sizes = [1, 8, 8], strides = [1, 1, 1]} : vector<9x8x8xbf16> to vector<1x8x8xbf16>
    %65 = vector.shape_cast %64 : vector<1x8x8xbf16> to vector<8x8xbf16>
    %cst_27 = arith.constant dense<0.000000e+00> : vector<256x8xf32>
    %66 = tpu.matmul %63, %65, %cst_27 {dimension_numbers = #tpu.dot_dimension_numbers<[1], [0], [0], [1], [0, 0, 1, 1], [], []>} : vector<256x8xbf16>, vector<8x8xbf16>, vector<256x8xf32> -> vector<256x8xf32>
    %67 = arith.addf %62, %66 : vector<256x8xf32>
    %68 = vector.extract_strided_slice %48 {offsets = [16, 0], sizes = [256, 8], strides = [1, 1]} : vector<288x8xbf16> to vector<256x8xbf16>
    %69 = vector.extract_strided_slice %51 {offsets = [3, 0, 0], sizes = [1, 8, 8], strides = [1, 1, 1]} : vector<9x8x8xbf16> to vector<1x8x8xbf16>
    %70 = vector.shape_cast %69 : vector<1x8x8xbf16> to vector<8x8xbf16>
    %cst_28 = arith.constant dense<0.000000e+00> : vector<256x8xf32>
    %71 = tpu.matmul %68, %70, %cst_28 {dimension_numbers = #tpu.dot_dimension_numbers<[1], [0], [0], [1], [0, 0, 1, 1], [], []>} : vector<256x8xbf16>, vector<8x8xbf16>, vector<256x8xf32> -> vector<256x8xf32>
    %72 = arith.addf %67, %71 : vector<256x8xf32>
    %73 = vector.extract_strided_slice %49 {offsets = [16, 0], sizes = [256, 8], strides = [1, 1]} : vector<288x8xbf16> to vector<256x8xbf16>
    %74 = vector.extract_strided_slice %51 {offsets = [4, 0, 0], sizes = [1, 8, 8], strides = [1, 1, 1]} : vector<9x8x8xbf16> to vector<1x8x8xbf16>
    %75 = vector.shape_cast %74 : vector<1x8x8xbf16> to vector<8x8xbf16>
    %cst_29 = arith.constant dense<0.000000e+00> : vector<256x8xf32>
    %76 = tpu.matmul %73, %75, %cst_29 {dimension_numbers = #tpu.dot_dimension_numbers<[1], [0], [0], [1], [0, 0, 1, 1], [], []>} : vector<256x8xbf16>, vector<8x8xbf16>, vector<256x8xf32> -> vector<256x8xf32>
    %77 = arith.addf %72, %76 : vector<256x8xf32>
    %78 = vector.extract_strided_slice %50 {offsets = [16, 0], sizes = [256, 8], strides = [1, 1]} : vector<288x8xbf16> to vector<256x8xbf16>
    %79 = vector.extract_strided_slice %51 {offsets = [5, 0, 0], sizes = [1, 8, 8], strides = [1, 1, 1]} : vector<9x8x8xbf16> to vector<1x8x8xbf16>
    %80 = vector.shape_cast %79 : vector<1x8x8xbf16> to vector<8x8xbf16>
    %cst_30 = arith.constant dense<0.000000e+00> : vector<256x8xf32>
    %81 = tpu.matmul %78, %80, %cst_30 {dimension_numbers = #tpu.dot_dimension_numbers<[1], [0], [0], [1], [0, 0, 1, 1], [], []>} : vector<256x8xbf16>, vector<8x8xbf16>, vector<256x8xf32> -> vector<256x8xf32>
    %82 = arith.addf %77, %81 : vector<256x8xf32>
    %83 = vector.extract_strided_slice %48 {offsets = [32, 0], sizes = [256, 8], strides = [1, 1]} : vector<288x8xbf16> to vector<256x8xbf16>
    %84 = vector.extract_strided_slice %51 {offsets = [6, 0, 0], sizes = [1, 8, 8], strides = [1, 1, 1]} : vector<9x8x8xbf16> to vector<1x8x8xbf16>
    %85 = vector.shape_cast %84 : vector<1x8x8xbf16> to vector<8x8xbf16>
    %cst_31 = arith.constant dense<0.000000e+00> : vector<256x8xf32>
    %86 = tpu.matmul %83, %85, %cst_31 {dimension_numbers = #tpu.dot_dimension_numbers<[1], [0], [0], [1], [0, 0, 1, 1], [], []>} : vector<256x8xbf16>, vector<8x8xbf16>, vector<256x8xf32> -> vector<256x8xf32>
    %87 = arith.addf %82, %86 : vector<256x8xf32>
    %88 = vector.extract_strided_slice %49 {offsets = [32, 0], sizes = [256, 8], strides = [1, 1]} : vector<288x8xbf16> to vector<256x8xbf16>
    %89 = vector.extract_strided_slice %51 {offsets = [7, 0, 0], sizes = [1, 8, 8], strides = [1, 1, 1]} : vector<9x8x8xbf16> to vector<1x8x8xbf16>
    %90 = vector.shape_cast %89 : vector<1x8x8xbf16> to vector<8x8xbf16>
    %cst_32 = arith.constant dense<0.000000e+00> : vector<256x8xf32>
    %91 = tpu.matmul %88, %90, %cst_32 {dimension_numbers = #tpu.dot_dimension_numbers<[1], [0], [0], [1], [0, 0, 1, 1], [], []>} : vector<256x8xbf16>, vector<8x8xbf16>, vector<256x8xf32> -> vector<256x8xf32>
    %92 = arith.addf %87, %91 : vector<256x8xf32>
    %93 = vector.extract_strided_slice %50 {offsets = [32, 0], sizes = [256, 8], strides = [1, 1]} : vector<288x8xbf16> to vector<256x8xbf16>
    %94 = vector.extract_strided_slice %51 {offsets = [8, 0, 0], sizes = [1, 8, 8], strides = [1, 1, 1]} : vector<9x8x8xbf16> to vector<1x8x8xbf16>
    %95 = vector.shape_cast %94 : vector<1x8x8xbf16> to vector<8x8xbf16>
    %cst_33 = arith.constant dense<0.000000e+00> : vector<256x8xf32>
    %96 = tpu.matmul %93, %95, %cst_33 {dimension_numbers = #tpu.dot_dimension_numbers<[1], [0], [0], [1], [0, 0, 1, 1], [], []>} : vector<256x8xbf16>, vector<8x8xbf16>, vector<256x8xf32> -> vector<256x8xf32>
    %97 = arith.addf %92, %96 : vector<256x8xf32>
    %cst_34 = arith.constant dense<0.000000e+00> : vector<8xf32>
    %98 = vector.multi_reduction <add>, %97, %cst_34 [0] : vector<256x8xf32> to vector<8xf32>
    %99 = vector.shape_cast %98 : vector<8xf32> to vector<1x8xf32>
    %cst_35 = arith.constant 3.906250e-03 : f32
    %100 = vector.broadcast %cst_35 : f32 to vector<1x8xf32>
    %101 = arith.mulf %99, %100 : vector<1x8xf32>
    %102 = vector.broadcast %101 : vector<1x8xf32> to vector<256x8xf32>
    %103 = arith.subf %97, %102 : vector<256x8xf32>
    %104 = arith.mulf %103, %103 : vector<256x8xf32>
    %cst_36 = arith.constant dense<0.000000e+00> : vector<8xf32>
    %105 = vector.multi_reduction <add>, %104, %cst_36 [0] : vector<256x8xf32> to vector<8xf32>
    %106 = vector.shape_cast %105 : vector<8xf32> to vector<1x8xf32>
    %107 = vector.shape_cast %99 : vector<1x8xf32> to vector<1x1x1x8xf32>
    %c0_37 = arith.constant 0 : index
    %c0_38 = arith.constant 0 : index
    %c0_39 = arith.constant 0 : index
    %c0_40 = arith.constant 0 : index
    %108 = vector.load %arg10[%c0_37, %c0_38, %c0_39, %c0_40] : memref<1x1x2x8xf32, #tpu.memory_space<vmem>>, vector<1x1x1x8xf32>
    tpu.vector_store %arg10[%c0_37, %c0_38, %c0_39, %c0_40], %107 {strides = array<i32>} : memref<1x1x2x8xf32, #tpu.memory_space<vmem>>, vector<1x1x1x8xf32>,
    %109 = vector.shape_cast %106 : vector<1x8xf32> to vector<1x1x1x8xf32>
    %c0_41 = arith.constant 0 : index
    %c0_42 = arith.constant 0 : index
    %c1 = arith.constant 1 : index
    %c0_43 = arith.constant 0 : index
    %110 = vector.load %arg10[%c0_41, %c0_42, %c1, %c0_43] : memref<1x1x2x8xf32, #tpu.memory_space<vmem>>, vector<1x1x1x8xf32>
    tpu.vector_store %arg10[%c0_41, %c0_42, %c1, %c0_43], %109 {strides = array<i32>} : memref<1x1x2x8xf32, #tpu.memory_space<vmem>>, vector<1x1x1x8xf32>,
    %111 = vector.shape_cast %97 : vector<256x8xf32> to vector<1x16x16x8xf32>
    %112 = arith.truncf %111 : vector<1x16x16x8xf32> to vector<1x16x16x8xbf16>
    %c0_44 = arith.constant 0 : index
    %c0_45 = arith.constant 0 : index
    %c0_46 = arith.constant 0 : index
    %c0_47 = arith.constant 0 : index
    %113 = vector.load %arg9[%c0_44, %c0_45, %c0_46, %c0_47] : memref<1x16x16x8xbf16, #tpu.memory_space<vmem>>, vector<1x16x16x8xbf16>
    tpu.vector_store %arg9[%c0_44, %c0_45, %c0_46, %c0_47], %112 {strides = array<i32>} : memref<1x16x16x8xbf16, #tpu.memory_space<vmem>>, vector<1x16x16x8xbf16>,
    return
  }
  func.func @transform_0(%arg0: i32, %arg1: i32, %arg2: i32) -> (i32, i32) {
    %c0_i32 = arith.constant 0 : i32
    %c0_i32_0 = arith.constant 0 : i32
    %c0_i32_1 = arith.constant 0 : i32
    return %c0_i32, %c0_i32_0 : i32, i32
  }
  func.func @transform_1(%arg0: i32, %arg1: i32, %arg2: i32) -> (i32, i32) {
    %c0_i32 = arith.constant 0 : i32
    %c0_i32_0 = arith.constant 0 : i32
    %c0_i32_1 = arith.constant 0 : i32
    return %c0_i32, %c0_i32_0 : i32, i32
  }
  func.func @transform_2(%arg0: i32, %arg1: i32, %arg2: i32) -> (i32, i32, i32, i32) {
    %c16_i32 = arith.constant 16 : i32
    %0 = arith.muli %arg1, %c16_i32 : i32
    %c1_i32 = arith.constant 1 : i32
    %1 = arith.subi %0, %c1_i32 : i32
    %c0_i32 = arith.constant 0 : i32
    %2 = arith.maxsi %1, %c0_i32 : i32
    %c0_i32_0 = arith.constant 0 : i32
    %c0_i32_1 = arith.constant 0 : i32
    %c0_i32_2 = arith.constant 0 : i32
    return %arg0, %2, %c0_i32_0, %c0_i32_1 : i32, i32, i32, i32
  }
  func.func @transform_3(%arg0: i32, %arg1: i32, %arg2: i32) -> (i32, i32, i32, i32) {
    %c0_i32 = arith.constant 0 : i32
    %c0_i32_0 = arith.constant 0 : i32
    %c0_i32_1 = arith.constant 0 : i32
    return %arg0, %arg1, %c0_i32, %c0_i32_0 : i32, i32, i32, i32
  }
  func.func @transform_4(%arg0: i32, %arg1: i32, %arg2: i32) -> (i32, i32, i32, i32) {
    %c1_i32 = arith.constant 1 : i32
    %0 = arith.addi %arg1, %c1_i32 : i32
    %c16_i32 = arith.constant 16 : i32
    %1 = arith.muli %0, %c16_i32 : i32
    %c15_i32 = arith.constant 15 : i32
    %2 = arith.minsi %1, %c15_i32 : i32
    %c0_i32 = arith.constant 0 : i32
    %c0_i32_0 = arith.constant 0 : i32
    %c0_i32_1 = arith.constant 0 : i32
    return %arg0, %2, %c0_i32, %c0_i32_0 : i32, i32, i32, i32
  }
  func.func @transform_5(%arg0: i32, %arg1: i32, %arg2: i32) -> (i32, i32, i32) {
    %c0_i32 = arith.constant 0 : i32
    %c0_i32_0 = arith.constant 0 : i32
    %c0_i32_1 = arith.constant 0 : i32
    return %c0_i32, %c0_i32_0, %arg2 : i32, i32, i32
  }
  func.func @transform_6(%arg0: i32, %arg1: i32, %arg2: i32) -> (i32, i32, i32, i32) {
    %c0_i32 = arith.constant 0 : i32
    %c0_i32_0 = arith.constant 0 : i32
    return %arg0, %arg1, %c0_i32, %arg2 : i32, i32, i32, i32
  }
  func.func @transform_7(%arg0: i32, %arg1: i32, %arg2: i32) -> (i32, i32, i32, i32) {
    %c0_i32 = arith.constant 0 : i32
    %c0_i32_0 = arith.constant 0 : i32
    return %arg0, %arg1, %c0_i32, %arg2 : i32, i32, i32, i32
  }
}

</mosaic_0001>

<llo_original>
// kernel: downsample_forward.5
$region0: #{downsample_forward.5}
  #allocation0 [shape = 'u32[]', space=smem, size = 0x4, offset = 0x4, fixed_abs, tag = 'smem constant byte address 0x4 - core index']
  #allocation1 [shape = 'u32[144,128]{1,0:T(1,128)}', space=vmem, size = 0x12000, scoped, tag = 'internal scratch']
  %s0 = inlined_call_operand.vmem [shape: f32[1,8], index: 0, kind: input, shape index: {}]
  %s1 = inlined_call_operand.vmem [shape: f32[1,8], index: 1, kind: input, shape index: {}]
  %s2 = inlined_call_operand.vmem [shape: bf16[2,16,16,8], index: 2, kind: input, shape index: {}]
  %s3 = inlined_call_operand.vmem [shape: f32[2,16,16,8], index: 3, kind: output, shape index: {}]
  %s4 = sld [smem:[#allocation0]]
  $region45: #{downsample_forward.5} parent=0
    _
  %s6 = ssub.s32 1, %s4
  %s7 = scalar_select 0, %s6, %s4
  loop: start=0, step=1, limit=4
  $region2: #{downsample_forward.5} parent=0 // loop_pre_header
    _
  $region3: #{downsample_forward.5} parent=0 // loop_header
    %s9 = sphi 0, %s13
    %p10 = scmp.ge.s32.totalorder %s9, 4
    %s16 = sphi 0, %s28
    %s17 = sphi 0, %s24
    %s18 = sphi 0, %s16
    %s19 = sphi 0, %s17
    %s20 = sphi 0, %s18
    %s21 = sphi 0, %s19
    %s29 = sphi 0, %s29
    %s31 = sphi 0, %s29
    %s32 = sphi 0, %s31
    %s46 = sphi 0, %s32
    %s50 = sphi 0, %s50
    %s52 = sphi 0, %s50
    %s53 = sphi 0, %s52
    %s67 = sphi 0, %s53
    %s75 = sphi 0, %s77
    %s78 = sphi 0, %s75
    %s79 = sphi 0, %s78
    %s95 = sphi 0, %s79
    %s103 = sphi 0, %s105
    %s106 = sphi 0, %s103
    %s107 = sphi 0, %s106
    %s123 = sphi 0, %s107
  $region4: #{downsample_forward.5} parent=0 // loop_header_branch
    %12 = sbr.rel (%p10) target = $region8
  $region5: #{downsample_forward.5} parent=0 // loop_body
    %s14 = ssub.s32 %s9, 1
    %s15 = ssub.s32 %s9, 2
    %s22 = sadd.s32 1, %s17
    %p23 = scmp.ge.s32.totalorder %s22, 1
    %s24 = scalar_select %p23, 0, %s22
    %s25 = sadd.s32 1, %s16
    %s26 = scalar_select %p23, %s25, %s16
    %p27 = scmp.ge.s32.totalorder %s26, 2
    %s28 = scalar_select %p27, 0, %s26
    %s30 = sadd.s32 %s29, 1
    %p33 = scmp.eq.s32.totalorder %s9, 1
    %p34 = scmp.ne.s32.totalorder %s29, %s31
    %p35 = scmp.eq.s32.totalorder %s9, 0
    %p36 = por %p34, %p35
    %p37 = scmp.ne.s32.totalorder %s29, %s31
    %p38 = scmp.eq.s32.totalorder %s14, 1
    %p39 = por %p37, %p38
    %p40 = scmp.ne.s32.totalorder %s31, %s32
    %p41 = scmp.eq.s32.totalorder %s14, 0
    %p42 = por %p40, %p41
    %p43 = scmp.ne.s32.totalorder %s31, %s32
    %p44 = scmp.eq.s32.totalorder %s15, 1
    %p45 = por %p43, %p44
    %p47 = scmp.ne.s32.totalorder %s32, %s46
    %p48 = scmp.eq.s32.totalorder %s15, 0
    %p49 = por %p47, %p48
    %s51 = sadd.s32 %s50, 1
    %p54 = scmp.eq.s32.totalorder %s9, 1
    %p55 = scmp.ne.s32.totalorder %s50, %s52
    %p56 = scmp.eq.s32.totalorder %s9, 0
    %p57 = por %p55, %p56
    %p58 = scmp.ne.s32.totalorder %s50, %s52
    %p59 = scmp.eq.s32.totalorder %s14, 1
    %p60 = por %p58, %p59
    %p61 = scmp.ne.s32.totalorder %s52, %s53
    %p62 = scmp.eq.s32.totalorder %s14, 0
    %p63 = por %p61, %p62
    %p64 = scmp.ne.s32.totalorder %s52, %s53
    %p65 = scmp.eq.s32.totalorder %s15, 1
    %p66 = por %p64, %p65
    %p68 = scmp.ne.s32.totalorder %s53, %s67
    %p69 = scmp.eq.s32.totalorder %s15, 0
    %p70 = por %p68, %p69
    %s71 = ssub.s32 %s16, %s28
    %s72 = ssub.s32 %s17, %s24
    %s73 = sor.u32 %s71, %s72
    %p74 = scmp.eq.s32.totalorder %s73, 0
    %s76 = sadd.s32 %s75, 1
    %s77 = scalar_select %p74, %s75, %s76
    %p80 = pneg %p74
    %p81 = scmp.eq.s32.totalorder %s9, 1
    %p82 = por %p80, %p81
    %p83 = scmp.ne.s32.totalorder %s75, %s78
    %p84 = scmp.eq.s32.totalorder %s9, 0
    %p85 = por %p83, %p84
    %p86 = scmp.ne.s32.totalorder %s75, %s78
    %p87 = scmp.eq.s32.totalorder %s14, 1
    %p88 = por %p86, %p87
    %p89 = scmp.ne.s32.totalorder %s78, %s79
    %p90 = scmp.eq.s32.totalorder %s14, 0
    %p91 = por %p89, %p90
    %p92 = scmp.ne.s32.totalorder %s78, %s79
    %p93 = scmp.eq.s32.totalorder %s15, 1
    %p94 = por %p92, %p93
    %p96 = scmp.ne.s32.totalorder %s79, %s95
    %p97 = scmp.eq.s32.totalorder %s15, 0
    %p98 = por %p96, %p97
    %s99 = ssub.s32 %s16, %s28
    %s100 = ssub.s32 %s17, %s24
    %s101 = sor.u32 %s99, %s100
    %p102 = scmp.eq.s32.totalorder %s101, 0
    %s104 = sadd.s32 %s103, 1
    %s105 = scalar_select %p102, %s103, %s104
    %p108 = pneg %p102
    %p109 = scmp.eq.s32.totalorder %s9, 1
    %p110 = por %p108, %p109
    %p111 = scmp.ne.s32.totalorder %s103, %s106
    %p112 = scmp.eq.s32.totalorder %s9, 0
    %p113 = por %p111, %p112
    %p114 = scmp.ne.s32.totalorder %s103, %s106
    %p115 = scmp.eq.s32.totalorder %s14, 1
    %p116 = por %p114, %p115
    %p117 = scmp.ne.s32.totalorder %s106, %s107
    %p118 = scmp.eq.s32.totalorder %s14, 0
    %p119 = por %p117, %p118
    %p120 = scmp.ne.s32.totalorder %s106, %s107
    %p121 = scmp.eq.s32.totalorder %s15, 1
    %p122 = por %p120, %p121
    %p124 = scmp.ne.s32.totalorder %s107, %s123
    %p125 = scmp.eq.s32.totalorder %s15, 0
    %p126 = por %p124, %p125
    %p127 = scmp.le.s32.totalorder 1, %s9
    %p128 = scmp.lt.s32.totalorder %s9, 3
    %p129 = pnand %p127, %p128
    %p130 = pneg %p129
    // Predicated region
    $region9: #{downsample_forward.5} parent=5 // pred_check
      _
    $region10: #{downsample_forward.5} parent=5 // pred_check_branch
      %132 = sbr.rel (%p129) target = $region12
    $region11: #{downsample_forward.5} parent=5 // pred_region
      %s133 = ssub.s32 %s9, 1
      // Predicated region
      $region13: #{downsample_forward.5} parent=11 // pred_check
        %p134 = pneg %p42
      $region14: #{downsample_forward.5} parent=11 // pred_check_branch
        %136 = sbr.rel (%p134) target = $region16
      $region15: #{downsample_forward.5} parent=11 // pred_region
        _
      $region16: #{downsample_forward.5} parent=11 // pred_fallthru
        _
      // Predicated region
      $region17: #{downsample_forward.5} parent=11 // pred_check
        %p137 = pneg %p63
      $region18: #{downsample_forward.5} parent=11 // pred_check_branch
        %139 = sbr.rel (%p137) target = $region20
      $region19: #{downsample_forward.5} parent=11 // pred_region
        _
      $region20: #{downsample_forward.5} parent=11 // pred_fallthru
        _
    $region12: #{downsample_forward.5} parent=5 // pred_fallthru
      _
    %p140 = scmp.lt.s32.totalorder %s9, 2
    // Predicated region
    $region21: #{downsample_forward.5} parent=5 // pred_check
      %p141 = pneg %p140
    $region22: #{downsample_forward.5} parent=5 // pred_check_branch
      %143 = sbr.rel (%p141) target = $region24
    $region23: #{downsample_forward.5} parent=5 // pred_region
      // Predicated region
      $region25: #{downsample_forward.5} parent=23 // pred_check
        %p144 = pneg %p85
      $region26: #{downsample_forward.5} parent=23 // pred_check_branch
        %146 = sbr.rel (%p144) target = $region28
      $region27: #{downsample_forward.5} parent=23 // pred_region
        %s147 = smul.u32 16, %s17
        %p148 = scmp.lt.s32.totalorder %s16, 1
        %s149 = scalar_select %p148, %s16, 1
        %p150 = scmp.lt.s32.totalorder %s147, 15
        %s151 = scalar_select %p150, %s147, 15
        %s152 = smul.addr %s151, 2
        %s153 = smul.addr %s149, 32
        %s154 = sadd.s32 %s152, %s153
        %s155 = smul.addr %s154, 4
        %s156 = scalar_lea.vmem %s2, %s155
        %s157 = smul.u32 16, %s17
      $region28: #{downsample_forward.5} parent=23 // pred_fallthru
        _
    $region24: #{downsample_forward.5} parent=5 // pred_fallthru
      _
    %p158 = scmp.le.s32.totalorder 1, %s9
    %p159 = scmp.lt.s32.totalorder %s9, 3
    %p160 = pnand %p158, %p159
    %p161 = pneg %p160
    // Predicated region
    $region29: #{downsample_forward.5} parent=5 // pred_check
      _
    $region30: #{downsample_forward.5} parent=5 // pred_check_branch
      %163 = sbr.rel (%p160) target = $region32
    $region31: #{downsample_forward.5} parent=5 // pred_region
      %s164 = ssub.s32 %s9, 1
      %p165 = pneg %p42
      %p166 = pneg %p39
      %p167 = pneg %p63
      %p168 = pneg %p60
      %s169 = smul.u32 16, %s19
      %p170 = scmp.lt.s32.totalorder %s18, 1
      %s171 = scalar_select %p170, %s18, 1
      %p172 = scmp.lt.s32.totalorder %s169, 15
      %s173 = scalar_select %p172, %s169, 15
      %s174 = smul.addr %s173, 2
      %s175 = smul.addr %s171, 32
      %s176 = sadd.s32 %s174, %s175
      %s177 = smul.addr %s176, 4
      %s178 = scalar_lea.vmem %s2, %s177
      %p179 = pneg %p91
      %p180 = pneg %p88
      %p181 = pneg %p119
      %p182 = pneg %p116
      %s183 = smul.u32 16, %s19
      %p184 = scmp.lt.s32.totalorder %s18, 1
      %s185 = scalar_select %p184, %s18, 1
      %p186 = scmp.lt.s32.totalorder %s183, 15
      %s187 = scalar_select %p186, %s183, 15
      %s188 = smul.addr %s187, 2
      %s189 = smul.addr %s185, 32
      %s190 = sadd.s32 %s188, %s189
      %s191 = smul.addr %s190, 8
      %s192 = scalar_lea.vmem %s3, %s191
      %s193 = smul.u32 16, %s19
      %p194 = scmp.lt.s32.totalorder %s18, 1
      %s195 = scalar_select %p194, %s18, 1
      %p196 = scmp.lt.s32.totalorder %s193, 15
      %s197 = scalar_select %p196, %s193, 15
      %s198 = smul.addr %s197, 2
      %s199 = smul.addr %s195, 32
      %s200 = sadd.s32 %s198, %s199
      %s201 = smul.addr %s200, 4
      %s202 = scalar_lea.vmem %s2, %s201
      %s203 = smul.u32 16, %s19
      %s204 = smul.u32 16, %s19
      %p205 = scmp.lt.s32.totalorder %s18, 1
      %s206 = scalar_select %p205, %s18, 1
      %p207 = scmp.lt.s32.totalorder %s204, 15
      %s208 = scalar_select %p207, %s204, 15
      %s209 = smul.addr %s208, 2
      %s210 = smul.addr %s206, 32
      %s211 = sadd.s32 %s209, %s210
      %s212 = smul.addr %s211, 8
      %s213 = scalar_lea.vmem %s3, %s212
      %s214 = smul.u32 16, %s19
      %v215 = vld [vmem:[%s202] sm:$0xf]
      %v216 = vld [vmem:[%s202 + $0x4] sm:$0xf]
      %v217 = vld [vmem:[%s202 + $0x8] sm:$0xf]
      %v218 = vld [vmem:[%s202 + $0xc] sm:$0xf]
      %v219 = vld [vmem:[%s202 + $0x10] sm:$0xf]
      %v220 = vld [vmem:[%s202 + $0x14] sm:$0xf]
      %v221 = vld [vmem:[%s202 + $0x18] sm:$0xf]
      %v222 = vld [vmem:[%s202 + $0x1c] sm:$0xf]
      %v223 = vld [vmem:[%s202 + $0x20] sm:$0xf]
      %v224 = vld [vmem:[%s202 + $0x24] sm:$0xf]
      %v225 = vld [vmem:[%s202 + $0x28] sm:$0xf]
      %v226 = vld [vmem:[%s202 + $0x2c] sm:$0xf]
      %v227 = vld [vmem:[%s202 + $0x30] sm:$0xf]
      %v228 = vld [vmem:[%s202 + $0x34] sm:$0xf]
      %v229 = vld [vmem:[%s202 + $0x38] sm:$0xf]
      %v230 = vld [vmem:[%s202 + $0x3c] sm:$0xf]
      %v231 = vld [vmem:[%s202 + $0x40] sm:$0xf]
      %v232 = vld [vmem:[%s202 + $0x44] sm:$0xf]
      %v233 = vld [vmem:[%s202 + $0x48] sm:$0xf]
      %v234 = vld [vmem:[%s202 + $0x4c] sm:$0xf]
      %v235 = vld [vmem:[%s202 + $0x50] sm:$0xf]
      %v236 = vld [vmem:[%s202 + $0x54] sm:$0xf]
      %v237 = vld [vmem:[%s202 + $0x58] sm:$0xf]
      %v238 = vld [vmem:[%s202 + $0x5c] sm:$0xf]
      %v239 = vld [vmem:[%s202 + $0x60] sm:$0xf]
      %v240 = vld [vmem:[%s202 + $0x64] sm:$0xf]
      %v241 = vld [vmem:[%s202 + $0x68] sm:$0xf]
      %v242 = vld [vmem:[%s202 + $0x6c] sm:$0xf]
      %v243 = vld [vmem:[%s202 + $0x70] sm:$0xf]
      %v244 = vld [vmem:[%s202 + $0x74] sm:$0xf]
      %v245 = vld [vmem:[%s202 + $0x78] sm:$0xf]
      %v246 = vld [vmem:[%s202 + $0x7c] sm:$0xf]
      %v247 = vunpack.c.l.bf16 %v215
      %v248 = vunpack.c.l.bf16 %v216
      %v249 = vunpack.c.l.bf16 %v217
      %v250 = vunpack.c.l.bf16 %v218
      %v251 = vunpack.c.l.bf16 %v219
      %v252 = vunpack.c.l.bf16 %v220
      %v253 = vunpack.c.l.bf16 %v221
      %v254 = vunpack.c.l.bf16 %v222
      %v255 = vunpack.c.l.bf16 %v223
      %v256 = vunpack.c.l.bf16 %v224
      %v257 = vunpack.c.l.bf16 %v225
      %v258 = vunpack.c.l.bf16 %v226
      %v259 = vunpack.c.l.bf16 %v227
      %v260 = vunpack.c.l.bf16 %v228
      %v261 = vunpack.c.l.bf16 %v229
      %v262 = vunpack.c.l.bf16 %v230
      %v263 = vunpack.c.l.bf16 %v231
      %v264 = vunpack.c.l.bf16 %v232
      %v265 = vunpack.c.l.bf16 %v233
      %v266 = vunpack.c.l.bf16 %v234
      %v267 = vunpack.c.l.bf16 %v235
      %v268 = vunpack.c.l.bf16 %v236
      %v269 = vunpack.c.l.bf16 %v237
      %v270 = vunpack.c.l.bf16 %v238
      %v271 = vunpack.c.l.bf16 %v239
      %v272 = vunpack.c.l.bf16 %v240
      %v273 = vunpack.c.l.bf16 %v241
      %v274 = vunpack.c.l.bf16 %v242
      %v275 = vunpack.c.l.bf16 %v243
      %v276 = vunpack.c.l.bf16 %v244
      %v277 = vunpack.c.l.bf16 %v245
      %v278 = vunpack.c.l.bf16 %v246
      %v279 = vld [vmem:[%s0] sm:$0x1]
      %v281 = vlaneseq
      %v282 = vshrl.u32 %v281, 7
      %v283 = vsub.s32 0, %v282
      %v284 = vrot.slane %v279, %v283
      %v286 = vmul.f32 %v247, %v284
      %v287 = vmul.f32 %v248, %v284
      %v288 = vmul.f32 %v249, %v284
      %v289 = vmul.f32 %v250, %v284
      %v290 = vmul.f32 %v251, %v284
      %v291 = vmul.f32 %v252, %v284
      %v292 = vmul.f32 %v253, %v284
      %v293 = vmul.f32 %v254, %v284
      %v294 = vmul.f32 %v255, %v284
      %v295 = vmul.f32 %v256, %v284
      %v296 = vmul.f32 %v257, %v284
      %v297 = vmul.f32 %v258, %v284
      %v298 = vmul.f32 %v259, %v284
      %v299 = vmul.f32 %v260, %v284
      %v300 = vmul.f32 %v261, %v284
      %v301 = vmul.f32 %v262, %v284
      %v302 = vmul.f32 %v263, %v284
      %v303 = vmul.f32 %v264, %v284
      %v304 = vmul.f32 %v265, %v284
      %v305 = vmul.f32 %v266, %v284
      %v306 = vmul.f32 %v267, %v284
      %v307 = vmul.f32 %v268, %v284
      %v308 = vmul.f32 %v269, %v284
      %v309 = vmul.f32 %v270, %v284
      %v310 = vmul.f32 %v271, %v284
      %v311 = vmul.f32 %v272, %v284
      %v312 = vmul.f32 %v273, %v284
      %v313 = vmul.f32 %v274, %v284
      %v314 = vmul.f32 %v275, %v284
      %v315 = vmul.f32 %v276, %v284
      %v316 = vmul.f32 %v277, %v284
      %v317 = vmul.f32 %v278, %v284
      %v318 = vld [vmem:[%s1] sm:$0x1]
      %v320 = vlaneseq
      %v321 = vshrl.u32 %v320, 7
      %v322 = vsub.s32 0, %v321
      %v323 = vrot.slane %v318, %v322
      %v325 = vadd.f32 %v286, %v323
      %v326 = vadd.f32 %v287, %v323
      %v327 = vadd.f32 %v288, %v323
      %v328 = vadd.f32 %v289, %v323
      %v329 = vadd.f32 %v290, %v323
      %v330 = vadd.f32 %v291, %v323
      %v331 = vadd.f32 %v292, %v323
      %v332 = vadd.f32 %v293, %v323
      %v333 = vadd.f32 %v294, %v323
      %v334 = vadd.f32 %v295, %v323
      %v335 = vadd.f32 %v296, %v323
      %v336 = vadd.f32 %v297, %v323
      %v337 = vadd.f32 %v298, %v323
      %v338 = vadd.f32 %v299, %v323
      %v339 = vadd.f32 %v300, %v323
      %v340 = vadd.f32 %v301, %v323
      %v341 = vadd.f32 %v302, %v323
      %v342 = vadd.f32 %v303, %v323
      %v343 = vadd.f32 %v304, %v323
      %v344 = vadd.f32 %v305, %v323
      %v345 = vadd.f32 %v306, %v323
      %v346 = vadd.f32 %v307, %v323
      %v347 = vadd.f32 %v308, %v323
      %v348 = vadd.f32 %v309, %v323
      %v349 = vadd.f32 %v310, %v323
      %v350 = vadd.f32 %v311, %v323
      %v351 = vadd.f32 %v312, %v323
      %v352 = vadd.f32 %v313, %v323
      %v353 = vadd.f32 %v314, %v323
      %v354 = vadd.f32 %v315, %v323
      %v355 = vadd.f32 %v316, %v323
      %v356 = vadd.f32 %v317, %v323
      %v357 = vmax.f32 %v325, 0.0
      %v358 = vmax.f32 %v326, 0.0
      %v359 = vmax.f32 %v327, 0.0
      %v360 = vmax.f32 %v328, 0.0
      %v361 = vmax.f32 %v329, 0.0
      %v362 = vmax.f32 %v330, 0.0
      %v363 = vmax.f32 %v331, 0.0
      %v364 = vmax.f32 %v332, 0.0
      %v365 = vmax.f32 %v333, 0.0
      %v366 = vmax.f32 %v334, 0.0
      %v367 = vmax.f32 %v335, 0.0
      %v368 = vmax.f32 %v336, 0.0
      %v369 = vmax.f32 %v337, 0.0
      %v370 = vmax.f32 %v338, 0.0
      %v371 = vmax.f32 %v339, 0.0
      %v372 = vmax.f32 %v340, 0.0
      %v373 = vmax.f32 %v341, 0.0
      %v374 = vmax.f32 %v342, 0.0
      %v375 = vmax.f32 %v343, 0.0
      %v376 = vmax.f32 %v344, 0.0
      %v377 = vmax.f32 %v345, 0.0
      %v378 = vmax.f32 %v346, 0.0
      %v379 = vmax.f32 %v347, 0.0
      %v380 = vmax.f32 %v348, 0.0
      %v381 = vmax.f32 %v349, 0.0
      %v382 = vmax.f32 %v350, 0.0
      %v383 = vmax.f32 %v351, 0.0
      %v384 = vmax.f32 %v352, 0.0
      %v385 = vmax.f32 %v353, 0.0
      %v386 = vmax.f32 %v354, 0.0
      %v387 = vmax.f32 %v355, 0.0
      %v388 = vmax.f32 %v356, 0.0
      %vm389 = vcmask 64512
      %390 = vst.msk [vmem:[%s213] sm:$0xff] %vm389, %v357
      %391 = vst.msk [vmem:[%s213 + $0x8] sm:$0xff] %vm389, %v358
      %392 = vst.msk [vmem:[%s213 + $0x10] sm:$0xff] %vm389, %v359
      %393 = vst.msk [vmem:[%s213 + $0x18] sm:$0xff] %vm389, %v360
      %394 = vst.msk [vmem:[%s213 + $0x20] sm:$0xff] %vm389, %v361
      %395 = vst.msk [vmem:[%s213 + $0x28] sm:$0xff] %vm389, %v362
      %396 = vst.msk [vmem:[%s213 + $0x30] sm:$0xff] %vm389, %v363
      %397 = vst.msk [vmem:[%s213 + $0x38] sm:$0xff] %vm389, %v364
      %398 = vst.msk [vmem:[%s213 + $0x40] sm:$0xff] %vm389, %v365
      %399 = vst.msk [vmem:[%s213 + $0x48] sm:$0xff] %vm389, %v366
      %400 = vst.msk [vmem:[%s213 + $0x50] sm:$0xff] %vm389, %v367
      %401 = vst.msk [vmem:[%s213 + $0x58] sm:$0xff] %vm389, %v368
      %402 = vst.msk [vmem:[%s213 + $0x60] sm:$0xff] %vm389, %v369
      %403 = vst.msk [vmem:[%s213 + $0x68] sm:$0xff] %vm389, %v370
      %404 = vst.msk [vmem:[%s213 + $0x70] sm:$0xff] %vm389, %v371
      %405 = vst.msk [vmem:[%s213 + $0x78] sm:$0xff] %vm389, %v372
      %406 = vst.msk [vmem:[%s213 + $0x80] sm:$0xff] %vm389, %v373
      %407 = vst.msk [vmem:[%s213 + $0x88] sm:$0xff] %vm389, %v374
      %408 = vst.msk [vmem:[%s213 + $0x90] sm:$0xff] %vm389, %v375
      %409 = vst.msk [vmem:[%s213 + $0x98] sm:$0xff] %vm389, %v376
      %410 = vst.msk [vmem:[%s213 + $0xa0] sm:$0xff] %vm389, %v377
      %411 = vst.msk [vmem:[%s213 + $0xa8] sm:$0xff] %vm389, %v378
      %412 = vst.msk [vmem:[%s213 + $0xb0] sm:$0xff] %vm389, %v379
      %413 = vst.msk [vmem:[%s213 + $0xb8] sm:$0xff] %vm389, %v380
      %414 = vst.msk [vmem:[%s213 + $0xc0] sm:$0xff] %vm389, %v381
      %415 = vst.msk [vmem:[%s213 + $0xc8] sm:$0xff] %vm389, %v382
      %416 = vst.msk [vmem:[%s213 + $0xd0] sm:$0xff] %vm389, %v383
      %417 = vst.msk [vmem:[%s213 + $0xd8] sm:$0xff] %vm389, %v384
      %418 = vst.msk [vmem:[%s213 + $0xe0] sm:$0xff] %vm389, %v385
      %419 = vst.msk [vmem:[%s213 + $0xe8] sm:$0xff] %vm389, %v386
      %420 = vst.msk [vmem:[%s213 + $0xf0] sm:$0xff] %vm389, %v387
      %421 = vst.msk [vmem:[%s213 + $0xf8] sm:$0xff] %vm389, %v388
      %s422 = smul.u32 16, %s19
      %p423 = scmp.lt.s32.totalorder %s18, 1
      %s424 = scalar_select %p423, %s18, 1
      %p425 = scmp.lt.s32.totalorder %s422, 15
      %s426 = scalar_select %p425, %s422, 15
      %s427 = smul.addr %s426, 2
      %s428 = smul.addr %s424, 32
      %s429 = sadd.s32 %s427, %s428
      %s430 = smul.addr %s429, 8
      %s431 = scalar_lea.vmem %s3, %s430
      // Predicated region
      $region33: #{downsample_forward.5} parent=31 // pred_check
        %p432 = pneg %p116
      $region34: #{downsample_forward.5} parent=31 // pred_check_branch
        %434 = sbr.rel (%p432) target = $region36
      $region35: #{downsample_forward.5} parent=31 // pred_region
        %s435 = smul.u32 16, %s19
      $region36: #{downsample_forward.5} parent=31 // pred_fallthru
        _
    $region32: #{downsample_forward.5} parent=5 // pred_fallthru
      _
    %p436 = scmp.le.s32.totalorder 2, %s9
    // Predicated region
    $region37: #{downsample_forward.5} parent=5 // pred_check
      %p437 = pneg %p436
    $region38: #{downsample_forward.5} parent=5 // pred_check_branch
      %439 = sbr.rel (%p437) target = $region40
    $region39: #{downsample_forward.5} parent=5 // pred_region
      %s440 = ssub.s32 %s9, 2
      // Predicated region
      $region41: #{downsample_forward.5} parent=39 // pred_check
        %p441 = pneg %p122
      $region42: #{downsample_forward.5} parent=39 // pred_check_branch
        %443 = sbr.rel (%p441) target = $region44
      $region43: #{downsample_forward.5} parent=39 // pred_region
        %s444 = smul.u32 16, %s21
        %p445 = scmp.lt.s32.totalorder %s20, 1
        %s446 = scalar_select %p445, %s20, 1
        %p447 = scmp.lt.s32.totalorder %s444, 15
        %s448 = scalar_select %p447, %s444, 15
        %s449 = smul.addr %s448, 2
        %s450 = smul.addr %s446, 32
        %s451 = sadd.s32 %s449, %s450
        %s452 = smul.addr %s451, 8
        %s453 = scalar_lea.vmem %s3, %s452
      $region44: #{downsample_forward.5} parent=39 // pred_fallthru
        _
    $region40: #{downsample_forward.5} parent=5 // pred_fallthru
      _
  $region6: #{downsample_forward.5} parent=0 // loop_footer
    %s13 = sadd.s32 1, %s9
  $region7: #{downsample_forward.5} parent=0 // loop_footer_branch
    %8 = sbr.rel target = $region3
  $region8: #{downsample_forward.5} parent=0 // loop_exit
    _

// kernel: downsample_forward.3
$region0: #{downsample_forward.3}
  #allocation0 [shape = 'u32[]', space=smem, size = 0x4, offset = 0x4, fixed_abs, tag = 'smem constant byte address 0x4 - core index']
  #allocation1 [shape = 'u32[144,128]{1,0:T(1,128)}', space=vmem, size = 0x12000, scoped, tag = 'internal scratch']
  %s0 = inlined_call_operand.vmem [shape: bf16[2,16,16,8], index: 0, kind: input, shape index: {}, may-alias: {0,1,2}]
  %s1 = inlined_call_operand.vmem [shape: bf16[2,16,16,8], index: 1, kind: input, shape index: {}, may-alias: {0,1,2}]
  %s2 = inlined_call_operand.vmem [shape: bf16[2,16,16,8], index: 2, kind: input, shape index: {}, may-alias: {0,1,2}]
  %s3 = inlined_call_operand.vmem [shape: bf16[9,8,8], index: 3, kind: input, shape index: {}]
  %s4 = inlined_call_operand.vmem [shape: bf16[2,16,16,8], index: 4, kind: output, shape index: {0}]
  %s5 = inlined_call_operand.vmem [shape: f32[2,1,2,8], index: 5, kind: output, shape index: {1}]
  %6 = xla_tuple %s4, %s5
  %s7 = sld [smem:[#allocation0]]
  $region57: #{downsample_forward.3} parent=0
    _
  %s9 = ssub.s32 1, %s7
  %s10 = scalar_select 0, %s9, %s7
  loop: start=0, step=1, limit=4
  $region2: #{downsample_forward.3} parent=0 // loop_pre_header
    _
  $region3: #{downsample_forward.3} parent=0 // loop_header
    %s12 = sphi 0, %s16
    %p13 = scmp.ge.s32.totalorder %s12, 4
    %s19 = sphi 0, %s38
    %s20 = sphi 0, %s34
    %s21 = sphi 0, %s30
    %s22 = sphi 0, %s19
    %s23 = sphi 0, %s20
    %s24 = sphi 0, %s21
    %s25 = sphi 0, %s22
    %s26 = sphi 0, %s23
    %s27 = sphi 0, %s24
    %s51 = sphi 0, %s53
    %s54 = sphi 0, %s51
    %s55 = sphi 0, %s54
    %s71 = sphi 0, %s55
    %s79 = sphi 0, %s81
    %s82 = sphi 0, %s79
    %s83 = sphi 0, %s82
    %s99 = sphi 0, %s83
    %s115 = sphi 0, %s117
    %s118 = sphi 0, %s115
    %s119 = sphi 0, %s118
    %s135 = sphi 0, %s119
    %s141 = sphi 0, %s143
    %s144 = sphi 0, %s141
    %s145 = sphi 0, %s144
    %s161 = sphi 0, %s145
    %s171 = sphi 0, %s173
    %s174 = sphi 0, %s171
    %s175 = sphi 0, %s174
    %s191 = sphi 0, %s175
    %s201 = sphi 0, %s203
    %s204 = sphi 0, %s201
    %s205 = sphi 0, %s204
    %s221 = sphi 0, %s205
  $region4: #{downsample_forward.3} parent=0 // loop_header_branch
    %15 = sbr.rel (%p13) target = $region8
  $region5: #{downsample_forward.3} parent=0 // loop_body
    %s17 = ssub.s32 %s12, 1
    %s18 = ssub.s32 %s12, 2
    %s28 = sadd.s32 1, %s21
    %p29 = scmp.ge.s32.totalorder %s28, 1
    %s30 = scalar_select %p29, 0, %s28
    %s31 = sadd.s32 1, %s20
    %s32 = scalar_select %p29, %s31, %s20
    %p33 = scmp.ge.s32.totalorder %s32, 1
    %s34 = scalar_select %p33, 0, %s32
    %s35 = sadd.s32 1, %s19
    %s36 = scalar_select %p33, %s35, %s19
    %p37 = scmp.ge.s32.totalorder %s36, 2
    %s38 = scalar_select %p37, 0, %s36
    %s39 = smul.u32 %s20, 16
    %s40 = ssub.s32 %s39, 1
    %p41 = scmp.gt.s32.totalorder %s40, 0
    %s42 = scalar_select %p41, %s40, 0
    %s43 = smul.u32 %s34, 16
    %s44 = ssub.s32 %s43, 1
    %p45 = scmp.gt.s32.totalorder %s44, 0
    %s46 = scalar_select %p45, %s44, 0
    %s47 = ssub.s32 %s19, %s38
    %s48 = ssub.s32 %s42, %s46
    %s49 = sor.u32 %s47, %s48
    %p50 = scmp.eq.s32.totalorder %s49, 0
    %s52 = sadd.s32 %s51, 1
    %s53 = scalar_select %p50, %s51, %s52
    %p56 = pneg %p50
    %p57 = scmp.eq.s32.totalorder %s12, 1
    %p58 = por %p56, %p57
    %p59 = scmp.ne.s32.totalorder %s51, %s54
    %p60 = scmp.eq.s32.totalorder %s12, 0
    %p61 = por %p59, %p60
    %p62 = scmp.ne.s32.totalorder %s51, %s54
    %p63 = scmp.eq.s32.totalorder %s17, 1
    %p64 = por %p62, %p63
    %p65 = scmp.ne.s32.totalorder %s54, %s55
    %p66 = scmp.eq.s32.totalorder %s17, 0
    %p67 = por %p65, %p66
    %p68 = scmp.ne.s32.totalorder %s54, %s55
    %p69 = scmp.eq.s32.totalorder %s18, 1
    %p70 = por %p68, %p69
    %p72 = scmp.ne.s32.totalorder %s55, %s71
    %p73 = scmp.eq.s32.totalorder %s18, 0
    %p74 = por %p72, %p73
    %s75 = ssub.s32 %s19, %s38
    %s76 = ssub.s32 %s20, %s34
    %s77 = sor.u32 %s75, %s76
    %p78 = scmp.eq.s32.totalorder %s77, 0
    %s80 = sadd.s32 %s79, 1
    %s81 = scalar_select %p78, %s79, %s80
    %p84 = pneg %p78
    %p85 = scmp.eq.s32.totalorder %s12, 1
    %p86 = por %p84, %p85
    %p87 = scmp.ne.s32.totalorder %s79, %s82
    %p88 = scmp.eq.s32.totalorder %s12, 0
    %p89 = por %p87, %p88
    %p90 = scmp.ne.s32.totalorder %s79, %s82
    %p91 = scmp.eq.s32.totalorder %s17, 1
    %p92 = por %p90, %p91
    %p93 = scmp.ne.s32.totalorder %s82, %s83
    %p94 = scmp.eq.s32.totalorder %s17, 0
    %p95 = por %p93, %p94
    %p96 = scmp.ne.s32.totalorder %s82, %s83
    %p97 = scmp.eq.s32.totalorder %s18, 1
    %p98 = por %p96, %p97
    %p100 = scmp.ne.s32.totalorder %s83, %s99
    %p101 = scmp.eq.s32.totalorder %s18, 0
    %p102 = por %p100, %p101
    %s103 = sadd.s32 %s20, 1
    %s104 = smul.u32 %s103, 16
    %p105 = scmp.lt.s32.totalorder %s104, 15
    %s106 = scalar_select %p105, %s104, 15
    %s107 = sadd.s32 %s34, 1
    %s108 = smul.u32 %s107, 16
    %p109 = scmp.lt.s32.totalorder %s108, 15
    %s110 = scalar_select %p109, %s108, 15
    %s111 = ssub.s32 %s19, %s38
    %s112 = ssub.s32 %s106, %s110
    %s113 = sor.u32 %s111, %s112
    %p114 = scmp.eq.s32.totalorder %s113, 0
    %s116 = sadd.s32 %s115, 1
    %s117 = scalar_select %p114, %s115, %s116
    %p120 = pneg %p114
    %p121 = scmp.eq.s32.totalorder %s12, 1
    %p122 = por %p120, %p121
    %p123 = scmp.ne.s32.totalorder %s115, %s118
    %p124 = scmp.eq.s32.totalorder %s12, 0
    %p125 = por %p123, %p124
    %p126 = scmp.ne.s32.totalorder %s115, %s118
    %p127 = scmp.eq.s32.totalorder %s17, 1
    %p128 = por %p126, %p127
    %p129 = scmp.ne.s32.totalorder %s118, %s119
    %p130 = scmp.eq.s32.totalorder %s17, 0
    %p131 = por %p129, %p130
    %p132 = scmp.ne.s32.totalorder %s118, %s119
    %p133 = scmp.eq.s32.totalorder %s18, 1
    %p134 = por %p132, %p133
    %p136 = scmp.ne.s32.totalorder %s119, %s135
    %p137 = scmp.eq.s32.totalorder %s18, 0
    %p138 = por %p136, %p137
    %s139 = ssub.s32 %s21, %s30
    %p140 = scmp.eq.s32.totalorder %s139, 0
    %s142 = sadd.s32 %s141, 1
    %s143 = scalar_select %p140, %s141, %s142
    %p146 = pneg %p140
    %p147 = scmp.eq.s32.totalorder %s12, 1
    %p148 = por %p146, %p147
    %p149 = scmp.ne.s32.totalorder %s141, %s144
    %p150 = scmp.eq.s32.totalorder %s12, 0
    %p151 = por %p149, %p150
    %p152 = scmp.ne.s32.totalorder %s141, %s144
    %p153 = scmp.eq.s32.totalorder %s17, 1
    %p154 = por %p152, %p153
    %p155 = scmp.ne.s32.totalorder %s144, %s145
    %p156 = scmp.eq.s32.totalorder %s17, 0
    %p157 = por %p155, %p156
    %p158 = scmp.ne.s32.totalorder %s144, %s145
    %p159 = scmp.eq.s32.totalorder %s18, 1
    %p160 = por %p158, %p159
    %p162 = scmp.ne.s32.totalorder %s145, %s161
    %p163 = scmp.eq.s32.totalorder %s18, 0
    %p164 = por %p162, %p163
    %s165 = ssub.s32 %s19, %s38
    %s166 = ssub.s32 %s20, %s34
    %s167 = sor.u32 %s165, %s166
    %s168 = ssub.s32 %s21, %s30
    %s169 = sor.u32 %s167, %s168
    %p170 = scmp.eq.s32.totalorder %s169, 0
    %s172 = sadd.s32 %s171, 1
    %s173 = scalar_select %p170, %s171, %s172
    %p176 = pneg %p170
    %p177 = scmp.eq.s32.totalorder %s12, 1
    %p178 = por %p176, %p177
    %p179 = scmp.ne.s32.totalorder %s171, %s174
    %p180 = scmp.eq.s32.totalorder %s12, 0
    %p181 = por %p179, %p180
    %p182 = scmp.ne.s32.totalorder %s171, %s174
    %p183 = scmp.eq.s32.totalorder %s17, 1
    %p184 = por %p182, %p183
    %p185 = scmp.ne.s32.totalorder %s174, %s175
    %p186 = scmp.eq.s32.totalorder %s17, 0
    %p187 = por %p185, %p186
    %p188 = scmp.ne.s32.totalorder %s174, %s175
    %p189 = scmp.eq.s32.totalorder %s18, 1
    %p190 = por %p188, %p189
    %p192 = scmp.ne.s32.totalorder %s175, %s191
    %p193 = scmp.eq.s32.totalorder %s18, 0
    %p194 = por %p192, %p193
    %s195 = ssub.s32 %s19, %s38
    %s196 = ssub.s32 %s20, %s34
    %s197 = sor.u32 %s195, %s196
    %s198 = ssub.s32 %s21, %s30
    %s199 = sor.u32 %s197, %s198
    %p200 = scmp.eq.s32.totalorder %s199, 0
    %s202 = sadd.s32 %s201, 1
    %s203 = scalar_select %p200, %s201, %s202
    %p206 = pneg %p200
    %p207 = scmp.eq.s32.totalorder %s12, 1
    %p208 = por %p206, %p207
    %p209 = scmp.ne.s32.totalorder %s201, %s204
    %p210 = scmp.eq.s32.totalorder %s12, 0
    %p211 = por %p209, %p210
    %p212 = scmp.ne.s32.totalorder %s201, %s204
    %p213 = scmp.eq.s32.totalorder %s17, 1
    %p214 = por %p212, %p213
    %p215 = scmp.ne.s32.totalorder %s204, %s205
    %p216 = scmp.eq.s32.totalorder %s17, 0
    %p217 = por %p215, %p216
    %p218 = scmp.ne.s32.totalorder %s204, %s205
    %p219 = scmp.eq.s32.totalorder %s18, 1
    %p220 = por %p218, %p219
    %p222 = scmp.ne.s32.totalorder %s205, %s221
    %p223 = scmp.eq.s32.totalorder %s18, 0
    %p224 = por %p222, %p223
    %p225 = scmp.le.s32.totalorder 1, %s12
    %p226 = scmp.lt.s32.totalorder %s12, 3
    %p227 = pnand %p225, %p226
    %p228 = pneg %p227
    // Predicated region
    $region9: #{downsample_forward.3} parent=5 // pred_check
      _
    $region10: #{downsample_forward.3} parent=5 // pred_check_branch
      %230 = sbr.rel (%p227) target = $region12
    $region11: #{downsample_forward.3} parent=5 // pred_region
      %s231 = ssub.s32 %s12, 1
      // Predicated region
      $region13: #{downsample_forward.3} parent=11 // pred_check
        %p232 = pneg %p157
      $region14: #{downsample_forward.3} parent=11 // pred_check_branch
        %234 = sbr.rel (%p232) target = $region16
      $region15: #{downsample_forward.3} parent=11 // pred_region
        %p235 = scmp.lt.s32.totalorder %s24, 0
        %s236 = scalar_select %p235, %s24, 0
        %s237 = smul.addr %s236, 4
        %s238 = scalar_lea.vmem %s3, %s237
      $region16: #{downsample_forward.3} parent=11 // pred_fallthru
        _
    $region12: #{downsample_forward.3} parent=5 // pred_fallthru
      _
    %p239 = scmp.lt.s32.totalorder %s12, 2
    // Predicated region
    $region17: #{downsample_forward.3} parent=5 // pred_check
      %p240 = pneg %p239
    $region18: #{downsample_forward.3} parent=5 // pred_check_branch
      %242 = sbr.rel (%p240) target = $region20
    $region19: #{downsample_forward.3} parent=5 // pred_region
      // Predicated region
      $region21: #{downsample_forward.3} parent=19 // pred_check
        %p243 = pneg %p61
      $region22: #{downsample_forward.3} parent=19 // pred_check_branch
        %245 = sbr.rel (%p243) target = $region24
      $region23: #{downsample_forward.3} parent=19 // pred_region
        %s246 = smul.u32 %s20, 16
        %s247 = ssub.s32 %s246, 1
        %p248 = scmp.gt.s32.totalorder %s247, 0
        %s249 = scalar_select %p248, %s247, 0
        %p250 = scmp.lt.s32.totalorder %s19, 1
        %s251 = scalar_select %p250, %s19, 1
        %p252 = scmp.lt.s32.totalorder %s249, 15
        %s253 = scalar_select %p252, %s249, 15
        %s254 = smul.addr %s253, 2
        %s255 = smul.addr %s251, 32
        %s256 = sadd.s32 %s254, %s255
        %s257 = smul.addr %s256, 4
        %s258 = scalar_lea.vmem %s0, %s257
        %s259 = smul.u32 %s20, 16
        %s260 = ssub.s32 %s259, 1
        %p261 = scmp.gt.s32.totalorder %s260, 0
        %s262 = scalar_select %p261, %s260, 0
      $region24: #{downsample_forward.3} parent=19 // pred_fallthru
        _
      // Predicated region
      $region25: #{downsample_forward.3} parent=19 // pred_check
        %p263 = pneg %p89
      $region26: #{downsample_forward.3} parent=19 // pred_check_branch
        %265 = sbr.rel (%p263) target = $region28
      $region27: #{downsample_forward.3} parent=19 // pred_region
        %s266 = smul.u32 16, %s20
        %p267 = scmp.lt.s32.totalorder %s19, 1
        %s268 = scalar_select %p267, %s19, 1
        %p269 = scmp.lt.s32.totalorder %s266, 15
        %s270 = scalar_select %p269, %s266, 15
        %s271 = smul.addr %s270, 2
        %s272 = smul.addr %s268, 32
        %s273 = sadd.s32 %s271, %s272
        %s274 = smul.addr %s273, 4
        %s275 = scalar_lea.vmem %s1, %s274
        %s276 = smul.u32 16, %s20
      $region28: #{downsample_forward.3} parent=19 // pred_fallthru
        _
      // Predicated region
      $region29: #{downsample_forward.3} parent=19 // pred_check
        %p277 = pneg %p125
      $region30: #{downsample_forward.3} parent=19 // pred_check_branch
        %279 = sbr.rel (%p277) target = $region32
      $region31: #{downsample_forward.3} parent=19 // pred_region
        %s280 = sadd.s32 %s20, 1
        %s281 = smul.u32 %s280, 16
        %p282 = scmp.lt.s32.totalorder %s281, 15
        %s283 = scalar_select %p282, %s281, 15
        %p284 = scmp.lt.s32.totalorder %s19, 1
        %s285 = scalar_select %p284, %s19, 1
        %p286 = scmp.lt.s32.totalorder %s283, 15
        %s287 = scalar_select %p286, %s283, 15
        %s288 = smul.addr %s287, 2
        %s289 = smul.addr %s285, 32
        %s290 = sadd.s32 %s288, %s289
        %s291 = smul.addr %s290, 4
        %s292 = scalar_lea.vmem %s2, %s291
        %s293 = sadd.s32 %s20, 1
        %s294 = smul.u32 %s293, 16
        %p295 = scmp.lt.s32.totalorder %s294, 15
        %s296 = scalar_select %p295, %s294, 15
      $region32: #{downsample_forward.3} parent=19 // pred_fallthru
        _
    $region20: #{downsample_forward.3} parent=5 // pred_fallthru
      _
    %p297 = scmp.le.s32.totalorder 1, %s12
    %p298 = scmp.lt.s32.totalorder %s12, 3
    %p299 = pnand %p297, %p298
    %p300 = pneg %p299
    // Predicated region
    $region33: #{downsample_forward.3} parent=5 // pred_check
      _
    $region34: #{downsample_forward.3} parent=5 // pred_check_branch
      %302 = sbr.rel (%p299) target = $region36
    $region35: #{downsample_forward.3} parent=5 // pred_region
      %s303 = ssub.s32 %s12, 1
      %s304 = smul.u32 %s23, 16
      %s305 = ssub.s32 %s304, 1
      %p306 = scmp.gt.s32.totalorder %s305, 0
      %s307 = scalar_select %p306, %s305, 0
      %p308 = scmp.lt.s32.totalorder %s22, 1
      %s309 = scalar_select %p308, %s22, 1
      %p310 = scmp.lt.s32.totalorder %s307, 15
      %s311 = scalar_select %p310, %s307, 15
      %s312 = smul.addr %s311, 2
      %s313 = smul.addr %s309, 32
      %s314 = sadd.s32 %s312, %s313
      %s315 = smul.addr %s314, 4
      %s316 = scalar_lea.vmem %s0, %s315
      %p317 = pneg %p67
      %p318 = pneg %p64
      %s319 = smul.u32 16, %s23
      %p320 = scmp.lt.s32.totalorder %s22, 1
      %s321 = scalar_select %p320, %s22, 1
      %p322 = scmp.lt.s32.totalorder %s319, 15
      %s323 = scalar_select %p322, %s319, 15
      %s324 = smul.addr %s323, 2
      %s325 = smul.addr %s321, 32
      %s326 = sadd.s32 %s324, %s325
      %s327 = smul.addr %s326, 4
      %s328 = scalar_lea.vmem %s1, %s327
      %p329 = pneg %p95
      %p330 = pneg %p92
      %s331 = sadd.s32 %s23, 1
      %s332 = smul.u32 %s331, 16
      %p333 = scmp.lt.s32.totalorder %s332, 15
      %s334 = scalar_select %p333, %s332, 15
      %p335 = scmp.lt.s32.totalorder %s22, 1
      %s336 = scalar_select %p335, %s22, 1
      %p337 = scmp.lt.s32.totalorder %s334, 15
      %s338 = scalar_select %p337, %s334, 15
      %s339 = smul.addr %s338, 2
      %s340 = smul.addr %s336, 32
      %s341 = sadd.s32 %s339, %s340
      %s342 = smul.addr %s341, 4
      %s343 = scalar_lea.vmem %s2, %s342
      %p344 = pneg %p131
      %p345 = pneg %p128
      %p346 = scmp.lt.s32.totalorder %s24, 0
      %s347 = scalar_select %p346, %s24, 0
      %s348 = smul.addr %s347, 4
      %s349 = scalar_lea.vmem %s3, %s348
      %p350 = pneg %p157
      %p351 = pneg %p154
      %p352 = pneg %p187
      %p353 = pneg %p184
      %s354 = smul.u32 16, %s23
      %p355 = scmp.lt.s32.totalorder %s22, 1
      %s356 = scalar_select %p355, %s22, 1
      %p357 = scmp.lt.s32.totalorder %s354, 15
      %s358 = scalar_select %p357, %s354, 15
      %p359 = scmp.lt.s32.totalorder %s24, 0
      %s360 = scalar_select %p359, %s24, 0
      %s361 = smul.addr %s358, 2
      %s362 = sadd.s32 %s360, %s361
      %s363 = smul.addr %s356, 32
      %s364 = sadd.s32 %s362, %s363
      %s365 = smul.addr %s364, 4
      %s366 = scalar_lea.vmem %s4, %s365
      %p367 = pneg %p217
      %p368 = pneg %p214
      %p369 = scmp.lt.s32.totalorder %s22, 1
      %s370 = scalar_select %p369, %s22, 1
      %p371 = scmp.lt.s32.totalorder %s23, 0
      %s372 = scalar_select %p371, %s23, 0
      %p373 = scmp.lt.s32.totalorder %s24, 0
      %s374 = scalar_select %p373, %s24, 0
      %s375 = sadd.s32 %s374, %s372
      %s376 = sadd.s32 %s375, %s370
      %s377 = smul.addr %s376, 2
      %s378 = scalar_lea.vmem %s5, %s377
      %s379 = smul.u32 %s23, 16
      %s380 = ssub.s32 %s379, 1
      %p381 = scmp.gt.s32.totalorder %s380, 0
      %s382 = scalar_select %p381, %s380, 0
      %p383 = scmp.lt.s32.totalorder %s22, 1
      %s384 = scalar_select %p383, %s22, 1
      %p385 = scmp.lt.s32.totalorder %s382, 15
      %s386 = scalar_select %p385, %s382, 15
      %s387 = smul.addr %s386, 2
      %s388 = smul.addr %s384, 32
      %s389 = sadd.s32 %s387, %s388
      %s390 = smul.addr %s389, 4
      %s391 = scalar_lea.vmem %s0, %s390
      %s392 = smul.u32 %s23, 16
      %s393 = ssub.s32 %s392, 1
      %p394 = scmp.gt.s32.totalorder %s393, 0
      %s395 = scalar_select %p394, %s393, 0
      %s396 = smul.u32 16, %s23
      %p397 = scmp.lt.s32.totalorder %s22, 1
      %s398 = scalar_select %p397, %s22, 1
      %p399 = scmp.lt.s32.totalorder %s396, 15
      %s400 = scalar_select %p399, %s396, 15
      %s401 = smul.addr %s400, 2
      %s402 = smul.addr %s398, 32
      %s403 = sadd.s32 %s401, %s402
      %s404 = smul.addr %s403, 4
      %s405 = scalar_lea.vmem %s1, %s404
      %s406 = smul.u32 16, %s23
      %s407 = sadd.s32 %s23, 1
      %s408 = smul.u32 %s407, 16
      %p409 = scmp.lt.s32.totalorder %s408, 15
      %s410 = scalar_select %p409, %s408, 15
      %p411 = scmp.lt.s32.totalorder %s22, 1
      %s412 = scalar_select %p411, %s22, 1
      %p413 = scmp.lt.s32.totalorder %s410, 15
      %s414 = scalar_select %p413, %s410, 15
      %s415 = smul.addr %s414, 2
      %s416 = smul.addr %s412, 32
      %s417 = sadd.s32 %s415, %s416
      %s418 = smul.addr %s417, 4
      %s419 = scalar_lea.vmem %s2, %s418
      %s420 = sadd.s32 %s23, 1
      %s421 = smul.u32 %s420, 16
      %p422 = scmp.lt.s32.totalorder %s421, 15
      %s423 = scalar_select %p422, %s421, 15
      %p424 = scmp.lt.s32.totalorder %s24, 0
      %s425 = scalar_select %p424, %s24, 0
      %s426 = smul.addr %s425, 4
      %s427 = scalar_lea.vmem %s3, %s426
      %s428 = smul.u32 16, %s23
      %p429 = scmp.lt.s32.totalorder %s22, 1
      %s430 = scalar_select %p429, %s22, 1
      %p431 = scmp.lt.s32.totalorder %s428, 15
      %s432 = scalar_select %p431, %s428, 15
      %p433 = scmp.lt.s32.totalorder %s24, 0
      %s434 = scalar_select %p433, %s24, 0
      %s435 = smul.addr %s432, 2
      %s436 = sadd.s32 %s434, %s435
      %s437 = smul.addr %s430, 32
      %s438 = sadd.s32 %s436, %s437
      %s439 = smul.addr %s438, 4
      %s440 = scalar_lea.vmem %s4, %s439
      %s441 = smul.u32 16, %s23
      %p442 = scmp.lt.s32.totalorder %s22, 1
      %s443 = scalar_select %p442, %s22, 1
      %p444 = scmp.lt.s32.totalorder %s23, 0
      %s445 = scalar_select %p444, %s23, 0
      %p446 = scmp.lt.s32.totalorder %s24, 0
      %s447 = scalar_select %p446, %s24, 0
      %s448 = sadd.s32 %s447, %s445
      %s449 = sadd.s32 %s448, %s443
      %s450 = smul.addr %s449, 2
      %s451 = scalar_lea.vmem %s5, %s450
      %v453 = vld [vmem:[%s391] sm:$0xf]
      %v454 = vld [vmem:[%s391 + $0x4] sm:$0xf]
      %v455 = vld [vmem:[%s405] sm:$0xf]
      %v456 = vld [vmem:[%s405 + $0x4] sm:$0xf]
      %v457 = vld [vmem:[%s405 + $0x8] sm:$0xf]
      %v458 = vld [vmem:[%s405 + $0xc] sm:$0xf]
      %v459 = vld [vmem:[%s405 + $0x10] sm:$0xf]
      %v460 = vld [vmem:[%s405 + $0x14] sm:$0xf]
      %v461 = vld [vmem:[%s405 + $0x18] sm:$0xf]
      %v462 = vld [vmem:[%s405 + $0x1c] sm:$0xf]
      %v463 = vld [vmem:[%s405 + $0x20] sm:$0xf]
      %v464 = vld [vmem:[%s405 + $0x24] sm:$0xf]
      %v465 = vld [vmem:[%s405 + $0x28] sm:$0xf]
      %v466 = vld [vmem:[%s405 + $0x2c] sm:$0xf]
      %v467 = vld [vmem:[%s405 + $0x30] sm:$0xf]
      %v468 = vld [vmem:[%s405 + $0x34] sm:$0xf]
      %v469 = vld [vmem:[%s405 + $0x38] sm:$0xf]
      %v470 = vld [vmem:[%s405 + $0x3c] sm:$0xf]
      %v471 = vld [vmem:[%s405 + $0x40] sm:$0xf]
      %v472 = vld [vmem:[%s405 + $0x44] sm:$0xf]
      %v473 = vld [vmem:[%s405 + $0x48] sm:$0xf]
      %v474 = vld [vmem:[%s405 + $0x4c] sm:$0xf]
      %v475 = vld [vmem:[%s405 + $0x50] sm:$0xf]
      %v476 = vld [vmem:[%s405 + $0x54] sm:$0xf]
      %v477 = vld [vmem:[%s405 + $0x58] sm:$0xf]
      %v478 = vld [vmem:[%s405 + $0x5c] sm:$0xf]
      %v479 = vld [vmem:[%s405 + $0x60] sm:$0xf]
      %v480 = vld [vmem:[%s405 + $0x64] sm:$0xf]
      %v481 = vld [vmem:[%s405 + $0x68] sm:$0xf]
      %v482 = vld [vmem:[%s405 + $0x6c] sm:$0xf]
      %v483 = vld [vmem:[%s405 + $0x70] sm:$0xf]
      %v484 = vld [vmem:[%s405 + $0x74] sm:$0xf]
      %v485 = vld [vmem:[%s405 + $0x78] sm:$0xf]
      %v486 = vld [vmem:[%s405 + $0x7c] sm:$0xf]
      %v487 = vld [vmem:[%s419] sm:$0xf]
      %v488 = vld [vmem:[%s419 + $0x4] sm:$0xf]
      %p489 = scmp.eq.s32.totalorder %s23, 0
      %s490 = scalar_select %p489, 1, 0
      %v491 = vstv %s490
      %vm492 = vcmp.eq.s32.totalorder %v491, 1
      %v493 = vsel %vm492, 0, %v453
      %v494 = vsel %vm492, 0, %v454
      %v495 = vsel %vm492, 0, %v487
      %v496 = vsel %vm492, 0, %v488
      %v533 = vunpack.c.l.b16 %v493
      %v534 = vunpack.c.l.b16 %v494
      %v535 = vunpack.c.l.b16 %v455
      %v536 = vunpack.c.l.b16 %v456
      %v537 = vunpack.c.l.b16 %v457
      %v538 = vunpack.c.l.b16 %v458
      %v539 = vunpack.c.l.b16 %v459
      %v540 = vunpack.c.l.b16 %v460
      %v541 = vunpack.c.l.b16 %v461
      %v542 = vunpack.c.l.b16 %v462
      %v543 = vunpack.c.l.b16 %v463
      %v544 = vunpack.c.l.b16 %v464
      %v545 = vunpack.c.l.b16 %v465
      %v546 = vunpack.c.l.b16 %v466
      %v547 = vunpack.c.l.b16 %v467
      %v548 = vunpack.c.l.b16 %v468
      %v549 = vunpack.c.l.b16 %v469
      %v550 = vunpack.c.l.b16 %v470
      %v551 = vunpack.c.l.b16 %v471
      %v552 = vunpack.c.l.b16 %v472
      %v553 = vunpack.c.l.b16 %v473
      %v554 = vunpack.c.l.b16 %v474
      %v555 = vunpack.c.l.b16 %v475
      %v556 = vunpack.c.l.b16 %v476
      %v557 = vunpack.c.l.b16 %v477
      %v558 = vunpack.c.l.b16 %v478
      %v559 = vunpack.c.l.b16 %v479
      %v560 = vunpack.c.l.b16 %v480
      %v561 = vunpack.c.l.b16 %v481
      %v562 = vunpack.c.l.b16 %v482
      %v563 = vunpack.c.l.b16 %v483
      %v564 = vunpack.c.l.b16 %v484
      %v565 = vunpack.c.l.b16 %v485
      %v566 = vunpack.c.l.b16 %v486
      %v567 = vunpack.c.l.b16 %v495
      %v568 = vunpack.c.l.b16 %v496
      %v569 = vpack.c.b16 %v534, %v533
      %v570 = vpack.c.b16 %v536, %v535
      %v571 = vpack.c.b16 %v538, %v537
      %v572 = vpack.c.b16 %v540, %v539
      %v573 = vpack.c.b16 %v542, %v541
      %v574 = vpack.c.b16 %v544, %v543
      %v575 = vpack.c.b16 %v546, %v545
      %v576 = vpack.c.b16 %v548, %v547
      %v577 = vpack.c.b16 %v550, %v549
      %v578 = vpack.c.b16 %v552, %v551
      %v579 = vpack.c.b16 %v554, %v553
      %v580 = vpack.c.b16 %v556, %v555
      %v581 = vpack.c.b16 %v558, %v557
      %v582 = vpack.c.b16 %v560, %v559
      %v583 = vpack.c.b16 %v562, %v561
      %v584 = vpack.c.b16 %v564, %v563
      %v585 = vpack.c.b16 %v566, %v565
      %v586 = vpack.c.b16 %v568, %v567
      %v588 = vshrl.u32 %v569, 16
      %v590 = vrot.slane %v588, 7
      %v591 = vshll.u32 %v569, 16
      %v593 = vor.u32 %v590, %v591
      %v595 = vshrl.u32 %v570, 16
      %v597 = vrot.slane %v595, 7
      %v598 = vshll.u32 %v570, 16
      %v600 = vor.u32 %v597, %v598
      %v602 = vshrl.u32 %v571, 16
      %v604 = vrot.slane %v602, 7
      %v605 = vshll.u32 %v571, 16
      %v607 = vor.u32 %v604, %v605
      %v609 = vshrl.u32 %v572, 16
      %v611 = vrot.slane %v609, 7
      %v612 = vshll.u32 %v572, 16
      %v614 = vor.u32 %v611, %v612
      %v616 = vshrl.u32 %v573, 16
      %v618 = vrot.slane %v616, 7
      %v619 = vshll.u32 %v573, 16
      %v621 = vor.u32 %v618, %v619
      %v623 = vshrl.u32 %v574, 16
      %v625 = vrot.slane %v623, 7
      %v626 = vshll.u32 %v574, 16
      %v628 = vor.u32 %v625, %v626
      %v630 = vshrl.u32 %v575, 16
      %v632 = vrot.slane %v630, 7
      %v633 = vshll.u32 %v575, 16
      %v635 = vor.u32 %v632, %v633
      %v637 = vshrl.u32 %v576, 16
      %v639 = vrot.slane %v637, 7
      %v640 = vshll.u32 %v576, 16
      %v642 = vor.u32 %v639, %v640
      %v644 = vshrl.u32 %v577, 16
      %v646 = vrot.slane %v644, 7
      %v647 = vshll.u32 %v577, 16
      %v649 = vor.u32 %v646, %v647
      %v651 = vshrl.u32 %v578, 16
      %v653 = vrot.slane %v651, 7
      %v654 = vshll.u32 %v578, 16
      %v656 = vor.u32 %v653, %v654
      %v658 = vshrl.u32 %v579, 16
      %v660 = vrot.slane %v658, 7
      %v661 = vshll.u32 %v579, 16
      %v663 = vor.u32 %v660, %v661
      %v665 = vshrl.u32 %v580, 16
      %v667 = vrot.slane %v665, 7
      %v668 = vshll.u32 %v580, 16
      %v670 = vor.u32 %v667, %v668
      %v672 = vshrl.u32 %v581, 16
      %v674 = vrot.slane %v672, 7
      %v675 = vshll.u32 %v581, 16
      %v677 = vor.u32 %v674, %v675
      %v679 = vshrl.u32 %v582, 16
      %v681 = vrot.slane %v679, 7
      %v682 = vshll.u32 %v582, 16
      %v684 = vor.u32 %v681, %v682
      %v686 = vshrl.u32 %v583, 16
      %v688 = vrot.slane %v686, 7
      %v689 = vshll.u32 %v583, 16
      %v691 = vor.u32 %v688, %v689
      %v693 = vshrl.u32 %v584, 16
      %v695 = vrot.slane %v693, 7
      %v696 = vshll.u32 %v584, 16
      %v698 = vor.u32 %v695, %v696
      %v700 = vshrl.u32 %v585, 16
      %v702 = vrot.slane %v700, 7
      %v703 = vshll.u32 %v585, 16
      %v705 = vor.u32 %v702, %v703
      %v707 = vshrl.u32 %v586, 16
      %v709 = vrot.slane %v707, 7
      %v710 = vshll.u32 %v586, 16
      %v712 = vor.u32 %v709, %v710
      %vm731 = vcmask 1040384
      %vm732 = vsmask.f32 256
      %vm733 = vmand %vm731, %vm732
      %v734 = vsel %vm733, 0, %v593
      %v735 = vsel %vm733, 0, %v600
      %v736 = vsel %vm733, 0, %v607
      %v737 = vsel %vm733, 0, %v614
      %v738 = vsel %vm733, 0, %v621
      %v739 = vsel %vm733, 0, %v628
      %v740 = vsel %vm733, 0, %v635
      %v741 = vsel %vm733, 0, %v642
      %v742 = vsel %vm733, 0, %v649
      %v743 = vsel %vm733, 0, %v656
      %v744 = vsel %vm733, 0, %v663
      %v745 = vsel %vm733, 0, %v670
      %v746 = vsel %vm733, 0, %v677
      %v747 = vsel %vm733, 0, %v684
      %v748 = vsel %vm733, 0, %v691
      %v749 = vsel %vm733, 0, %v698
      %v750 = vsel %vm733, 0, %v705
      %v751 = vsel %vm733, 0, %v712
      %v752 = vrot.slane %v591, 1
      %v753 = vor.u32 %v588, %v752
      %v754 = vrot.slane %v598, 1
      %v755 = vor.u32 %v595, %v754
      %v756 = vrot.slane %v605, 1
      %v757 = vor.u32 %v602, %v756
      %v758 = vrot.slane %v612, 1
      %v759 = vor.u32 %v609, %v758
      %v760 = vrot.slane %v619, 1
      %v761 = vor.u32 %v616, %v760
      %v762 = vrot.slane %v626, 1
      %v763 = vor.u32 %v623, %v762
      %v764 = vrot.slane %v633, 1
      %v765 = vor.u32 %v630, %v764
      %v766 = vrot.slane %v640, 1
      %v767 = vor.u32 %v637, %v766
      %v768 = vrot.slane %v647, 1
      %v769 = vor.u32 %v644, %v768
      %v770 = vrot.slane %v654, 1
      %v771 = vor.u32 %v651, %v770
      %v772 = vrot.slane %v661, 1
      %v773 = vor.u32 %v658, %v772
      %v774 = vrot.slane %v668, 1
      %v775 = vor.u32 %v665, %v774
      %v776 = vrot.slane %v675, 1
      %v777 = vor.u32 %v672, %v776
      %v778 = vrot.slane %v682, 1
      %v779 = vor.u32 %v679, %v778
      %v780 = vrot.slane %v689, 1
      %v781 = vor.u32 %v686, %v780
      %v782 = vrot.slane %v696, 1
      %v783 = vor.u32 %v693, %v782
      %v784 = vrot.slane %v703, 1
      %v785 = vor.u32 %v700, %v784
      %v786 = vrot.slane %v710, 1
      %v787 = vor.u32 %v707, %v786
      %vm806 = vcmask 1047552
      %vm807 = vsmask.f32 7424
      %vm808 = vmand %vm806, %vm807
      %v809 = vsel %vm808, %v753, 0
      %v810 = vsel %vm808, %v755, 0
      %v811 = vsel %vm808, %v757, 0
      %v812 = vsel %vm808, %v759, 0
      %v813 = vsel %vm808, %v761, 0
      %v814 = vsel %vm808, %v763, 0
      %v815 = vsel %vm808, %v765, 0
      %v816 = vsel %vm808, %v767, 0
      %v817 = vsel %vm808, %v769, 0
      %v818 = vsel %vm808, %v771, 0
      %v819 = vsel %vm808, %v773, 0
      %v820 = vsel %vm808, %v775, 0
      %v821 = vsel %vm808, %v777, 0
      %v822 = vsel %vm808, %v779, 0
      %v823 = vsel %vm808, %v781, 0
      %v824 = vsel %vm808, %v783, 0
      %v825 = vsel %vm808, %v785, 0
      %v826 = vsel %vm808, %v787, 0
      %v827 = vld [vmem:[%s427] sm:$0xf]
      %v828 = vld [vmem:[%s427 + $0x4] sm:$0xf]
      %v829 = vld [vmem:[%s427 + $0x8] sm:$0xf]
      %v830 = vld [vmem:[%s427 + $0xc] sm:$0xf]
      %v831 = vld [vmem:[%s427 + $0x10] sm:$0xf]
      %v832 = vld [vmem:[%s427 + $0x14] sm:$0xf]
      %v833 = vld [vmem:[%s427 + $0x18] sm:$0xf]
      %v834 = vld [vmem:[%s427 + $0x1c] sm:$0xf]
      %v835 = vld [vmem:[%s427 + $0x20] sm:$0xf]
      %vm836 = vcmask 64512
      %v837 = vsel %vm836, %v569, 0
      %v839 = vsel %vm836, %v570, 0
      %v841 = vsel %vm836, %v571, 0
      %v843 = vsel %vm836, %v572, 0
      %v845 = vsel %vm836, %v573, 0
      %v847 = vsel %vm836, %v574, 0
      %v849 = vsel %vm836, %v575, 0
      %v851 = vsel %vm836, %v576, 0
      %v853 = vsel %vm836, %v577, 0
      %v855 = vsel %vm836, %v578, 0
      %v857 = vsel %vm836, %v579, 0
      %v859 = vsel %vm836, %v580, 0
      %v861 = vsel %vm836, %v581, 0
      %v863 = vsel %vm836, %v582, 0
      %v865 = vsel %vm836, %v583, 0
      %v867 = vsel %vm836, %v584, 0
      %vm869 = vcmask 1043456
      %v871 = vsel %vm869, %v828, 0
      %873 = vmatprep.subr.bf16.mxu0 0
      %874 = vmatpush1.bf16.msra.mxu0 %v871
      %875 = vmatprep.subr.bf16.mxu0 0
      %876 = vmatpush1.bf16.msra.mxu0 0
      %877 = vmatprep.subr.bf16.mxu0 0
      %878 = vmatpush1.bf16.msra.mxu0 0
      %879 = vmatprep.subr.bf16.mxu0 0
      %880 = vmatpush1.bf16.msra.mxu0 0
      %881 = vmatprep.subr.bf16.mxu0 0
      %882 = vmatpush1.bf16.msra.mxu0 0
      %883 = vmatprep.subr.bf16.mxu0 0
      %884 = vmatpush1.bf16.msra.mxu0 0
      %885 = vmatprep.subr.bf16.mxu0 0
      %886 = vmatpush1.bf16.msra.mxu0 0
      %887 = vmatprep.subr.bf16.mxu0 0
      %888 = vmatpush1.bf16.msra.mxu0 0
      %889 = vmatprep.subr.bf16.mxu0 0
      %890 = vmatpush1.bf16.msra.mxu0 0
      %891 = vmatprep.subr.bf16.mxu0 0
      %892 = vmatpush1.bf16.msra.mxu0 0
      %893 = vmatprep.subr.bf16.mxu0 0
      %894 = vmatpush1.bf16.msra.mxu0 0
      %895 = vmatprep.subr.bf16.mxu0 0
      %896 = vmatpush1.bf16.msra.mxu0 0
      %897 = vmatprep.subr.bf16.mxu0 0
      %898 = vmatpush1.bf16.msra.mxu0 0
      %899 = vmatprep.subr.bf16.mxu0 0
      %900 = vmatpush1.bf16.msra.mxu0 0
      %901 = vmatprep.subr.bf16.mxu0 0
      %902 = vmatpush1.bf16.msra.mxu0 0
      %903 = vmatprep.subr.bf16.mxu0 0
      %904 = vmatpush1.bf16.msra.mxu0 0
      %905 = vmatprep.mubr.bf16.mxu0 0
      %906 = vmatmul.mubr.bf16.gmra.mrb[0].mxu0 %v837
      %v907 = vpop.f32.mrb[0].mxu0
      %v908 = vadd.f32 0.0, %v907
      %v909 = vpop.f32.mrb[0].mxu0
      %v910 = vpop.f32.mrb[0].mxu0
      %v911 = vadd.f32 0.0, %v910
      %v912 = vpop.f32.mrb[0].mxu0
      %913 = vmatprep.mubr.bf16.mxu0 0
      %914 = vmatmul.mubr.bf16.gmra.mrb[0].mxu0 %v839
      %v915 = vpop.f32.mrb[0].mxu0
      %v916 = vadd.f32 0.0, %v915
      %v917 = vpop.f32.mrb[0].mxu0
      %v918 = vpop.f32.mrb[0].mxu0
      %v919 = vadd.f32 0.0, %v918
      %v920 = vpop.f32.mrb[0].mxu0
      %921 = vmatprep.mubr.bf16.mxu0 0
      %922 = vmatmul.mubr.bf16.gmra.mrb[0].mxu0 %v841
      %v923 = vpop.f32.mrb[0].mxu0
      %v924 = vadd.f32 0.0, %v923
      %v925 = vpop.f32.mrb[0].mxu0
      %v926 = vpop.f32.mrb[0].mxu0
      %v927 = vadd.f32 0.0, %v926
      %v928 = vpop.f32.mrb[0].mxu0
      %929 = vmatprep.mubr.bf16.mxu0 0
      %930 = vmatmul.mubr.bf16.gmra.mrb[0].mxu0 %v843
      %v931 = vpop.f32.mrb[0].mxu0
      %v932 = vadd.f32 0.0, %v931
      %v933 = vpop.f32.mrb[0].mxu0
      %v934 = vpop.f32.mrb[0].mxu0
      %v935 = vadd.f32 0.0, %v934
      %v936 = vpop.f32.mrb[0].mxu0
      %937 = vmatprep.mubr.bf16.mxu0 0
      %938 = vmatmul.mubr.bf16.gmra.mrb[0].mxu0 %v845
      %v939 = vpop.f32.mrb[0].mxu0
      %v940 = vadd.f32 0.0, %v939
      %v941 = vpop.f32.mrb[0].mxu0
      %v942 = vpop.f32.mrb[0].mxu0
      %v943 = vadd.f32 0.0, %v942
      %v944 = vpop.f32.mrb[0].mxu0
      %945 = vmatprep.mubr.bf16.mxu0 0
      %946 = vmatmul.mubr.bf16.gmra.mrb[0].mxu0 %v847
      %v947 = vpop.f32.mrb[0].mxu0
      %v948 = vadd.f32 0.0, %v947
      %v949 = vpop.f32.mrb[0].mxu0
      %v950 = vpop.f32.mrb[0].mxu0
      %v951 = vadd.f32 0.0, %v950
      %v952 = vpop.f32.mrb[0].mxu0
      %953 = vmatprep.mubr.bf16.mxu0 0
      %954 = vmatmul.mubr.bf16.gmra.mrb[0].mxu0 %v849
      %v955 = vpop.f32.mrb[0].mxu0
      %v956 = vadd.f32 0.0, %v955
      %v957 = vpop.f32.mrb[0].mxu0
      %v958 = vpop.f32.mrb[0].mxu0
      %v959 = vadd.f32 0.0, %v958
      %v960 = vpop.f32.mrb[0].mxu0
      %961 = vmatprep.mubr.bf16.mxu0 0
      %962 = vmatmul.mubr.bf16.gmra.mrb[0].mxu0 %v851
      %v963 = vpop.f32.mrb[0].mxu0
      %v964 = vadd.f32 0.0, %v963
      %v965 = vpop.f32.mrb[0].mxu0
      %v966 = vpop.f32.mrb[0].mxu0
      %v967 = vadd.f32 0.0, %v966
      %v968 = vpop.f32.mrb[0].mxu0
      %969 = vmatprep.mubr.bf16.mxu0 0
      %970 = vmatmul.mubr.bf16.gmra.mrb[0].mxu0 %v853
      %v971 = vpop.f32.mrb[0].mxu0
      %v972 = vadd.f32 0.0, %v971
      %v973 = vpop.f32.mrb[0].mxu0
      %v974 = vpop.f32.mrb[0].mxu0
      %v975 = vadd.f32 0.0, %v974
      %v976 = vpop.f32.mrb[0].mxu0
      %977 = vmatprep.mubr.bf16.mxu0 0
      %978 = vmatmul.mubr.bf16.gmra.mrb[0].mxu0 %v855
      %v979 = vpop.f32.mrb[0].mxu0
      %v980 = vadd.f32 0.0, %v979
      %v981 = vpop.f32.mrb[0].mxu0
      %v982 = vpop.f32.mrb[0].mxu0
      %v983 = vadd.f32 0.0, %v982
      %v984 = vpop.f32.mrb[0].mxu0
      %985 = vmatprep.mubr.bf16.mxu0 0
      %986 = vmatmul.mubr.bf16.gmra.mrb[0].mxu0 %v857
      %v987 = vpop.f32.mrb[0].mxu0
      %v988 = vadd.f32 0.0, %v987
      %v989 = vpop.f32.mrb[0].mxu0
      %v990 = vpop.f32.mrb[0].mxu0
      %v991 = vadd.f32 0.0, %v990
      %v992 = vpop.f32.mrb[0].mxu0
      %993 = vmatprep.mubr.bf16.mxu0 0
      %994 = vmatmul.mubr.bf16.gmra.mrb[0].mxu0 %v859
      %v995 = vpop.f32.mrb[0].mxu0
      %v996 = vadd.f32 0.0, %v995
      %v997 = vpop.f32.mrb[0].mxu0
      %v998 = vpop.f32.mrb[0].mxu0
      %v999 = vadd.f32 0.0, %v998
      %v1000 = vpop.f32.mrb[0].mxu0
      %1001 = vmatprep.mubr.bf16.mxu0 0
      %1002 = vmatmul.mubr.bf16.gmra.mrb[0].mxu0 %v861
      %v1003 = vpop.f32.mrb[0].mxu0
      %v1004 = vadd.f32 0.0, %v1003
      %v1005 = vpop.f32.mrb[0].mxu0
      %v1006 = vpop.f32.mrb[0].mxu0
      %v1007 = vadd.f32 0.0, %v1006
      %v1008 = vpop.f32.mrb[0].mxu0
      %1009 = vmatprep.mubr.bf16.mxu0 0
      %1010 = vmatmul.mubr.bf16.gmra.mrb[0].mxu0 %v863
      %v1011 = vpop.f32.mrb[0].mxu0
      %v1012 = vadd.f32 0.0, %v1011
      %v1013 = vpop.f32.mrb[0].mxu0
      %v1014 = vpop.f32.mrb[0].mxu0
      %v1015 = vadd.f32 0.0, %v1014
      %v1016 = vpop.f32.mrb[0].mxu0
      %1017 = vmatprep.mubr.bf16.mxu0 0
      %1018 = vmatmul.mubr.bf16.gmra.mrb[0].mxu0 %v865
      %v1019 = vpop.f32.mrb[0].mxu0
      %v1020 = vadd.f32 0.0, %v1019
      %v1021 = vpop.f32.mrb[0].mxu0
      %v1022 = vpop.f32.mrb[0].mxu0
      %v1023 = vadd.f32 0.0, %v1022
      %v1024 = vpop.f32.mrb[0].mxu0
      %1025 = vmatprep.mubr.bf16.mxu0 0
      %1026 = vmatmul.mubr.bf16.gmra.mrb[0].mxu0 %v867
      %v1027 = vpop.f32.mrb[0].mxu0
      %v1028 = vadd.f32 0.0, %v1027
      %v1029 = vpop.f32.mrb[0].mxu0
      %v1030 = vpop.f32.mrb[0].mxu0
      %v1031 = vadd.f32 0.0, %v1030
      %v1032 = vpop.f32.mrb[0].mxu0
      %1033 = vdwg.mxu0
      %v1035 = vsel %vm836, %v734, 0
      %v1038 = vsel %vm836, %v735, 0
      %v1041 = vsel %vm836, %v736, 0
      %v1044 = vsel %vm836, %v737, 0
      %v1047 = vsel %vm836, %v738, 0
      %v1050 = vsel %vm836, %v739, 0
      %v1053 = vsel %vm836, %v740, 0
      %v1056 = vsel %vm836, %v741, 0
      %v1059 = vsel %vm836, %v742, 0
      %v1062 = vsel %vm836, %v743, 0
      %v1065 = vsel %vm836, %v744, 0
      %v1068 = vsel %vm836, %v745, 0
      %v1071 = vsel %vm836, %v746, 0
      %v1074 = vsel %vm836, %v747, 0
      %v1077 = vsel %vm836, %v748, 0
      %v1080 = vsel %vm836, %v749, 0
      %v1083 = vsel %vm869, %v827, 0
      %1085 = vmatprep.subr.bf16.mxu0 0
      %1086 = vmatpush1.bf16.msra.mxu0 %v1083
      %1087 = vmatprep.subr.bf16.mxu0 0
      %1088 = vmatpush1.bf16.msra.mxu0 0
      %1089 = vmatprep.subr.bf16.mxu0 0
      %1090 = vmatpush1.bf16.msra.mxu0 0
      %1091 = vmatprep.subr.bf16.mxu0 0
      %1092 = vmatpush1.bf16.msra.mxu0 0
      %1093 = vmatprep.subr.bf16.mxu0 0
      %1094 = vmatpush1.bf16.msra.mxu0 0
      %1095 = vmatprep.subr.bf16.mxu0 0
      %1096 = vmatpush1.bf16.msra.mxu0 0
      %1097 = vmatprep.subr.bf16.mxu0 0
      %1098 = vmatpush1.bf16.msra.mxu0 0
      %1099 = vmatprep.subr.bf16.mxu0 0
      %1100 = vmatpush1.bf16.msra.mxu0 0
      %1101 = vmatprep.subr.bf16.mxu0 0
      %1102 = vmatpush1.bf16.msra.mxu0 0
      %1103 = vmatprep.subr.bf16.mxu0 0
      %1104 = vmatpush1.bf16.msra.mxu0 0
      %1105 = vmatprep.subr.bf16.mxu0 0
      %1106 = vmatpush1.bf16.msra.mxu0 0
      %1107 = vmatprep.subr.bf16.mxu0 0
      %1108 = vmatpush1.bf16.msra.mxu0 0
      %1109 = vmatprep.subr.bf16.mxu0 0
      %1110 = vmatpush1.bf16.msra.mxu0 0
      %1111 = vmatprep.subr.bf16.mxu0 0
      %1112 = vmatpush1.bf16.msra.mxu0 0
      %1113 = vmatprep.subr.bf16.mxu0 0
      %1114 = vmatpush1.bf16.msra.mxu0 0
      %1115 = vmatprep.subr.bf16.mxu0 0
      %1116 = vmatpush1.bf16.msra.mxu0 0
      %1117 = vmatprep.mubr.bf16.mxu0 0
      %1118 = vmatmul.mubr.bf16.gmra.mrb[0].mxu0 %v1035
      %v1119 = vpop.f32.mrb[0].mxu0
      %v1120 = vadd.f32 %v908, %v1119
      %v1121 = vpop.f32.mrb[0].mxu0
      %v1122 = vpop.f32.mrb[0].mxu0
      %v1123 = vadd.f32 %v911, %v1122
      %v1124 = vpop.f32.mrb[0].mxu0
      %1125 = vmatprep.mubr.bf16.mxu0 0
      %1126 = vmatmul.mubr.bf16.gmra.mrb[0].mxu0 %v1038
      %v1127 = vpop.f32.mrb[0].mxu0
      %v1128 = vadd.f32 %v916, %v1127
      %v1129 = vpop.f32.mrb[0].mxu0
      %v1130 = vpop.f32.mrb[0].mxu0
      %v1131 = vadd.f32 %v919, %v1130
      %v1132 = vpop.f32.mrb[0].mxu0
      %1133 = vmatprep.mubr.bf16.mxu0 0
      %1134 = vmatmul.mubr.bf16.gmra.mrb[0].mxu0 %v1041
      %v1135 = vpop.f32.mrb[0].mxu0
      %v1136 = vadd.f32 %v924, %v1135
      %v1137 = vpop.f32.mrb[0].mxu0
      %v1138 = vpop.f32.mrb[0].mxu0
      %v1139 = vadd.f32 %v927, %v1138
      %v1140 = vpop.f32.mrb[0].mxu0
      %1141 = vmatprep.mubr.bf16.mxu0 0
      %1142 = vmatmul.mubr.bf16.gmra.mrb[0].mxu0 %v1044
      %v1143 = vpop.f32.mrb[0].mxu0
      %v1144 = vadd.f32 %v932, %v1143
      %v1145 = vpop.f32.mrb[0].mxu0
      %v1146 = vpop.f32.mrb[0].mxu0
      %v1147 = vadd.f32 %v935, %v1146
      %v1148 = vpop.f32.mrb[0].mxu0
      %1149 = vmatprep.mubr.bf16.mxu0 0
      %1150 = vmatmul.mubr.bf16.gmra.mrb[0].mxu0 %v1047
      %v1151 = vpop.f32.mrb[0].mxu0
      %v1152 = vadd.f32 %v940, %v1151
      %v1153 = vpop.f32.mrb[0].mxu0
      %v1154 = vpop.f32.mrb[0].mxu0
      %v1155 = vadd.f32 %v943, %v1154
      %v1156 = vpop.f32.mrb[0].mxu0
      %1157 = vmatprep.mubr.bf16.mxu0 0
      %1158 = vmatmul.mubr.bf16.gmra.mrb[0].mxu0 %v1050
      %v1159 = vpop.f32.mrb[0].mxu0
      %v1160 = vadd.f32 %v948, %v1159
      %v1161 = vpop.f32.mrb[0].mxu0
      %v1162 = vpop.f32.mrb[0].mxu0
      %v1163 = vadd.f32 %v951, %v1162
      %v1164 = vpop.f32.mrb[0].mxu0
      %1165 = vmatprep.mubr.bf16.mxu0 0
      %1166 = vmatmul.mubr.bf16.gmra.mrb[0].mxu0 %v1053
      %v1167 = vpop.f32.mrb[0].mxu0
      %v1168 = vadd.f32 %v956, %v1167
      %v1169 = vpop.f32.mrb[0].mxu0
      %v1170 = vpop.f32.mrb[0].mxu0
      %v1171 = vadd.f32 %v959, %v1170
      %v1172 = vpop.f32.mrb[0].mxu0
      %1173 = vmatprep.mubr.bf16.mxu0 0
      %1174 = vmatmul.mubr.bf16.gmra.mrb[0].mxu0 %v1056
      %v1175 = vpop.f32.mrb[0].mxu0
      %v1176 = vadd.f32 %v964, %v1175
      %v1177 = vpop.f32.mrb[0].mxu0
      %v1178 = vpop.f32.mrb[0].mxu0
      %v1179 = vadd.f32 %v967, %v1178
      %v1180 = vpop.f32.mrb[0].mxu0
      %1181 = vmatprep.mubr.bf16.mxu0 0
      %1182 = vmatmul.mubr.bf16.gmra.mrb[0].mxu0 %v1059
      %v1183 = vpop.f32.mrb[0].mxu0
      %v1184 = vadd.f32 %v972, %v1183
      %v1185 = vpop.f32.mrb[0].mxu0
      %v1186 = vpop.f32.mrb[0].mxu0
      %v1187 = vadd.f32 %v975, %v1186
      %v1188 = vpop.f32.mrb[0].mxu0
      %1189 = vmatprep.mubr.bf16.mxu0 0
      %1190 = vmatmul.mubr.bf16.gmra.mrb[0].mxu0 %v1062
      %v1191 = vpop.f32.mrb[0].mxu0
      %v1192 = vadd.f32 %v980, %v1191
      %v1193 = vpop.f32.mrb[0].mxu0
      %v1194 = vpop.f32.mrb[0].mxu0
      %v1195 = vadd.f32 %v983, %v1194
      %v1196 = vpop.f32.mrb[0].mxu0
      %1197 = vmatprep.mubr.bf16.mxu0 0
      %1198 = vmatmul.mubr.bf16.gmra.mrb[0].mxu0 %v1065
      %v1199 = vpop.f32.mrb[0].mxu0
      %v1200 = vadd.f32 %v988, %v1199
      %v1201 = vpop.f32.mrb[0].mxu0
      %v1202 = vpop.f32.mrb[0].mxu0
      %v1203 = vadd.f32 %v991, %v1202
      %v1204 = vpop.f32.mrb[0].mxu0
      %1205 = vmatprep.mubr.bf16.mxu0 0
      %1206 = vmatmul.mubr.bf16.gmra.mrb[0].mxu0 %v1068
      %v1207 = vpop.f32.mrb[0].mxu0
      %v1208 = vadd.f32 %v996, %v1207
      %v1209 = vpop.f32.mrb[0].mxu0
      %v1210 = vpop.f32.mrb[0].mxu0
      %v1211 = vadd.f32 %v999, %v1210
      %v1212 = vpop.f32.mrb[0].mxu0
      %1213 = vmatprep.mubr.bf16.mxu0 0
      %1214 = vmatmul.mubr.bf16.gmra.mrb[0].mxu0 %v1071
      %v1215 = vpop.f32.mrb[0].mxu0
      %v1216 = vadd.f32 %v1004, %v1215
      %v1217 = vpop.f32.mrb[0].mxu0
      %v1218 = vpop.f32.mrb[0].mxu0
      %v1219 = vadd.f32 %v1007, %v1218
      %v1220 = vpop.f32.mrb[0].mxu0
      %1221 = vmatprep.mubr.bf16.mxu0 0
      %1222 = vmatmul.mubr.bf16.gmra.mrb[0].mxu0 %v1074
      %v1223 = vpop.f32.mrb[0].mxu0
      %v1224 = vadd.f32 %v1012, %v1223
      %v1225 = vpop.f32.mrb[0].mxu0
      %v1226 = vpop.f32.mrb[0].mxu0
      %v1227 = vadd.f32 %v1015, %v1226
      %v1228 = vpop.f32.mrb[0].mxu0
      %1229 = vmatprep.mubr.bf16.mxu0 0
      %1230 = vmatmul.mubr.bf16.gmra.mrb[0].mxu0 %v1077
      %v1231 = vpop.f32.mrb[0].mxu0
      %v1232 = vadd.f32 %v1020, %v1231
      %v1233 = vpop.f32.mrb[0].mxu0
      %v1234 = vpop.f32.mrb[0].mxu0
      %v1235 = vadd.f32 %v1023, %v1234
      %v1236 = vpop.f32.mrb[0].mxu0
      %1237 = vmatprep.mubr.bf16.mxu0 0
      %1238 = vmatmul.mubr.bf16.gmra.mrb[0].mxu0 %v1080
      %v1239 = vpop.f32.mrb[0].mxu0
      %v1240 = vadd.f32 %v1028, %v1239
      %v1241 = vpop.f32.mrb[0].mxu0
      %v1242 = vpop.f32.mrb[0].mxu0
      %v1243 = vadd.f32 %v1031, %v1242
      %v1244 = vpop.f32.mrb[0].mxu0
      %1245 = vdwg.mxu0
      %v1247 = vsel %vm836, %v809, 0
      %v1250 = vsel %vm836, %v810, 0
      %v1253 = vsel %vm836, %v811, 0
      %v1256 = vsel %vm836, %v812, 0
      %v1259 = vsel %vm836, %v813, 0
      %v1262 = vsel %vm836, %v814, 0
      %v1265 = vsel %vm836, %v815, 0
      %v1268 = vsel %vm836, %v816, 0
      %v1271 = vsel %vm836, %v817, 0
      %v1274 = vsel %vm836, %v818, 0
      %v1277 = vsel %vm836, %v819, 0
      %v1280 = vsel %vm836, %v820, 0
      %v1283 = vsel %vm836, %v821, 0
      %v1286 = vsel %vm836, %v822, 0
      %v1289 = vsel %vm836, %v823, 0
      %v1292 = vsel %vm836, %v824, 0
      %v1295 = vsel %vm869, %v829, 0
      %1297 = vmatprep.subr.bf16.mxu0 0
      %1298 = vmatpush1.bf16.msra.mxu0 %v1295
      %1299 = vmatprep.subr.bf16.mxu0 0
      %1300 = vmatpush1.bf16.msra.mxu0 0
      %1301 = vmatprep.subr.bf16.mxu0 0
      %1302 = vmatpush1.bf16.msra.mxu0 0
      %1303 = vmatprep.subr.bf16.mxu0 0
      %1304 = vmatpush1.bf16.msra.mxu0 0
      %1305 = vmatprep.subr.bf16.mxu0 0
      %1306 = vmatpush1.bf16.msra.mxu0 0
      %1307 = vmatprep.subr.bf16.mxu0 0
      %1308 = vmatpush1.bf16.msra.mxu0 0
      %1309 = vmatprep.subr.bf16.mxu0 0
      %1310 = vmatpush1.bf16.msra.mxu0 0
      %1311 = vmatprep.subr.bf16.mxu0 0
      %1312 = vmatpush1.bf16.msra.mxu0 0
      %1313 = vmatprep.subr.bf16.mxu0 0
      %1314 = vmatpush1.bf16.msra.mxu0 0
      %1315 = vmatprep.subr.bf16.mxu0 0
      %1316 = vmatpush1.bf16.msra.mxu0 0
      %1317 = vmatprep.subr.bf16.mxu0 0
      %1318 = vmatpush1.bf16.msra.mxu0 0
      %1319 = vmatprep.subr.bf16.mxu0 0
      %1320 = vmatpush1.bf16.msra.mxu0 0
      %1321 = vmatprep.subr.bf16.mxu0 0
      %1322 = vmatpush1.bf16.msra.mxu0 0
      %1323 = vmatprep.subr.bf16.mxu0 0
      %1324 = vmatpush1.bf16.msra.mxu0 0
      %1325 = vmatprep.subr.bf16.mxu0 0
      %1326 = vmatpush1.bf16.msra.mxu0 0
      %1327 = vmatprep.subr.bf16.mxu0 0
      %1328 = vmatpush1.bf16.msra.mxu0 0
      %1329 = vmatprep.mubr.bf16.mxu0 0
      %1330 = vmatmul.mubr.bf16.gmra.mrb[0].mxu0 %v1247
      %v1331 = vpop.f32.mrb[0].mxu0
      %v1332 = vadd.f32 0.0, %v1331
      %v1333 = vpop.f32.mrb[0].mxu0
      %v1334 = vpop.f32.mrb[0].mxu0
      %v1335 = vadd.f32 0.0, %v1334
      %v1336 = vpop.f32.mrb[0].mxu0
      %1337 = vmatprep.mubr.bf16.mxu0 0
      %1338 = vmatmul.mubr.bf16.gmra.mrb[0].mxu0 %v1250
      %v1339 = vpop.f32.mrb[0].mxu0
      %v1340 = vadd.f32 0.0, %v1339
      %v1341 = vpop.f32.mrb[0].mxu0
      %v1342 = vpop.f32.mrb[0].mxu0
      %v1343 = vadd.f32 0.0, %v1342
      %v1344 = vpop.f32.mrb[0].mxu0
      %1345 = vmatprep.mubr.bf16.mxu0 0
      %1346 = vmatmul.mubr.bf16.gmra.mrb[0].mxu0 %v1253
      %v1347 = vpop.f32.mrb[0].mxu0
      %v1348 = vadd.f32 0.0, %v1347
      %v1349 = vpop.f32.mrb[0].mxu0
      %v1350 = vpop.f32.mrb[0].mxu0
      %v1351 = vadd.f32 0.0, %v1350
      %v1352 = vpop.f32.mrb[0].mxu0
      %1353 = vmatprep.mubr.bf16.mxu0 0
      %1354 = vmatmul.mubr.bf16.gmra.mrb[0].mxu0 %v1256
      %v1355 = vpop.f32.mrb[0].mxu0
      %v1356 = vadd.f32 0.0, %v1355
      %v1357 = vpop.f32.mrb[0].mxu0
      %v1358 = vpop.f32.mrb[0].mxu0
      %v1359 = vadd.f32 0.0, %v1358
      %v1360 = vpop.f32.mrb[0].mxu0
      %1361 = vmatprep.mubr.bf16.mxu0 0
      %1362 = vmatmul.mubr.bf16.gmra.mrb[0].mxu0 %v1259
      %v1363 = vpop.f32.mrb[0].mxu0
      %v1364 = vadd.f32 0.0, %v1363
      %v1365 = vpop.f32.mrb[0].mxu0
      %v1366 = vpop.f32.mrb[0].mxu0
      %v1367 = vadd.f32 0.0, %v1366
      %v1368 = vpop.f32.mrb[0].mxu0
      %1369 = vmatprep.mubr.bf16.mxu0 0
      %1370 = vmatmul.mubr.bf16.gmra.mrb[0].mxu0 %v1262
      %v1371 = vpop.f32.mrb[0].mxu0
      %v1372 = vadd.f32 0.0, %v1371
      %v1373 = vpop.f32.mrb[0].mxu0
      %v1374 = vpop.f32.mrb[0].mxu0
      %v1375 = vadd.f32 0.0, %v1374
      %v1376 = vpop.f32.mrb[0].mxu0
      %1377 = vmatprep.mubr.bf16.mxu0 0
      %1378 = vmatmul.mubr.bf16.gmra.mrb[0].mxu0 %v1265
      %v1379 = vpop.f32.mrb[0].mxu0
      %v1380 = vadd.f32 0.0, %v1379
      %v1381 = vpop.f32.mrb[0].mxu0
      %v1382 = vpop.f32.mrb[0].mxu0
      %v1383 = vadd.f32 0.0, %v1382
      %v1384 = vpop.f32.mrb[0].mxu0
      %1385 = vmatprep.mubr.bf16.mxu0 0
      %1386 = vmatmul.mubr.bf16.gmra.mrb[0].mxu0 %v1268
      %v1387 = vpop.f32.mrb[0].mxu0
      %v1388 = vadd.f32 0.0, %v1387
      %v1389 = vpop.f32.mrb[0].mxu0
      %v1390 = vpop.f32.mrb[0].mxu0
      %v1391 = vadd.f32 0.0, %v1390
      %v1392 = vpop.f32.mrb[0].mxu0
      %1393 = vmatprep.mubr.bf16.mxu0 0
      %1394 = vmatmul.mubr.bf16.gmra.mrb[0].mxu0 %v1271
      %v1395 = vpop.f32.mrb[0].mxu0
      %v1396 = vadd.f32 0.0, %v1395
      %v1397 = vpop.f32.mrb[0].mxu0
      %v1398 = vpop.f32.mrb[0].mxu0
      %v1399 = vadd.f32 0.0, %v1398
      %v1400 = vpop.f32.mrb[0].mxu0
      %1401 = vmatprep.mubr.bf16.mxu0 0
      %1402 = vmatmul.mubr.bf16.gmra.mrb[0].mxu0 %v1274
      %v1403 = vpop.f32.mrb[0].mxu0
      %v1404 = vadd.f32 0.0, %v1403
      %v1405 = vpop.f32.mrb[0].mxu0
      %v1406 = vpop.f32.mrb[0].mxu0
      %v1407 = vadd.f32 0.0, %v1406
      %v1408 = vpop.f32.mrb[0].mxu0
      %1409 = vmatprep.mubr.bf16.mxu0 0
      %1410 = vmatmul.mubr.bf16.gmra.mrb[0].mxu0 %v1277
      %v1411 = vpop.f32.mrb[0].mxu0
      %v1412 = vadd.f32 0.0, %v1411
      %v1413 = vpop.f32.mrb[0].mxu0
      %v1414 = vpop.f32.mrb[0].mxu0
      %v1415 = vadd.f32 0.0, %v1414
      %v1416 = vpop.f32.mrb[0].mxu0
      %1417 = vmatprep.mubr.bf16.mxu0 0
      %1418 = vmatmul.mubr.bf16.gmra.mrb[0].mxu0 %v1280
      %v1419 = vpop.f32.mrb[0].mxu0
      %v1420 = vadd.f32 0.0, %v1419
      %v1421 = vpop.f32.mrb[0].mxu0
      %v1422 = vpop.f32.mrb[0].mxu0
      %v1423 = vadd.f32 0.0, %v1422
      %v1424 = vpop.f32.mrb[0].mxu0
      %1425 = vmatprep.mubr.bf16.mxu0 0
      %1426 = vmatmul.mubr.bf16.gmra.mrb[0].mxu0 %v1283
      %v1427 = vpop.f32.mrb[0].mxu0
      %v1428 = vadd.f32 0.0, %v1427
      %v1429 = vpop.f32.mrb[0].mxu0
      %v1430 = vpop.f32.mrb[0].mxu0
      %v1431 = vadd.f32 0.0, %v1430
      %v1432 = vpop.f32.mrb[0].mxu0
      %1433 = vmatprep.mubr.bf16.mxu0 0
      %1434 = vmatmul.mubr.bf16.gmra.mrb[0].mxu0 %v1286
      %v1435 = vpop.f32.mrb[0].mxu0
      %v1436 = vadd.f32 0.0, %v1435
      %v1437 = vpop.f32.mrb[0].mxu0
      %v1438 = vpop.f32.mrb[0].mxu0
      %v1439 = vadd.f32 0.0, %v1438
      %v1440 = vpop.f32.mrb[0].mxu0
      %1441 = vmatprep.mubr.bf16.mxu0 0
      %1442 = vmatmul.mubr.bf16.gmra.mrb[0].mxu0 %v1289
      %v1443 = vpop.f32.mrb[0].mxu0
      %v1444 = vadd.f32 0.0, %v1443
      %v1445 = vpop.f32.mrb[0].mxu0
      %v1446 = vpop.f32.mrb[0].mxu0
      %v1447 = vadd.f32 0.0, %v1446
      %v1448 = vpop.f32.mrb[0].mxu0
      %1449 = vmatprep.mubr.bf16.mxu0 0
      %1450 = vmatmul.mubr.bf16.gmra.mrb[0].mxu0 %v1292
      %v1451 = vpop.f32.mrb[0].mxu0
      %v1452 = vadd.f32 0.0, %v1451
      %v1453 = vpop.f32.mrb[0].mxu0
      %v1454 = vpop.f32.mrb[0].mxu0
      %v1455 = vadd.f32 0.0, %v1454
      %v1456 = vpop.f32.mrb[0].mxu0
      %1457 = vdwg.mxu0
      %v1458 = vadd.f32 %v1120, %v1332
      %v1459 = vadd.f32 %v1123, %v1335
      %v1460 = vadd.f32 %v1128, %v1340
      %v1461 = vadd.f32 %v1131, %v1343
      %v1462 = vadd.f32 %v1136, %v1348
      %v1463 = vadd.f32 %v1139, %v1351
      %v1464 = vadd.f32 %v1144, %v1356
      %v1465 = vadd.f32 %v1147, %v1359
      %v1466 = vadd.f32 %v1152, %v1364
      %v1467 = vadd.f32 %v1155, %v1367
      %v1468 = vadd.f32 %v1160, %v1372
      %v1469 = vadd.f32 %v1163, %v1375
      %v1470 = vadd.f32 %v1168, %v1380
      %v1471 = vadd.f32 %v1171, %v1383
      %v1472 = vadd.f32 %v1176, %v1388
      %v1473 = vadd.f32 %v1179, %v1391
      %v1474 = vadd.f32 %v1184, %v1396
      %v1475 = vadd.f32 %v1187, %v1399
      %v1476 = vadd.f32 %v1192, %v1404
      %v1477 = vadd.f32 %v1195, %v1407
      %v1478 = vadd.f32 %v1200, %v1412
      %v1479 = vadd.f32 %v1203, %v1415
      %v1480 = vadd.f32 %v1208, %v1420
      %v1481 = vadd.f32 %v1211, %v1423
      %v1482 = vadd.f32 %v1216, %v1428
      %v1483 = vadd.f32 %v1219, %v1431
      %v1484 = vadd.f32 %v1224, %v1436
      %v1485 = vadd.f32 %v1227, %v1439
      %v1486 = vadd.f32 %v1232, %v1444
      %v1487 = vadd.f32 %v1235, %v1447
      %v1488 = vadd.f32 %v1240, %v1452
      %v1489 = vadd.f32 %v1243, %v1455
      %v1491 = vsel %vm836, %v750, 0
      %v1494 = vsel %vm869, %v830, 0
      %1496 = vmatprep.subr.bf16.mxu0 0
      %1497 = vmatpush1.bf16.msra.mxu0 %v1494
      %1498 = vmatprep.subr.bf16.mxu0 0
      %1499 = vmatpush1.bf16.msra.mxu0 0
      %1500 = vmatprep.subr.bf16.mxu0 0
      %1501 = vmatpush1.bf16.msra.mxu0 0
      %1502 = vmatprep.subr.bf16.mxu0 0
      %1503 = vmatpush1.bf16.msra.mxu0 0
      %1504 = vmatprep.subr.bf16.mxu0 0
      %1505 = vmatpush1.bf16.msra.mxu0 0
      %1506 = vmatprep.subr.bf16.mxu0 0
      %1507 = vmatpush1.bf16.msra.mxu0 0
      %1508 = vmatprep.subr.bf16.mxu0 0
      %1509 = vmatpush1.bf16.msra.mxu0 0
      %1510 = vmatprep.subr.bf16.mxu0 0
      %1511 = vmatpush1.bf16.msra.mxu0 0
      %1512 = vmatprep.subr.bf16.mxu0 0
      %1513 = vmatpush1.bf16.msra.mxu0 0
      %1514 = vmatprep.subr.bf16.mxu0 0
      %1515 = vmatpush1.bf16.msra.mxu0 0
      %1516 = vmatprep.subr.bf16.mxu0 0
      %1517 = vmatpush1.bf16.msra.mxu0 0
      %1518 = vmatprep.subr.bf16.mxu0 0
      %1519 = vmatpush1.bf16.msra.mxu0 0
      %1520 = vmatprep.subr.bf16.mxu0 0
      %1521 = vmatpush1.bf16.msra.mxu0 0
      %1522 = vmatprep.subr.bf16.mxu0 0
      %1523 = vmatpush1.bf16.msra.mxu0 0
      %1524 = vmatprep.subr.bf16.mxu0 0
      %1525 = vmatpush1.bf16.msra.mxu0 0
      %1526 = vmatprep.subr.bf16.mxu0 0
      %1527 = vmatpush1.bf16.msra.mxu0 0
      %1528 = vmatprep.mubr.bf16.mxu0 0
      %1529 = vmatmul.mubr.bf16.gmra.mrb[0].mxu0 %v1038
      %v1530 = vpop.f32.mrb[0].mxu0
      %v1531 = vadd.f32 0.0, %v1530
      %v1532 = vpop.f32.mrb[0].mxu0
      %v1533 = vpop.f32.mrb[0].mxu0
      %v1534 = vadd.f32 0.0, %v1533
      %v1535 = vpop.f32.mrb[0].mxu0
      %1536 = vmatprep.mubr.bf16.mxu0 0
      %1537 = vmatmul.mubr.bf16.gmra.mrb[0].mxu0 %v1041
      %v1538 = vpop.f32.mrb[0].mxu0
      %v1539 = vadd.f32 0.0, %v1538
      %v1540 = vpop.f32.mrb[0].mxu0
      %v1541 = vpop.f32.mrb[0].mxu0
      %v1542 = vadd.f32 0.0, %v1541
      %v1543 = vpop.f32.mrb[0].mxu0
      %1544 = vmatprep.mubr.bf16.mxu0 0
      %1545 = vmatmul.mubr.bf16.gmra.mrb[0].mxu0 %v1044
      %v1546 = vpop.f32.mrb[0].mxu0
      %v1547 = vadd.f32 0.0, %v1546
      %v1548 = vpop.f32.mrb[0].mxu0
      %v1549 = vpop.f32.mrb[0].mxu0
      %v1550 = vadd.f32 0.0, %v1549
      %v1551 = vpop.f32.mrb[0].mxu0
      %1552 = vmatprep.mubr.bf16.mxu0 0
      %1553 = vmatmul.mubr.bf16.gmra.mrb[0].mxu0 %v1047
      %v1554 = vpop.f32.mrb[0].mxu0
      %v1555 = vadd.f32 0.0, %v1554
      %v1556 = vpop.f32.mrb[0].mxu0
      %v1557 = vpop.f32.mrb[0].mxu0
      %v1558 = vadd.f32 0.0, %v1557
      %v1559 = vpop.f32.mrb[0].mxu0
      %1560 = vmatprep.mubr.bf16.mxu0 0
      %1561 = vmatmul.mubr.bf16.gmra.mrb[0].mxu0 %v1050
      %v1562 = vpop.f32.mrb[0].mxu0
      %v1563 = vadd.f32 0.0, %v1562
      %v1564 = vpop.f32.mrb[0].mxu0
      %v1565 = vpop.f32.mrb[0].mxu0
      %v1566 = vadd.f32 0.0, %v1565
      %v1567 = vpop.f32.mrb[0].mxu0
      %1568 = vmatprep.mubr.bf16.mxu0 0
      %1569 = vmatmul.mubr.bf16.gmra.mrb[0].mxu0 %v1053
      %v1570 = vpop.f32.mrb[0].mxu0
      %v1571 = vadd.f32 0.0, %v1570
      %v1572 = vpop.f32.mrb[0].mxu0
      %v1573 = vpop.f32.mrb[0].mxu0
      %v1574 = vadd.f32 0.0, %v1573
      %v1575 = vpop.f32.mrb[0].mxu0
      %1576 = vmatprep.mubr.bf16.mxu0 0
      %1577 = vmatmul.mubr.bf16.gmra.mrb[0].mxu0 %v1056
      %v1578 = vpop.f32.mrb[0].mxu0
      %v1579 = vadd.f32 0.0, %v1578
      %v1580 = vpop.f32.mrb[0].mxu0
      %v1581 = vpop.f32.mrb[0].mxu0
      %v1582 = vadd.f32 0.0, %v1581
      %v1583 = vpop.f32.mrb[0].mxu0
      %1584 = vmatprep.mubr.bf16.mxu0 0
      %1585 = vmatmul.mubr.bf16.gmra.mrb[0].mxu0 %v1059
      %v1586 = vpop.f32.mrb[0].mxu0
      %v1587 = vadd.f32 0.0, %v1586
      %v1588 = vpop.f32.mrb[0].mxu0
      %v1589 = vpop.f32.mrb[0].mxu0
      %v1590 = vadd.f32 0.0, %v1589
      %v1591 = vpop.f32.mrb[0].mxu0
      %1592 = vmatprep.mubr.bf16.mxu0 0
      %1593 = vmatmul.mubr.bf16.gmra.mrb[0].mxu0 %v1062
      %v1594 = vpop.f32.mrb[0].mxu0
      %v1595 = vadd.f32 0.0, %v1594
      %v1596 = vpop.f32.mrb[0].mxu0
      %v1597 = vpop.f32.mrb[0].mxu0
      %v1598 = vadd.f32 0.0, %v1597
      %v1599 = vpop.f32.mrb[0].mxu0
      %1600 = vmatprep.mubr.bf16.mxu0 0
      %1601 = vmatmul.mubr.bf16.gmra.mrb[0].mxu0 %v1065
      %v1602 = vpop.f32.mrb[0].mxu0
      %v1603 = vadd.f32 0.0, %v1602
      %v1604 = vpop.f32.mrb[0].mxu0
      %v1605 = vpop.f32.mrb[0].mxu0
      %v1606 = vadd.f32 0.0, %v1605
      %v1607 = vpop.f32.mrb[0].mxu0
      %1608 = vmatprep.mubr.bf16.mxu0 0
      %1609 = vmatmul.mubr.bf16.gmra.mrb[0].mxu0 %v1068
      %v1610 = vpop.f32.mrb[0].mxu0
      %v1611 = vadd.f32 0.0, %v1610
      %v1612 = vpop.f32.mrb[0].mxu0
      %v1613 = vpop.f32.mrb[0].mxu0
      %v1614 = vadd.f32 0.0, %v1613
      %v1615 = vpop.f32.mrb[0].mxu0
      %1616 = vmatprep.mubr.bf16.mxu0 0
      %1617 = vmatmul.mubr.bf16.gmra.mrb[0].mxu0 %v1071
      %v1618 = vpop.f32.mrb[0].mxu0
      %v1619 = vadd.f32 0.0, %v1618
      %v1620 = vpop.f32.mrb[0].mxu0
      %v1621 = vpop.f32.mrb[0].mxu0
      %v1622 = vadd.f32 0.0, %v1621
      %v1623 = vpop.f32.mrb[0].mxu0
      %1624 = vmatprep.mubr.bf16.mxu0 0
      %1625 = vmatmul.mubr.bf16.gmra.mrb[0].mxu0 %v1074
      %v1626 = vpop.f32.mrb[0].mxu0
      %v1627 = vadd.f32 0.0, %v1626
      %v1628 = vpop.f32.mrb[0].mxu0
      %v1629 = vpop.f32.mrb[0].mxu0
      %v1630 = vadd.f32 0.0, %v1629
      %v1631 = vpop.f32.mrb[0].mxu0
      %1632 = vmatprep.mubr.bf16.mxu0 0
      %1633 = vmatmul.mubr.bf16.gmra.mrb[0].mxu0 %v1077
      %v1634 = vpop.f32.mrb[0].mxu0
      %v1635 = vadd.f32 0.0, %v1634
      %v1636 = vpop.f32.mrb[0].mxu0
      %v1637 = vpop.f32.mrb[0].mxu0
      %v1638 = vadd.f32 0.0, %v1637
      %v1639 = vpop.f32.mrb[0].mxu0
      %1640 = vmatprep.mubr.bf16.mxu0 0
      %1641 = vmatmul.mubr.bf16.gmra.mrb[0].mxu0 %v1080
      %v1642 = vpop.f32.mrb[0].mxu0
      %v1643 = vadd.f32 0.0, %v1642
      %v1644 = vpop.f32.mrb[0].mxu0
      %v1645 = vpop.f32.mrb[0].mxu0
      %v1646 = vadd.f32 0.0, %v1645
      %v1647 = vpop.f32.mrb[0].mxu0
      %1648 = vmatprep.mubr.bf16.mxu0 0
      %1649 = vmatmul.mubr.bf16.gmra.mrb[0].mxu0 %v1491
      %v1650 = vpop.f32.mrb[0].mxu0
      %v1651 = vadd.f32 0.0, %v1650
      %v1652 = vpop.f32.mrb[0].mxu0
      %v1653 = vpop.f32.mrb[0].mxu0
      %v1654 = vadd.f32 0.0, %v1653
      %v1655 = vpop.f32.mrb[0].mxu0
      %1656 = vdwg.mxu0
      %v1657 = vadd.f32 %v1458, %v1531
      %v1658 = vadd.f32 %v1459, %v1534
      %v1659 = vadd.f32 %v1460, %v1539
      %v1660 = vadd.f32 %v1461, %v1542
      %v1661 = vadd.f32 %v1462, %v1547
      %v1662 = vadd.f32 %v1463, %v1550
      %v1663 = vadd.f32 %v1464, %v1555
      %v1664 = vadd.f32 %v1465, %v1558
      %v1665 = vadd.f32 %v1466, %v1563
      %v1666 = vadd.f32 %v1467, %v1566
      %v1667 = vadd.f32 %v1468, %v1571
      %v1668 = vadd.f32 %v1469, %v1574
      %v1669 = vadd.f32 %v1470, %v1579
      %v1670 = vadd.f32 %v1471, %v1582
      %v1671 = vadd.f32 %v1472, %v1587
      %v1672 = vadd.f32 %v1473, %v1590
      %v1673 = vadd.f32 %v1474, %v1595
      %v1674 = vadd.f32 %v1475, %v1598
      %v1675 = vadd.f32 %v1476, %v1603
      %v1676 = vadd.f32 %v1477, %v1606
      %v1677 = vadd.f32 %v1478, %v1611
      %v1678 = vadd.f32 %v1479, %v1614
      %v1679 = vadd.f32 %v1480, %v1619
      %v1680 = vadd.f32 %v1481, %v1622
      %v1681 = vadd.f32 %v1482, %v1627
      %v1682 = vadd.f32 %v1483, %v1630
      %v1683 = vadd.f32 %v1484, %v1635
      %v1684 = vadd.f32 %v1485, %v1638
      %v1685 = vadd.f32 %v1486, %v1643
      %v1686 = vadd.f32 %v1487, %v1646
      %v1687 = vadd.f32 %v1488, %v1651
      %v1688 = vadd.f32 %v1489, %v1654
      %v1689 = vsel %vm836, %v585, 0
      %v1692 = vsel %vm869, %v831, 0
      %1694 = vmatprep.subr.bf16.mxu0 0
      %1695 = vmatpush1.bf16.msra.mxu0 %v1692
      %1696 = vmatprep.subr.bf16.mxu0 0
      %1697 = vmatpush1.bf16.msra.mxu0 0
      %1698 = vmatprep.subr.bf16.mxu0 0
      %1699 = vmatpush1.bf16.msra.mxu0 0
      %1700 = vmatprep.subr.bf16.mxu0 0
      %1701 = vmatpush1.bf16.msra.mxu0 0
      %1702 = vmatprep.subr.bf16.mxu0 0
      %1703 = vmatpush1.bf16.msra.mxu0 0
      %1704 = vmatprep.subr.bf16.mxu0 0
      %1705 = vmatpush1.bf16.msra.mxu0 0
      %1706 = vmatprep.subr.bf16.mxu0 0
      %1707 = vmatpush1.bf16.msra.mxu0 0
      %1708 = vmatprep.subr.bf16.mxu0 0
      %1709 = vmatpush1.bf16.msra.mxu0 0
      %1710 = vmatprep.subr.bf16.mxu0 0
      %1711 = vmatpush1.bf16.msra.mxu0 0
      %1712 = vmatprep.subr.bf16.mxu0 0
      %1713 = vmatpush1.bf16.msra.mxu0 0
      %1714 = vmatprep.subr.bf16.mxu0 0
      %1715 = vmatpush1.bf16.msra.mxu0 0
      %1716 = vmatprep.subr.bf16.mxu0 0
      %1717 = vmatpush1.bf16.msra.mxu0 0
      %1718 = vmatprep.subr.bf16.mxu0 0
      %1719 = vmatpush1.bf16.msra.mxu0 0
      %1720 = vmatprep.subr.bf16.mxu0 0
      %1721 = vmatpush1.bf16.msra.mxu0 0
      %1722 = vmatprep.subr.bf16.mxu0 0
      %1723 = vmatpush1.bf16.msra.mxu0 0
      %1724 = vmatprep.subr.bf16.mxu0 0
      %1725 = vmatpush1.bf16.msra.mxu0 0
      %1726 = vmatprep.mubr.bf16.mxu0 0
      %1727 = vmatmul.mubr.bf16.gmra.mrb[0].mxu0 %v839
      %v1728 = vpop.f32.mrb[0].mxu0
      %v1729 = vadd.f32 0.0, %v1728
      %v1730 = vpop.f32.mrb[0].mxu0
      %v1731 = vpop.f32.mrb[0].mxu0
      %v1732 = vadd.f32 0.0, %v1731
      %v1733 = vpop.f32.mrb[0].mxu0
      %1734 = vmatprep.mubr.bf16.mxu0 0
      %1735 = vmatmul.mubr.bf16.gmra.mrb[0].mxu0 %v841
      %v1736 = vpop.f32.mrb[0].mxu0
      %v1737 = vadd.f32 0.0, %v1736
      %v1738 = vpop.f32.mrb[0].mxu0
      %v1739 = vpop.f32.mrb[0].mxu0
      %v1740 = vadd.f32 0.0, %v1739
      %v1741 = vpop.f32.mrb[0].mxu0
      %1742 = vmatprep.mubr.bf16.mxu0 0
      %1743 = vmatmul.mubr.bf16.gmra.mrb[0].mxu0 %v843
      %v1744 = vpop.f32.mrb[0].mxu0
      %v1745 = vadd.f32 0.0, %v1744
      %v1746 = vpop.f32.mrb[0].mxu0
      %v1747 = vpop.f32.mrb[0].mxu0
      %v1748 = vadd.f32 0.0, %v1747
      %v1749 = vpop.f32.mrb[0].mxu0
      %1750 = vmatprep.mubr.bf16.mxu0 0
      %1751 = vmatmul.mubr.bf16.gmra.mrb[0].mxu0 %v845
      %v1752 = vpop.f32.mrb[0].mxu0
      %v1753 = vadd.f32 0.0, %v1752
      %v1754 = vpop.f32.mrb[0].mxu0
      %v1755 = vpop.f32.mrb[0].mxu0
      %v1756 = vadd.f32 0.0, %v1755
      %v1757 = vpop.f32.mrb[0].mxu0
      %1758 = vmatprep.mubr.bf16.mxu0 0
      %1759 = vmatmul.mubr.bf16.gmra.mrb[0].mxu0 %v847
      %v1760 = vpop.f32.mrb[0].mxu0
      %v1761 = vadd.f32 0.0, %v1760
      %v1762 = vpop.f32.mrb[0].mxu0
      %v1763 = vpop.f32.mrb[0].mxu0
      %v1764 = vadd.f32 0.0, %v1763
      %v1765 = vpop.f32.mrb[0].mxu0
      %1766 = vmatprep.mubr.bf16.mxu0 0
      %1767 = vmatmul.mubr.bf16.gmra.mrb[0].mxu0 %v849
      %v1768 = vpop.f32.mrb[0].mxu0
      %v1769 = vadd.f32 0.0, %v1768
      %v1770 = vpop.f32.mrb[0].mxu0
      %v1771 = vpop.f32.mrb[0].mxu0
      %v1772 = vadd.f32 0.0, %v1771
      %v1773 = vpop.f32.mrb[0].mxu0
      %1774 = vmatprep.mubr.bf16.mxu0 0
      %1775 = vmatmul.mubr.bf16.gmra.mrb[0].mxu0 %v851
      %v1776 = vpop.f32.mrb[0].mxu0
      %v1777 = vadd.f32 0.0, %v1776
      %v1778 = vpop.f32.mrb[0].mxu0
      %v1779 = vpop.f32.mrb[0].mxu0
      %v1780 = vadd.f32 0.0, %v1779
      %v1781 = vpop.f32.mrb[0].mxu0
      %1782 = vmatprep.mubr.bf16.mxu0 0
      %1783 = vmatmul.mubr.bf16.gmra.mrb[0].mxu0 %v853
      %v1784 = vpop.f32.mrb[0].mxu0
      %v1785 = vadd.f32 0.0, %v1784
      %v1786 = vpop.f32.mrb[0].mxu0
      %v1787 = vpop.f32.mrb[0].mxu0
      %v1788 = vadd.f32 0.0, %v1787
      %v1789 = vpop.f32.mrb[0].mxu0
      %1790 = vmatprep.mubr.bf16.mxu0 0
      %1791 = vmatmul.mubr.bf16.gmra.mrb[0].mxu0 %v855
      %v1792 = vpop.f32.mrb[0].mxu0
      %v1793 = vadd.f32 0.0, %v1792
      %v1794 = vpop.f32.mrb[0].mxu0
      %v1795 = vpop.f32.mrb[0].mxu0
      %v1796 = vadd.f32 0.0, %v1795
      %v1797 = vpop.f32.mrb[0].mxu0
      %1798 = vmatprep.mubr.bf16.mxu0 0
      %1799 = vmatmul.mubr.bf16.gmra.mrb[0].mxu0 %v857
      %v1800 = vpop.f32.mrb[0].mxu0
      %v1801 = vadd.f32 0.0, %v1800
      %v1802 = vpop.f32.mrb[0].mxu0
      %v1803 = vpop.f32.mrb[0].mxu0
      %v1804 = vadd.f32 0.0, %v1803
      %v1805 = vpop.f32.mrb[0].mxu0
      %1806 = vmatprep.mubr.bf16.mxu0 0
      %1807 = vmatmul.mubr.bf16.gmra.mrb[0].mxu0 %v859
      %v1808 = vpop.f32.mrb[0].mxu0
      %v1809 = vadd.f32 0.0, %v1808
      %v1810 = vpop.f32.mrb[0].mxu0
      %v1811 = vpop.f32.mrb[0].mxu0
      %v1812 = vadd.f32 0.0, %v1811
      %v1813 = vpop.f32.mrb[0].mxu0
      %1814 = vmatprep.mubr.bf16.mxu0 0
      %1815 = vmatmul.mubr.bf16.gmra.mrb[0].mxu0 %v861
      %v1816 = vpop.f32.mrb[0].mxu0
      %v1817 = vadd.f32 0.0, %v1816
      %v1818 = vpop.f32.mrb[0].mxu0
      %v1819 = vpop.f32.mrb[0].mxu0
      %v1820 = vadd.f32 0.0, %v1819
      %v1821 = vpop.f32.mrb[0].mxu0
      %1822 = vmatprep.mubr.bf16.mxu0 0
      %1823 = vmatmul.mubr.bf16.gmra.mrb[0].mxu0 %v863
      %v1824 = vpop.f32.mrb[0].mxu0
      %v1825 = vadd.f32 0.0, %v1824
      %v1826 = vpop.f32.mrb[0].mxu0
      %v1827 = vpop.f32.mrb[0].mxu0
      %v1828 = vadd.f32 0.0, %v1827
      %v1829 = vpop.f32.mrb[0].mxu0
      %1830 = vmatprep.mubr.bf16.mxu0 0
      %1831 = vmatmul.mubr.bf16.gmra.mrb[0].mxu0 %v865
      %v1832 = vpop.f32.mrb[0].mxu0
      %v1833 = vadd.f32 0.0, %v1832
      %v1834 = vpop.f32.mrb[0].mxu0
      %v1835 = vpop.f32.mrb[0].mxu0
      %v1836 = vadd.f32 0.0, %v1835
      %v1837 = vpop.f32.mrb[0].mxu0
      %1838 = vmatprep.mubr.bf16.mxu0 0
      %1839 = vmatmul.mubr.bf16.gmra.mrb[0].mxu0 %v867
      %v1840 = vpop.f32.mrb[0].mxu0
      %v1841 = vadd.f32 0.0, %v1840
      %v1842 = vpop.f32.mrb[0].mxu0
      %v1843 = vpop.f32.mrb[0].mxu0
      %v1844 = vadd.f32 0.0, %v1843
      %v1845 = vpop.f32.mrb[0].mxu0
      %1846 = vmatprep.mubr.bf16.mxu0 0
      %1847 = vmatmul.mubr.bf16.gmra.mrb[0].mxu0 %v1689
      %v1848 = vpop.f32.mrb[0].mxu0
      %v1849 = vadd.f32 0.0, %v1848
      %v1850 = vpop.f32.mrb[0].mxu0
      %v1851 = vpop.f32.mrb[0].mxu0
      %v1852 = vadd.f32 0.0, %v1851
      %v1853 = vpop.f32.mrb[0].mxu0
      %1854 = vdwg.mxu0
      %v1855 = vadd.f32 %v1657, %v1729
      %v1856 = vadd.f32 %v1658, %v1732
      %v1857 = vadd.f32 %v1659, %v1737
      %v1858 = vadd.f32 %v1660, %v1740
      %v1859 = vadd.f32 %v1661, %v1745
      %v1860 = vadd.f32 %v1662, %v1748
      %v1861 = vadd.f32 %v1663, %v1753
      %v1862 = vadd.f32 %v1664, %v1756
      %v1863 = vadd.f32 %v1665, %v1761
      %v1864 = vadd.f32 %v1666, %v1764
      %v1865 = vadd.f32 %v1667, %v1769
      %v1866 = vadd.f32 %v1668, %v1772
      %v1867 = vadd.f32 %v1669, %v1777
      %v1868 = vadd.f32 %v1670, %v1780
      %v1869 = vadd.f32 %v1671, %v1785
      %v1870 = vadd.f32 %v1672, %v1788
      %v1871 = vadd.f32 %v1673, %v1793
      %v1872 = vadd.f32 %v1674, %v1796
      %v1873 = vadd.f32 %v1675, %v1801
      %v1874 = vadd.f32 %v1676, %v1804
      %v1875 = vadd.f32 %v1677, %v1809
      %v1876 = vadd.f32 %v1678, %v1812
      %v1877 = vadd.f32 %v1679, %v1817
      %v1878 = vadd.f32 %v1680, %v1820
      %v1879 = vadd.f32 %v1681, %v1825
      %v1880 = vadd.f32 %v1682, %v1828
      %v1881 = vadd.f32 %v1683, %v1833
      %v1882 = vadd.f32 %v1684, %v1836
      %v1883 = vadd.f32 %v1685, %v1841
      %v1884 = vadd.f32 %v1686, %v1844
      %v1885 = vadd.f32 %v1687, %v1849
      %v1886 = vadd.f32 %v1688, %v1852
      %v1888 = vsel %vm836, %v825, 0
      %v1891 = vsel %vm869, %v832, 0
      %1893 = vmatprep.subr.bf16.mxu0 0
      %1894 = vmatpush1.bf16.msra.mxu0 %v1891
      %1895 = vmatprep.subr.bf16.mxu0 0
      %1896 = vmatpush1.bf16.msra.mxu0 0
      %1897 = vmatprep.subr.bf16.mxu0 0
      %1898 = vmatpush1.bf16.msra.mxu0 0
      %1899 = vmatprep.subr.bf16.mxu0 0
      %1900 = vmatpush1.bf16.msra.mxu0 0
      %1901 = vmatprep.subr.bf16.mxu0 0
      %1902 = vmatpush1.bf16.msra.mxu0 0
      %1903 = vmatprep.subr.bf16.mxu0 0
      %1904 = vmatpush1.bf16.msra.mxu0 0
      %1905 = vmatprep.subr.bf16.mxu0 0
      %1906 = vmatpush1.bf16.msra.mxu0 0
      %1907 = vmatprep.subr.bf16.mxu0 0
      %1908 = vmatpush1.bf16.msra.mxu0 0
      %1909 = vmatprep.subr.bf16.mxu0 0
      %1910 = vmatpush1.bf16.msra.mxu0 0
      %1911 = vmatprep.subr.bf16.mxu0 0
      %1912 = vmatpush1.bf16.msra.mxu0 0
      %1913 = vmatprep.subr.bf16.mxu0 0
      %1914 = vmatpush1.bf16.msra.mxu0 0
      %1915 = vmatprep.subr.bf16.mxu0 0
      %1916 = vmatpush1.bf16.msra.mxu0 0
      %1917 = vmatprep.subr.bf16.mxu0 0
      %1918 = vmatpush1.bf16.msra.mxu0 0
      %1919 = vmatprep.subr.bf16.mxu0 0
      %1920 = vmatpush1.bf16.msra.mxu0 0
      %1921 = vmatprep.subr.bf16.mxu0 0
      %1922 = vmatpush1.bf16.msra.mxu0 0
      %1923 = vmatprep.subr.bf16.mxu0 0
      %1924 = vmatpush1.bf16.msra.mxu0 0
      %1925 = vmatprep.mubr.bf16.mxu0 0
      %1926 = vmatmul.mubr.bf16.gmra.mrb[0].mxu0 %v1250
      %v1927 = vpop.f32.mrb[0].mxu0
      %v1928 = vadd.f32 0.0, %v1927
      %v1929 = vpop.f32.mrb[0].mxu0
      %v1930 = vpop.f32.mrb[0].mxu0
      %v1931 = vadd.f32 0.0, %v1930
      %v1932 = vpop.f32.mrb[0].mxu0
      %1933 = vmatprep.mubr.bf16.mxu0 0
      %1934 = vmatmul.mubr.bf16.gmra.mrb[0].mxu0 %v1253
      %v1935 = vpop.f32.mrb[0].mxu0
      %v1936 = vadd.f32 0.0, %v1935
      %v1937 = vpop.f32.mrb[0].mxu0
      %v1938 = vpop.f32.mrb[0].mxu0
      %v1939 = vadd.f32 0.0, %v1938
      %v1940 = vpop.f32.mrb[0].mxu0
      %1941 = vmatprep.mubr.bf16.mxu0 0
      %1942 = vmatmul.mubr.bf16.gmra.mrb[0].mxu0 %v1256
      %v1943 = vpop.f32.mrb[0].mxu0
      %v1944 = vadd.f32 0.0, %v1943
      %v1945 = vpop.f32.mrb[0].mxu0
      %v1946 = vpop.f32.mrb[0].mxu0
      %v1947 = vadd.f32 0.0, %v1946
      %v1948 = vpop.f32.mrb[0].mxu0
      %1949 = vmatprep.mubr.bf16.mxu0 0
      %1950 = vmatmul.mubr.bf16.gmra.mrb[0].mxu0 %v1259
      %v1951 = vpop.f32.mrb[0].mxu0
      %v1952 = vadd.f32 0.0, %v1951
      %v1953 = vpop.f32.mrb[0].mxu0
      %v1954 = vpop.f32.mrb[0].mxu0
      %v1955 = vadd.f32 0.0, %v1954
      %v1956 = vpop.f32.mrb[0].mxu0
      %1957 = vmatprep.mubr.bf16.mxu0 0
      %1958 = vmatmul.mubr.bf16.gmra.mrb[0].mxu0 %v1262
      %v1959 = vpop.f32.mrb[0].mxu0
      %v1960 = vadd.f32 0.0, %v1959
      %v1961 = vpop.f32.mrb[0].mxu0
      %v1962 = vpop.f32.mrb[0].mxu0
      %v1963 = vadd.f32 0.0, %v1962
      %v1964 = vpop.f32.mrb[0].mxu0
      %1965 = vmatprep.mubr.bf16.mxu0 0
      %1966 = vmatmul.mubr.bf16.gmra.mrb[0].mxu0 %v1265
      %v1967 = vpop.f32.mrb[0].mxu0
      %v1968 = vadd.f32 0.0, %v1967
      %v1969 = vpop.f32.mrb[0].mxu0
      %v1970 = vpop.f32.mrb[0].mxu0
      %v1971 = vadd.f32 0.0, %v1970
      %v1972 = vpop.f32.mrb[0].mxu0
      %1973 = vmatprep.mubr.bf16.mxu0 0
      %1974 = vmatmul.mubr.bf16.gmra.mrb[0].mxu0 %v1268
      %v1975 = vpop.f32.mrb[0].mxu0
      %v1976 = vadd.f32 0.0, %v1975
      %v1977 = vpop.f32.mrb[0].mxu0
      %v1978 = vpop.f32.mrb[0].mxu0
      %v1979 = vadd.f32 0.0, %v1978
      %v1980 = vpop.f32.mrb[0].mxu0
      %1981 = vmatprep.mubr.bf16.mxu0 0
      %1982 = vmatmul.mubr.bf16.gmra.mrb[0].mxu0 %v1271
      %v1983 = vpop.f32.mrb[0].mxu0
      %v1984 = vadd.f32 0.0, %v1983
      %v1985 = vpop.f32.mrb[0].mxu0
      %v1986 = vpop.f32.mrb[0].mxu0
      %v1987 = vadd.f32 0.0, %v1986
      %v1988 = vpop.f32.mrb[0].mxu0
      %1989 = vmatprep.mubr.bf16.mxu0 0
      %1990 = vmatmul.mubr.bf16.gmra.mrb[0].mxu0 %v1274
      %v1991 = vpop.f32.mrb[0].mxu0
      %v1992 = vadd.f32 0.0, %v1991
      %v1993 = vpop.f32.mrb[0].mxu0
      %v1994 = vpop.f32.mrb[0].mxu0
      %v1995 = vadd.f32 0.0, %v1994
      %v1996 = vpop.f32.mrb[0].mxu0
      %1997 = vmatprep.mubr.bf16.mxu0 0
      %1998 = vmatmul.mubr.bf16.gmra.mrb[0].mxu0 %v1277
      %v1999 = vpop.f32.mrb[0].mxu0
      %v2000 = vadd.f32 0.0, %v1999
      %v2001 = vpop.f32.mrb[0].mxu0
      %v2002 = vpop.f32.mrb[0].mxu0
      %v2003 = vadd.f32 0.0, %v2002
      %v2004 = vpop.f32.mrb[0].mxu0
      %2005 = vmatprep.mubr.bf16.mxu0 0
      %2006 = vmatmul.mubr.bf16.gmra.mrb[0].mxu0 %v1280
      %v2007 = vpop.f32.mrb[0].mxu0
      %v2008 = vadd.f32 0.0, %v2007
      %v2009 = vpop.f32.mrb[0].mxu0
      %v2010 = vpop.f32.mrb[0].mxu0
      %v2011 = vadd.f32 0.0, %v2010
      %v2012 = vpop.f32.mrb[0].mxu0
      %2013 = vmatprep.mubr.bf16.mxu0 0
      %2014 = vmatmul.mubr.bf16.gmra.mrb[0].mxu0 %v1283
      %v2015 = vpop.f32.mrb[0].mxu0
      %v2016 = vadd.f32 0.0, %v2015
      %v2017 = vpop.f32.mrb[0].mxu0
      %v2018 = vpop.f32.mrb[0].mxu0
      %v2019 = vadd.f32 0.0, %v2018
      %v2020 = vpop.f32.mrb[0].mxu0
      %2021 = vmatprep.mubr.bf16.mxu0 0
      %2022 = vmatmul.mubr.bf16.gmra.mrb[0].mxu0 %v1286
      %v2023 = vpop.f32.mrb[0].mxu0
      %v2024 = vadd.f32 0.0, %v2023
      %v2025 = vpop.f32.mrb[0].mxu0
      %v2026 = vpop.f32.mrb[0].mxu0
      %v2027 = vadd.f32 0.0, %v2026
      %v2028 = vpop.f32.mrb[0].mxu0
      %2029 = vmatprep.mubr.bf16.mxu0 0
      %2030 = vmatmul.mubr.bf16.gmra.mrb[0].mxu0 %v1289
      %v2031 = vpop.f32.mrb[0].mxu0
      %v2032 = vadd.f32 0.0, %v2031
      %v2033 = vpop.f32.mrb[0].mxu0
      %v2034 = vpop.f32.mrb[0].mxu0
      %v2035 = vadd.f32 0.0, %v2034
      %v2036 = vpop.f32.mrb[0].mxu0
      %2037 = vmatprep.mubr.bf16.mxu0 0
      %2038 = vmatmul.mubr.bf16.gmra.mrb[0].mxu0 %v1292
      %v2039 = vpop.f32.mrb[0].mxu0
      %v2040 = vadd.f32 0.0, %v2039
      %v2041 = vpop.f32.mrb[0].mxu0
      %v2042 = vpop.f32.mrb[0].mxu0
      %v2043 = vadd.f32 0.0, %v2042
      %v2044 = vpop.f32.mrb[0].mxu0
      %2045 = vmatprep.mubr.bf16.mxu0 0
      %2046 = vmatmul.mubr.bf16.gmra.mrb[0].mxu0 %v1888
      %v2047 = vpop.f32.mrb[0].mxu0
      %v2048 = vadd.f32 0.0, %v2047
      %v2049 = vpop.f32.mrb[0].mxu0
      %v2050 = vpop.f32.mrb[0].mxu0
      %v2051 = vadd.f32 0.0, %v2050
      %v2052 = vpop.f32.mrb[0].mxu0
      %2053 = vdwg.mxu0
      %v2054 = vadd.f32 %v1855, %v1928
      %v2055 = vadd.f32 %v1856, %v1931
      %v2056 = vadd.f32 %v1857, %v1936
      %v2057 = vadd.f32 %v1858, %v1939
      %v2058 = vadd.f32 %v1859, %v1944
      %v2059 = vadd.f32 %v1860, %v1947
      %v2060 = vadd.f32 %v1861, %v1952
      %v2061 = vadd.f32 %v1862, %v1955
      %v2062 = vadd.f32 %v1863, %v1960
      %v2063 = vadd.f32 %v1864, %v1963
      %v2064 = vadd.f32 %v1865, %v1968
      %v2065 = vadd.f32 %v1866, %v1971
      %v2066 = vadd.f32 %v1867, %v1976
      %v2067 = vadd.f32 %v1868, %v1979
      %v2068 = vadd.f32 %v1869, %v1984
      %v2069 = vadd.f32 %v1870, %v1987
      %v2070 = vadd.f32 %v1871, %v1992
      %v2071 = vadd.f32 %v1872, %v1995
      %v2072 = vadd.f32 %v1873, %v2000
      %v2073 = vadd.f32 %v1874, %v2003
      %v2074 = vadd.f32 %v1875, %v2008
      %v2075 = vadd.f32 %v1876, %v2011
      %v2076 = vadd.f32 %v1877, %v2016
      %v2077 = vadd.f32 %v1878, %v2019
      %v2078 = vadd.f32 %v1879, %v2024
      %v2079 = vadd.f32 %v1880, %v2027
      %v2080 = vadd.f32 %v1881, %v2032
      %v2081 = vadd.f32 %v1882, %v2035
      %v2082 = vadd.f32 %v1883, %v2040
      %v2083 = vadd.f32 %v1884, %v2043
      %v2084 = vadd.f32 %v1885, %v2048
      %v2085 = vadd.f32 %v1886, %v2051
      %v2087 = vsel %vm836, %v751, 0
      %v2090 = vsel %vm869, %v833, 0
      %2092 = vmatprep.subr.bf16.mxu0 0
      %2093 = vmatpush1.bf16.msra.mxu0 %v2090
      %2094 = vmatprep.subr.bf16.mxu0 0
      %2095 = vmatpush1.bf16.msra.mxu0 0
      %2096 = vmatprep.subr.bf16.mxu0 0
      %2097 = vmatpush1.bf16.msra.mxu0 0
      %2098 = vmatprep.subr.bf16.mxu0 0
      %2099 = vmatpush1.bf16.msra.mxu0 0
      %2100 = vmatprep.subr.bf16.mxu0 0
      %2101 = vmatpush1.bf16.msra.mxu0 0
      %2102 = vmatprep.subr.bf16.mxu0 0
      %2103 = vmatpush1.bf16.msra.mxu0 0
      %2104 = vmatprep.subr.bf16.mxu0 0
      %2105 = vmatpush1.bf16.msra.mxu0 0
      %2106 = vmatprep.subr.bf16.mxu0 0
      %2107 = vmatpush1.bf16.msra.mxu0 0
      %2108 = vmatprep.subr.bf16.mxu0 0
      %2109 = vmatpush1.bf16.msra.mxu0 0
      %2110 = vmatprep.subr.bf16.mxu0 0
      %2111 = vmatpush1.bf16.msra.mxu0 0
      %2112 = vmatprep.subr.bf16.mxu0 0
      %2113 = vmatpush1.bf16.msra.mxu0 0
      %2114 = vmatprep.subr.bf16.mxu0 0
      %2115 = vmatpush1.bf16.msra.mxu0 0
      %2116 = vmatprep.subr.bf16.mxu0 0
      %2117 = vmatpush1.bf16.msra.mxu0 0
      %2118 = vmatprep.subr.bf16.mxu0 0
      %2119 = vmatpush1.bf16.msra.mxu0 0
      %2120 = vmatprep.subr.bf16.mxu0 0
      %2121 = vmatpush1.bf16.msra.mxu0 0
      %2122 = vmatprep.subr.bf16.mxu0 0
      %2123 = vmatpush1.bf16.msra.mxu0 0
      %2124 = vmatprep.mubr.bf16.mxu0 0
      %2125 = vmatmul.mubr.bf16.gmra.mrb[0].mxu0 %v1041
      %v2126 = vpop.f32.mrb[0].mxu0
      %v2127 = vadd.f32 0.0, %v2126
      %v2128 = vpop.f32.mrb[0].mxu0
      %v2129 = vpop.f32.mrb[0].mxu0
      %v2130 = vadd.f32 0.0, %v2129
      %v2131 = vpop.f32.mrb[0].mxu0
      %2132 = vmatprep.mubr.bf16.mxu0 0
      %2133 = vmatmul.mubr.bf16.gmra.mrb[0].mxu0 %v1044
      %v2134 = vpop.f32.mrb[0].mxu0
      %v2135 = vadd.f32 0.0, %v2134
      %v2136 = vpop.f32.mrb[0].mxu0
      %v2137 = vpop.f32.mrb[0].mxu0
      %v2138 = vadd.f32 0.0, %v2137
      %v2139 = vpop.f32.mrb[0].mxu0
      %2140 = vmatprep.mubr.bf16.mxu0 0
      %2141 = vmatmul.mubr.bf16.gmra.mrb[0].mxu0 %v1047
      %v2142 = vpop.f32.mrb[0].mxu0
      %v2143 = vadd.f32 0.0, %v2142
      %v2144 = vpop.f32.mrb[0].mxu0
      %v2145 = vpop.f32.mrb[0].mxu0
      %v2146 = vadd.f32 0.0, %v2145
      %v2147 = vpop.f32.mrb[0].mxu0
      %2148 = vmatprep.mubr.bf16.mxu0 0
      %2149 = vmatmul.mubr.bf16.gmra.mrb[0].mxu0 %v1050
      %v2150 = vpop.f32.mrb[0].mxu0
      %v2151 = vadd.f32 0.0, %v2150
      %v2152 = vpop.f32.mrb[0].mxu0
      %v2153 = vpop.f32.mrb[0].mxu0
      %v2154 = vadd.f32 0.0, %v2153
      %v2155 = vpop.f32.mrb[0].mxu0
      %2156 = vmatprep.mubr.bf16.mxu0 0
      %2157 = vmatmul.mubr.bf16.gmra.mrb[0].mxu0 %v1053
      %v2158 = vpop.f32.mrb[0].mxu0
      %v2159 = vadd.f32 0.0, %v2158
      %v2160 = vpop.f32.mrb[0].mxu0
      %v2161 = vpop.f32.mrb[0].mxu0
      %v2162 = vadd.f32 0.0, %v2161
      %v2163 = vpop.f32.mrb[0].mxu0
      %2164 = vmatprep.mubr.bf16.mxu0 0
      %2165 = vmatmul.mubr.bf16.gmra.mrb[0].mxu0 %v1056
      %v2166 = vpop.f32.mrb[0].mxu0
      %v2167 = vadd.f32 0.0, %v2166
      %v2168 = vpop.f32.mrb[0].mxu0
      %v2169 = vpop.f32.mrb[0].mxu0
      %v2170 = vadd.f32 0.0, %v2169
      %v2171 = vpop.f32.mrb[0].mxu0
      %2172 = vmatprep.mubr.bf16.mxu0 0
      %2173 = vmatmul.mubr.bf16.gmra.mrb[0].mxu0 %v1059
      %v2174 = vpop.f32.mrb[0].mxu0
      %v2175 = vadd.f32 0.0, %v2174
      %v2176 = vpop.f32.mrb[0].mxu0
      %v2177 = vpop.f32.mrb[0].mxu0
      %v2178 = vadd.f32 0.0, %v2177
      %v2179 = vpop.f32.mrb[0].mxu0
      %2180 = vmatprep.mubr.bf16.mxu0 0
      %2181 = vmatmul.mubr.bf16.gmra.mrb[0].mxu0 %v1062
      %v2182 = vpop.f32.mrb[0].mxu0
      %v2183 = vadd.f32 0.0, %v2182
      %v2184 = vpop.f32.mrb[0].mxu0
      %v2185 = vpop.f32.mrb[0].mxu0
      %v2186 = vadd.f32 0.0, %v2185
      %v2187 = vpop.f32.mrb[0].mxu0
      %2188 = vmatprep.mubr.bf16.mxu0 0
      %2189 = vmatmul.mubr.bf16.gmra.mrb[0].mxu0 %v1065
      %v2190 = vpop.f32.mrb[0].mxu0
      %v2191 = vadd.f32 0.0, %v2190
      %v2192 = vpop.f32.mrb[0].mxu0
      %v2193 = vpop.f32.mrb[0].mxu0
      %v2194 = vadd.f32 0.0, %v2193
      %v2195 = vpop.f32.mrb[0].mxu0
      %2196 = vmatprep.mubr.bf16.mxu0 0
      %2197 = vmatmul.mubr.bf16.gmra.mrb[0].mxu0 %v1068
      %v2198 = vpop.f32.mrb[0].mxu0
      %v2199 = vadd.f32 0.0, %v2198
      %v2200 = vpop.f32.mrb[0].mxu0
      %v2201 = vpop.f32.mrb[0].mxu0
      %v2202 = vadd.f32 0.0, %v2201
      %v2203 = vpop.f32.mrb[0].mxu0
      %2204 = vmatprep.mubr.bf16.mxu0 0
      %2205 = vmatmul.mubr.bf16.gmra.mrb[0].mxu0 %v1071
      %v2206 = vpop.f32.mrb[0].mxu0
      %v2207 = vadd.f32 0.0, %v2206
      %v2208 = vpop.f32.mrb[0].mxu0
      %v2209 = vpop.f32.mrb[0].mxu0
      %v2210 = vadd.f32 0.0, %v2209
      %v2211 = vpop.f32.mrb[0].mxu0
      %2212 = vmatprep.mubr.bf16.mxu0 0
      %2213 = vmatmul.mubr.bf16.gmra.mrb[0].mxu0 %v1074
      %v2214 = vpop.f32.mrb[0].mxu0
      %v2215 = vadd.f32 0.0, %v2214
      %v2216 = vpop.f32.mrb[0].mxu0
      %v2217 = vpop.f32.mrb[0].mxu0
      %v2218 = vadd.f32 0.0, %v2217
      %v2219 = vpop.f32.mrb[0].mxu0
      %2220 = vmatprep.mubr.bf16.mxu0 0
      %2221 = vmatmul.mubr.bf16.gmra.mrb[0].mxu0 %v1077
      %v2222 = vpop.f32.mrb[0].mxu0
      %v2223 = vadd.f32 0.0, %v2222
      %v2224 = vpop.f32.mrb[0].mxu0
      %v2225 = vpop.f32.mrb[0].mxu0
      %v2226 = vadd.f32 0.0, %v2225
      %v2227 = vpop.f32.mrb[0].mxu0
      %2228 = vmatprep.mubr.bf16.mxu0 0
      %2229 = vmatmul.mubr.bf16.gmra.mrb[0].mxu0 %v1080
      %v2230 = vpop.f32.mrb[0].mxu0
      %v2231 = vadd.f32 0.0, %v2230
      %v2232 = vpop.f32.mrb[0].mxu0
      %v2233 = vpop.f32.mrb[0].mxu0
      %v2234 = vadd.f32 0.0, %v2233
      %v2235 = vpop.f32.mrb[0].mxu0
      %2236 = vmatprep.mubr.bf16.mxu0 0
      %2237 = vmatmul.mubr.bf16.gmra.mrb[0].mxu0 %v1491
      %v2238 = vpop.f32.mrb[0].mxu0
      %v2239 = vadd.f32 0.0, %v2238
      %v2240 = vpop.f32.mrb[0].mxu0
      %v2241 = vpop.f32.mrb[0].mxu0
      %v2242 = vadd.f32 0.0, %v2241
      %v2243 = vpop.f32.mrb[0].mxu0
      %2244 = vmatprep.mubr.bf16.mxu0 0
      %2245 = vmatmul.mubr.bf16.gmra.mrb[0].mxu0 %v2087
      %v2246 = vpop.f32.mrb[0].mxu0
      %v2247 = vadd.f32 0.0, %v2246
      %v2248 = vpop.f32.mrb[0].mxu0
      %v2249 = vpop.f32.mrb[0].mxu0
      %v2250 = vadd.f32 0.0, %v2249
      %v2251 = vpop.f32.mrb[0].mxu0
      %2252 = vdwg.mxu0
      %v2253 = vadd.f32 %v2054, %v2127
      %v2254 = vadd.f32 %v2055, %v2130
      %v2255 = vadd.f32 %v2056, %v2135
      %v2256 = vadd.f32 %v2057, %v2138
      %v2257 = vadd.f32 %v2058, %v2143
      %v2258 = vadd.f32 %v2059, %v2146
      %v2259 = vadd.f32 %v2060, %v2151
      %v2260 = vadd.f32 %v2061, %v2154
      %v2261 = vadd.f32 %v2062, %v2159
      %v2262 = vadd.f32 %v2063, %v2162
      %v2263 = vadd.f32 %v2064, %v2167
      %v2264 = vadd.f32 %v2065, %v2170
      %v2265 = vadd.f32 %v2066, %v2175
      %v2266 = vadd.f32 %v2067, %v2178
      %v2267 = vadd.f32 %v2068, %v2183
      %v2268 = vadd.f32 %v2069, %v2186
      %v2269 = vadd.f32 %v2070, %v2191
      %v2270 = vadd.f32 %v2071, %v2194
      %v2271 = vadd.f32 %v2072, %v2199
      %v2272 = vadd.f32 %v2073, %v2202
      %v2273 = vadd.f32 %v2074, %v2207
      %v2274 = vadd.f32 %v2075, %v2210
      %v2275 = vadd.f32 %v2076, %v2215
      %v2276 = vadd.f32 %v2077, %v2218
      %v2277 = vadd.f32 %v2078, %v2223
      %v2278 = vadd.f32 %v2079, %v2226
      %v2279 = vadd.f32 %v2080, %v2231
      %v2280 = vadd.f32 %v2081, %v2234
      %v2281 = vadd.f32 %v2082, %v2239
      %v2282 = vadd.f32 %v2083, %v2242
      %v2283 = vadd.f32 %v2084, %v2247
      %v2284 = vadd.f32 %v2085, %v2250
      %v2285 = vsel %vm836, %v586, 0
      %v2288 = vsel %vm869, %v834, 0
      %2290 = vmatprep.subr.bf16.mxu0 0
      %2291 = vmatpush1.bf16.msra.mxu0 %v2288
      %2292 = vmatprep.subr.bf16.mxu0 0
      %2293 = vmatpush1.bf16.msra.mxu0 0
      %2294 = vmatprep.subr.bf16.mxu0 0
      %2295 = vmatpush1.bf16.msra.mxu0 0
      %2296 = vmatprep.subr.bf16.mxu0 0
      %2297 = vmatpush1.bf16.msra.mxu0 0
      %2298 = vmatprep.subr.bf16.mxu0 0
      %2299 = vmatpush1.bf16.msra.mxu0 0
      %2300 = vmatprep.subr.bf16.mxu0 0
      %2301 = vmatpush1.bf16.msra.mxu0 0
      %2302 = vmatprep.subr.bf16.mxu0 0
      %2303 = vmatpush1.bf16.msra.mxu0 0
      %2304 = vmatprep.subr.bf16.mxu0 0
      %2305 = vmatpush1.bf16.msra.mxu0 0
      %2306 = vmatprep.subr.bf16.mxu0 0
      %2307 = vmatpush1.bf16.msra.mxu0 0
      %2308 = vmatprep.subr.bf16.mxu0 0
      %2309 = vmatpush1.bf16.msra.mxu0 0
      %2310 = vmatprep.subr.bf16.mxu0 0
      %2311 = vmatpush1.bf16.msra.mxu0 0
      %2312 = vmatprep.subr.bf16.mxu0 0
      %2313 = vmatpush1.bf16.msra.mxu0 0
      %2314 = vmatprep.subr.bf16.mxu0 0
      %2315 = vmatpush1.bf16.msra.mxu0 0
      %2316 = vmatprep.subr.bf16.mxu0 0
      %2317 = vmatpush1.bf16.msra.mxu0 0
      %2318 = vmatprep.subr.bf16.mxu0 0
      %2319 = vmatpush1.bf16.msra.mxu0 0
      %2320 = vmatprep.subr.bf16.mxu0 0
      %2321 = vmatpush1.bf16.msra.mxu0 0
      %2322 = vmatprep.mubr.bf16.mxu0 0
      %2323 = vmatmul.mubr.bf16.gmra.mrb[0].mxu0 %v841
      %v2324 = vpop.f32.mrb[0].mxu0
      %v2325 = vadd.f32 0.0, %v2324
      %v2326 = vpop.f32.mrb[0].mxu0
      %v2327 = vpop.f32.mrb[0].mxu0
      %v2328 = vadd.f32 0.0, %v2327
      %v2329 = vpop.f32.mrb[0].mxu0
      %2330 = vmatprep.mubr.bf16.mxu0 0
      %2331 = vmatmul.mubr.bf16.gmra.mrb[0].mxu0 %v843
      %v2332 = vpop.f32.mrb[0].mxu0
      %v2333 = vadd.f32 0.0, %v2332
      %v2334 = vpop.f32.mrb[0].mxu0
      %v2335 = vpop.f32.mrb[0].mxu0
      %v2336 = vadd.f32 0.0, %v2335
      %v2337 = vpop.f32.mrb[0].mxu0
      %2338 = vmatprep.mubr.bf16.mxu0 0
      %2339 = vmatmul.mubr.bf16.gmra.mrb[0].mxu0 %v845
      %v2340 = vpop.f32.mrb[0].mxu0
      %v2341 = vadd.f32 0.0, %v2340
      %v2342 = vpop.f32.mrb[0].mxu0
      %v2343 = vpop.f32.mrb[0].mxu0
      %v2344 = vadd.f32 0.0, %v2343
      %v2345 = vpop.f32.mrb[0].mxu0
      %2346 = vmatprep.mubr.bf16.mxu0 0
      %2347 = vmatmul.mubr.bf16.gmra.mrb[0].mxu0 %v847
      %v2348 = vpop.f32.mrb[0].mxu0
      %v2349 = vadd.f32 0.0, %v2348
      %v2350 = vpop.f32.mrb[0].mxu0
      %v2351 = vpop.f32.mrb[0].mxu0
      %v2352 = vadd.f32 0.0, %v2351
      %v2353 = vpop.f32.mrb[0].mxu0
      %2354 = vmatprep.mubr.bf16.mxu0 0
      %2355 = vmatmul.mubr.bf16.gmra.mrb[0].mxu0 %v849
      %v2356 = vpop.f32.mrb[0].mxu0
      %v2357 = vadd.f32 0.0, %v2356
      %v2358 = vpop.f32.mrb[0].mxu0
      %v2359 = vpop.f32.mrb[0].mxu0
      %v2360 = vadd.f32 0.0, %v2359
      %v2361 = vpop.f32.mrb[0].mxu0
      %2362 = vmatprep.mubr.bf16.mxu0 0
      %2363 = vmatmul.mubr.bf16.gmra.mrb[0].mxu0 %v851
      %v2364 = vpop.f32.mrb[0].mxu0
      %v2365 = vadd.f32 0.0, %v2364
      %v2366 = vpop.f32.mrb[0].mxu0
      %v2367 = vpop.f32.mrb[0].mxu0
      %v2368 = vadd.f32 0.0, %v2367
      %v2369 = vpop.f32.mrb[0].mxu0
      %2370 = vmatprep.mubr.bf16.mxu0 0
      %2371 = vmatmul.mubr.bf16.gmra.mrb[0].mxu0 %v853
      %v2372 = vpop.f32.mrb[0].mxu0
      %v2373 = vadd.f32 0.0, %v2372
      %v2374 = vpop.f32.mrb[0].mxu0
      %v2375 = vpop.f32.mrb[0].mxu0
      %v2376 = vadd.f32 0.0, %v2375
      %v2377 = vpop.f32.mrb[0].mxu0
      %2378 = vmatprep.mubr.bf16.mxu0 0
      %2379 = vmatmul.mubr.bf16.gmra.mrb[0].mxu0 %v855
      %v2380 = vpop.f32.mrb[0].mxu0
      %v2381 = vadd.f32 0.0, %v2380
      %v2382 = vpop.f32.mrb[0].mxu0
      %v2383 = vpop.f32.mrb[0].mxu0
      %v2384 = vadd.f32 0.0, %v2383
      %v2385 = vpop.f32.mrb[0].mxu0
      %2386 = vmatprep.mubr.bf16.mxu0 0
      %2387 = vmatmul.mubr.bf16.gmra.mrb[0].mxu0 %v857
      %v2388 = vpop.f32.mrb[0].mxu0
      %v2389 = vadd.f32 0.0, %v2388
      %v2390 = vpop.f32.mrb[0].mxu0
      %v2391 = vpop.f32.mrb[0].mxu0
      %v2392 = vadd.f32 0.0, %v2391
      %v2393 = vpop.f32.mrb[0].mxu0
      %2394 = vmatprep.mubr.bf16.mxu0 0
      %2395 = vmatmul.mubr.bf16.gmra.mrb[0].mxu0 %v859
      %v2396 = vpop.f32.mrb[0].mxu0
      %v2397 = vadd.f32 0.0, %v2396
      %v2398 = vpop.f32.mrb[0].mxu0
      %v2399 = vpop.f32.mrb[0].mxu0
      %v2400 = vadd.f32 0.0, %v2399
      %v2401 = vpop.f32.mrb[0].mxu0
      %2402 = vmatprep.mubr.bf16.mxu0 0
      %2403 = vmatmul.mubr.bf16.gmra.mrb[0].mxu0 %v861
      %v2404 = vpop.f32.mrb[0].mxu0
      %v2405 = vadd.f32 0.0, %v2404
      %v2406 = vpop.f32.mrb[0].mxu0
      %v2407 = vpop.f32.mrb[0].mxu0
      %v2408 = vadd.f32 0.0, %v2407
      %v2409 = vpop.f32.mrb[0].mxu0
      %2410 = vmatprep.mubr.bf16.mxu0 0
      %2411 = vmatmul.mubr.bf16.gmra.mrb[0].mxu0 %v863
      %v2412 = vpop.f32.mrb[0].mxu0
      %v2413 = vadd.f32 0.0, %v2412
      %v2414 = vpop.f32.mrb[0].mxu0
      %v2415 = vpop.f32.mrb[0].mxu0
      %v2416 = vadd.f32 0.0, %v2415
      %v2417 = vpop.f32.mrb[0].mxu0
      %2418 = vmatprep.mubr.bf16.mxu0 0
      %2419 = vmatmul.mubr.bf16.gmra.mrb[0].mxu0 %v865
      %v2420 = vpop.f32.mrb[0].mxu0
      %v2421 = vadd.f32 0.0, %v2420
      %v2422 = vpop.f32.mrb[0].mxu0
      %v2423 = vpop.f32.mrb[0].mxu0
      %v2424 = vadd.f32 0.0, %v2423
      %v2425 = vpop.f32.mrb[0].mxu0
      %2426 = vmatprep.mubr.bf16.mxu0 0
      %2427 = vmatmul.mubr.bf16.gmra.mrb[0].mxu0 %v867
      %v2428 = vpop.f32.mrb[0].mxu0
      %v2429 = vadd.f32 0.0, %v2428
      %v2430 = vpop.f32.mrb[0].mxu0
      %v2431 = vpop.f32.mrb[0].mxu0
      %v2432 = vadd.f32 0.0, %v2431
      %v2433 = vpop.f32.mrb[0].mxu0
      %2434 = vmatprep.mubr.bf16.mxu0 0
      %2435 = vmatmul.mubr.bf16.gmra.mrb[0].mxu0 %v1689
      %v2436 = vpop.f32.mrb[0].mxu0
      %v2437 = vadd.f32 0.0, %v2436
      %v2438 = vpop.f32.mrb[0].mxu0
      %v2439 = vpop.f32.mrb[0].mxu0
      %v2440 = vadd.f32 0.0, %v2439
      %v2441 = vpop.f32.mrb[0].mxu0
      %2442 = vmatprep.mubr.bf16.mxu0 0
      %2443 = vmatmul.mubr.bf16.gmra.mrb[0].mxu0 %v2285
      %v2444 = vpop.f32.mrb[0].mxu0
      %v2445 = vadd.f32 0.0, %v2444
      %v2446 = vpop.f32.mrb[0].mxu0
      %v2447 = vpop.f32.mrb[0].mxu0
      %v2448 = vadd.f32 0.0, %v2447
      %v2449 = vpop.f32.mrb[0].mxu0
      %2450 = vdwg.mxu0
      %v2451 = vadd.f32 %v2253, %v2325
      %v2452 = vadd.f32 %v2254, %v2328
      %v2453 = vadd.f32 %v2255, %v2333
      %v2454 = vadd.f32 %v2256, %v2336
      %v2455 = vadd.f32 %v2257, %v2341
      %v2456 = vadd.f32 %v2258, %v2344
      %v2457 = vadd.f32 %v2259, %v2349
      %v2458 = vadd.f32 %v2260, %v2352
      %v2459 = vadd.f32 %v2261, %v2357
      %v2460 = vadd.f32 %v2262, %v2360
      %v2461 = vadd.f32 %v2263, %v2365
      %v2462 = vadd.f32 %v2264, %v2368
      %v2463 = vadd.f32 %v2265, %v2373
      %v2464 = vadd.f32 %v2266, %v2376
      %v2465 = vadd.f32 %v2267, %v2381
      %v2466 = vadd.f32 %v2268, %v2384
      %v2467 = vadd.f32 %v2269, %v2389
      %v2468 = vadd.f32 %v2270, %v2392
      %v2469 = vadd.f32 %v2271, %v2397
      %v2470 = vadd.f32 %v2272, %v2400
      %v2471 = vadd.f32 %v2273, %v2405
      %v2472 = vadd.f32 %v2274, %v2408
      %v2473 = vadd.f32 %v2275, %v2413
      %v2474 = vadd.f32 %v2276, %v2416
      %v2475 = vadd.f32 %v2277, %v2421
      %v2476 = vadd.f32 %v2278, %v2424
      %v2477 = vadd.f32 %v2279, %v2429
      %v2478 = vadd.f32 %v2280, %v2432
      %v2479 = vadd.f32 %v2281, %v2437
      %v2480 = vadd.f32 %v2282, %v2440
      %v2481 = vadd.f32 %v2283, %v2445
      %v2482 = vadd.f32 %v2284, %v2448
      %v2484 = vsel %vm836, %v826, 0
      %v2487 = vsel %vm869, %v835, 0
      %2489 = vmatprep.subr.bf16.mxu0 0
      %2490 = vmatpush1.bf16.msra.mxu0 %v2487
      %2491 = vmatprep.subr.bf16.mxu0 0
      %2492 = vmatpush1.bf16.msra.mxu0 0
      %2493 = vmatprep.subr.bf16.mxu0 0
      %2494 = vmatpush1.bf16.msra.mxu0 0
      %2495 = vmatprep.subr.bf16.mxu0 0
      %2496 = vmatpush1.bf16.msra.mxu0 0
      %2497 = vmatprep.subr.bf16.mxu0 0
      %2498 = vmatpush1.bf16.msra.mxu0 0
      %2499 = vmatprep.subr.bf16.mxu0 0
      %2500 = vmatpush1.bf16.msra.mxu0 0
      %2501 = vmatprep.subr.bf16.mxu0 0
      %2502 = vmatpush1.bf16.msra.mxu0 0
      %2503 = vmatprep.subr.bf16.mxu0 0
      %2504 = vmatpush1.bf16.msra.mxu0 0
      %2505 = vmatprep.subr.bf16.mxu0 0
      %2506 = vmatpush1.bf16.msra.mxu0 0
      %2507 = vmatprep.subr.bf16.mxu0 0
      %2508 = vmatpush1.bf16.msra.mxu0 0
      %2509 = vmatprep.subr.bf16.mxu0 0
      %2510 = vmatpush1.bf16.msra.mxu0 0
      %2511 = vmatprep.subr.bf16.mxu0 0
      %2512 = vmatpush1.bf16.msra.mxu0 0
      %2513 = vmatprep.subr.bf16.mxu0 0
      %2514 = vmatpush1.bf16.msra.mxu0 0
      %2515 = vmatprep.subr.bf16.mxu0 0
      %2516 = vmatpush1.bf16.msra.mxu0 0
      %2517 = vmatprep.subr.bf16.mxu0 0
      %2518 = vmatpush1.bf16.msra.mxu0 0
      %2519 = vmatprep.subr.bf16.mxu0 0
      %2520 = vmatpush1.bf16.msra.mxu0 0
      %2521 = vmatprep.mubr.bf16.mxu0 0
      %2522 = vmatmul.mubr.bf16.gmra.mrb[0].mxu0 %v1253
      %v2523 = vpop.f32.mrb[0].mxu0
      %v2524 = vadd.f32 0.0, %v2523
      %v2525 = vpop.f32.mrb[0].mxu0
      %v2526 = vpop.f32.mrb[0].mxu0
      %v2527 = vadd.f32 0.0, %v2526
      %v2528 = vpop.f32.mrb[0].mxu0
      %2529 = vmatprep.mubr.bf16.mxu0 0
      %2530 = vmatmul.mubr.bf16.gmra.mrb[0].mxu0 %v1256
      %v2531 = vpop.f32.mrb[0].mxu0
      %v2532 = vadd.f32 0.0, %v2531
      %v2533 = vpop.f32.mrb[0].mxu0
      %v2534 = vpop.f32.mrb[0].mxu0
      %v2535 = vadd.f32 0.0, %v2534
      %v2536 = vpop.f32.mrb[0].mxu0
      %2537 = vmatprep.mubr.bf16.mxu0 0
      %2538 = vmatmul.mubr.bf16.gmra.mrb[0].mxu0 %v1259
      %v2539 = vpop.f32.mrb[0].mxu0
      %v2540 = vadd.f32 0.0, %v2539
      %v2541 = vpop.f32.mrb[0].mxu0
      %v2542 = vpop.f32.mrb[0].mxu0
      %v2543 = vadd.f32 0.0, %v2542
      %v2544 = vpop.f32.mrb[0].mxu0
      %2545 = vmatprep.mubr.bf16.mxu0 0
      %2546 = vmatmul.mubr.bf16.gmra.mrb[0].mxu0 %v1262
      %v2547 = vpop.f32.mrb[0].mxu0
      %v2548 = vadd.f32 0.0, %v2547
      %v2549 = vpop.f32.mrb[0].mxu0
      %v2550 = vpop.f32.mrb[0].mxu0
      %v2551 = vadd.f32 0.0, %v2550
      %v2552 = vpop.f32.mrb[0].mxu0
      %2553 = vmatprep.mubr.bf16.mxu0 0
      %2554 = vmatmul.mubr.bf16.gmra.mrb[0].mxu0 %v1265
      %v2555 = vpop.f32.mrb[0].mxu0
      %v2556 = vadd.f32 0.0, %v2555
      %v2557 = vpop.f32.mrb[0].mxu0
      %v2558 = vpop.f32.mrb[0].mxu0
      %v2559 = vadd.f32 0.0, %v2558
      %v2560 = vpop.f32.mrb[0].mxu0
      %2561 = vmatprep.mubr.bf16.mxu0 0
      %2562 = vmatmul.mubr.bf16.gmra.mrb[0].mxu0 %v1268
      %v2563 = vpop.f32.mrb[0].mxu0
      %v2564 = vadd.f32 0.0, %v2563
      %v2565 = vpop.f32.mrb[0].mxu0
      %v2566 = vpop.f32.mrb[0].mxu0
      %v2567 = vadd.f32 0.0, %v2566
      %v2568 = vpop.f32.mrb[0].mxu0
      %2569 = vmatprep.mubr.bf16.mxu0 0
      %2570 = vmatmul.mubr.bf16.gmra.mrb[0].mxu0 %v1271
      %v2571 = vpop.f32.mrb[0].mxu0
      %v2572 = vadd.f32 0.0, %v2571
      %v2573 = vpop.f32.mrb[0].mxu0
      %v2574 = vpop.f32.mrb[0].mxu0
      %v2575 = vadd.f32 0.0, %v2574
      %v2576 = vpop.f32.mrb[0].mxu0
      %2577 = vmatprep.mubr.bf16.mxu0 0
      %2578 = vmatmul.mubr.bf16.gmra.mrb[0].mxu0 %v1274
      %v2579 = vpop.f32.mrb[0].mxu0
      %v2580 = vadd.f32 0.0, %v2579
      %v2581 = vpop.f32.mrb[0].mxu0
      %v2582 = vpop.f32.mrb[0].mxu0
      %v2583 = vadd.f32 0.0, %v2582
      %v2584 = vpop.f32.mrb[0].mxu0
      %2585 = vmatprep.mubr.bf16.mxu0 0
      %2586 = vmatmul.mubr.bf16.gmra.mrb[0].mxu0 %v1277
      %v2587 = vpop.f32.mrb[0].mxu0
      %v2588 = vadd.f32 0.0, %v2587
      %v2589 = vpop.f32.mrb[0].mxu0
      %v2590 = vpop.f32.mrb[0].mxu0
      %v2591 = vadd.f32 0.0, %v2590
      %v2592 = vpop.f32.mrb[0].mxu0
      %2593 = vmatprep.mubr.bf16.mxu0 0
      %2594 = vmatmul.mubr.bf16.gmra.mrb[0].mxu0 %v1280
      %v2595 = vpop.f32.mrb[0].mxu0
      %v2596 = vadd.f32 0.0, %v2595
      %v2597 = vpop.f32.mrb[0].mxu0
      %v2598 = vpop.f32.mrb[0].mxu0
      %v2599 = vadd.f32 0.0, %v2598
      %v2600 = vpop.f32.mrb[0].mxu0
      %2601 = vmatprep.mubr.bf16.mxu0 0
      %2602 = vmatmul.mubr.bf16.gmra.mrb[0].mxu0 %v1283
      %v2603 = vpop.f32.mrb[0].mxu0
      %v2604 = vadd.f32 0.0, %v2603
      %v2605 = vpop.f32.mrb[0].mxu0
      %v2606 = vpop.f32.mrb[0].mxu0
      %v2607 = vadd.f32 0.0, %v2606
      %v2608 = vpop.f32.mrb[0].mxu0
      %2609 = vmatprep.mubr.bf16.mxu0 0
      %2610 = vmatmul.mubr.bf16.gmra.mrb[0].mxu0 %v1286
      %v2611 = vpop.f32.mrb[0].mxu0
      %v2612 = vadd.f32 0.0, %v2611
      %v2613 = vpop.f32.mrb[0].mxu0
      %v2614 = vpop.f32.mrb[0].mxu0
      %v2615 = vadd.f32 0.0, %v2614
      %v2616 = vpop.f32.mrb[0].mxu0
      %2617 = vmatprep.mubr.bf16.mxu0 0
      %2618 = vmatmul.mubr.bf16.gmra.mrb[0].mxu0 %v1289
      %v2619 = vpop.f32.mrb[0].mxu0
      %v2620 = vadd.f32 0.0, %v2619
      %v2621 = vpop.f32.mrb[0].mxu0
      %v2622 = vpop.f32.mrb[0].mxu0
      %v2623 = vadd.f32 0.0, %v2622
      %v2624 = vpop.f32.mrb[0].mxu0
      %2625 = vmatprep.mubr.bf16.mxu0 0
      %2626 = vmatmul.mubr.bf16.gmra.mrb[0].mxu0 %v1292
      %v2627 = vpop.f32.mrb[0].mxu0
      %v2628 = vadd.f32 0.0, %v2627
      %v2629 = vpop.f32.mrb[0].mxu0
      %v2630 = vpop.f32.mrb[0].mxu0
      %v2631 = vadd.f32 0.0, %v2630
      %v2632 = vpop.f32.mrb[0].mxu0
      %2633 = vmatprep.mubr.bf16.mxu0 0
      %2634 = vmatmul.mubr.bf16.gmra.mrb[0].mxu0 %v1888
      %v2635 = vpop.f32.mrb[0].mxu0
      %v2636 = vadd.f32 0.0, %v2635
      %v2637 = vpop.f32.mrb[0].mxu0
      %v2638 = vpop.f32.mrb[0].mxu0
      %v2639 = vadd.f32 0.0, %v2638
      %v2640 = vpop.f32.mrb[0].mxu0
      %2641 = vmatprep.mubr.bf16.mxu0 0
      %2642 = vmatmul.mubr.bf16.gmra.mrb[0].mxu0 %v2484
      %v2643 = vpop.f32.mrb[0].mxu0
      %v2644 = vadd.f32 0.0, %v2643
      %v2645 = vpop.f32.mrb[0].mxu0
      %v2646 = vpop.f32.mrb[0].mxu0
      %v2647 = vadd.f32 0.0, %v2646
      %v2648 = vpop.f32.mrb[0].mxu0
      %2649 = vdwg.mxu0
      %v2650 = vadd.f32 %v2451, %v2524
      %v2651 = vadd.f32 %v2452, %v2527
      %v2652 = vadd.f32 %v2453, %v2532
      %v2653 = vadd.f32 %v2454, %v2535
      %v2654 = vadd.f32 %v2455, %v2540
      %v2655 = vadd.f32 %v2456, %v2543
      %v2656 = vadd.f32 %v2457, %v2548
      %v2657 = vadd.f32 %v2458, %v2551
      %v2658 = vadd.f32 %v2459, %v2556
      %v2659 = vadd.f32 %v2460, %v2559
      %v2660 = vadd.f32 %v2461, %v2564
      %v2661 = vadd.f32 %v2462, %v2567
      %v2662 = vadd.f32 %v2463, %v2572
      %v2663 = vadd.f32 %v2464, %v2575
      %v2664 = vadd.f32 %v2465, %v2580
      %v2665 = vadd.f32 %v2466, %v2583
      %v2666 = vadd.f32 %v2467, %v2588
      %v2667 = vadd.f32 %v2468, %v2591
      %v2668 = vadd.f32 %v2469, %v2596
      %v2669 = vadd.f32 %v2470, %v2599
      %v2670 = vadd.f32 %v2471, %v2604
      %v2671 = vadd.f32 %v2472, %v2607
      %v2672 = vadd.f32 %v2473, %v2612
      %v2673 = vadd.f32 %v2474, %v2615
      %v2674 = vadd.f32 %v2475, %v2620
      %v2675 = vadd.f32 %v2476, %v2623
      %v2676 = vadd.f32 %v2477, %v2628
      %v2677 = vadd.f32 %v2478, %v2631
      %v2678 = vadd.f32 %v2479, %v2636
      %v2679 = vadd.f32 %v2480, %v2639
      %v2680 = vadd.f32 %v2481, %v2644
      %v2681 = vadd.f32 %v2482, %v2647
      %v2682 = vsel %vm836, %v2650, 0.0
      %v2683 = vsel %vm836, %v2651, 0.0
      %v2684 = vadd.f32 %v2682, %v2683
      %v2685 = vsel %vm836, %v2652, 0.0
      %v2686 = vadd.f32 %v2684, %v2685
      %v2687 = vsel %vm836, %v2653, 0.0
      %v2688 = vadd.f32 %v2686, %v2687
      %v2689 = vsel %vm836, %v2654, 0.0
      %v2690 = vadd.f32 %v2688, %v2689
      %v2691 = vsel %vm836, %v2655, 0.0
      %v2692 = vadd.f32 %v2690, %v2691
      %v2693 = vsel %vm836, %v2656, 0.0
      %v2694 = vadd.f32 %v2692, %v2693
      %v2695 = vsel %vm836, %v2657, 0.0
      %v2696 = vadd.f32 %v2694, %v2695
      %v2697 = vsel %vm836, %v2658, 0.0
      %v2698 = vadd.f32 %v2696, %v2697
      %v2699 = vsel %vm836, %v2659, 0.0
      %v2700 = vadd.f32 %v2698, %v2699
      %v2701 = vsel %vm836, %v2660, 0.0
      %v2702 = vadd.f32 %v2700, %v2701
      %v2703 = vsel %vm836, %v2661, 0.0
      %v2704 = vadd.f32 %v2702, %v2703
      %v2705 = vsel %vm836, %v2662, 0.0
      %v2706 = vadd.f32 %v2704, %v2705
      %v2707 = vsel %vm836, %v2663, 0.0
      %v2708 = vadd.f32 %v2706, %v2707
      %v2709 = vsel %vm836, %v2664, 0.0
      %v2710 = vadd.f32 %v2708, %v2709
      %v2711 = vsel %vm836, %v2665, 0.0
      %v2712 = vadd.f32 %v2710, %v2711
      %v2713 = vsel %vm836, %v2666, 0.0
      %v2714 = vadd.f32 %v2712, %v2713
      %v2715 = vsel %vm836, %v2667, 0.0
      %v2716 = vadd.f32 %v2714, %v2715
      %v2717 = vsel %vm836, %v2668, 0.0
      %v2718 = vadd.f32 %v2716, %v2717
      %v2719 = vsel %vm836, %v2669, 0.0
      %v2720 = vadd.f32 %v2718, %v2719
      %v2721 = vsel %vm836, %v2670, 0.0
      %v2722 = vadd.f32 %v2720, %v2721
      %v2723 = vsel %vm836, %v2671, 0.0
      %v2724 = vadd.f32 %v2722, %v2723
      %v2725 = vsel %vm836, %v2672, 0.0
      %v2726 = vadd.f32 %v2724, %v2725
      %v2727 = vsel %vm836, %v2673, 0.0
      %v2728 = vadd.f32 %v2726, %v2727
      %v2729 = vsel %vm836, %v2674, 0.0
      %v2730 = vadd.f32 %v2728, %v2729
      %v2731 = vsel %vm836, %v2675, 0.0
      %v2732 = vadd.f32 %v2730, %v2731
      %v2733 = vsel %vm836, %v2676, 0.0
      %v2734 = vadd.f32 %v2732, %v2733
      %v2735 = vsel %vm836, %v2677, 0.0
      %v2736 = vadd.f32 %v2734, %v2735
      %v2737 = vsel %vm836, %v2678, 0.0
      %v2738 = vadd.f32 %v2736, %v2737
      %v2739 = vsel %vm836, %v2679, 0.0
      %v2740 = vadd.f32 %v2738, %v2739
      %v2741 = vsel %vm836, %v2680, 0.0
      %v2742 = vadd.f32 %v2740, %v2741
      %v2743 = vsel %vm836, %v2681, 0.0
      %v2744 = vadd.f32 %v2742, %v2743
      %v2745 = vrot.slane %v2744, 4
      %v2746 = vadd.f32 %v2744, %v2745
      %v2747 = vrot.slane %v2746, 2
      %v2748 = vadd.f32 %v2746, %v2747
      %v2749 = vrot.slane %v2748, 1
      %v2750 = vadd.f32 %v2748, %v2749
      %v2751 = vmul.f32 %v2750, 0.00390625
      %v2752 = vsub.f32 %v2650, %v2751
      %v2753 = vsub.f32 %v2651, %v2751
      %v2754 = vsub.f32 %v2652, %v2751
      %v2755 = vsub.f32 %v2653, %v2751
      %v2756 = vsub.f32 %v2654, %v2751
      %v2757 = vsub.f32 %v2655, %v2751
      %v2758 = vsub.f32 %v2656, %v2751
      %v2759 = vsub.f32 %v2657, %v2751
      %v2760 = vsub.f32 %v2658, %v2751
      %v2761 = vsub.f32 %v2659, %v2751
      %v2762 = vsub.f32 %v2660, %v2751
      %v2763 = vsub.f32 %v2661, %v2751
      %v2764 = vsub.f32 %v2662, %v2751
      %v2765 = vsub.f32 %v2663, %v2751
      %v2766 = vsub.f32 %v2664, %v2751
      %v2767 = vsub.f32 %v2665, %v2751
      %v2768 = vsub.f32 %v2666, %v2751
      %v2769 = vsub.f32 %v2667, %v2751
      %v2770 = vsub.f32 %v2668, %v2751
      %v2771 = vsub.f32 %v2669, %v2751
      %v2772 = vsub.f32 %v2670, %v2751
      %v2773 = vsub.f32 %v2671, %v2751
      %v2774 = vsub.f32 %v2672, %v2751
      %v2775 = vsub.f32 %v2673, %v2751
      %v2776 = vsub.f32 %v2674, %v2751
      %v2777 = vsub.f32 %v2675, %v2751
      %v2778 = vsub.f32 %v2676, %v2751
      %v2779 = vsub.f32 %v2677, %v2751
      %v2780 = vsub.f32 %v2678, %v2751
      %v2781 = vsub.f32 %v2679, %v2751
      %v2782 = vsub.f32 %v2680, %v2751
      %v2783 = vsub.f32 %v2681, %v2751
      %v2784 = vmul.f32 %v2752, %v2752
      %v2785 = vmul.f32 %v2753, %v2753
      %v2786 = vmul.f32 %v2754, %v2754
      %v2787 = vmul.f32 %v2755, %v2755
      %v2788 = vmul.f32 %v2756, %v2756
      %v2789 = vmul.f32 %v2757, %v2757
      %v2790 = vmul.f32 %v2758, %v2758
      %v2791 = vmul.f32 %v2759, %v2759
      %v2792 = vmul.f32 %v2760, %v2760
      %v2793 = vmul.f32 %v2761, %v2761
      %v2794 = vmul.f32 %v2762, %v2762
      %v2795 = vmul.f32 %v2763, %v2763
      %v2796 = vmul.f32 %v2764, %v2764
      %v2797 = vmul.f32 %v2765, %v2765
      %v2798 = vmul.f32 %v2766, %v2766
      %v2799 = vmul.f32 %v2767, %v2767
      %v2800 = vmul.f32 %v2768, %v2768
      %v2801 = vmul.f32 %v2769, %v2769
      %v2802 = vmul.f32 %v2770, %v2770
      %v2803 = vmul.f32 %v2771, %v2771
      %v2804 = vmul.f32 %v2772, %v2772
      %v2805 = vmul.f32 %v2773, %v2773
      %v2806 = vmul.f32 %v2774, %v2774
      %v2807 = vmul.f32 %v2775, %v2775
      %v2808 = vmul.f32 %v2776, %v2776
      %v2809 = vmul.f32 %v2777, %v2777
      %v2810 = vmul.f32 %v2778, %v2778
      %v2811 = vmul.f32 %v2779, %v2779
      %v2812 = vmul.f32 %v2780, %v2780
      %v2813 = vmul.f32 %v2781, %v2781
      %v2814 = vmul.f32 %v2782, %v2782
      %v2815 = vmul.f32 %v2783, %v2783
      %v2816 = vsel %vm836, %v2784, 0.0
      %v2817 = vsel %vm836, %v2785, 0.0
      %v2818 = vadd.f32 %v2816, %v2817
      %v2819 = vsel %vm836, %v2786, 0.0
      %v2820 = vadd.f32 %v2818, %v2819
      %v2821 = vsel %vm836, %v2787, 0.0
      %v2822 = vadd.f32 %v2820, %v2821
      %v2823 = vsel %vm836, %v2788, 0.0
      %v2824 = vadd.f32 %v2822, %v2823
      %v2825 = vsel %vm836, %v2789, 0.0
      %v2826 = vadd.f32 %v2824, %v2825
      %v2827 = vsel %vm836, %v2790, 0.0
      %v2828 = vadd.f32 %v2826, %v2827
      %v2829 = vsel %vm836, %v2791, 0.0
      %v2830 = vadd.f32 %v2828, %v2829
      %v2831 = vsel %vm836, %v2792, 0.0
      %v2832 = vadd.f32 %v2830, %v2831
      %v2833 = vsel %vm836, %v2793, 0.0
      %v2834 = vadd.f32 %v2832, %v2833
      %v2835 = vsel %vm836, %v2794, 0.0
      %v2836 = vadd.f32 %v2834, %v2835
      %v2837 = vsel %vm836, %v2795, 0.0
      %v2838 = vadd.f32 %v2836, %v2837
      %v2839 = vsel %vm836, %v2796, 0.0
      %v2840 = vadd.f32 %v2838, %v2839
      %v2841 = vsel %vm836, %v2797, 0.0
      %v2842 = vadd.f32 %v2840, %v2841
      %v2843 = vsel %vm836, %v2798, 0.0
      %v2844 = vadd.f32 %v2842, %v2843
      %v2845 = vsel %vm836, %v2799, 0.0
      %v2846 = vadd.f32 %v2844, %v2845
      %v2847 = vsel %vm836, %v2800, 0.0
      %v2848 = vadd.f32 %v2846, %v2847
      %v2849 = vsel %vm836, %v2801, 0.0
      %v2850 = vadd.f32 %v2848, %v2849
      %v2851 = vsel %vm836, %v2802, 0.0
      %v2852 = vadd.f32 %v2850, %v2851
      %v2853 = vsel %vm836, %v2803, 0.0
      %v2854 = vadd.f32 %v2852, %v2853
      %v2855 = vsel %vm836, %v2804, 0.0
      %v2856 = vadd.f32 %v2854, %v2855
      %v2857 = vsel %vm836, %v2805, 0.0
      %v2858 = vadd.f32 %v2856, %v2857
      %v2859 = vsel %vm836, %v2806, 0.0
      %v2860 = vadd.f32 %v2858, %v2859
      %v2861 = vsel %vm836, %v2807, 0.0
      %v2862 = vadd.f32 %v2860, %v2861
      %v2863 = vsel %vm836, %v2808, 0.0
      %v2864 = vadd.f32 %v2862, %v2863
      %v2865 = vsel %vm836, %v2809, 0.0
      %v2866 = vadd.f32 %v2864, %v2865
      %v2867 = vsel %vm836, %v2810, 0.0
      %v2868 = vadd.f32 %v2866, %v2867
      %v2869 = vsel %vm836, %v2811, 0.0
      %v2870 = vadd.f32 %v2868, %v2869
      %v2871 = vsel %vm836, %v2812, 0.0
      %v2872 = vadd.f32 %v2870, %v2871
      %v2873 = vsel %vm836, %v2813, 0.0
      %v2874 = vadd.f32 %v2872, %v2873
      %v2875 = vsel %vm836, %v2814, 0.0
      %v2876 = vadd.f32 %v2874, %v2875
      %v2877 = vsel %vm836, %v2815, 0.0
      %v2878 = vadd.f32 %v2876, %v2877
      %v2879 = vrot.slane %v2878, 4
      %v2880 = vadd.f32 %v2878, %v2879
      %v2881 = vrot.slane %v2880, 2
      %v2882 = vadd.f32 %v2880, %v2881
      %v2883 = vrot.slane %v2882, 1
      %v2884 = vadd.f32 %v2882, %v2883
      %vm2885 = vcmask 57344
      %2886 = vst.msk [vmem:[%s451] sm:$0x1] %vm2885, %v2750
      %2887 = vst.msk [vmem:[%s451 + $0x1] sm:$0x1] %vm2885, %v2884
      %v2888 = vpack.c.bf16 %v2651, %v2650
      %v2889 = vpack.c.bf16 %v2653, %v2652
      %v2890 = vpack.c.bf16 %v2655, %v2654
      %v2891 = vpack.c.bf16 %v2657, %v2656
      %v2892 = vpack.c.bf16 %v2659, %v2658
      %v2893 = vpack.c.bf16 %v2661, %v2660
      %v2894 = vpack.c.bf16 %v2663, %v2662
      %v2895 = vpack.c.bf16 %v2665, %v2664
      %v2896 = vpack.c.bf16 %v2667, %v2666
      %v2897 = vpack.c.bf16 %v2669, %v2668
      %v2898 = vpack.c.bf16 %v2671, %v2670
      %v2899 = vpack.c.bf16 %v2673, %v2672
      %v2900 = vpack.c.bf16 %v2675, %v2674
      %v2901 = vpack.c.bf16 %v2677, %v2676
      %v2902 = vpack.c.bf16 %v2679, %v2678
      %v2903 = vpack.c.bf16 %v2681, %v2680
      %v2920 = vunpack.c.l.b16 %v2888
      %v2921 = vunpack.c.h.b16 %v2888
      %v2922 = vunpack.c.l.b16 %v2889
      %v2923 = vunpack.c.h.b16 %v2889
      %v2924 = vunpack.c.l.b16 %v2890
      %v2925 = vunpack.c.h.b16 %v2890
      %v2926 = vunpack.c.l.b16 %v2891
      %v2927 = vunpack.c.h.b16 %v2891
      %v2928 = vunpack.c.l.b16 %v2892
      %v2929 = vunpack.c.h.b16 %v2892
      %v2930 = vunpack.c.l.b16 %v2893
      %v2931 = vunpack.c.h.b16 %v2893
      %v2932 = vunpack.c.l.b16 %v2894
      %v2933 = vunpack.c.h.b16 %v2894
      %v2934 = vunpack.c.l.b16 %v2895
      %v2935 = vunpack.c.h.b16 %v2895
      %v2936 = vunpack.c.l.b16 %v2896
      %v2937 = vunpack.c.h.b16 %v2896
      %v2938 = vunpack.c.l.b16 %v2897
      %v2939 = vunpack.c.h.b16 %v2897
      %v2940 = vunpack.c.l.b16 %v2898
      %v2941 = vunpack.c.h.b16 %v2898
      %v2942 = vunpack.c.l.b16 %v2899
      %v2943 = vunpack.c.h.b16 %v2899
      %v2944 = vunpack.c.l.b16 %v2900
      %v2945 = vunpack.c.h.b16 %v2900
      %v2946 = vunpack.c.l.b16 %v2901
      %v2947 = vunpack.c.h.b16 %v2901
      %v2948 = vunpack.c.l.b16 %v2902
      %v2949 = vunpack.c.h.b16 %v2902
      %v2950 = vunpack.c.l.b16 %v2903
      %v2951 = vunpack.c.h.b16 %v2903
      %v2952 = vpack.c.b16 %v2920, %v2920
      %v2953 = vpack.c.b16 %v2921, %v2921
      %v2954 = vpack.c.b16 %v2922, %v2922
      %v2955 = vpack.c.b16 %v2923, %v2923
      %v2956 = vpack.c.b16 %v2924, %v2924
      %v2957 = vpack.c.b16 %v2925, %v2925
      %v2958 = vpack.c.b16 %v2926, %v2926
      %v2959 = vpack.c.b16 %v2927, %v2927
      %v2960 = vpack.c.b16 %v2928, %v2928
      %v2961 = vpack.c.b16 %v2929, %v2929
      %v2962 = vpack.c.b16 %v2930, %v2930
      %v2963 = vpack.c.b16 %v2931, %v2931
      %v2964 = vpack.c.b16 %v2932, %v2932
      %v2965 = vpack.c.b16 %v2933, %v2933
      %v2966 = vpack.c.b16 %v2934, %v2934
      %v2967 = vpack.c.b16 %v2935, %v2935
      %v2968 = vpack.c.b16 %v2936, %v2936
      %v2969 = vpack.c.b16 %v2937, %v2937
      %v2970 = vpack.c.b16 %v2938, %v2938
      %v2971 = vpack.c.b16 %v2939, %v2939
      %v2972 = vpack.c.b16 %v2940, %v2940
      %v2973 = vpack.c.b16 %v2941, %v2941
      %v2974 = vpack.c.b16 %v2942, %v2942
      %v2975 = vpack.c.b16 %v2943, %v2943
      %v2976 = vpack.c.b16 %v2944, %v2944
      %v2977 = vpack.c.b16 %v2945, %v2945
      %v2978 = vpack.c.b16 %v2946, %v2946
      %v2979 = vpack.c.b16 %v2947, %v2947
      %v2980 = vpack.c.b16 %v2948, %v2948
      %v2981 = vpack.c.b16 %v2949, %v2949
      %v2982 = vpack.c.b16 %v2950, %v2950
      %v2983 = vpack.c.b16 %v2951, %v2951
      %vm3016 = vcmask 60416
      %3017 = vst.msk [vmem:[%s440] sm:$0xf] %vm3016, %v2952
      %3018 = vst.msk [vmem:[%s440 + $0x4] sm:$0xf] %vm3016, %v2953
      %3019 = vst.msk [vmem:[%s440 + $0x8] sm:$0xf] %vm3016, %v2954
      %3020 = vst.msk [vmem:[%s440 + $0xc] sm:$0xf] %vm3016, %v2955
      %3021 = vst.msk [vmem:[%s440 + $0x10] sm:$0xf] %vm3016, %v2956
      %3022 = vst.msk [vmem:[%s440 + $0x14] sm:$0xf] %vm3016, %v2957
      %3023 = vst.msk [vmem:[%s440 + $0x18] sm:$0xf] %vm3016, %v2958
      %3024 = vst.msk [vmem:[%s440 + $0x1c] sm:$0xf] %vm3016, %v2959
      %3025 = vst.msk [vmem:[%s440 + $0x20] sm:$0xf] %vm3016, %v2960
      %3026 = vst.msk [vmem:[%s440 + $0x24] sm:$0xf] %vm3016, %v2961
      %3027 = vst.msk [vmem:[%s440 + $0x28] sm:$0xf] %vm3016, %v2962
      %3028 = vst.msk [vmem:[%s440 + $0x2c] sm:$0xf] %vm3016, %v2963
      %3029 = vst.msk [vmem:[%s440 + $0x30] sm:$0xf] %vm3016, %v2964
      %3030 = vst.msk [vmem:[%s440 + $0x34] sm:$0xf] %vm3016, %v2965
      %3031 = vst.msk [vmem:[%s440 + $0x38] sm:$0xf] %vm3016, %v2966
      %3032 = vst.msk [vmem:[%s440 + $0x3c] sm:$0xf] %vm3016, %v2967
      %3033 = vst.msk [vmem:[%s440 + $0x40] sm:$0xf] %vm3016, %v2968
      %3034 = vst.msk [vmem:[%s440 + $0x44] sm:$0xf] %vm3016, %v2969
      %3035 = vst.msk [vmem:[%s440 + $0x48] sm:$0xf] %vm3016, %v2970
      %3036 = vst.msk [vmem:[%s440 + $0x4c] sm:$0xf] %vm3016, %v2971
      %3037 = vst.msk [vmem:[%s440 + $0x50] sm:$0xf] %vm3016, %v2972
      %3038 = vst.msk [vmem:[%s440 + $0x54] sm:$0xf] %vm3016, %v2973
      %3039 = vst.msk [vmem:[%s440 + $0x58] sm:$0xf] %vm3016, %v2974
      %3040 = vst.msk [vmem:[%s440 + $0x5c] sm:$0xf] %vm3016, %v2975
      %3041 = vst.msk [vmem:[%s440 + $0x60] sm:$0xf] %vm3016, %v2976
      %3042 = vst.msk [vmem:[%s440 + $0x64] sm:$0xf] %vm3016, %v2977
      %3043 = vst.msk [vmem:[%s440 + $0x68] sm:$0xf] %vm3016, %v2978
      %3044 = vst.msk [vmem:[%s440 + $0x6c] sm:$0xf] %vm3016, %v2979
      %3045 = vst.msk [vmem:[%s440 + $0x70] sm:$0xf] %vm3016, %v2980
      %3046 = vst.msk [vmem:[%s440 + $0x74] sm:$0xf] %vm3016, %v2981
      %3047 = vst.msk [vmem:[%s440 + $0x78] sm:$0xf] %vm3016, %v2982
      %3048 = vst.msk [vmem:[%s440 + $0x7c] sm:$0xf] %vm3016, %v2983
      %s3049 = smul.u32 16, %s23
      %p3050 = scmp.lt.s32.totalorder %s22, 1
      %s3051 = scalar_select %p3050, %s22, 1
      %p3052 = scmp.lt.s32.totalorder %s3049, 15
      %s3053 = scalar_select %p3052, %s3049, 15
      %p3054 = scmp.lt.s32.totalorder %s24, 0
      %s3055 = scalar_select %p3054, %s24, 0
      %s3056 = smul.addr %s3053, 2
      %s3057 = sadd.s32 %s3055, %s3056
      %s3058 = smul.addr %s3051, 32
      %s3059 = sadd.s32 %s3057, %s3058
      %s3060 = smul.addr %s3059, 4
      %s3061 = scalar_lea.vmem %s4, %s3060
      %p3062 = scmp.lt.s32.totalorder %s22, 1
      %s3063 = scalar_select %p3062, %s22, 1
      %p3064 = scmp.lt.s32.totalorder %s23, 0
      %s3065 = scalar_select %p3064, %s23, 0
      %p3066 = scmp.lt.s32.totalorder %s24, 0
      %s3067 = scalar_select %p3066, %s24, 0
      %s3068 = sadd.s32 %s3067, %s3065
      %s3069 = sadd.s32 %s3068, %s3063
      %s3070 = smul.addr %s3069, 2
      %s3071 = scalar_lea.vmem %s5, %s3070
      // Predicated region
      $region37: #{downsample_forward.3} parent=35 // pred_check
        %p3072 = pneg %p184
      $region38: #{downsample_forward.3} parent=35 // pred_check_branch
        %3074 = sbr.rel (%p3072) target = $region40
      $region39: #{downsample_forward.3} parent=35 // pred_region
        %s3075 = smul.u32 16, %s23
      $region40: #{downsample_forward.3} parent=35 // pred_fallthru
        _
      // Predicated region
      $region41: #{downsample_forward.3} parent=35 // pred_check
        %p3076 = pneg %p214
      $region42: #{downsample_forward.3} parent=35 // pred_check_branch
        %3078 = sbr.rel (%p3076) target = $region44
      $region43: #{downsample_forward.3} parent=35 // pred_region
        _
      $region44: #{downsample_forward.3} parent=35 // pred_fallthru
        _
    $region36: #{downsample_forward.3} parent=5 // pred_fallthru
      _
    %p3079 = scmp.le.s32.totalorder 2, %s12
    // Predicated region
    $region45: #{downsample_forward.3} parent=5 // pred_check
      %p3080 = pneg %p3079
    $region46: #{downsample_forward.3} parent=5 // pred_check_branch
      %3082 = sbr.rel (%p3080) target = $region48
    $region47: #{downsample_forward.3} parent=5 // pred_region
      %s3083 = ssub.s32 %s12, 2
      // Predicated region
      $region49: #{downsample_forward.3} parent=47 // pred_check
        %p3084 = pneg %p190
      $region50: #{downsample_forward.3} parent=47 // pred_check_branch
        %3086 = sbr.rel (%p3084) target = $region52
      $region51: #{downsample_forward.3} parent=47 // pred_region
        %s3087 = smul.u32 16, %s26
        %p3088 = scmp.lt.s32.totalorder %s25, 1
        %s3089 = scalar_select %p3088, %s25, 1
        %p3090 = scmp.lt.s32.totalorder %s3087, 15
        %s3091 = scalar_select %p3090, %s3087, 15
        %p3092 = scmp.lt.s32.totalorder %s27, 0
        %s3093 = scalar_select %p3092, %s27, 0
        %s3094 = smul.addr %s3091, 2
        %s3095 = sadd.s32 %s3093, %s3094
        %s3096 = smul.addr %s3089, 32
        %s3097 = sadd.s32 %s3095, %s3096
        %s3098 = smul.addr %s3097, 4
        %s3099 = scalar_lea.vmem %s4, %s3098
      $region52: #{downsample_forward.3} parent=47 // pred_fallthru
        _
      // Predicated region
      $region53: #{downsample_forward.3} parent=47 // pred_check
        %p3100 = pneg %p220
      $region54: #{downsample_forward.3} parent=47 // pred_check_branch
        %3102 = sbr.rel (%p3100) target = $region56
      $region55: #{downsample_forward.3} parent=47 // pred_region
        %p3103 = scmp.lt.s32.totalorder %s25, 1
        %s3104 = scalar_select %p3103, %s25, 1
        %p3105 = scmp.lt.s32.totalorder %s26, 0
        %s3106 = scalar_select %p3105, %s26, 0
        %p3107 = scmp.lt.s32.totalorder %s27, 0
        %s3108 = scalar_select %p3107, %s27, 0
        %s3109 = sadd.s32 %s3108, %s3106
        %s3110 = sadd.s32 %s3109, %s3104
        %s3111 = smul.addr %s3110, 2
        %s3112 = scalar_lea.vmem %s5, %s3111
      $region56: #{downsample_forward.3} parent=47 // pred_fallthru
        _
    $region48: #{downsample_forward.3} parent=5 // pred_fallthru
      _
  $region6: #{downsample_forward.3} parent=0 // loop_footer
    %s16 = sadd.s32 1, %s12
  $region7: #{downsample_forward.3} parent=0 // loop_footer_branch
    %11 = sbr.rel target = $region3
  $region8: #{downsample_forward.3} parent=0 // loop_exit
    _

// kernel: downsample_forward.4
$region0: #{downsample_forward.4}
  #allocation0 [shape = 'u32[]', space=smem, size = 0x4, offset = 0x4, fixed_abs, tag = 'smem constant byte address 0x4 - core index']
  #allocation1 [shape = 'u32[144,128]{1,0:T(1,128)}', space=vmem, size = 0x12000, scoped, tag = 'internal scratch']
  %s0 = inlined_call_operand.vmem [shape: f32[1,8], index: 0, kind: input, shape index: {}]
  %s1 = inlined_call_operand.vmem [shape: f32[1,8], index: 1, kind: input, shape index: {}]
  %s2 = inlined_call_operand.vmem [shape: bf16[2,16,16,8], index: 2, kind: input, shape index: {}, may-alias: {2,3,4}]
  %s3 = inlined_call_operand.vmem [shape: bf16[2,16,16,8], index: 3, kind: input, shape index: {}, may-alias: {2,3,4}]
  %s4 = inlined_call_operand.vmem [shape: bf16[2,16,16,8], index: 4, kind: input, shape index: {}, may-alias: {2,3,4}]
  %s5 = inlined_call_operand.vmem [shape: bf16[9,8,8], index: 5, kind: input, shape index: {}]
  %s6 = inlined_call_operand.vmem [shape: bf16[2,16,16,8], index: 6, kind: output, shape index: {0}]
  %s7 = inlined_call_operand.vmem [shape: f32[2,1,2,8], index: 7, kind: output, shape index: {1}]
  %8 = xla_tuple %s6, %s7
  %s9 = sld [smem:[#allocation0]]
  $region65: #{downsample_forward.4} parent=0
    _
  %s11 = ssub.s32 1, %s9
  %s12 = scalar_select 0, %s11, %s9
  loop: start=0, step=1, limit=4
  $region2: #{downsample_forward.4} parent=0 // loop_pre_header
    _
  $region3: #{downsample_forward.4} parent=0 // loop_header
    %s14 = sphi 0, %s18
    %p15 = scmp.ge.s32.totalorder %s14, 4
    %s21 = sphi 0, %s40
    %s22 = sphi 0, %s36
    %s23 = sphi 0, %s32
    %s24 = sphi 0, %s21
    %s25 = sphi 0, %s22
    %s26 = sphi 0, %s23
    %s27 = sphi 0, %s24
    %s28 = sphi 0, %s25
    %s29 = sphi 0, %s26
    %s41 = sphi 0, %s41
    %s43 = sphi 0, %s41
    %s44 = sphi 0, %s43
    %s58 = sphi 0, %s44
    %s62 = sphi 0, %s62
    %s64 = sphi 0, %s62
    %s65 = sphi 0, %s64
    %s79 = sphi 0, %s65
    %s95 = sphi 0, %s97
    %s98 = sphi 0, %s95
    %s99 = sphi 0, %s98
    %s115 = sphi 0, %s99
    %s123 = sphi 0, %s125
    %s126 = sphi 0, %s123
    %s127 = sphi 0, %s126
    %s143 = sphi 0, %s127
    %s159 = sphi 0, %s161
    %s162 = sphi 0, %s159
    %s163 = sphi 0, %s162
    %s179 = sphi 0, %s163
    %s185 = sphi 0, %s187
    %s188 = sphi 0, %s185
    %s189 = sphi 0, %s188
    %s205 = sphi 0, %s189
    %s215 = sphi 0, %s217
    %s218 = sphi 0, %s215
    %s219 = sphi 0, %s218
    %s235 = sphi 0, %s219
    %s245 = sphi 0, %s247
    %s248 = sphi 0, %s245
    %s249 = sphi 0, %s248
    %s265 = sphi 0, %s249
  $region4: #{downsample_forward.4} parent=0 // loop_header_branch
    %17 = sbr.rel (%p15) target = $region8
  $region5: #{downsample_forward.4} parent=0 // loop_body
    %s19 = ssub.s32 %s14, 1
    %s20 = ssub.s32 %s14, 2
    %s30 = sadd.s32 1, %s23
    %p31 = scmp.ge.s32.totalorder %s30, 1
    %s32 = scalar_select %p31, 0, %s30
    %s33 = sadd.s32 1, %s22
    %s34 = scalar_select %p31, %s33, %s22
    %p35 = scmp.ge.s32.totalorder %s34, 1
    %s36 = scalar_select %p35, 0, %s34
    %s37 = sadd.s32 1, %s21
    %s38 = scalar_select %p35, %s37, %s21
    %p39 = scmp.ge.s32.totalorder %s38, 2
    %s40 = scalar_select %p39, 0, %s38
    %s42 = sadd.s32 %s41, 1
    %p45 = scmp.eq.s32.totalorder %s14, 1
    %p46 = scmp.ne.s32.totalorder %s41, %s43
    %p47 = scmp.eq.s32.totalorder %s14, 0
    %p48 = por %p46, %p47
    %p49 = scmp.ne.s32.totalorder %s41, %s43
    %p50 = scmp.eq.s32.totalorder %s19, 1
    %p51 = por %p49, %p50
    %p52 = scmp.ne.s32.totalorder %s43, %s44
    %p53 = scmp.eq.s32.totalorder %s19, 0
    %p54 = por %p52, %p53
    %p55 = scmp.ne.s32.totalorder %s43, %s44
    %p56 = scmp.eq.s32.totalorder %s20, 1
    %p57 = por %p55, %p56
    %p59 = scmp.ne.s32.totalorder %s44, %s58
    %p60 = scmp.eq.s32.totalorder %s20, 0
    %p61 = por %p59, %p60
    %s63 = sadd.s32 %s62, 1
    %p66 = scmp.eq.s32.totalorder %s14, 1
    %p67 = scmp.ne.s32.totalorder %s62, %s64
    %p68 = scmp.eq.s32.totalorder %s14, 0
    %p69 = por %p67, %p68
    %p70 = scmp.ne.s32.totalorder %s62, %s64
    %p71 = scmp.eq.s32.totalorder %s19, 1
    %p72 = por %p70, %p71
    %p73 = scmp.ne.s32.totalorder %s64, %s65
    %p74 = scmp.eq.s32.totalorder %s19, 0
    %p75 = por %p73, %p74
    %p76 = scmp.ne.s32.totalorder %s64, %s65
    %p77 = scmp.eq.s32.totalorder %s20, 1
    %p78 = por %p76, %p77
    %p80 = scmp.ne.s32.totalorder %s65, %s79
    %p81 = scmp.eq.s32.totalorder %s20, 0
    %p82 = por %p80, %p81
    %s83 = smul.u32 %s22, 16
    %s84 = ssub.s32 %s83, 1
    %p85 = scmp.gt.s32.totalorder %s84, 0
    %s86 = scalar_select %p85, %s84, 0
    %s87 = smul.u32 %s36, 16
    %s88 = ssub.s32 %s87, 1
    %p89 = scmp.gt.s32.totalorder %s88, 0
    %s90 = scalar_select %p89, %s88, 0
    %s91 = ssub.s32 %s21, %s40
    %s92 = ssub.s32 %s86, %s90
    %s93 = sor.u32 %s91, %s92
    %p94 = scmp.eq.s32.totalorder %s93, 0
    %s96 = sadd.s32 %s95, 1
    %s97 = scalar_select %p94, %s95, %s96
    %p100 = pneg %p94
    %p101 = scmp.eq.s32.totalorder %s14, 1
    %p102 = por %p100, %p101
    %p103 = scmp.ne.s32.totalorder %s95, %s98
    %p104 = scmp.eq.s32.totalorder %s14, 0
    %p105 = por %p103, %p104
    %p106 = scmp.ne.s32.totalorder %s95, %s98
    %p107 = scmp.eq.s32.totalorder %s19, 1
    %p108 = por %p106, %p107
    %p109 = scmp.ne.s32.totalorder %s98, %s99
    %p110 = scmp.eq.s32.totalorder %s19, 0
    %p111 = por %p109, %p110
    %p112 = scmp.ne.s32.totalorder %s98, %s99
    %p113 = scmp.eq.s32.totalorder %s20, 1
    %p114 = por %p112, %p113
    %p116 = scmp.ne.s32.totalorder %s99, %s115
    %p117 = scmp.eq.s32.totalorder %s20, 0
    %p118 = por %p116, %p117
    %s119 = ssub.s32 %s21, %s40
    %s120 = ssub.s32 %s22, %s36
    %s121 = sor.u32 %s119, %s120
    %p122 = scmp.eq.s32.totalorder %s121, 0
    %s124 = sadd.s32 %s123, 1
    %s125 = scalar_select %p122, %s123, %s124
    %p128 = pneg %p122
    %p129 = scmp.eq.s32.totalorder %s14, 1
    %p130 = por %p128, %p129
    %p131 = scmp.ne.s32.totalorder %s123, %s126
    %p132 = scmp.eq.s32.totalorder %s14, 0
    %p133 = por %p131, %p132
    %p134 = scmp.ne.s32.totalorder %s123, %s126
    %p135 = scmp.eq.s32.totalorder %s19, 1
    %p136 = por %p134, %p135
    %p137 = scmp.ne.s32.totalorder %s126, %s127
    %p138 = scmp.eq.s32.totalorder %s19, 0
    %p139 = por %p137, %p138
    %p140 = scmp.ne.s32.totalorder %s126, %s127
    %p141 = scmp.eq.s32.totalorder %s20, 1
    %p142 = por %p140, %p141
    %p144 = scmp.ne.s32.totalorder %s127, %s143
    %p145 = scmp.eq.s32.totalorder %s20, 0
    %p146 = por %p144, %p145
    %s147 = sadd.s32 %s22, 1
    %s148 = smul.u32 %s147, 16
    %p149 = scmp.lt.s32.totalorder %s148, 15
    %s150 = scalar_select %p149, %s148, 15
    %s151 = sadd.s32 %s36, 1
    %s152 = smul.u32 %s151, 16
    %p153 = scmp.lt.s32.totalorder %s152, 15
    %s154 = scalar_select %p153, %s152, 15
    %s155 = ssub.s32 %s21, %s40
    %s156 = ssub.s32 %s150, %s154
    %s157 = sor.u32 %s155, %s156
    %p158 = scmp.eq.s32.totalorder %s157, 0
    %s160 = sadd.s32 %s159, 1
    %s161 = scalar_select %p158, %s159, %s160
    %p164 = pneg %p158
    %p165 = scmp.eq.s32.totalorder %s14, 1
    %p166 = por %p164, %p165
    %p167 = scmp.ne.s32.totalorder %s159, %s162
    %p168 = scmp.eq.s32.totalorder %s14, 0
    %p169 = por %p167, %p168
    %p170 = scmp.ne.s32.totalorder %s159, %s162
    %p171 = scmp.eq.s32.totalorder %s19, 1
    %p172 = por %p170, %p171
    %p173 = scmp.ne.s32.totalorder %s162, %s163
    %p174 = scmp.eq.s32.totalorder %s19, 0
    %p175 = por %p173, %p174
    %p176 = scmp.ne.s32.totalorder %s162, %s163
    %p177 = scmp.eq.s32.totalorder %s20, 1
    %p178 = por %p176, %p177
    %p180 = scmp.ne.s32.totalorder %s163, %s179
    %p181 = scmp.eq.s32.totalorder %s20, 0
    %p182 = por %p180, %p181
    %s183 = ssub.s32 %s23, %s32
    %p184 = scmp.eq.s32.totalorder %s183, 0
    %s186 = sadd.s32 %s185, 1
    %s187 = scalar_select %p184, %s185, %s186
    %p190 = pneg %p184
    %p191 = scmp.eq.s32.totalorder %s14, 1
    %p192 = por %p190, %p191
    %p193 = scmp.ne.s32.totalorder %s185, %s188
    %p194 = scmp.eq.s32.totalorder %s14, 0
    %p195 = por %p193, %p194
    %p196 = scmp.ne.s32.totalorder %s185, %s188
    %p197 = scmp.eq.s32.totalorder %s19, 1
    %p198 = por %p196, %p197
    %p199 = scmp.ne.s32.totalorder %s188, %s189
    %p200 = scmp.eq.s32.totalorder %s19, 0
    %p201 = por %p199, %p200
    %p202 = scmp.ne.s32.totalorder %s188, %s189
    %p203 = scmp.eq.s32.totalorder %s20, 1
    %p204 = por %p202, %p203
    %p206 = scmp.ne.s32.totalorder %s189, %s205
    %p207 = scmp.eq.s32.totalorder %s20, 0
    %p208 = por %p206, %p207
    %s209 = ssub.s32 %s21, %s40
    %s210 = ssub.s32 %s22, %s36
    %s211 = sor.u32 %s209, %s210
    %s212 = ssub.s32 %s23, %s32
    %s213 = sor.u32 %s211, %s212
    %p214 = scmp.eq.s32.totalorder %s213, 0
    %s216 = sadd.s32 %s215, 1
    %s217 = scalar_select %p214, %s215, %s216
    %p220 = pneg %p214
    %p221 = scmp.eq.s32.totalorder %s14, 1
    %p222 = por %p220, %p221
    %p223 = scmp.ne.s32.totalorder %s215, %s218
    %p224 = scmp.eq.s32.totalorder %s14, 0
    %p225 = por %p223, %p224
    %p226 = scmp.ne.s32.totalorder %s215, %s218
    %p227 = scmp.eq.s32.totalorder %s19, 1
    %p228 = por %p226, %p227
    %p229 = scmp.ne.s32.totalorder %s218, %s219
    %p230 = scmp.eq.s32.totalorder %s19, 0
    %p231 = por %p229, %p230
    %p232 = scmp.ne.s32.totalorder %s218, %s219
    %p233 = scmp.eq.s32.totalorder %s20, 1
    %p234 = por %p232, %p233
    %p236 = scmp.ne.s32.totalorder %s219, %s235
    %p237 = scmp.eq.s32.totalorder %s20, 0
    %p238 = por %p236, %p237
    %s239 = ssub.s32 %s21, %s40
    %s240 = ssub.s32 %s22, %s36
    %s241 = sor.u32 %s239, %s240
    %s242 = ssub.s32 %s23, %s32
    %s243 = sor.u32 %s241, %s242
    %p244 = scmp.eq.s32.totalorder %s243, 0
    %s246 = sadd.s32 %s245, 1
    %s247 = scalar_select %p244, %s245, %s246
    %p250 = pneg %p244
    %p251 = scmp.eq.s32.totalorder %s14, 1
    %p252 = por %p250, %p251
    %p253 = scmp.ne.s32.totalorder %s245, %s248
    %p254 = scmp.eq.s32.totalorder %s14, 0
    %p255 = por %p253, %p254
    %p256 = scmp.ne.s32.totalorder %s245, %s248
    %p257 = scmp.eq.s32.totalorder %s19, 1
    %p258 = por %p256, %p257
    %p259 = scmp.ne.s32.totalorder %s248, %s249
    %p260 = scmp.eq.s32.totalorder %s19, 0
    %p261 = por %p259, %p260
    %p262 = scmp.ne.s32.totalorder %s248, %s249
    %p263 = scmp.eq.s32.totalorder %s20, 1
    %p264 = por %p262, %p263
    %p266 = scmp.ne.s32.totalorder %s249, %s265
    %p267 = scmp.eq.s32.totalorder %s20, 0
    %p268 = por %p266, %p267
    %p269 = scmp.le.s32.totalorder 1, %s14
    %p270 = scmp.lt.s32.totalorder %s14, 3
    %p271 = pnand %p269, %p270
    %p272 = pneg %p271
    // Predicated region
    $region9: #{downsample_forward.4} parent=5 // pred_check
      _
    $region10: #{downsample_forward.4} parent=5 // pred_check_branch
      %274 = sbr.rel (%p271) target = $region12
    $region11: #{downsample_forward.4} parent=5 // pred_region
      %s275 = ssub.s32 %s14, 1
      // Predicated region
      $region13: #{downsample_forward.4} parent=11 // pred_check
        %p276 = pneg %p54
      $region14: #{downsample_forward.4} parent=11 // pred_check_branch
        %278 = sbr.rel (%p276) target = $region16
      $region15: #{downsample_forward.4} parent=11 // pred_region
        _
      $region16: #{downsample_forward.4} parent=11 // pred_fallthru
        _
      // Predicated region
      $region17: #{downsample_forward.4} parent=11 // pred_check
        %p279 = pneg %p75
      $region18: #{downsample_forward.4} parent=11 // pred_check_branch
        %281 = sbr.rel (%p279) target = $region20
      $region19: #{downsample_forward.4} parent=11 // pred_region
        _
      $region20: #{downsample_forward.4} parent=11 // pred_fallthru
        _
      // Predicated region
      $region21: #{downsample_forward.4} parent=11 // pred_check
        %p282 = pneg %p201
      $region22: #{downsample_forward.4} parent=11 // pred_check_branch
        %284 = sbr.rel (%p282) target = $region24
      $region23: #{downsample_forward.4} parent=11 // pred_region
        %p285 = scmp.lt.s32.totalorder %s26, 0
        %s286 = scalar_select %p285, %s26, 0
        %s287 = smul.addr %s286, 4
        %s288 = scalar_lea.vmem %s5, %s287
      $region24: #{downsample_forward.4} parent=11 // pred_fallthru
        _
    $region12: #{downsample_forward.4} parent=5 // pred_fallthru
      _
    %p289 = scmp.lt.s32.totalorder %s14, 2
    // Predicated region
    $region25: #{downsample_forward.4} parent=5 // pred_check
      %p290 = pneg %p289
    $region26: #{downsample_forward.4} parent=5 // pred_check_branch
      %292 = sbr.rel (%p290) target = $region28
    $region27: #{downsample_forward.4} parent=5 // pred_region
      // Predicated region
      $region29: #{downsample_forward.4} parent=27 // pred_check
        %p293 = pneg %p105
      $region30: #{downsample_forward.4} parent=27 // pred_check_branch
        %295 = sbr.rel (%p293) target = $region32
      $region31: #{downsample_forward.4} parent=27 // pred_region
        %s296 = smul.u32 %s22, 16
        %s297 = ssub.s32 %s296, 1
        %p298 = scmp.gt.s32.totalorder %s297, 0
        %s299 = scalar_select %p298, %s297, 0
        %p300 = scmp.lt.s32.totalorder %s21, 1
        %s301 = scalar_select %p300, %s21, 1
        %p302 = scmp.lt.s32.totalorder %s299, 15
        %s303 = scalar_select %p302, %s299, 15
        %s304 = smul.addr %s303, 2
        %s305 = smul.addr %s301, 32
        %s306 = sadd.s32 %s304, %s305
        %s307 = smul.addr %s306, 4
        %s308 = scalar_lea.vmem %s2, %s307
        %s309 = smul.u32 %s22, 16
        %s310 = ssub.s32 %s309, 1
        %p311 = scmp.gt.s32.totalorder %s310, 0
        %s312 = scalar_select %p311, %s310, 0
      $region32: #{downsample_forward.4} parent=27 // pred_fallthru
        _
      // Predicated region
      $region33: #{downsample_forward.4} parent=27 // pred_check
        %p313 = pneg %p133
      $region34: #{downsample_forward.4} parent=27 // pred_check_branch
        %315 = sbr.rel (%p313) target = $region36
      $region35: #{downsample_forward.4} parent=27 // pred_region
        %s316 = smul.u32 16, %s22
        %p317 = scmp.lt.s32.totalorder %s21, 1
        %s318 = scalar_select %p317, %s21, 1
        %p319 = scmp.lt.s32.totalorder %s316, 15
        %s320 = scalar_select %p319, %s316, 15
        %s321 = smul.addr %s320, 2
        %s322 = smul.addr %s318, 32
        %s323 = sadd.s32 %s321, %s322
        %s324 = smul.addr %s323, 4
        %s325 = scalar_lea.vmem %s3, %s324
        %s326 = smul.u32 16, %s22
      $region36: #{downsample_forward.4} parent=27 // pred_fallthru
        _
      // Predicated region
      $region37: #{downsample_forward.4} parent=27 // pred_check
        %p327 = pneg %p169
      $region38: #{downsample_forward.4} parent=27 // pred_check_branch
        %329 = sbr.rel (%p327) target = $region40
      $region39: #{downsample_forward.4} parent=27 // pred_region
        %s330 = sadd.s32 %s22, 1
        %s331 = smul.u32 %s330, 16
        %p332 = scmp.lt.s32.totalorder %s331, 15
        %s333 = scalar_select %p332, %s331, 15
        %p334 = scmp.lt.s32.totalorder %s21, 1
        %s335 = scalar_select %p334, %s21, 1
        %p336 = scmp.lt.s32.totalorder %s333, 15
        %s337 = scalar_select %p336, %s333, 15
        %s338 = smul.addr %s337, 2
        %s339 = smul.addr %s335, 32
        %s340 = sadd.s32 %s338, %s339
        %s341 = smul.addr %s340, 4
        %s342 = scalar_lea.vmem %s4, %s341
        %s343 = sadd.s32 %s22, 1
        %s344 = smul.u32 %s343, 16
        %p345 = scmp.lt.s32.totalorder %s344, 15
        %s346 = scalar_select %p345, %s344, 15
      $region40: #{downsample_forward.4} parent=27 // pred_fallthru
        _
    $region28: #{downsample_forward.4} parent=5 // pred_fallthru
      _
    %p347 = scmp.le.s32.totalorder 1, %s14
    %p348 = scmp.lt.s32.totalorder %s14, 3
    %p349 = pnand %p347, %p348
    %p350 = pneg %p349
    // Predicated region
    $region41: #{downsample_forward.4} parent=5 // pred_check
      _
    $region42: #{downsample_forward.4} parent=5 // pred_check_branch
      %352 = sbr.rel (%p349) target = $region44
    $region43: #{downsample_forward.4} parent=5 // pred_region
      %s353 = ssub.s32 %s14, 1
      %p354 = pneg %p54
      %p355 = pneg %p51
      %p356 = pneg %p75
      %p357 = pneg %p72
      %s358 = smul.u32 %s25, 16
      %s359 = ssub.s32 %s358, 1
      %p360 = scmp.gt.s32.totalorder %s359, 0
      %s361 = scalar_select %p360, %s359, 0
      %p362 = scmp.lt.s32.totalorder %s24, 1
      %s363 = scalar_select %p362, %s24, 1
      %p364 = scmp.lt.s32.totalorder %s361, 15
      %s365 = scalar_select %p364, %s361, 15
      %s366 = smul.addr %s365, 2
      %s367 = smul.addr %s363, 32
      %s368 = sadd.s32 %s366, %s367
      %s369 = smul.addr %s368, 4
      %s370 = scalar_lea.vmem %s2, %s369
      %p371 = pneg %p111
      %p372 = pneg %p108
      %s373 = smul.u32 16, %s25
      %p374 = scmp.lt.s32.totalorder %s24, 1
      %s375 = scalar_select %p374, %s24, 1
      %p376 = scmp.lt.s32.totalorder %s373, 15
      %s377 = scalar_select %p376, %s373, 15
      %s378 = smul.addr %s377, 2
      %s379 = smul.addr %s375, 32
      %s380 = sadd.s32 %s378, %s379
      %s381 = smul.addr %s380, 4
      %s382 = scalar_lea.vmem %s3, %s381
      %p383 = pneg %p139
      %p384 = pneg %p136
      %s385 = sadd.s32 %s25, 1
      %s386 = smul.u32 %s385, 16
      %p387 = scmp.lt.s32.totalorder %s386, 15
      %s388 = scalar_select %p387, %s386, 15
      %p389 = scmp.lt.s32.totalorder %s24, 1
      %s390 = scalar_select %p389, %s24, 1
      %p391 = scmp.lt.s32.totalorder %s388, 15
      %s392 = scalar_select %p391, %s388, 15
      %s393 = smul.addr %s392, 2
      %s394 = smul.addr %s390, 32
      %s395 = sadd.s32 %s393, %s394
      %s396 = smul.addr %s395, 4
      %s397 = scalar_lea.vmem %s4, %s396
      %p398 = pneg %p175
      %p399 = pneg %p172
      %p400 = scmp.lt.s32.totalorder %s26, 0
      %s401 = scalar_select %p400, %s26, 0
      %s402 = smul.addr %s401, 4
      %s403 = scalar_lea.vmem %s5, %s402
      %p404 = pneg %p201
      %p405 = pneg %p198
      %p406 = pneg %p231
      %p407 = pneg %p228
      %s408 = smul.u32 16, %s25
      %p409 = scmp.lt.s32.totalorder %s24, 1
      %s410 = scalar_select %p409, %s24, 1
      %p411 = scmp.lt.s32.totalorder %s408, 15
      %s412 = scalar_select %p411, %s408, 15
      %p413 = scmp.lt.s32.totalorder %s26, 0
      %s414 = scalar_select %p413, %s26, 0
      %s415 = smul.addr %s412, 2
      %s416 = sadd.s32 %s414, %s415
      %s417 = smul.addr %s410, 32
      %s418 = sadd.s32 %s416, %s417
      %s419 = smul.addr %s418, 4
      %s420 = scalar_lea.vmem %s6, %s419
      %p421 = pneg %p261
      %p422 = pneg %p258
      %p423 = scmp.lt.s32.totalorder %s24, 1
      %s424 = scalar_select %p423, %s24, 1
      %p425 = scmp.lt.s32.totalorder %s25, 0
      %s426 = scalar_select %p425, %s25, 0
      %p427 = scmp.lt.s32.totalorder %s26, 0
      %s428 = scalar_select %p427, %s26, 0
      %s429 = sadd.s32 %s428, %s426
      %s430 = sadd.s32 %s429, %s424
      %s431 = smul.addr %s430, 2
      %s432 = scalar_lea.vmem %s7, %s431
      %s433 = smul.u32 %s25, 16
      %s434 = ssub.s32 %s433, 1
      %p435 = scmp.gt.s32.totalorder %s434, 0
      %s436 = scalar_select %p435, %s434, 0
      %p437 = scmp.lt.s32.totalorder %s24, 1
      %s438 = scalar_select %p437, %s24, 1
      %p439 = scmp.lt.s32.totalorder %s436, 15
      %s440 = scalar_select %p439, %s436, 15
      %s441 = smul.addr %s440, 2
      %s442 = smul.addr %s438, 32
      %s443 = sadd.s32 %s441, %s442
      %s444 = smul.addr %s443, 4
      %s445 = scalar_lea.vmem %s2, %s444
      %s446 = smul.u32 %s25, 16
      %s447 = ssub.s32 %s446, 1
      %p448 = scmp.gt.s32.totalorder %s447, 0
      %s449 = scalar_select %p448, %s447, 0
      %s450 = smul.u32 16, %s25
      %p451 = scmp.lt.s32.totalorder %s24, 1
      %s452 = scalar_select %p451, %s24, 1
      %p453 = scmp.lt.s32.totalorder %s450, 15
      %s454 = scalar_select %p453, %s450, 15
      %s455 = smul.addr %s454, 2
      %s456 = smul.addr %s452, 32
      %s457 = sadd.s32 %s455, %s456
      %s458 = smul.addr %s457, 4
      %s459 = scalar_lea.vmem %s3, %s458
      %s460 = smul.u32 16, %s25
      %s461 = sadd.s32 %s25, 1
      %s462 = smul.u32 %s461, 16
      %p463 = scmp.lt.s32.totalorder %s462, 15
      %s464 = scalar_select %p463, %s462, 15
      %p465 = scmp.lt.s32.totalorder %s24, 1
      %s466 = scalar_select %p465, %s24, 1
      %p467 = scmp.lt.s32.totalorder %s464, 15
      %s468 = scalar_select %p467, %s464, 15
      %s469 = smul.addr %s468, 2
      %s470 = smul.addr %s466, 32
      %s471 = sadd.s32 %s469, %s470
      %s472 = smul.addr %s471, 4
      %s473 = scalar_lea.vmem %s4, %s472
      %s474 = sadd.s32 %s25, 1
      %s475 = smul.u32 %s474, 16
      %p476 = scmp.lt.s32.totalorder %s475, 15
      %s477 = scalar_select %p476, %s475, 15
      %p478 = scmp.lt.s32.totalorder %s26, 0
      %s479 = scalar_select %p478, %s26, 0
      %s480 = smul.addr %s479, 4
      %s481 = scalar_lea.vmem %s5, %s480
      %s482 = smul.u32 16, %s25
      %p483 = scmp.lt.s32.totalorder %s24, 1
      %s484 = scalar_select %p483, %s24, 1
      %p485 = scmp.lt.s32.totalorder %s482, 15
      %s486 = scalar_select %p485, %s482, 15
      %p487 = scmp.lt.s32.totalorder %s26, 0
      %s488 = scalar_select %p487, %s26, 0
      %s489 = smul.addr %s486, 2
      %s490 = sadd.s32 %s488, %s489
      %s491 = smul.addr %s484, 32
      %s492 = sadd.s32 %s490, %s491
      %s493 = smul.addr %s492, 4
      %s494 = scalar_lea.vmem %s6, %s493
      %s495 = smul.u32 16, %s25
      %p496 = scmp.lt.s32.totalorder %s24, 1
      %s497 = scalar_select %p496, %s24, 1
      %p498 = scmp.lt.s32.totalorder %s25, 0
      %s499 = scalar_select %p498, %s25, 0
      %p500 = scmp.lt.s32.totalorder %s26, 0
      %s501 = scalar_select %p500, %s26, 0
      %s502 = sadd.s32 %s501, %s499
      %s503 = sadd.s32 %s502, %s497
      %s504 = smul.addr %s503, 2
      %s505 = scalar_lea.vmem %s7, %s504
      %v507 = vld [vmem:[%s445] sm:$0xf]
      %v508 = vld [vmem:[%s445 + $0x4] sm:$0xf]
      %v509 = vld [vmem:[%s459] sm:$0xf]
      %v510 = vld [vmem:[%s459 + $0x4] sm:$0xf]
      %v511 = vld [vmem:[%s459 + $0x8] sm:$0xf]
      %v512 = vld [vmem:[%s459 + $0xc] sm:$0xf]
      %v513 = vld [vmem:[%s459 + $0x10] sm:$0xf]
      %v514 = vld [vmem:[%s459 + $0x14] sm:$0xf]
      %v515 = vld [vmem:[%s459 + $0x18] sm:$0xf]
      %v516 = vld [vmem:[%s459 + $0x1c] sm:$0xf]
      %v517 = vld [vmem:[%s459 + $0x20] sm:$0xf]
      %v518 = vld [vmem:[%s459 + $0x24] sm:$0xf]
      %v519 = vld [vmem:[%s459 + $0x28] sm:$0xf]
      %v520 = vld [vmem:[%s459 + $0x2c] sm:$0xf]
      %v521 = vld [vmem:[%s459 + $0x30] sm:$0xf]
      %v522 = vld [vmem:[%s459 + $0x34] sm:$0xf]
      %v523 = vld [vmem:[%s459 + $0x38] sm:$0xf]
      %v524 = vld [vmem:[%s459 + $0x3c] sm:$0xf]
      %v525 = vld [vmem:[%s459 + $0x40] sm:$0xf]
      %v526 = vld [vmem:[%s459 + $0x44] sm:$0xf]
      %v527 = vld [vmem:[%s459 + $0x48] sm:$0xf]
      %v528 = vld [vmem:[%s459 + $0x4c] sm:$0xf]
      %v529 = vld [vmem:[%s459 + $0x50] sm:$0xf]
      %v530 = vld [vmem:[%s459 + $0x54] sm:$0xf]
      %v531 = vld [vmem:[%s459 + $0x58] sm:$0xf]
      %v532 = vld [vmem:[%s459 + $0x5c] sm:$0xf]
      %v533 = vld [vmem:[%s459 + $0x60] sm:$0xf]
      %v534 = vld [vmem:[%s459 + $0x64] sm:$0xf]
      %v535 = vld [vmem:[%s459 + $0x68] sm:$0xf]
      %v536 = vld [vmem:[%s459 + $0x6c] sm:$0xf]
      %v537 = vld [vmem:[%s459 + $0x70] sm:$0xf]
      %v538 = vld [vmem:[%s459 + $0x74] sm:$0xf]
      %v539 = vld [vmem:[%s459 + $0x78] sm:$0xf]
      %v540 = vld [vmem:[%s459 + $0x7c] sm:$0xf]
      %v541 = vld [vmem:[%s473] sm:$0xf]
      %v542 = vld [vmem:[%s473 + $0x4] sm:$0xf]
      %v543 = vld [vmem:[%s0] sm:$0x1]
      %v544 = vld [vmem:[%s1] sm:$0x1]
      %v545 = vunpack.c.l.bf16 %v507
      %v546 = vunpack.c.l.bf16 %v508
      %v548 = vlaneseq
      %v549 = vshrl.u32 %v548, 7
      %v550 = vsub.s32 0, %v549
      %v551 = vrot.slane %v543, %v550
      %v553 = vmul.f32 %v545, %v551
      %v554 = vmul.f32 %v546, %v551
      %v556 = vlaneseq
      %v557 = vshrl.u32 %v556, 7
      %v558 = vsub.s32 0, %v557
      %v559 = vrot.slane %v544, %v558
      %v561 = vadd.f32 %v553, %v559
      %v562 = vadd.f32 %v554, %v559
      %v563 = vmax.f32 %v561, 0.0
      %v564 = vmax.f32 %v562, 0.0
      %v565 = vpack.c.bf16 %v564, %v563
      %v566 = vunpack.c.l.bf16 %v509
      %v567 = vunpack.c.l.bf16 %v510
      %v568 = vunpack.c.l.bf16 %v511
      %v569 = vunpack.c.l.bf16 %v512
      %v570 = vunpack.c.l.bf16 %v513
      %v571 = vunpack.c.l.bf16 %v514
      %v572 = vunpack.c.l.bf16 %v515
      %v573 = vunpack.c.l.bf16 %v516
      %v574 = vunpack.c.l.bf16 %v517
      %v575 = vunpack.c.l.bf16 %v518
      %v576 = vunpack.c.l.bf16 %v519
      %v577 = vunpack.c.l.bf16 %v520
      %v578 = vunpack.c.l.bf16 %v521
      %v579 = vunpack.c.l.bf16 %v522
      %v580 = vunpack.c.l.bf16 %v523
      %v581 = vunpack.c.l.bf16 %v524
      %v582 = vunpack.c.l.bf16 %v525
      %v583 = vunpack.c.l.bf16 %v526
      %v584 = vunpack.c.l.bf16 %v527
      %v585 = vunpack.c.l.bf16 %v528
      %v586 = vunpack.c.l.bf16 %v529
      %v587 = vunpack.c.l.bf16 %v530
      %v588 = vunpack.c.l.bf16 %v531
      %v589 = vunpack.c.l.bf16 %v532
      %v590 = vunpack.c.l.bf16 %v533
      %v591 = vunpack.c.l.bf16 %v534
      %v592 = vunpack.c.l.bf16 %v535
      %v593 = vunpack.c.l.bf16 %v536
      %v594 = vunpack.c.l.bf16 %v537
      %v595 = vunpack.c.l.bf16 %v538
      %v596 = vunpack.c.l.bf16 %v539
      %v597 = vunpack.c.l.bf16 %v540
      %v598 = vmul.f32 %v566, %v551
      %v599 = vmul.f32 %v567, %v551
      %v600 = vmul.f32 %v568, %v551
      %v601 = vmul.f32 %v569, %v551
      %v602 = vmul.f32 %v570, %v551
      %v603 = vmul.f32 %v571, %v551
      %v604 = vmul.f32 %v572, %v551
      %v605 = vmul.f32 %v573, %v551
      %v606 = vmul.f32 %v574, %v551
      %v607 = vmul.f32 %v575, %v551
      %v608 = vmul.f32 %v576, %v551
      %v609 = vmul.f32 %v577, %v551
      %v610 = vmul.f32 %v578, %v551
      %v611 = vmul.f32 %v579, %v551
      %v612 = vmul.f32 %v580, %v551
      %v613 = vmul.f32 %v581, %v551
      %v614 = vmul.f32 %v582, %v551
      %v615 = vmul.f32 %v583, %v551
      %v616 = vmul.f32 %v584, %v551
      %v617 = vmul.f32 %v585, %v551
      %v618 = vmul.f32 %v586, %v551
      %v619 = vmul.f32 %v587, %v551
      %v620 = vmul.f32 %v588, %v551
      %v621 = vmul.f32 %v589, %v551
      %v622 = vmul.f32 %v590, %v551
      %v623 = vmul.f32 %v591, %v551
      %v624 = vmul.f32 %v592, %v551
      %v625 = vmul.f32 %v593, %v551
      %v626 = vmul.f32 %v594, %v551
      %v627 = vmul.f32 %v595, %v551
      %v628 = vmul.f32 %v596, %v551
      %v629 = vmul.f32 %v597, %v551
      %v630 = vadd.f32 %v598, %v559
      %v631 = vadd.f32 %v599, %v559
      %v632 = vadd.f32 %v600, %v559
      %v633 = vadd.f32 %v601, %v559
      %v634 = vadd.f32 %v602, %v559
      %v635 = vadd.f32 %v603, %v559
      %v636 = vadd.f32 %v604, %v559
      %v637 = vadd.f32 %v605, %v559
      %v638 = vadd.f32 %v606, %v559
      %v639 = vadd.f32 %v607, %v559
      %v640 = vadd.f32 %v608, %v559
      %v641 = vadd.f32 %v609, %v559
      %v642 = vadd.f32 %v610, %v559
      %v643 = vadd.f32 %v611, %v559
      %v644 = vadd.f32 %v612, %v559
      %v645 = vadd.f32 %v613, %v559
      %v646 = vadd.f32 %v614, %v559
      %v647 = vadd.f32 %v615, %v559
      %v648 = vadd.f32 %v616, %v559
      %v649 = vadd.f32 %v617, %v559
      %v650 = vadd.f32 %v618, %v559
      %v651 = vadd.f32 %v619, %v559
      %v652 = vadd.f32 %v620, %v559
      %v653 = vadd.f32 %v621, %v559
      %v654 = vadd.f32 %v622, %v559
      %v655 = vadd.f32 %v623, %v559
      %v656 = vadd.f32 %v624, %v559
      %v657 = vadd.f32 %v625, %v559
      %v658 = vadd.f32 %v626, %v559
      %v659 = vadd.f32 %v627, %v559
      %v660 = vadd.f32 %v628, %v559
      %v661 = vadd.f32 %v629, %v559
      %v662 = vmax.f32 %v630, 0.0
      %v663 = vmax.f32 %v631, 0.0
      %v664 = vmax.f32 %v632, 0.0
      %v665 = vmax.f32 %v633, 0.0
      %v666 = vmax.f32 %v634, 0.0
      %v667 = vmax.f32 %v635, 0.0
      %v668 = vmax.f32 %v636, 0.0
      %v669 = vmax.f32 %v637, 0.0
      %v670 = vmax.f32 %v638, 0.0
      %v671 = vmax.f32 %v639, 0.0
      %v672 = vmax.f32 %v640, 0.0
      %v673 = vmax.f32 %v641, 0.0
      %v674 = vmax.f32 %v642, 0.0
      %v675 = vmax.f32 %v643, 0.0
      %v676 = vmax.f32 %v644, 0.0
      %v677 = vmax.f32 %v645, 0.0
      %v678 = vmax.f32 %v646, 0.0
      %v679 = vmax.f32 %v647, 0.0
      %v680 = vmax.f32 %v648, 0.0
      %v681 = vmax.f32 %v649, 0.0
      %v682 = vmax.f32 %v650, 0.0
      %v683 = vmax.f32 %v651, 0.0
      %v684 = vmax.f32 %v652, 0.0
      %v685 = vmax.f32 %v653, 0.0
      %v686 = vmax.f32 %v654, 0.0
      %v687 = vmax.f32 %v655, 0.0
      %v688 = vmax.f32 %v656, 0.0
      %v689 = vmax.f32 %v657, 0.0
      %v690 = vmax.f32 %v658, 0.0
      %v691 = vmax.f32 %v659, 0.0
      %v692 = vmax.f32 %v660, 0.0
      %v693 = vmax.f32 %v661, 0.0
      %v694 = vpack.c.bf16 %v663, %v662
      %v695 = vpack.c.bf16 %v665, %v664
      %v696 = vpack.c.bf16 %v667, %v666
      %v697 = vpack.c.bf16 %v669, %v668
      %v698 = vpack.c.bf16 %v671, %v670
      %v699 = vpack.c.bf16 %v673, %v672
      %v700 = vpack.c.bf16 %v675, %v674
      %v701 = vpack.c.bf16 %v677, %v676
      %v702 = vpack.c.bf16 %v679, %v678
      %v703 = vpack.c.bf16 %v681, %v680
      %v704 = vpack.c.bf16 %v683, %v682
      %v705 = vpack.c.bf16 %v685, %v684
      %v706 = vpack.c.bf16 %v687, %v686
      %v707 = vpack.c.bf16 %v689, %v688
      %v708 = vpack.c.bf16 %v691, %v690
      %v709 = vpack.c.bf16 %v693, %v692
      %v710 = vunpack.c.l.bf16 %v541
      %v711 = vunpack.c.l.bf16 %v542
      %v712 = vmul.f32 %v710, %v551
      %v713 = vmul.f32 %v711, %v551
      %v714 = vadd.f32 %v712, %v559
      %v715 = vadd.f32 %v713, %v559
      %v716 = vmax.f32 %v714, 0.0
      %v717 = vmax.f32 %v715, 0.0
      %v718 = vpack.c.bf16 %v717, %v716
      %p719 = scmp.eq.s32.totalorder %s25, 0
      %s720 = scalar_select %p719, 1, 0
      %v721 = vstv %s720
      %vm722 = vcmp.eq.s32.totalorder %v721, 1
      %v723 = vsel %vm722, 0, %v565
      %v724 = vsel %vm722, 0, %v718
      %v726 = vshrl.u32 %v723, 16
      %v728 = vrot.slane %v726, 7
      %v729 = vshll.u32 %v723, 16
      %v731 = vor.u32 %v728, %v729
      %v733 = vshrl.u32 %v694, 16
      %v735 = vrot.slane %v733, 7
      %v736 = vshll.u32 %v694, 16
      %v738 = vor.u32 %v735, %v736
      %v740 = vshrl.u32 %v695, 16
      %v742 = vrot.slane %v740, 7
      %v743 = vshll.u32 %v695, 16
      %v745 = vor.u32 %v742, %v743
      %v747 = vshrl.u32 %v696, 16
      %v749 = vrot.slane %v747, 7
      %v750 = vshll.u32 %v696, 16
      %v752 = vor.u32 %v749, %v750
      %v754 = vshrl.u32 %v697, 16
      %v756 = vrot.slane %v754, 7
      %v757 = vshll.u32 %v697, 16
      %v759 = vor.u32 %v756, %v757
      %v761 = vshrl.u32 %v698, 16
      %v763 = vrot.slane %v761, 7
      %v764 = vshll.u32 %v698, 16
      %v766 = vor.u32 %v763, %v764
      %v768 = vshrl.u32 %v699, 16
      %v770 = vrot.slane %v768, 7
      %v771 = vshll.u32 %v699, 16
      %v773 = vor.u32 %v770, %v771
      %v775 = vshrl.u32 %v700, 16
      %v777 = vrot.slane %v775, 7
      %v778 = vshll.u32 %v700, 16
      %v780 = vor.u32 %v777, %v778
      %v782 = vshrl.u32 %v701, 16
      %v784 = vrot.slane %v782, 7
      %v785 = vshll.u32 %v701, 16
      %v787 = vor.u32 %v784, %v785
      %v789 = vshrl.u32 %v702, 16
      %v791 = vrot.slane %v789, 7
      %v792 = vshll.u32 %v702, 16
      %v794 = vor.u32 %v791, %v792
      %v796 = vshrl.u32 %v703, 16
      %v798 = vrot.slane %v796, 7
      %v799 = vshll.u32 %v703, 16
      %v801 = vor.u32 %v798, %v799
      %v803 = vshrl.u32 %v704, 16
      %v805 = vrot.slane %v803, 7
      %v806 = vshll.u32 %v704, 16
      %v808 = vor.u32 %v805, %v806
      %v810 = vshrl.u32 %v705, 16
      %v812 = vrot.slane %v810, 7
      %v813 = vshll.u32 %v705, 16
      %v815 = vor.u32 %v812, %v813
      %v817 = vshrl.u32 %v706, 16
      %v819 = vrot.slane %v817, 7
      %v820 = vshll.u32 %v706, 16
      %v822 = vor.u32 %v819, %v820
      %v824 = vshrl.u32 %v707, 16
      %v826 = vrot.slane %v824, 7
      %v827 = vshll.u32 %v707, 16
      %v829 = vor.u32 %v826, %v827
      %v831 = vshrl.u32 %v708, 16
      %v833 = vrot.slane %v831, 7
      %v834 = vshll.u32 %v708, 16
      %v836 = vor.u32 %v833, %v834
      %v838 = vshrl.u32 %v709, 16
      %v840 = vrot.slane %v838, 7
      %v841 = vshll.u32 %v709, 16
      %v843 = vor.u32 %v840, %v841
      %v845 = vshrl.u32 %v724, 16
      %v847 = vrot.slane %v845, 7
      %v848 = vshll.u32 %v724, 16
      %v850 = vor.u32 %v847, %v848
      %vm869 = vcmask 1040384
      %vm870 = vsmask.f32 256
      %vm871 = vmand %vm869, %vm870
      %v872 = vsel %vm871, 0, %v731
      %v873 = vsel %vm871, 0, %v738
      %v874 = vsel %vm871, 0, %v745
      %v875 = vsel %vm871, 0, %v752
      %v876 = vsel %vm871, 0, %v759
      %v877 = vsel %vm871, 0, %v766
      %v878 = vsel %vm871, 0, %v773
      %v879 = vsel %vm871, 0, %v780
      %v880 = vsel %vm871, 0, %v787
      %v881 = vsel %vm871, 0, %v794
      %v882 = vsel %vm871, 0, %v801
      %v883 = vsel %vm871, 0, %v808
      %v884 = vsel %vm871, 0, %v815
      %v885 = vsel %vm871, 0, %v822
      %v886 = vsel %vm871, 0, %v829
      %v887 = vsel %vm871, 0, %v836
      %v888 = vsel %vm871, 0, %v843
      %v889 = vsel %vm871, 0, %v850
      %v890 = vrot.slane %v729, 1
      %v891 = vor.u32 %v726, %v890
      %v892 = vrot.slane %v736, 1
      %v893 = vor.u32 %v733, %v892
      %v894 = vrot.slane %v743, 1
      %v895 = vor.u32 %v740, %v894
      %v896 = vrot.slane %v750, 1
      %v897 = vor.u32 %v747, %v896
      %v898 = vrot.slane %v757, 1
      %v899 = vor.u32 %v754, %v898
      %v900 = vrot.slane %v764, 1
      %v901 = vor.u32 %v761, %v900
      %v902 = vrot.slane %v771, 1
      %v903 = vor.u32 %v768, %v902
      %v904 = vrot.slane %v778, 1
      %v905 = vor.u32 %v775, %v904
      %v906 = vrot.slane %v785, 1
      %v907 = vor.u32 %v782, %v906
      %v908 = vrot.slane %v792, 1
      %v909 = vor.u32 %v789, %v908
      %v910 = vrot.slane %v799, 1
      %v911 = vor.u32 %v796, %v910
      %v912 = vrot.slane %v806, 1
      %v913 = vor.u32 %v803, %v912
      %v914 = vrot.slane %v813, 1
      %v915 = vor.u32 %v810, %v914
      %v916 = vrot.slane %v820, 1
      %v917 = vor.u32 %v817, %v916
      %v918 = vrot.slane %v827, 1
      %v919 = vor.u32 %v824, %v918
      %v920 = vrot.slane %v834, 1
      %v921 = vor.u32 %v831, %v920
      %v922 = vrot.slane %v841, 1
      %v923 = vor.u32 %v838, %v922
      %v924 = vrot.slane %v848, 1
      %v925 = vor.u32 %v845, %v924
      %vm944 = vcmask 1047552
      %vm945 = vsmask.f32 7424
      %vm946 = vmand %vm944, %vm945
      %v947 = vsel %vm946, %v891, 0
      %v948 = vsel %vm946, %v893, 0
      %v949 = vsel %vm946, %v895, 0
      %v950 = vsel %vm946, %v897, 0
      %v951 = vsel %vm946, %v899, 0
      %v952 = vsel %vm946, %v901, 0
      %v953 = vsel %vm946, %v903, 0
      %v954 = vsel %vm946, %v905, 0
      %v955 = vsel %vm946, %v907, 0
      %v956 = vsel %vm946, %v909, 0
      %v957 = vsel %vm946, %v911, 0
      %v958 = vsel %vm946, %v913, 0
      %v959 = vsel %vm946, %v915, 0
      %v960 = vsel %vm946, %v917, 0
      %v961 = vsel %vm946, %v919, 0
      %v962 = vsel %vm946, %v921, 0
      %v963 = vsel %vm946, %v923, 0
      %v964 = vsel %vm946, %v925, 0
      %v965 = vld [vmem:[%s481] sm:$0xf]
      %v966 = vld [vmem:[%s481 + $0x4] sm:$0xf]
      %v967 = vld [vmem:[%s481 + $0x8] sm:$0xf]
      %v968 = vld [vmem:[%s481 + $0xc] sm:$0xf]
      %v969 = vld [vmem:[%s481 + $0x10] sm:$0xf]
      %v970 = vld [vmem:[%s481 + $0x14] sm:$0xf]
      %v971 = vld [vmem:[%s481 + $0x18] sm:$0xf]
      %v972 = vld [vmem:[%s481 + $0x1c] sm:$0xf]
      %v973 = vld [vmem:[%s481 + $0x20] sm:$0xf]
      %vm974 = vcmask 64512
      %v975 = vsel %vm974, %v723, 0
      %v977 = vsel %vm974, %v694, 0
      %v979 = vsel %vm974, %v695, 0
      %v981 = vsel %vm974, %v696, 0
      %v983 = vsel %vm974, %v697, 0
      %v985 = vsel %vm974, %v698, 0
      %v987 = vsel %vm974, %v699, 0
      %v989 = vsel %vm974, %v700, 0
      %v991 = vsel %vm974, %v701, 0
      %v993 = vsel %vm974, %v702, 0
      %v995 = vsel %vm974, %v703, 0
      %v997 = vsel %vm974, %v704, 0
      %v999 = vsel %vm974, %v705, 0
      %v1001 = vsel %vm974, %v706, 0
      %v1003 = vsel %vm974, %v707, 0
      %v1005 = vsel %vm974, %v708, 0
      %vm1007 = vcmask 1043456
      %v1009 = vsel %vm1007, %v966, 0
      %1011 = vmatprep.subr.bf16.mxu0 0
      %1012 = vmatpush1.bf16.msra.mxu0 %v1009
      %1013 = vmatprep.subr.bf16.mxu0 0
      %1014 = vmatpush1.bf16.msra.mxu0 0
      %1015 = vmatprep.subr.bf16.mxu0 0
      %1016 = vmatpush1.bf16.msra.mxu0 0
      %1017 = vmatprep.subr.bf16.mxu0 0
      %1018 = vmatpush1.bf16.msra.mxu0 0
      %1019 = vmatprep.subr.bf16.mxu0 0
      %1020 = vmatpush1.bf16.msra.mxu0 0
      %1021 = vmatprep.subr.bf16.mxu0 0
      %1022 = vmatpush1.bf16.msra.mxu0 0
      %1023 = vmatprep.subr.bf16.mxu0 0
      %1024 = vmatpush1.bf16.msra.mxu0 0
      %1025 = vmatprep.subr.bf16.mxu0 0
      %1026 = vmatpush1.bf16.msra.mxu0 0
      %1027 = vmatprep.subr.bf16.mxu0 0
      %1028 = vmatpush1.bf16.msra.mxu0 0
      %1029 = vmatprep.subr.bf16.mxu0 0
      %1030 = vmatpush1.bf16.msra.mxu0 0
      %1031 = vmatprep.subr.bf16.mxu0 0
      %1032 = vmatpush1.bf16.msra.mxu0 0
      %1033 = vmatprep.subr.bf16.mxu0 0
      %1034 = vmatpush1.bf16.msra.mxu0 0
      %1035 = vmatprep.subr.bf16.mxu0 0
      %1036 = vmatpush1.bf16.msra.mxu0 0
      %1037 = vmatprep.subr.bf16.mxu0 0
      %1038 = vmatpush1.bf16.msra.mxu0 0
      %1039 = vmatprep.subr.bf16.mxu0 0
      %1040 = vmatpush1.bf16.msra.mxu0 0
      %1041 = vmatprep.subr.bf16.mxu0 0
      %1042 = vmatpush1.bf16.msra.mxu0 0
      %1043 = vmatprep.mubr.bf16.mxu0 0
      %1044 = vmatmul.mubr.bf16.gmra.mrb[0].mxu0 %v975
      %v1045 = vpop.f32.mrb[0].mxu0
      %v1046 = vadd.f32 0.0, %v1045
      %v1047 = vpop.f32.mrb[0].mxu0
      %v1048 = vpop.f32.mrb[0].mxu0
      %v1049 = vadd.f32 0.0, %v1048
      %v1050 = vpop.f32.mrb[0].mxu0
      %1051 = vmatprep.mubr.bf16.mxu0 0
      %1052 = vmatmul.mubr.bf16.gmra.mrb[0].mxu0 %v977
      %v1053 = vpop.f32.mrb[0].mxu0
      %v1054 = vadd.f32 0.0, %v1053
      %v1055 = vpop.f32.mrb[0].mxu0
      %v1056 = vpop.f32.mrb[0].mxu0
      %v1057 = vadd.f32 0.0, %v1056
      %v1058 = vpop.f32.mrb[0].mxu0
      %1059 = vmatprep.mubr.bf16.mxu0 0
      %1060 = vmatmul.mubr.bf16.gmra.mrb[0].mxu0 %v979
      %v1061 = vpop.f32.mrb[0].mxu0
      %v1062 = vadd.f32 0.0, %v1061
      %v1063 = vpop.f32.mrb[0].mxu0
      %v1064 = vpop.f32.mrb[0].mxu0
      %v1065 = vadd.f32 0.0, %v1064
      %v1066 = vpop.f32.mrb[0].mxu0
      %1067 = vmatprep.mubr.bf16.mxu0 0
      %1068 = vmatmul.mubr.bf16.gmra.mrb[0].mxu0 %v981
      %v1069 = vpop.f32.mrb[0].mxu0
      %v1070 = vadd.f32 0.0, %v1069
      %v1071 = vpop.f32.mrb[0].mxu0
      %v1072 = vpop.f32.mrb[0].mxu0
      %v1073 = vadd.f32 0.0, %v1072
      %v1074 = vpop.f32.mrb[0].mxu0
      %1075 = vmatprep.mubr.bf16.mxu0 0
      %1076 = vmatmul.mubr.bf16.gmra.mrb[0].mxu0 %v983
      %v1077 = vpop.f32.mrb[0].mxu0
      %v1078 = vadd.f32 0.0, %v1077
      %v1079 = vpop.f32.mrb[0].mxu0
      %v1080 = vpop.f32.mrb[0].mxu0
      %v1081 = vadd.f32 0.0, %v1080
      %v1082 = vpop.f32.mrb[0].mxu0
      %1083 = vmatprep.mubr.bf16.mxu0 0
      %1084 = vmatmul.mubr.bf16.gmra.mrb[0].mxu0 %v985
      %v1085 = vpop.f32.mrb[0].mxu0
      %v1086 = vadd.f32 0.0, %v1085
      %v1087 = vpop.f32.mrb[0].mxu0
      %v1088 = vpop.f32.mrb[0].mxu0
      %v1089 = vadd.f32 0.0, %v1088
      %v1090 = vpop.f32.mrb[0].mxu0
      %1091 = vmatprep.mubr.bf16.mxu0 0
      %1092 = vmatmul.mubr.bf16.gmra.mrb[0].mxu0 %v987
      %v1093 = vpop.f32.mrb[0].mxu0
      %v1094 = vadd.f32 0.0, %v1093
      %v1095 = vpop.f32.mrb[0].mxu0
      %v1096 = vpop.f32.mrb[0].mxu0
      %v1097 = vadd.f32 0.0, %v1096
      %v1098 = vpop.f32.mrb[0].mxu0
      %1099 = vmatprep.mubr.bf16.mxu0 0
      %1100 = vmatmul.mubr.bf16.gmra.mrb[0].mxu0 %v989
      %v1101 = vpop.f32.mrb[0].mxu0
      %v1102 = vadd.f32 0.0, %v1101
      %v1103 = vpop.f32.mrb[0].mxu0
      %v1104 = vpop.f32.mrb[0].mxu0
      %v1105 = vadd.f32 0.0, %v1104
      %v1106 = vpop.f32.mrb[0].mxu0
      %1107 = vmatprep.mubr.bf16.mxu0 0
      %1108 = vmatmul.mubr.bf16.gmra.mrb[0].mxu0 %v991
      %v1109 = vpop.f32.mrb[0].mxu0
      %v1110 = vadd.f32 0.0, %v1109
      %v1111 = vpop.f32.mrb[0].mxu0
      %v1112 = vpop.f32.mrb[0].mxu0
      %v1113 = vadd.f32 0.0, %v1112
      %v1114 = vpop.f32.mrb[0].mxu0
      %1115 = vmatprep.mubr.bf16.mxu0 0
      %1116 = vmatmul.mubr.bf16.gmra.mrb[0].mxu0 %v993
      %v1117 = vpop.f32.mrb[0].mxu0
      %v1118 = vadd.f32 0.0, %v1117
      %v1119 = vpop.f32.mrb[0].mxu0
      %v1120 = vpop.f32.mrb[0].mxu0
      %v1121 = vadd.f32 0.0, %v1120
      %v1122 = vpop.f32.mrb[0].mxu0
      %1123 = vmatprep.mubr.bf16.mxu0 0
      %1124 = vmatmul.mubr.bf16.gmra.mrb[0].mxu0 %v995
      %v1125 = vpop.f32.mrb[0].mxu0
      %v1126 = vadd.f32 0.0, %v1125
      %v1127 = vpop.f32.mrb[0].mxu0
      %v1128 = vpop.f32.mrb[0].mxu0
      %v1129 = vadd.f32 0.0, %v1128
      %v1130 = vpop.f32.mrb[0].mxu0
      %1131 = vmatprep.mubr.bf16.mxu0 0
      %1132 = vmatmul.mubr.bf16.gmra.mrb[0].mxu0 %v997
      %v1133 = vpop.f32.mrb[0].mxu0
      %v1134 = vadd.f32 0.0, %v1133
      %v1135 = vpop.f32.mrb[0].mxu0
      %v1136 = vpop.f32.mrb[0].mxu0
      %v1137 = vadd.f32 0.0, %v1136
      %v1138 = vpop.f32.mrb[0].mxu0
      %1139 = vmatprep.mubr.bf16.mxu0 0
      %1140 = vmatmul.mubr.bf16.gmra.mrb[0].mxu0 %v999
      %v1141 = vpop.f32.mrb[0].mxu0
      %v1142 = vadd.f32 0.0, %v1141
      %v1143 = vpop.f32.mrb[0].mxu0
      %v1144 = vpop.f32.mrb[0].mxu0
      %v1145 = vadd.f32 0.0, %v1144
      %v1146 = vpop.f32.mrb[0].mxu0
      %1147 = vmatprep.mubr.bf16.mxu0 0
      %1148 = vmatmul.mubr.bf16.gmra.mrb[0].mxu0 %v1001
      %v1149 = vpop.f32.mrb[0].mxu0
      %v1150 = vadd.f32 0.0, %v1149
      %v1151 = vpop.f32.mrb[0].mxu0
      %v1152 = vpop.f32.mrb[0].mxu0
      %v1153 = vadd.f32 0.0, %v1152
      %v1154 = vpop.f32.mrb[0].mxu0
      %1155 = vmatprep.mubr.bf16.mxu0 0
      %1156 = vmatmul.mubr.bf16.gmra.mrb[0].mxu0 %v1003
      %v1157 = vpop.f32.mrb[0].mxu0
      %v1158 = vadd.f32 0.0, %v1157
      %v1159 = vpop.f32.mrb[0].mxu0
      %v1160 = vpop.f32.mrb[0].mxu0
      %v1161 = vadd.f32 0.0, %v1160
      %v1162 = vpop.f32.mrb[0].mxu0
      %1163 = vmatprep.mubr.bf16.mxu0 0
      %1164 = vmatmul.mubr.bf16.gmra.mrb[0].mxu0 %v1005
      %v1165 = vpop.f32.mrb[0].mxu0
      %v1166 = vadd.f32 0.0, %v1165
      %v1167 = vpop.f32.mrb[0].mxu0
      %v1168 = vpop.f32.mrb[0].mxu0
      %v1169 = vadd.f32 0.0, %v1168
      %v1170 = vpop.f32.mrb[0].mxu0
      %1171 = vdwg.mxu0
      %v1173 = vsel %vm974, %v872, 0
      %v1176 = vsel %vm974, %v873, 0
      %v1179 = vsel %vm974, %v874, 0
      %v1182 = vsel %vm974, %v875, 0
      %v1185 = vsel %vm974, %v876, 0
      %v1188 = vsel %vm974, %v877, 0
      %v1191 = vsel %vm974, %v878, 0
      %v1194 = vsel %vm974, %v879, 0
      %v1197 = vsel %vm974, %v880, 0
      %v1200 = vsel %vm974, %v881, 0
      %v1203 = vsel %vm974, %v882, 0
      %v1206 = vsel %vm974, %v883, 0
      %v1209 = vsel %vm974, %v884, 0
      %v1212 = vsel %vm974, %v885, 0
      %v1215 = vsel %vm974, %v886, 0
      %v1218 = vsel %vm974, %v887, 0
      %v1221 = vsel %vm1007, %v965, 0
      %1223 = vmatprep.subr.bf16.mxu0 0
      %1224 = vmatpush1.bf16.msra.mxu0 %v1221
      %1225 = vmatprep.subr.bf16.mxu0 0
      %1226 = vmatpush1.bf16.msra.mxu0 0
      %1227 = vmatprep.subr.bf16.mxu0 0
      %1228 = vmatpush1.bf16.msra.mxu0 0
      %1229 = vmatprep.subr.bf16.mxu0 0
      %1230 = vmatpush1.bf16.msra.mxu0 0
      %1231 = vmatprep.subr.bf16.mxu0 0
      %1232 = vmatpush1.bf16.msra.mxu0 0
      %1233 = vmatprep.subr.bf16.mxu0 0
      %1234 = vmatpush1.bf16.msra.mxu0 0
      %1235 = vmatprep.subr.bf16.mxu0 0
      %1236 = vmatpush1.bf16.msra.mxu0 0
      %1237 = vmatprep.subr.bf16.mxu0 0
      %1238 = vmatpush1.bf16.msra.mxu0 0
      %1239 = vmatprep.subr.bf16.mxu0 0
      %1240 = vmatpush1.bf16.msra.mxu0 0
      %1241 = vmatprep.subr.bf16.mxu0 0
      %1242 = vmatpush1.bf16.msra.mxu0 0
      %1243 = vmatprep.subr.bf16.mxu0 0
      %1244 = vmatpush1.bf16.msra.mxu0 0
      %1245 = vmatprep.subr.bf16.mxu0 0
      %1246 = vmatpush1.bf16.msra.mxu0 0
      %1247 = vmatprep.subr.bf16.mxu0 0
      %1248 = vmatpush1.bf16.msra.mxu0 0
      %1249 = vmatprep.subr.bf16.mxu0 0
      %1250 = vmatpush1.bf16.msra.mxu0 0
      %1251 = vmatprep.subr.bf16.mxu0 0
      %1252 = vmatpush1.bf16.msra.mxu0 0
      %1253 = vmatprep.subr.bf16.mxu0 0
      %1254 = vmatpush1.bf16.msra.mxu0 0
      %1255 = vmatprep.mubr.bf16.mxu0 0
      %1256 = vmatmul.mubr.bf16.gmra.mrb[0].mxu0 %v1173
      %v1257 = vpop.f32.mrb[0].mxu0
      %v1258 = vadd.f32 %v1046, %v1257
      %v1259 = vpop.f32.mrb[0].mxu0
      %v1260 = vpop.f32.mrb[0].mxu0
      %v1261 = vadd.f32 %v1049, %v1260
      %v1262 = vpop.f32.mrb[0].mxu0
      %1263 = vmatprep.mubr.bf16.mxu0 0
      %1264 = vmatmul.mubr.bf16.gmra.mrb[0].mxu0 %v1176
      %v1265 = vpop.f32.mrb[0].mxu0
      %v1266 = vadd.f32 %v1054, %v1265
      %v1267 = vpop.f32.mrb[0].mxu0
      %v1268 = vpop.f32.mrb[0].mxu0
      %v1269 = vadd.f32 %v1057, %v1268
      %v1270 = vpop.f32.mrb[0].mxu0
      %1271 = vmatprep.mubr.bf16.mxu0 0
      %1272 = vmatmul.mubr.bf16.gmra.mrb[0].mxu0 %v1179
      %v1273 = vpop.f32.mrb[0].mxu0
      %v1274 = vadd.f32 %v1062, %v1273
      %v1275 = vpop.f32.mrb[0].mxu0
      %v1276 = vpop.f32.mrb[0].mxu0
      %v1277 = vadd.f32 %v1065, %v1276
      %v1278 = vpop.f32.mrb[0].mxu0
      %1279 = vmatprep.mubr.bf16.mxu0 0
      %1280 = vmatmul.mubr.bf16.gmra.mrb[0].mxu0 %v1182
      %v1281 = vpop.f32.mrb[0].mxu0
      %v1282 = vadd.f32 %v1070, %v1281
      %v1283 = vpop.f32.mrb[0].mxu0
      %v1284 = vpop.f32.mrb[0].mxu0
      %v1285 = vadd.f32 %v1073, %v1284
      %v1286 = vpop.f32.mrb[0].mxu0
      %1287 = vmatprep.mubr.bf16.mxu0 0
      %1288 = vmatmul.mubr.bf16.gmra.mrb[0].mxu0 %v1185
      %v1289 = vpop.f32.mrb[0].mxu0
      %v1290 = vadd.f32 %v1078, %v1289
      %v1291 = vpop.f32.mrb[0].mxu0
      %v1292 = vpop.f32.mrb[0].mxu0
      %v1293 = vadd.f32 %v1081, %v1292
      %v1294 = vpop.f32.mrb[0].mxu0
      %1295 = vmatprep.mubr.bf16.mxu0 0
      %1296 = vmatmul.mubr.bf16.gmra.mrb[0].mxu0 %v1188
      %v1297 = vpop.f32.mrb[0].mxu0
      %v1298 = vadd.f32 %v1086, %v1297
      %v1299 = vpop.f32.mrb[0].mxu0
      %v1300 = vpop.f32.mrb[0].mxu0
      %v1301 = vadd.f32 %v1089, %v1300
      %v1302 = vpop.f32.mrb[0].mxu0
      %1303 = vmatprep.mubr.bf16.mxu0 0
      %1304 = vmatmul.mubr.bf16.gmra.mrb[0].mxu0 %v1191
      %v1305 = vpop.f32.mrb[0].mxu0
      %v1306 = vadd.f32 %v1094, %v1305
      %v1307 = vpop.f32.mrb[0].mxu0
      %v1308 = vpop.f32.mrb[0].mxu0
      %v1309 = vadd.f32 %v1097, %v1308
      %v1310 = vpop.f32.mrb[0].mxu0
      %1311 = vmatprep.mubr.bf16.mxu0 0
      %1312 = vmatmul.mubr.bf16.gmra.mrb[0].mxu0 %v1194
      %v1313 = vpop.f32.mrb[0].mxu0
      %v1314 = vadd.f32 %v1102, %v1313
      %v1315 = vpop.f32.mrb[0].mxu0
      %v1316 = vpop.f32.mrb[0].mxu0
      %v1317 = vadd.f32 %v1105, %v1316
      %v1318 = vpop.f32.mrb[0].mxu0
      %1319 = vmatprep.mubr.bf16.mxu0 0
      %1320 = vmatmul.mubr.bf16.gmra.mrb[0].mxu0 %v1197
      %v1321 = vpop.f32.mrb[0].mxu0
      %v1322 = vadd.f32 %v1110, %v1321
      %v1323 = vpop.f32.mrb[0].mxu0
      %v1324 = vpop.f32.mrb[0].mxu0
      %v1325 = vadd.f32 %v1113, %v1324
      %v1326 = vpop.f32.mrb[0].mxu0
      %1327 = vmatprep.mubr.bf16.mxu0 0
      %1328 = vmatmul.mubr.bf16.gmra.mrb[0].mxu0 %v1200
      %v1329 = vpop.f32.mrb[0].mxu0
      %v1330 = vadd.f32 %v1118, %v1329
      %v1331 = vpop.f32.mrb[0].mxu0
      %v1332 = vpop.f32.mrb[0].mxu0
      %v1333 = vadd.f32 %v1121, %v1332
      %v1334 = vpop.f32.mrb[0].mxu0
      %1335 = vmatprep.mubr.bf16.mxu0 0
      %1336 = vmatmul.mubr.bf16.gmra.mrb[0].mxu0 %v1203
      %v1337 = vpop.f32.mrb[0].mxu0
      %v1338 = vadd.f32 %v1126, %v1337
      %v1339 = vpop.f32.mrb[0].mxu0
      %v1340 = vpop.f32.mrb[0].mxu0
      %v1341 = vadd.f32 %v1129, %v1340
      %v1342 = vpop.f32.mrb[0].mxu0
      %1343 = vmatprep.mubr.bf16.mxu0 0
      %1344 = vmatmul.mubr.bf16.gmra.mrb[0].mxu0 %v1206
      %v1345 = vpop.f32.mrb[0].mxu0
      %v1346 = vadd.f32 %v1134, %v1345
      %v1347 = vpop.f32.mrb[0].mxu0
      %v1348 = vpop.f32.mrb[0].mxu0
      %v1349 = vadd.f32 %v1137, %v1348
      %v1350 = vpop.f32.mrb[0].mxu0
      %1351 = vmatprep.mubr.bf16.mxu0 0
      %1352 = vmatmul.mubr.bf16.gmra.mrb[0].mxu0 %v1209
      %v1353 = vpop.f32.mrb[0].mxu0
      %v1354 = vadd.f32 %v1142, %v1353
      %v1355 = vpop.f32.mrb[0].mxu0
      %v1356 = vpop.f32.mrb[0].mxu0
      %v1357 = vadd.f32 %v1145, %v1356
      %v1358 = vpop.f32.mrb[0].mxu0
      %1359 = vmatprep.mubr.bf16.mxu0 0
      %1360 = vmatmul.mubr.bf16.gmra.mrb[0].mxu0 %v1212
      %v1361 = vpop.f32.mrb[0].mxu0
      %v1362 = vadd.f32 %v1150, %v1361
      %v1363 = vpop.f32.mrb[0].mxu0
      %v1364 = vpop.f32.mrb[0].mxu0
      %v1365 = vadd.f32 %v1153, %v1364
      %v1366 = vpop.f32.mrb[0].mxu0
      %1367 = vmatprep.mubr.bf16.mxu0 0
      %1368 = vmatmul.mubr.bf16.gmra.mrb[0].mxu0 %v1215
      %v1369 = vpop.f32.mrb[0].mxu0
      %v1370 = vadd.f32 %v1158, %v1369
      %v1371 = vpop.f32.mrb[0].mxu0
      %v1372 = vpop.f32.mrb[0].mxu0
      %v1373 = vadd.f32 %v1161, %v1372
      %v1374 = vpop.f32.mrb[0].mxu0
      %1375 = vmatprep.mubr.bf16.mxu0 0
      %1376 = vmatmul.mubr.bf16.gmra.mrb[0].mxu0 %v1218
      %v1377 = vpop.f32.mrb[0].mxu0
      %v1378 = vadd.f32 %v1166, %v1377
      %v1379 = vpop.f32.mrb[0].mxu0
      %v1380 = vpop.f32.mrb[0].mxu0
      %v1381 = vadd.f32 %v1169, %v1380
      %v1382 = vpop.f32.mrb[0].mxu0
      %1383 = vdwg.mxu0
      %v1385 = vsel %vm974, %v947, 0
      %v1388 = vsel %vm974, %v948, 0
      %v1391 = vsel %vm974, %v949, 0
      %v1394 = vsel %vm974, %v950, 0
      %v1397 = vsel %vm974, %v951, 0
      %v1400 = vsel %vm974, %v952, 0
      %v1403 = vsel %vm974, %v953, 0
      %v1406 = vsel %vm974, %v954, 0
      %v1409 = vsel %vm974, %v955, 0
      %v1412 = vsel %vm974, %v956, 0
      %v1415 = vsel %vm974, %v957, 0
      %v1418 = vsel %vm974, %v958, 0
      %v1421 = vsel %vm974, %v959, 0
      %v1424 = vsel %vm974, %v960, 0
      %v1427 = vsel %vm974, %v961, 0
      %v1430 = vsel %vm974, %v962, 0
      %v1433 = vsel %vm1007, %v967, 0
      %1435 = vmatprep.subr.bf16.mxu0 0
      %1436 = vmatpush1.bf16.msra.mxu0 %v1433
      %1437 = vmatprep.subr.bf16.mxu0 0
      %1438 = vmatpush1.bf16.msra.mxu0 0
      %1439 = vmatprep.subr.bf16.mxu0 0
      %1440 = vmatpush1.bf16.msra.mxu0 0
      %1441 = vmatprep.subr.bf16.mxu0 0
      %1442 = vmatpush1.bf16.msra.mxu0 0
      %1443 = vmatprep.subr.bf16.mxu0 0
      %1444 = vmatpush1.bf16.msra.mxu0 0
      %1445 = vmatprep.subr.bf16.mxu0 0
      %1446 = vmatpush1.bf16.msra.mxu0 0
      %1447 = vmatprep.subr.bf16.mxu0 0
      %1448 = vmatpush1.bf16.msra.mxu0 0
      %1449 = vmatprep.subr.bf16.mxu0 0
      %1450 = vmatpush1.bf16.msra.mxu0 0
      %1451 = vmatprep.subr.bf16.mxu0 0
      %1452 = vmatpush1.bf16.msra.mxu0 0
      %1453 = vmatprep.subr.bf16.mxu0 0
      %1454 = vmatpush1.bf16.msra.mxu0 0
      %1455 = vmatprep.subr.bf16.mxu0 0
      %1456 = vmatpush1.bf16.msra.mxu0 0
      %1457 = vmatprep.subr.bf16.mxu0 0
      %1458 = vmatpush1.bf16.msra.mxu0 0
      %1459 = vmatprep.subr.bf16.mxu0 0
      %1460 = vmatpush1.bf16.msra.mxu0 0
      %1461 = vmatprep.subr.bf16.mxu0 0
      %1462 = vmatpush1.bf16.msra.mxu0 0
      %1463 = vmatprep.subr.bf16.mxu0 0
      %1464 = vmatpush1.bf16.msra.mxu0 0
      %1465 = vmatprep.subr.bf16.mxu0 0
      %1466 = vmatpush1.bf16.msra.mxu0 0
      %1467 = vmatprep.mubr.bf16.mxu0 0
      %1468 = vmatmul.mubr.bf16.gmra.mrb[0].mxu0 %v1385
      %v1469 = vpop.f32.mrb[0].mxu0
      %v1470 = vadd.f32 0.0, %v1469
      %v1471 = vpop.f32.mrb[0].mxu0
      %v1472 = vpop.f32.mrb[0].mxu0
      %v1473 = vadd.f32 0.0, %v1472
      %v1474 = vpop.f32.mrb[0].mxu0
      %1475 = vmatprep.mubr.bf16.mxu0 0
      %1476 = vmatmul.mubr.bf16.gmra.mrb[0].mxu0 %v1388
      %v1477 = vpop.f32.mrb[0].mxu0
      %v1478 = vadd.f32 0.0, %v1477
      %v1479 = vpop.f32.mrb[0].mxu0
      %v1480 = vpop.f32.mrb[0].mxu0
      %v1481 = vadd.f32 0.0, %v1480
      %v1482 = vpop.f32.mrb[0].mxu0
      %1483 = vmatprep.mubr.bf16.mxu0 0
      %1484 = vmatmul.mubr.bf16.gmra.mrb[0].mxu0 %v1391
      %v1485 = vpop.f32.mrb[0].mxu0
      %v1486 = vadd.f32 0.0, %v1485
      %v1487 = vpop.f32.mrb[0].mxu0
      %v1488 = vpop.f32.mrb[0].mxu0
      %v1489 = vadd.f32 0.0, %v1488
      %v1490 = vpop.f32.mrb[0].mxu0
      %1491 = vmatprep.mubr.bf16.mxu0 0
      %1492 = vmatmul.mubr.bf16.gmra.mrb[0].mxu0 %v1394
      %v1493 = vpop.f32.mrb[0].mxu0
      %v1494 = vadd.f32 0.0, %v1493
      %v1495 = vpop.f32.mrb[0].mxu0
      %v1496 = vpop.f32.mrb[0].mxu0
      %v1497 = vadd.f32 0.0, %v1496
      %v1498 = vpop.f32.mrb[0].mxu0
      %1499 = vmatprep.mubr.bf16.mxu0 0
      %1500 = vmatmul.mubr.bf16.gmra.mrb[0].mxu0 %v1397
      %v1501 = vpop.f32.mrb[0].mxu0
      %v1502 = vadd.f32 0.0, %v1501
      %v1503 = vpop.f32.mrb[0].mxu0
      %v1504 = vpop.f32.mrb[0].mxu0
      %v1505 = vadd.f32 0.0, %v1504
      %v1506 = vpop.f32.mrb[0].mxu0
      %1507 = vmatprep.mubr.bf16.mxu0 0
      %1508 = vmatmul.mubr.bf16.gmra.mrb[0].mxu0 %v1400
      %v1509 = vpop.f32.mrb[0].mxu0
      %v1510 = vadd.f32 0.0, %v1509
      %v1511 = vpop.f32.mrb[0].mxu0
      %v1512 = vpop.f32.mrb[0].mxu0
      %v1513 = vadd.f32 0.0, %v1512
      %v1514 = vpop.f32.mrb[0].mxu0
      %1515 = vmatprep.mubr.bf16.mxu0 0
      %1516 = vmatmul.mubr.bf16.gmra.mrb[0].mxu0 %v1403
      %v1517 = vpop.f32.mrb[0].mxu0
      %v1518 = vadd.f32 0.0, %v1517
      %v1519 = vpop.f32.mrb[0].mxu0
      %v1520 = vpop.f32.mrb[0].mxu0
      %v1521 = vadd.f32 0.0, %v1520
      %v1522 = vpop.f32.mrb[0].mxu0
      %1523 = vmatprep.mubr.bf16.mxu0 0
      %1524 = vmatmul.mubr.bf16.gmra.mrb[0].mxu0 %v1406
      %v1525 = vpop.f32.mrb[0].mxu0
      %v1526 = vadd.f32 0.0, %v1525
      %v1527 = vpop.f32.mrb[0].mxu0
      %v1528 = vpop.f32.mrb[0].mxu0
      %v1529 = vadd.f32 0.0, %v1528
      %v1530 = vpop.f32.mrb[0].mxu0
      %1531 = vmatprep.mubr.bf16.mxu0 0
      %1532 = vmatmul.mubr.bf16.gmra.mrb[0].mxu0 %v1409
      %v1533 = vpop.f32.mrb[0].mxu0
      %v1534 = vadd.f32 0.0, %v1533
      %v1535 = vpop.f32.mrb[0].mxu0
      %v1536 = vpop.f32.mrb[0].mxu0
      %v1537 = vadd.f32 0.0, %v1536
      %v1538 = vpop.f32.mrb[0].mxu0
      %1539 = vmatprep.mubr.bf16.mxu0 0
      %1540 = vmatmul.mubr.bf16.gmra.mrb[0].mxu0 %v1412
      %v1541 = vpop.f32.mrb[0].mxu0
      %v1542 = vadd.f32 0.0, %v1541
      %v1543 = vpop.f32.mrb[0].mxu0
      %v1544 = vpop.f32.mrb[0].mxu0
      %v1545 = vadd.f32 0.0, %v1544
      %v1546 = vpop.f32.mrb[0].mxu0
      %1547 = vmatprep.mubr.bf16.mxu0 0
      %1548 = vmatmul.mubr.bf16.gmra.mrb[0].mxu0 %v1415
      %v1549 = vpop.f32.mrb[0].mxu0
      %v1550 = vadd.f32 0.0, %v1549
      %v1551 = vpop.f32.mrb[0].mxu0
      %v1552 = vpop.f32.mrb[0].mxu0
      %v1553 = vadd.f32 0.0, %v1552
      %v1554 = vpop.f32.mrb[0].mxu0
      %1555 = vmatprep.mubr.bf16.mxu0 0
      %1556 = vmatmul.mubr.bf16.gmra.mrb[0].mxu0 %v1418
      %v1557 = vpop.f32.mrb[0].mxu0
      %v1558 = vadd.f32 0.0, %v1557
      %v1559 = vpop.f32.mrb[0].mxu0
      %v1560 = vpop.f32.mrb[0].mxu0
      %v1561 = vadd.f32 0.0, %v1560
      %v1562 = vpop.f32.mrb[0].mxu0
      %1563 = vmatprep.mubr.bf16.mxu0 0
      %1564 = vmatmul.mubr.bf16.gmra.mrb[0].mxu0 %v1421
      %v1565 = vpop.f32.mrb[0].mxu0
      %v1566 = vadd.f32 0.0, %v1565
      %v1567 = vpop.f32.mrb[0].mxu0
      %v1568 = vpop.f32.mrb[0].mxu0
      %v1569 = vadd.f32 0.0, %v1568
      %v1570 = vpop.f32.mrb[0].mxu0
      %1571 = vmatprep.mubr.bf16.mxu0 0
      %1572 = vmatmul.mubr.bf16.gmra.mrb[0].mxu0 %v1424
      %v1573 = vpop.f32.mrb[0].mxu0
      %v1574 = vadd.f32 0.0, %v1573
      %v1575 = vpop.f32.mrb[0].mxu0
      %v1576 = vpop.f32.mrb[0].mxu0
      %v1577 = vadd.f32 0.0, %v1576
      %v1578 = vpop.f32.mrb[0].mxu0
      %1579 = vmatprep.mubr.bf16.mxu0 0
      %1580 = vmatmul.mubr.bf16.gmra.mrb[0].mxu0 %v1427
      %v1581 = vpop.f32.mrb[0].mxu0
      %v1582 = vadd.f32 0.0, %v1581
      %v1583 = vpop.f32.mrb[0].mxu0
      %v1584 = vpop.f32.mrb[0].mxu0
      %v1585 = vadd.f32 0.0, %v1584
      %v1586 = vpop.f32.mrb[0].mxu0
      %1587 = vmatprep.mubr.bf16.mxu0 0
      %1588 = vmatmul.mubr.bf16.gmra.mrb[0].mxu0 %v1430
      %v1589 = vpop.f32.mrb[0].mxu0
      %v1590 = vadd.f32 0.0, %v1589
      %v1591 = vpop.f32.mrb[0].mxu0
      %v1592 = vpop.f32.mrb[0].mxu0
      %v1593 = vadd.f32 0.0, %v1592
      %v1594 = vpop.f32.mrb[0].mxu0
      %1595 = vdwg.mxu0
      %v1596 = vadd.f32 %v1258, %v1470
      %v1597 = vadd.f32 %v1261, %v1473
      %v1598 = vadd.f32 %v1266, %v1478
      %v1599 = vadd.f32 %v1269, %v1481
      %v1600 = vadd.f32 %v1274, %v1486
      %v1601 = vadd.f32 %v1277, %v1489
      %v1602 = vadd.f32 %v1282, %v1494
      %v1603 = vadd.f32 %v1285, %v1497
      %v1604 = vadd.f32 %v1290, %v1502
      %v1605 = vadd.f32 %v1293, %v1505
      %v1606 = vadd.f32 %v1298, %v1510
      %v1607 = vadd.f32 %v1301, %v1513
      %v1608 = vadd.f32 %v1306, %v1518
      %v1609 = vadd.f32 %v1309, %v1521
      %v1610 = vadd.f32 %v1314, %v1526
      %v1611 = vadd.f32 %v1317, %v1529
      %v1612 = vadd.f32 %v1322, %v1534
      %v1613 = vadd.f32 %v1325, %v1537
      %v1614 = vadd.f32 %v1330, %v1542
      %v1615 = vadd.f32 %v1333, %v1545
      %v1616 = vadd.f32 %v1338, %v1550
      %v1617 = vadd.f32 %v1341, %v1553
      %v1618 = vadd.f32 %v1346, %v1558
      %v1619 = vadd.f32 %v1349, %v1561
      %v1620 = vadd.f32 %v1354, %v1566
      %v1621 = vadd.f32 %v1357, %v1569
      %v1622 = vadd.f32 %v1362, %v1574
      %v1623 = vadd.f32 %v1365, %v1577
      %v1624 = vadd.f32 %v1370, %v1582
      %v1625 = vadd.f32 %v1373, %v1585
      %v1626 = vadd.f32 %v1378, %v1590
      %v1627 = vadd.f32 %v1381, %v1593
      %v1629 = vsel %vm974, %v888, 0
      %v1632 = vsel %vm1007, %v968, 0
      %1634 = vmatprep.subr.bf16.mxu0 0
      %1635 = vmatpush1.bf16.msra.mxu0 %v1632
      %1636 = vmatprep.subr.bf16.mxu0 0
      %1637 = vmatpush1.bf16.msra.mxu0 0
      %1638 = vmatprep.subr.bf16.mxu0 0
      %1639 = vmatpush1.bf16.msra.mxu0 0
      %1640 = vmatprep.subr.bf16.mxu0 0
      %1641 = vmatpush1.bf16.msra.mxu0 0
      %1642 = vmatprep.subr.bf16.mxu0 0
      %1643 = vmatpush1.bf16.msra.mxu0 0
      %1644 = vmatprep.subr.bf16.mxu0 0
      %1645 = vmatpush1.bf16.msra.mxu0 0
      %1646 = vmatprep.subr.bf16.mxu0 0
      %1647 = vmatpush1.bf16.msra.mxu0 0
      %1648 = vmatprep.subr.bf16.mxu0 0
      %1649 = vmatpush1.bf16.msra.mxu0 0
      %1650 = vmatprep.subr.bf16.mxu0 0
      %1651 = vmatpush1.bf16.msra.mxu0 0
      %1652 = vmatprep.subr.bf16.mxu0 0
      %1653 = vmatpush1.bf16.msra.mxu0 0
      %1654 = vmatprep.subr.bf16.mxu0 0
      %1655 = vmatpush1.bf16.msra.mxu0 0
      %1656 = vmatprep.subr.bf16.mxu0 0
      %1657 = vmatpush1.bf16.msra.mxu0 0
      %1658 = vmatprep.subr.bf16.mxu0 0
      %1659 = vmatpush1.bf16.msra.mxu0 0
      %1660 = vmatprep.subr.bf16.mxu0 0
      %1661 = vmatpush1.bf16.msra.mxu0 0
      %1662 = vmatprep.subr.bf16.mxu0 0
      %1663 = vmatpush1.bf16.msra.mxu0 0
      %1664 = vmatprep.subr.bf16.mxu0 0
      %1665 = vmatpush1.bf16.msra.mxu0 0
      %1666 = vmatprep.mubr.bf16.mxu0 0
      %1667 = vmatmul.mubr.bf16.gmra.mrb[0].mxu0 %v1176
      %v1668 = vpop.f32.mrb[0].mxu0
      %v1669 = vadd.f32 0.0, %v1668
      %v1670 = vpop.f32.mrb[0].mxu0
      %v1671 = vpop.f32.mrb[0].mxu0
      %v1672 = vadd.f32 0.0, %v1671
      %v1673 = vpop.f32.mrb[0].mxu0
      %1674 = vmatprep.mubr.bf16.mxu0 0
      %1675 = vmatmul.mubr.bf16.gmra.mrb[0].mxu0 %v1179
      %v1676 = vpop.f32.mrb[0].mxu0
      %v1677 = vadd.f32 0.0, %v1676
      %v1678 = vpop.f32.mrb[0].mxu0
      %v1679 = vpop.f32.mrb[0].mxu0
      %v1680 = vadd.f32 0.0, %v1679
      %v1681 = vpop.f32.mrb[0].mxu0
      %1682 = vmatprep.mubr.bf16.mxu0 0
      %1683 = vmatmul.mubr.bf16.gmra.mrb[0].mxu0 %v1182
      %v1684 = vpop.f32.mrb[0].mxu0
      %v1685 = vadd.f32 0.0, %v1684
      %v1686 = vpop.f32.mrb[0].mxu0
      %v1687 = vpop.f32.mrb[0].mxu0
      %v1688 = vadd.f32 0.0, %v1687
      %v1689 = vpop.f32.mrb[0].mxu0
      %1690 = vmatprep.mubr.bf16.mxu0 0
      %1691 = vmatmul.mubr.bf16.gmra.mrb[0].mxu0 %v1185
      %v1692 = vpop.f32.mrb[0].mxu0
      %v1693 = vadd.f32 0.0, %v1692
      %v1694 = vpop.f32.mrb[0].mxu0
      %v1695 = vpop.f32.mrb[0].mxu0
      %v1696 = vadd.f32 0.0, %v1695
      %v1697 = vpop.f32.mrb[0].mxu0
      %1698 = vmatprep.mubr.bf16.mxu0 0
      %1699 = vmatmul.mubr.bf16.gmra.mrb[0].mxu0 %v1188
      %v1700 = vpop.f32.mrb[0].mxu0
      %v1701 = vadd.f32 0.0, %v1700
      %v1702 = vpop.f32.mrb[0].mxu0
      %v1703 = vpop.f32.mrb[0].mxu0
      %v1704 = vadd.f32 0.0, %v1703
      %v1705 = vpop.f32.mrb[0].mxu0
      %1706 = vmatprep.mubr.bf16.mxu0 0
      %1707 = vmatmul.mubr.bf16.gmra.mrb[0].mxu0 %v1191
      %v1708 = vpop.f32.mrb[0].mxu0
      %v1709 = vadd.f32 0.0, %v1708
      %v1710 = vpop.f32.mrb[0].mxu0
      %v1711 = vpop.f32.mrb[0].mxu0
      %v1712 = vadd.f32 0.0, %v1711
      %v1713 = vpop.f32.mrb[0].mxu0
      %1714 = vmatprep.mubr.bf16.mxu0 0
      %1715 = vmatmul.mubr.bf16.gmra.mrb[0].mxu0 %v1194
      %v1716 = vpop.f32.mrb[0].mxu0
      %v1717 = vadd.f32 0.0, %v1716
      %v1718 = vpop.f32.mrb[0].mxu0
      %v1719 = vpop.f32.mrb[0].mxu0
      %v1720 = vadd.f32 0.0, %v1719
      %v1721 = vpop.f32.mrb[0].mxu0
      %1722 = vmatprep.mubr.bf16.mxu0 0
      %1723 = vmatmul.mubr.bf16.gmra.mrb[0].mxu0 %v1197
      %v1724 = vpop.f32.mrb[0].mxu0
      %v1725 = vadd.f32 0.0, %v1724
      %v1726 = vpop.f32.mrb[0].mxu0
      %v1727 = vpop.f32.mrb[0].mxu0
      %v1728 = vadd.f32 0.0, %v1727
      %v1729 = vpop.f32.mrb[0].mxu0
      %1730 = vmatprep.mubr.bf16.mxu0 0
      %1731 = vmatmul.mubr.bf16.gmra.mrb[0].mxu0 %v1200
      %v1732 = vpop.f32.mrb[0].mxu0
      %v1733 = vadd.f32 0.0, %v1732
      %v1734 = vpop.f32.mrb[0].mxu0
      %v1735 = vpop.f32.mrb[0].mxu0
      %v1736 = vadd.f32 0.0, %v1735
      %v1737 = vpop.f32.mrb[0].mxu0
      %1738 = vmatprep.mubr.bf16.mxu0 0
      %1739 = vmatmul.mubr.bf16.gmra.mrb[0].mxu0 %v1203
      %v1740 = vpop.f32.mrb[0].mxu0
      %v1741 = vadd.f32 0.0, %v1740
      %v1742 = vpop.f32.mrb[0].mxu0
      %v1743 = vpop.f32.mrb[0].mxu0
      %v1744 = vadd.f32 0.0, %v1743
      %v1745 = vpop.f32.mrb[0].mxu0
      %1746 = vmatprep.mubr.bf16.mxu0 0
      %1747 = vmatmul.mubr.bf16.gmra.mrb[0].mxu0 %v1206
      %v1748 = vpop.f32.mrb[0].mxu0
      %v1749 = vadd.f32 0.0, %v1748
      %v1750 = vpop.f32.mrb[0].mxu0
      %v1751 = vpop.f32.mrb[0].mxu0
      %v1752 = vadd.f32 0.0, %v1751
      %v1753 = vpop.f32.mrb[0].mxu0
      %1754 = vmatprep.mubr.bf16.mxu0 0
      %1755 = vmatmul.mubr.bf16.gmra.mrb[0].mxu0 %v1209
      %v1756 = vpop.f32.mrb[0].mxu0
      %v1757 = vadd.f32 0.0, %v1756
      %v1758 = vpop.f32.mrb[0].mxu0
      %v1759 = vpop.f32.mrb[0].mxu0
      %v1760 = vadd.f32 0.0, %v1759
      %v1761 = vpop.f32.mrb[0].mxu0
      %1762 = vmatprep.mubr.bf16.mxu0 0
      %1763 = vmatmul.mubr.bf16.gmra.mrb[0].mxu0 %v1212
      %v1764 = vpop.f32.mrb[0].mxu0
      %v1765 = vadd.f32 0.0, %v1764
      %v1766 = vpop.f32.mrb[0].mxu0
      %v1767 = vpop.f32.mrb[0].mxu0
      %v1768 = vadd.f32 0.0, %v1767
      %v1769 = vpop.f32.mrb[0].mxu0
      %1770 = vmatprep.mubr.bf16.mxu0 0
      %1771 = vmatmul.mubr.bf16.gmra.mrb[0].mxu0 %v1215
      %v1772 = vpop.f32.mrb[0].mxu0
      %v1773 = vadd.f32 0.0, %v1772
      %v1774 = vpop.f32.mrb[0].mxu0
      %v1775 = vpop.f32.mrb[0].mxu0
      %v1776 = vadd.f32 0.0, %v1775
      %v1777 = vpop.f32.mrb[0].mxu0
      %1778 = vmatprep.mubr.bf16.mxu0 0
      %1779 = vmatmul.mubr.bf16.gmra.mrb[0].mxu0 %v1218
      %v1780 = vpop.f32.mrb[0].mxu0
      %v1781 = vadd.f32 0.0, %v1780
      %v1782 = vpop.f32.mrb[0].mxu0
      %v1783 = vpop.f32.mrb[0].mxu0
      %v1784 = vadd.f32 0.0, %v1783
      %v1785 = vpop.f32.mrb[0].mxu0
      %1786 = vmatprep.mubr.bf16.mxu0 0
      %1787 = vmatmul.mubr.bf16.gmra.mrb[0].mxu0 %v1629
      %v1788 = vpop.f32.mrb[0].mxu0
      %v1789 = vadd.f32 0.0, %v1788
      %v1790 = vpop.f32.mrb[0].mxu0
      %v1791 = vpop.f32.mrb[0].mxu0
      %v1792 = vadd.f32 0.0, %v1791
      %v1793 = vpop.f32.mrb[0].mxu0
      %1794 = vdwg.mxu0
      %v1795 = vadd.f32 %v1596, %v1669
      %v1796 = vadd.f32 %v1597, %v1672
      %v1797 = vadd.f32 %v1598, %v1677
      %v1798 = vadd.f32 %v1599, %v1680
      %v1799 = vadd.f32 %v1600, %v1685
      %v1800 = vadd.f32 %v1601, %v1688
      %v1801 = vadd.f32 %v1602, %v1693
      %v1802 = vadd.f32 %v1603, %v1696
      %v1803 = vadd.f32 %v1604, %v1701
      %v1804 = vadd.f32 %v1605, %v1704
      %v1805 = vadd.f32 %v1606, %v1709
      %v1806 = vadd.f32 %v1607, %v1712
      %v1807 = vadd.f32 %v1608, %v1717
      %v1808 = vadd.f32 %v1609, %v1720
      %v1809 = vadd.f32 %v1610, %v1725
      %v1810 = vadd.f32 %v1611, %v1728
      %v1811 = vadd.f32 %v1612, %v1733
      %v1812 = vadd.f32 %v1613, %v1736
      %v1813 = vadd.f32 %v1614, %v1741
      %v1814 = vadd.f32 %v1615, %v1744
      %v1815 = vadd.f32 %v1616, %v1749
      %v1816 = vadd.f32 %v1617, %v1752
      %v1817 = vadd.f32 %v1618, %v1757
      %v1818 = vadd.f32 %v1619, %v1760
      %v1819 = vadd.f32 %v1620, %v1765
      %v1820 = vadd.f32 %v1621, %v1768
      %v1821 = vadd.f32 %v1622, %v1773
      %v1822 = vadd.f32 %v1623, %v1776
      %v1823 = vadd.f32 %v1624, %v1781
      %v1824 = vadd.f32 %v1625, %v1784
      %v1825 = vadd.f32 %v1626, %v1789
      %v1826 = vadd.f32 %v1627, %v1792
      %v1827 = vsel %vm974, %v709, 0
      %v1830 = vsel %vm1007, %v969, 0
      %1832 = vmatprep.subr.bf16.mxu0 0
      %1833 = vmatpush1.bf16.msra.mxu0 %v1830
      %1834 = vmatprep.subr.bf16.mxu0 0
      %1835 = vmatpush1.bf16.msra.mxu0 0
      %1836 = vmatprep.subr.bf16.mxu0 0
      %1837 = vmatpush1.bf16.msra.mxu0 0
      %1838 = vmatprep.subr.bf16.mxu0 0
      %1839 = vmatpush1.bf16.msra.mxu0 0
      %1840 = vmatprep.subr.bf16.mxu0 0
      %1841 = vmatpush1.bf16.msra.mxu0 0
      %1842 = vmatprep.subr.bf16.mxu0 0
      %1843 = vmatpush1.bf16.msra.mxu0 0
      %1844 = vmatprep.subr.bf16.mxu0 0
      %1845 = vmatpush1.bf16.msra.mxu0 0
      %1846 = vmatprep.subr.bf16.mxu0 0
      %1847 = vmatpush1.bf16.msra.mxu0 0
      %1848 = vmatprep.subr.bf16.mxu0 0
      %1849 = vmatpush1.bf16.msra.mxu0 0
      %1850 = vmatprep.subr.bf16.mxu0 0
      %1851 = vmatpush1.bf16.msra.mxu0 0
      %1852 = vmatprep.subr.bf16.mxu0 0
      %1853 = vmatpush1.bf16.msra.mxu0 0
      %1854 = vmatprep.subr.bf16.mxu0 0
      %1855 = vmatpush1.bf16.msra.mxu0 0
      %1856 = vmatprep.subr.bf16.mxu0 0
      %1857 = vmatpush1.bf16.msra.mxu0 0
      %1858 = vmatprep.subr.bf16.mxu0 0
      %1859 = vmatpush1.bf16.msra.mxu0 0
      %1860 = vmatprep.subr.bf16.mxu0 0
      %1861 = vmatpush1.bf16.msra.mxu0 0
      %1862 = vmatprep.subr.bf16.mxu0 0
      %1863 = vmatpush1.bf16.msra.mxu0 0
      %1864 = vmatprep.mubr.bf16.mxu0 0
      %1865 = vmatmul.mubr.bf16.gmra.mrb[0].mxu0 %v977
      %v1866 = vpop.f32.mrb[0].mxu0
      %v1867 = vadd.f32 0.0, %v1866
      %v1868 = vpop.f32.mrb[0].mxu0
      %v1869 = vpop.f32.mrb[0].mxu0
      %v1870 = vadd.f32 0.0, %v1869
      %v1871 = vpop.f32.mrb[0].mxu0
      %1872 = vmatprep.mubr.bf16.mxu0 0
      %1873 = vmatmul.mubr.bf16.gmra.mrb[0].mxu0 %v979
      %v1874 = vpop.f32.mrb[0].mxu0
      %v1875 = vadd.f32 0.0, %v1874
      %v1876 = vpop.f32.mrb[0].mxu0
      %v1877 = vpop.f32.mrb[0].mxu0
      %v1878 = vadd.f32 0.0, %v1877
      %v1879 = vpop.f32.mrb[0].mxu0
      %1880 = vmatprep.mubr.bf16.mxu0 0
      %1881 = vmatmul.mubr.bf16.gmra.mrb[0].mxu0 %v981
      %v1882 = vpop.f32.mrb[0].mxu0
      %v1883 = vadd.f32 0.0, %v1882
      %v1884 = vpop.f32.mrb[0].mxu0
      %v1885 = vpop.f32.mrb[0].mxu0
      %v1886 = vadd.f32 0.0, %v1885
      %v1887 = vpop.f32.mrb[0].mxu0
      %1888 = vmatprep.mubr.bf16.mxu0 0
      %1889 = vmatmul.mubr.bf16.gmra.mrb[0].mxu0 %v983
      %v1890 = vpop.f32.mrb[0].mxu0
      %v1891 = vadd.f32 0.0, %v1890
      %v1892 = vpop.f32.mrb[0].mxu0
      %v1893 = vpop.f32.mrb[0].mxu0
      %v1894 = vadd.f32 0.0, %v1893
      %v1895 = vpop.f32.mrb[0].mxu0
      %1896 = vmatprep.mubr.bf16.mxu0 0
      %1897 = vmatmul.mubr.bf16.gmra.mrb[0].mxu0 %v985
      %v1898 = vpop.f32.mrb[0].mxu0
      %v1899 = vadd.f32 0.0, %v1898
      %v1900 = vpop.f32.mrb[0].mxu0
      %v1901 = vpop.f32.mrb[0].mxu0
      %v1902 = vadd.f32 0.0, %v1901
      %v1903 = vpop.f32.mrb[0].mxu0
      %1904 = vmatprep.mubr.bf16.mxu0 0
      %1905 = vmatmul.mubr.bf16.gmra.mrb[0].mxu0 %v987
      %v1906 = vpop.f32.mrb[0].mxu0
      %v1907 = vadd.f32 0.0, %v1906
      %v1908 = vpop.f32.mrb[0].mxu0
      %v1909 = vpop.f32.mrb[0].mxu0
      %v1910 = vadd.f32 0.0, %v1909
      %v1911 = vpop.f32.mrb[0].mxu0
      %1912 = vmatprep.mubr.bf16.mxu0 0
      %1913 = vmatmul.mubr.bf16.gmra.mrb[0].mxu0 %v989
      %v1914 = vpop.f32.mrb[0].mxu0
      %v1915 = vadd.f32 0.0, %v1914
      %v1916 = vpop.f32.mrb[0].mxu0
      %v1917 = vpop.f32.mrb[0].mxu0
      %v1918 = vadd.f32 0.0, %v1917
      %v1919 = vpop.f32.mrb[0].mxu0
      %1920 = vmatprep.mubr.bf16.mxu0 0
      %1921 = vmatmul.mubr.bf16.gmra.mrb[0].mxu0 %v991
      %v1922 = vpop.f32.mrb[0].mxu0
      %v1923 = vadd.f32 0.0, %v1922
      %v1924 = vpop.f32.mrb[0].mxu0
      %v1925 = vpop.f32.mrb[0].mxu0
      %v1926 = vadd.f32 0.0, %v1925
      %v1927 = vpop.f32.mrb[0].mxu0
      %1928 = vmatprep.mubr.bf16.mxu0 0
      %1929 = vmatmul.mubr.bf16.gmra.mrb[0].mxu0 %v993
      %v1930 = vpop.f32.mrb[0].mxu0
      %v1931 = vadd.f32 0.0, %v1930
      %v1932 = vpop.f32.mrb[0].mxu0
      %v1933 = vpop.f32.mrb[0].mxu0
      %v1934 = vadd.f32 0.0, %v1933
      %v1935 = vpop.f32.mrb[0].mxu0
      %1936 = vmatprep.mubr.bf16.mxu0 0
      %1937 = vmatmul.mubr.bf16.gmra.mrb[0].mxu0 %v995
      %v1938 = vpop.f32.mrb[0].mxu0
      %v1939 = vadd.f32 0.0, %v1938
      %v1940 = vpop.f32.mrb[0].mxu0
      %v1941 = vpop.f32.mrb[0].mxu0
      %v1942 = vadd.f32 0.0, %v1941
      %v1943 = vpop.f32.mrb[0].mxu0
      %1944 = vmatprep.mubr.bf16.mxu0 0
      %1945 = vmatmul.mubr.bf16.gmra.mrb[0].mxu0 %v997
      %v1946 = vpop.f32.mrb[0].mxu0
      %v1947 = vadd.f32 0.0, %v1946
      %v1948 = vpop.f32.mrb[0].mxu0
      %v1949 = vpop.f32.mrb[0].mxu0
      %v1950 = vadd.f32 0.0, %v1949
      %v1951 = vpop.f32.mrb[0].mxu0
      %1952 = vmatprep.mubr.bf16.mxu0 0
      %1953 = vmatmul.mubr.bf16.gmra.mrb[0].mxu0 %v999
      %v1954 = vpop.f32.mrb[0].mxu0
      %v1955 = vadd.f32 0.0, %v1954
      %v1956 = vpop.f32.mrb[0].mxu0
      %v1957 = vpop.f32.mrb[0].mxu0
      %v1958 = vadd.f32 0.0, %v1957
      %v1959 = vpop.f32.mrb[0].mxu0
      %1960 = vmatprep.mubr.bf16.mxu0 0
      %1961 = vmatmul.mubr.bf16.gmra.mrb[0].mxu0 %v1001
      %v1962 = vpop.f32.mrb[0].mxu0
      %v1963 = vadd.f32 0.0, %v1962
      %v1964 = vpop.f32.mrb[0].mxu0
      %v1965 = vpop.f32.mrb[0].mxu0
      %v1966 = vadd.f32 0.0, %v1965
      %v1967 = vpop.f32.mrb[0].mxu0
      %1968 = vmatprep.mubr.bf16.mxu0 0
      %1969 = vmatmul.mubr.bf16.gmra.mrb[0].mxu0 %v1003
      %v1970 = vpop.f32.mrb[0].mxu0
      %v1971 = vadd.f32 0.0, %v1970
      %v1972 = vpop.f32.mrb[0].mxu0
      %v1973 = vpop.f32.mrb[0].mxu0
      %v1974 = vadd.f32 0.0, %v1973
      %v1975 = vpop.f32.mrb[0].mxu0
      %1976 = vmatprep.mubr.bf16.mxu0 0
      %1977 = vmatmul.mubr.bf16.gmra.mrb[0].mxu0 %v1005
      %v1978 = vpop.f32.mrb[0].mxu0
      %v1979 = vadd.f32 0.0, %v1978
      %v1980 = vpop.f32.mrb[0].mxu0
      %v1981 = vpop.f32.mrb[0].mxu0
      %v1982 = vadd.f32 0.0, %v1981
      %v1983 = vpop.f32.mrb[0].mxu0
      %1984 = vmatprep.mubr.bf16.mxu0 0
      %1985 = vmatmul.mubr.bf16.gmra.mrb[0].mxu0 %v1827
      %v1986 = vpop.f32.mrb[0].mxu0
      %v1987 = vadd.f32 0.0, %v1986
      %v1988 = vpop.f32.mrb[0].mxu0
      %v1989 = vpop.f32.mrb[0].mxu0
      %v1990 = vadd.f32 0.0, %v1989
      %v1991 = vpop.f32.mrb[0].mxu0
      %1992 = vdwg.mxu0
      %v1993 = vadd.f32 %v1795, %v1867
      %v1994 = vadd.f32 %v1796, %v1870
      %v1995 = vadd.f32 %v1797, %v1875
      %v1996 = vadd.f32 %v1798, %v1878
      %v1997 = vadd.f32 %v1799, %v1883
      %v1998 = vadd.f32 %v1800, %v1886
      %v1999 = vadd.f32 %v1801, %v1891
      %v2000 = vadd.f32 %v1802, %v1894
      %v2001 = vadd.f32 %v1803, %v1899
      %v2002 = vadd.f32 %v1804, %v1902
      %v2003 = vadd.f32 %v1805, %v1907
      %v2004 = vadd.f32 %v1806, %v1910
      %v2005 = vadd.f32 %v1807, %v1915
      %v2006 = vadd.f32 %v1808, %v1918
      %v2007 = vadd.f32 %v1809, %v1923
      %v2008 = vadd.f32 %v1810, %v1926
      %v2009 = vadd.f32 %v1811, %v1931
      %v2010 = vadd.f32 %v1812, %v1934
      %v2011 = vadd.f32 %v1813, %v1939
      %v2012 = vadd.f32 %v1814, %v1942
      %v2013 = vadd.f32 %v1815, %v1947
      %v2014 = vadd.f32 %v1816, %v1950
      %v2015 = vadd.f32 %v1817, %v1955
      %v2016 = vadd.f32 %v1818, %v1958
      %v2017 = vadd.f32 %v1819, %v1963
      %v2018 = vadd.f32 %v1820, %v1966
      %v2019 = vadd.f32 %v1821, %v1971
      %v2020 = vadd.f32 %v1822, %v1974
      %v2021 = vadd.f32 %v1823, %v1979
      %v2022 = vadd.f32 %v1824, %v1982
      %v2023 = vadd.f32 %v1825, %v1987
      %v2024 = vadd.f32 %v1826, %v1990
      %v2026 = vsel %vm974, %v963, 0
      %v2029 = vsel %vm1007, %v970, 0
      %2031 = vmatprep.subr.bf16.mxu0 0
      %2032 = vmatpush1.bf16.msra.mxu0 %v2029
      %2033 = vmatprep.subr.bf16.mxu0 0
      %2034 = vmatpush1.bf16.msra.mxu0 0
      %2035 = vmatprep.subr.bf16.mxu0 0
      %2036 = vmatpush1.bf16.msra.mxu0 0
      %2037 = vmatprep.subr.bf16.mxu0 0
      %2038 = vmatpush1.bf16.msra.mxu0 0
      %2039 = vmatprep.subr.bf16.mxu0 0
      %2040 = vmatpush1.bf16.msra.mxu0 0
      %2041 = vmatprep.subr.bf16.mxu0 0
      %2042 = vmatpush1.bf16.msra.mxu0 0
      %2043 = vmatprep.subr.bf16.mxu0 0
      %2044 = vmatpush1.bf16.msra.mxu0 0
      %2045 = vmatprep.subr.bf16.mxu0 0
      %2046 = vmatpush1.bf16.msra.mxu0 0
      %2047 = vmatprep.subr.bf16.mxu0 0
      %2048 = vmatpush1.bf16.msra.mxu0 0
      %2049 = vmatprep.subr.bf16.mxu0 0
      %2050 = vmatpush1.bf16.msra.mxu0 0
      %2051 = vmatprep.subr.bf16.mxu0 0
      %2052 = vmatpush1.bf16.msra.mxu0 0
      %2053 = vmatprep.subr.bf16.mxu0 0
      %2054 = vmatpush1.bf16.msra.mxu0 0
      %2055 = vmatprep.subr.bf16.mxu0 0
      %2056 = vmatpush1.bf16.msra.mxu0 0
      %2057 = vmatprep.subr.bf16.mxu0 0
      %2058 = vmatpush1.bf16.msra.mxu0 0
      %2059 = vmatprep.subr.bf16.mxu0 0
      %2060 = vmatpush1.bf16.msra.mxu0 0
      %2061 = vmatprep.subr.bf16.mxu0 0
      %2062 = vmatpush1.bf16.msra.mxu0 0
      %2063 = vmatprep.mubr.bf16.mxu0 0
      %2064 = vmatmul.mubr.bf16.gmra.mrb[0].mxu0 %v1388
      %v2065 = vpop.f32.mrb[0].mxu0
      %v2066 = vadd.f32 0.0, %v2065
      %v2067 = vpop.f32.mrb[0].mxu0
      %v2068 = vpop.f32.mrb[0].mxu0
      %v2069 = vadd.f32 0.0, %v2068
      %v2070 = vpop.f32.mrb[0].mxu0
      %2071 = vmatprep.mubr.bf16.mxu0 0
      %2072 = vmatmul.mubr.bf16.gmra.mrb[0].mxu0 %v1391
      %v2073 = vpop.f32.mrb[0].mxu0
      %v2074 = vadd.f32 0.0, %v2073
      %v2075 = vpop.f32.mrb[0].mxu0
      %v2076 = vpop.f32.mrb[0].mxu0
      %v2077 = vadd.f32 0.0, %v2076
      %v2078 = vpop.f32.mrb[0].mxu0
      %2079 = vmatprep.mubr.bf16.mxu0 0
      %2080 = vmatmul.mubr.bf16.gmra.mrb[0].mxu0 %v1394
      %v2081 = vpop.f32.mrb[0].mxu0
      %v2082 = vadd.f32 0.0, %v2081
      %v2083 = vpop.f32.mrb[0].mxu0
      %v2084 = vpop.f32.mrb[0].mxu0
      %v2085 = vadd.f32 0.0, %v2084
      %v2086 = vpop.f32.mrb[0].mxu0
      %2087 = vmatprep.mubr.bf16.mxu0 0
      %2088 = vmatmul.mubr.bf16.gmra.mrb[0].mxu0 %v1397
      %v2089 = vpop.f32.mrb[0].mxu0
      %v2090 = vadd.f32 0.0, %v2089
      %v2091 = vpop.f32.mrb[0].mxu0
      %v2092 = vpop.f32.mrb[0].mxu0
      %v2093 = vadd.f32 0.0, %v2092
      %v2094 = vpop.f32.mrb[0].mxu0
      %2095 = vmatprep.mubr.bf16.mxu0 0
      %2096 = vmatmul.mubr.bf16.gmra.mrb[0].mxu0 %v1400
      %v2097 = vpop.f32.mrb[0].mxu0
      %v2098 = vadd.f32 0.0, %v2097
      %v2099 = vpop.f32.mrb[0].mxu0
      %v2100 = vpop.f32.mrb[0].mxu0
      %v2101 = vadd.f32 0.0, %v2100
      %v2102 = vpop.f32.mrb[0].mxu0
      %2103 = vmatprep.mubr.bf16.mxu0 0
      %2104 = vmatmul.mubr.bf16.gmra.mrb[0].mxu0 %v1403
      %v2105 = vpop.f32.mrb[0].mxu0
      %v2106 = vadd.f32 0.0, %v2105
      %v2107 = vpop.f32.mrb[0].mxu0
      %v2108 = vpop.f32.mrb[0].mxu0
      %v2109 = vadd.f32 0.0, %v2108
      %v2110 = vpop.f32.mrb[0].mxu0
      %2111 = vmatprep.mubr.bf16.mxu0 0
      %2112 = vmatmul.mubr.bf16.gmra.mrb[0].mxu0 %v1406
      %v2113 = vpop.f32.mrb[0].mxu0
      %v2114 = vadd.f32 0.0, %v2113
      %v2115 = vpop.f32.mrb[0].mxu0
      %v2116 = vpop.f32.mrb[0].mxu0
      %v2117 = vadd.f32 0.0, %v2116
      %v2118 = vpop.f32.mrb[0].mxu0
      %2119 = vmatprep.mubr.bf16.mxu0 0
      %2120 = vmatmul.mubr.bf16.gmra.mrb[0].mxu0 %v1409
      %v2121 = vpop.f32.mrb[0].mxu0
      %v2122 = vadd.f32 0.0, %v2121
      %v2123 = vpop.f32.mrb[0].mxu0
      %v2124 = vpop.f32.mrb[0].mxu0
      %v2125 = vadd.f32 0.0, %v2124
      %v2126 = vpop.f32.mrb[0].mxu0
      %2127 = vmatprep.mubr.bf16.mxu0 0
      %2128 = vmatmul.mubr.bf16.gmra.mrb[0].mxu0 %v1412
      %v2129 = vpop.f32.mrb[0].mxu0
      %v2130 = vadd.f32 0.0, %v2129
      %v2131 = vpop.f32.mrb[0].mxu0
      %v2132 = vpop.f32.mrb[0].mxu0
      %v2133 = vadd.f32 0.0, %v2132
      %v2134 = vpop.f32.mrb[0].mxu0
      %2135 = vmatprep.mubr.bf16.mxu0 0
      %2136 = vmatmul.mubr.bf16.gmra.mrb[0].mxu0 %v1415
      %v2137 = vpop.f32.mrb[0].mxu0
      %v2138 = vadd.f32 0.0, %v2137
      %v2139 = vpop.f32.mrb[0].mxu0
      %v2140 = vpop.f32.mrb[0].mxu0
      %v2141 = vadd.f32 0.0, %v2140
      %v2142 = vpop.f32.mrb[0].mxu0
      %2143 = vmatprep.mubr.bf16.mxu0 0
      %2144 = vmatmul.mubr.bf16.gmra.mrb[0].mxu0 %v1418
      %v2145 = vpop.f32.mrb[0].mxu0
      %v2146 = vadd.f32 0.0, %v2145
      %v2147 = vpop.f32.mrb[0].mxu0
      %v2148 = vpop.f32.mrb[0].mxu0
      %v2149 = vadd.f32 0.0, %v2148
      %v2150 = vpop.f32.mrb[0].mxu0
      %2151 = vmatprep.mubr.bf16.mxu0 0
      %2152 = vmatmul.mubr.bf16.gmra.mrb[0].mxu0 %v1421
      %v2153 = vpop.f32.mrb[0].mxu0
      %v2154 = vadd.f32 0.0, %v2153
      %v2155 = vpop.f32.mrb[0].mxu0
      %v2156 = vpop.f32.mrb[0].mxu0
      %v2157 = vadd.f32 0.0, %v2156
      %v2158 = vpop.f32.mrb[0].mxu0
      %2159 = vmatprep.mubr.bf16.mxu0 0
      %2160 = vmatmul.mubr.bf16.gmra.mrb[0].mxu0 %v1424
      %v2161 = vpop.f32.mrb[0].mxu0
      %v2162 = vadd.f32 0.0, %v2161
      %v2163 = vpop.f32.mrb[0].mxu0
      %v2164 = vpop.f32.mrb[0].mxu0
      %v2165 = vadd.f32 0.0, %v2164
      %v2166 = vpop.f32.mrb[0].mxu0
      %2167 = vmatprep.mubr.bf16.mxu0 0
      %2168 = vmatmul.mubr.bf16.gmra.mrb[0].mxu0 %v1427
      %v2169 = vpop.f32.mrb[0].mxu0
      %v2170 = vadd.f32 0.0, %v2169
      %v2171 = vpop.f32.mrb[0].mxu0
      %v2172 = vpop.f32.mrb[0].mxu0
      %v2173 = vadd.f32 0.0, %v2172
      %v2174 = vpop.f32.mrb[0].mxu0
      %2175 = vmatprep.mubr.bf16.mxu0 0
      %2176 = vmatmul.mubr.bf16.gmra.mrb[0].mxu0 %v1430
      %v2177 = vpop.f32.mrb[0].mxu0
      %v2178 = vadd.f32 0.0, %v2177
      %v2179 = vpop.f32.mrb[0].mxu0
      %v2180 = vpop.f32.mrb[0].mxu0
      %v2181 = vadd.f32 0.0, %v2180
      %v2182 = vpop.f32.mrb[0].mxu0
      %2183 = vmatprep.mubr.bf16.mxu0 0
      %2184 = vmatmul.mubr.bf16.gmra.mrb[0].mxu0 %v2026
      %v2185 = vpop.f32.mrb[0].mxu0
      %v2186 = vadd.f32 0.0, %v2185
      %v2187 = vpop.f32.mrb[0].mxu0
      %v2188 = vpop.f32.mrb[0].mxu0
      %v2189 = vadd.f32 0.0, %v2188
      %v2190 = vpop.f32.mrb[0].mxu0
      %2191 = vdwg.mxu0
      %v2192 = vadd.f32 %v1993, %v2066
      %v2193 = vadd.f32 %v1994, %v2069
      %v2194 = vadd.f32 %v1995, %v2074
      %v2195 = vadd.f32 %v1996, %v2077
      %v2196 = vadd.f32 %v1997, %v2082
      %v2197 = vadd.f32 %v1998, %v2085
      %v2198 = vadd.f32 %v1999, %v2090
      %v2199 = vadd.f32 %v2000, %v2093
      %v2200 = vadd.f32 %v2001, %v2098
      %v2201 = vadd.f32 %v2002, %v2101
      %v2202 = vadd.f32 %v2003, %v2106
      %v2203 = vadd.f32 %v2004, %v2109
      %v2204 = vadd.f32 %v2005, %v2114
      %v2205 = vadd.f32 %v2006, %v2117
      %v2206 = vadd.f32 %v2007, %v2122
      %v2207 = vadd.f32 %v2008, %v2125
      %v2208 = vadd.f32 %v2009, %v2130
      %v2209 = vadd.f32 %v2010, %v2133
      %v2210 = vadd.f32 %v2011, %v2138
      %v2211 = vadd.f32 %v2012, %v2141
      %v2212 = vadd.f32 %v2013, %v2146
      %v2213 = vadd.f32 %v2014, %v2149
      %v2214 = vadd.f32 %v2015, %v2154
      %v2215 = vadd.f32 %v2016, %v2157
      %v2216 = vadd.f32 %v2017, %v2162
      %v2217 = vadd.f32 %v2018, %v2165
      %v2218 = vadd.f32 %v2019, %v2170
      %v2219 = vadd.f32 %v2020, %v2173
      %v2220 = vadd.f32 %v2021, %v2178
      %v2221 = vadd.f32 %v2022, %v2181
      %v2222 = vadd.f32 %v2023, %v2186
      %v2223 = vadd.f32 %v2024, %v2189
      %v2225 = vsel %vm974, %v889, 0
      %v2228 = vsel %vm1007, %v971, 0
      %2230 = vmatprep.subr.bf16.mxu0 0
      %2231 = vmatpush1.bf16.msra.mxu0 %v2228
      %2232 = vmatprep.subr.bf16.mxu0 0
      %2233 = vmatpush1.bf16.msra.mxu0 0
      %2234 = vmatprep.subr.bf16.mxu0 0
      %2235 = vmatpush1.bf16.msra.mxu0 0
      %2236 = vmatprep.subr.bf16.mxu0 0
      %2237 = vmatpush1.bf16.msra.mxu0 0
      %2238 = vmatprep.subr.bf16.mxu0 0
      %2239 = vmatpush1.bf16.msra.mxu0 0
      %2240 = vmatprep.subr.bf16.mxu0 0
      %2241 = vmatpush1.bf16.msra.mxu0 0
      %2242 = vmatprep.subr.bf16.mxu0 0
      %2243 = vmatpush1.bf16.msra.mxu0 0
      %2244 = vmatprep.subr.bf16.mxu0 0
      %2245 = vmatpush1.bf16.msra.mxu0 0
      %2246 = vmatprep.subr.bf16.mxu0 0
      %2247 = vmatpush1.bf16.msra.mxu0 0
      %2248 = vmatprep.subr.bf16.mxu0 0
      %2249 = vmatpush1.bf16.msra.mxu0 0
      %2250 = vmatprep.subr.bf16.mxu0 0
      %2251 = vmatpush1.bf16.msra.mxu0 0
      %2252 = vmatprep.subr.bf16.mxu0 0
      %2253 = vmatpush1.bf16.msra.mxu0 0
      %2254 = vmatprep.subr.bf16.mxu0 0
      %2255 = vmatpush1.bf16.msra.mxu0 0
      %2256 = vmatprep.subr.bf16.mxu0 0
      %2257 = vmatpush1.bf16.msra.mxu0 0
      %2258 = vmatprep.subr.bf16.mxu0 0
      %2259 = vmatpush1.bf16.msra.mxu0 0
      %2260 = vmatprep.subr.bf16.mxu0 0
      %2261 = vmatpush1.bf16.msra.mxu0 0
      %2262 = vmatprep.mubr.bf16.mxu0 0
      %2263 = vmatmul.mubr.bf16.gmra.mrb[0].mxu0 %v1179
      %v2264 = vpop.f32.mrb[0].mxu0
      %v2265 = vadd.f32 0.0, %v2264
      %v2266 = vpop.f32.mrb[0].mxu0
      %v2267 = vpop.f32.mrb[0].mxu0
      %v2268 = vadd.f32 0.0, %v2267
      %v2269 = vpop.f32.mrb[0].mxu0
      %2270 = vmatprep.mubr.bf16.mxu0 0
      %2271 = vmatmul.mubr.bf16.gmra.mrb[0].mxu0 %v1182
      %v2272 = vpop.f32.mrb[0].mxu0
      %v2273 = vadd.f32 0.0, %v2272
      %v2274 = vpop.f32.mrb[0].mxu0
      %v2275 = vpop.f32.mrb[0].mxu0
      %v2276 = vadd.f32 0.0, %v2275
      %v2277 = vpop.f32.mrb[0].mxu0
      %2278 = vmatprep.mubr.bf16.mxu0 0
      %2279 = vmatmul.mubr.bf16.gmra.mrb[0].mxu0 %v1185
      %v2280 = vpop.f32.mrb[0].mxu0
      %v2281 = vadd.f32 0.0, %v2280
      %v2282 = vpop.f32.mrb[0].mxu0
      %v2283 = vpop.f32.mrb[0].mxu0
      %v2284 = vadd.f32 0.0, %v2283
      %v2285 = vpop.f32.mrb[0].mxu0
      %2286 = vmatprep.mubr.bf16.mxu0 0
      %2287 = vmatmul.mubr.bf16.gmra.mrb[0].mxu0 %v1188
      %v2288 = vpop.f32.mrb[0].mxu0
      %v2289 = vadd.f32 0.0, %v2288
      %v2290 = vpop.f32.mrb[0].mxu0
      %v2291 = vpop.f32.mrb[0].mxu0
      %v2292 = vadd.f32 0.0, %v2291
      %v2293 = vpop.f32.mrb[0].mxu0
      %2294 = vmatprep.mubr.bf16.mxu0 0
      %2295 = vmatmul.mubr.bf16.gmra.mrb[0].mxu0 %v1191
      %v2296 = vpop.f32.mrb[0].mxu0
      %v2297 = vadd.f32 0.0, %v2296
      %v2298 = vpop.f32.mrb[0].mxu0
      %v2299 = vpop.f32.mrb[0].mxu0
      %v2300 = vadd.f32 0.0, %v2299
      %v2301 = vpop.f32.mrb[0].mxu0
      %2302 = vmatprep.mubr.bf16.mxu0 0
      %2303 = vmatmul.mubr.bf16.gmra.mrb[0].mxu0 %v1194
      %v2304 = vpop.f32.mrb[0].mxu0
      %v2305 = vadd.f32 0.0, %v2304
      %v2306 = vpop.f32.mrb[0].mxu0
      %v2307 = vpop.f32.mrb[0].mxu0
      %v2308 = vadd.f32 0.0, %v2307
      %v2309 = vpop.f32.mrb[0].mxu0
      %2310 = vmatprep.mubr.bf16.mxu0 0
      %2311 = vmatmul.mubr.bf16.gmra.mrb[0].mxu0 %v1197
      %v2312 = vpop.f32.mrb[0].mxu0
      %v2313 = vadd.f32 0.0, %v2312
      %v2314 = vpop.f32.mrb[0].mxu0
      %v2315 = vpop.f32.mrb[0].mxu0
      %v2316 = vadd.f32 0.0, %v2315
      %v2317 = vpop.f32.mrb[0].mxu0
      %2318 = vmatprep.mubr.bf16.mxu0 0
      %2319 = vmatmul.mubr.bf16.gmra.mrb[0].mxu0 %v1200
      %v2320 = vpop.f32.mrb[0].mxu0
      %v2321 = vadd.f32 0.0, %v2320
      %v2322 = vpop.f32.mrb[0].mxu0
      %v2323 = vpop.f32.mrb[0].mxu0
      %v2324 = vadd.f32 0.0, %v2323
      %v2325 = vpop.f32.mrb[0].mxu0
      %2326 = vmatprep.mubr.bf16.mxu0 0
      %2327 = vmatmul.mubr.bf16.gmra.mrb[0].mxu0 %v1203
      %v2328 = vpop.f32.mrb[0].mxu0
      %v2329 = vadd.f32 0.0, %v2328
      %v2330 = vpop.f32.mrb[0].mxu0
      %v2331 = vpop.f32.mrb[0].mxu0
      %v2332 = vadd.f32 0.0, %v2331
      %v2333 = vpop.f32.mrb[0].mxu0
      %2334 = vmatprep.mubr.bf16.mxu0 0
      %2335 = vmatmul.mubr.bf16.gmra.mrb[0].mxu0 %v1206
      %v2336 = vpop.f32.mrb[0].mxu0
      %v2337 = vadd.f32 0.0, %v2336
      %v2338 = vpop.f32.mrb[0].mxu0
      %v2339 = vpop.f32.mrb[0].mxu0
      %v2340 = vadd.f32 0.0, %v2339
      %v2341 = vpop.f32.mrb[0].mxu0
      %2342 = vmatprep.mubr.bf16.mxu0 0
      %2343 = vmatmul.mubr.bf16.gmra.mrb[0].mxu0 %v1209
      %v2344 = vpop.f32.mrb[0].mxu0
      %v2345 = vadd.f32 0.0, %v2344
      %v2346 = vpop.f32.mrb[0].mxu0
      %v2347 = vpop.f32.mrb[0].mxu0
      %v2348 = vadd.f32 0.0, %v2347
      %v2349 = vpop.f32.mrb[0].mxu0
      %2350 = vmatprep.mubr.bf16.mxu0 0
      %2351 = vmatmul.mubr.bf16.gmra.mrb[0].mxu0 %v1212
      %v2352 = vpop.f32.mrb[0].mxu0
      %v2353 = vadd.f32 0.0, %v2352
      %v2354 = vpop.f32.mrb[0].mxu0
      %v2355 = vpop.f32.mrb[0].mxu0
      %v2356 = vadd.f32 0.0, %v2355
      %v2357 = vpop.f32.mrb[0].mxu0
      %2358 = vmatprep.mubr.bf16.mxu0 0
      %2359 = vmatmul.mubr.bf16.gmra.mrb[0].mxu0 %v1215
      %v2360 = vpop.f32.mrb[0].mxu0
      %v2361 = vadd.f32 0.0, %v2360
      %v2362 = vpop.f32.mrb[0].mxu0
      %v2363 = vpop.f32.mrb[0].mxu0
      %v2364 = vadd.f32 0.0, %v2363
      %v2365 = vpop.f32.mrb[0].mxu0
      %2366 = vmatprep.mubr.bf16.mxu0 0
      %2367 = vmatmul.mubr.bf16.gmra.mrb[0].mxu0 %v1218
      %v2368 = vpop.f32.mrb[0].mxu0
      %v2369 = vadd.f32 0.0, %v2368
      %v2370 = vpop.f32.mrb[0].mxu0
      %v2371 = vpop.f32.mrb[0].mxu0
      %v2372 = vadd.f32 0.0, %v2371
      %v2373 = vpop.f32.mrb[0].mxu0
      %2374 = vmatprep.mubr.bf16.mxu0 0
      %2375 = vmatmul.mubr.bf16.gmra.mrb[0].mxu0 %v1629
      %v2376 = vpop.f32.mrb[0].mxu0
      %v2377 = vadd.f32 0.0, %v2376
      %v2378 = vpop.f32.mrb[0].mxu0
      %v2379 = vpop.f32.mrb[0].mxu0
      %v2380 = vadd.f32 0.0, %v2379
      %v2381 = vpop.f32.mrb[0].mxu0
      %2382 = vmatprep.mubr.bf16.mxu0 0
      %2383 = vmatmul.mubr.bf16.gmra.mrb[0].mxu0 %v2225
      %v2384 = vpop.f32.mrb[0].mxu0
      %v2385 = vadd.f32 0.0, %v2384
      %v2386 = vpop.f32.mrb[0].mxu0
      %v2387 = vpop.f32.mrb[0].mxu0
      %v2388 = vadd.f32 0.0, %v2387
      %v2389 = vpop.f32.mrb[0].mxu0
      %2390 = vdwg.mxu0
      %v2391 = vadd.f32 %v2192, %v2265
      %v2392 = vadd.f32 %v2193, %v2268
      %v2393 = vadd.f32 %v2194, %v2273
      %v2394 = vadd.f32 %v2195, %v2276
      %v2395 = vadd.f32 %v2196, %v2281
      %v2396 = vadd.f32 %v2197, %v2284
      %v2397 = vadd.f32 %v2198, %v2289
      %v2398 = vadd.f32 %v2199, %v2292
      %v2399 = vadd.f32 %v2200, %v2297
      %v2400 = vadd.f32 %v2201, %v2300
      %v2401 = vadd.f32 %v2202, %v2305
      %v2402 = vadd.f32 %v2203, %v2308
      %v2403 = vadd.f32 %v2204, %v2313
      %v2404 = vadd.f32 %v2205, %v2316
      %v2405 = vadd.f32 %v2206, %v2321
      %v2406 = vadd.f32 %v2207, %v2324
      %v2407 = vadd.f32 %v2208, %v2329
      %v2408 = vadd.f32 %v2209, %v2332
      %v2409 = vadd.f32 %v2210, %v2337
      %v2410 = vadd.f32 %v2211, %v2340
      %v2411 = vadd.f32 %v2212, %v2345
      %v2412 = vadd.f32 %v2213, %v2348
      %v2413 = vadd.f32 %v2214, %v2353
      %v2414 = vadd.f32 %v2215, %v2356
      %v2415 = vadd.f32 %v2216, %v2361
      %v2416 = vadd.f32 %v2217, %v2364
      %v2417 = vadd.f32 %v2218, %v2369
      %v2418 = vadd.f32 %v2219, %v2372
      %v2419 = vadd.f32 %v2220, %v2377
      %v2420 = vadd.f32 %v2221, %v2380
      %v2421 = vadd.f32 %v2222, %v2385
      %v2422 = vadd.f32 %v2223, %v2388
      %v2423 = vsel %vm974, %v724, 0
      %v2426 = vsel %vm1007, %v972, 0
      %2428 = vmatprep.subr.bf16.mxu0 0
      %2429 = vmatpush1.bf16.msra.mxu0 %v2426
      %2430 = vmatprep.subr.bf16.mxu0 0
      %2431 = vmatpush1.bf16.msra.mxu0 0
      %2432 = vmatprep.subr.bf16.mxu0 0
      %2433 = vmatpush1.bf16.msra.mxu0 0
      %2434 = vmatprep.subr.bf16.mxu0 0
      %2435 = vmatpush1.bf16.msra.mxu0 0
      %2436 = vmatprep.subr.bf16.mxu0 0
      %2437 = vmatpush1.bf16.msra.mxu0 0
      %2438 = vmatprep.subr.bf16.mxu0 0
      %2439 = vmatpush1.bf16.msra.mxu0 0
      %2440 = vmatprep.subr.bf16.mxu0 0
      %2441 = vmatpush1.bf16.msra.mxu0 0
      %2442 = vmatprep.subr.bf16.mxu0 0
      %2443 = vmatpush1.bf16.msra.mxu0 0
      %2444 = vmatprep.subr.bf16.mxu0 0
      %2445 = vmatpush1.bf16.msra.mxu0 0
      %2446 = vmatprep.subr.bf16.mxu0 0
      %2447 = vmatpush1.bf16.msra.mxu0 0
      %2448 = vmatprep.subr.bf16.mxu0 0
      %2449 = vmatpush1.bf16.msra.mxu0 0
      %2450 = vmatprep.subr.bf16.mxu0 0
      %2451 = vmatpush1.bf16.msra.mxu0 0
      %2452 = vmatprep.subr.bf16.mxu0 0
      %2453 = vmatpush1.bf16.msra.mxu0 0
      %2454 = vmatprep.subr.bf16.mxu0 0
      %2455 = vmatpush1.bf16.msra.mxu0 0
      %2456 = vmatprep.subr.bf16.mxu0 0
      %2457 = vmatpush1.bf16.msra.mxu0 0
      %2458 = vmatprep.subr.bf16.mxu0 0
      %2459 = vmatpush1.bf16.msra.mxu0 0
      %2460 = vmatprep.mubr.bf16.mxu0 0
      %2461 = vmatmul.mubr.bf16.gmra.mrb[0].mxu0 %v979
      %v2462 = vpop.f32.mrb[0].mxu0
      %v2463 = vadd.f32 0.0, %v2462
      %v2464 = vpop.f32.mrb[0].mxu0
      %v2465 = vpop.f32.mrb[0].mxu0
      %v2466 = vadd.f32 0.0, %v2465
      %v2467 = vpop.f32.mrb[0].mxu0
      %2468 = vmatprep.mubr.bf16.mxu0 0
      %2469 = vmatmul.mubr.bf16.gmra.mrb[0].mxu0 %v981
      %v2470 = vpop.f32.mrb[0].mxu0
      %v2471 = vadd.f32 0.0, %v2470
      %v2472 = vpop.f32.mrb[0].mxu0
      %v2473 = vpop.f32.mrb[0].mxu0
      %v2474 = vadd.f32 0.0, %v2473
      %v2475 = vpop.f32.mrb[0].mxu0
      %2476 = vmatprep.mubr.bf16.mxu0 0
      %2477 = vmatmul.mubr.bf16.gmra.mrb[0].mxu0 %v983
      %v2478 = vpop.f32.mrb[0].mxu0
      %v2479 = vadd.f32 0.0, %v2478
      %v2480 = vpop.f32.mrb[0].mxu0
      %v2481 = vpop.f32.mrb[0].mxu0
      %v2482 = vadd.f32 0.0, %v2481
      %v2483 = vpop.f32.mrb[0].mxu0
      %2484 = vmatprep.mubr.bf16.mxu0 0
      %2485 = vmatmul.mubr.bf16.gmra.mrb[0].mxu0 %v985
      %v2486 = vpop.f32.mrb[0].mxu0
      %v2487 = vadd.f32 0.0, %v2486
      %v2488 = vpop.f32.mrb[0].mxu0
      %v2489 = vpop.f32.mrb[0].mxu0
      %v2490 = vadd.f32 0.0, %v2489
      %v2491 = vpop.f32.mrb[0].mxu0
      %2492 = vmatprep.mubr.bf16.mxu0 0
      %2493 = vmatmul.mubr.bf16.gmra.mrb[0].mxu0 %v987
      %v2494 = vpop.f32.mrb[0].mxu0
      %v2495 = vadd.f32 0.0, %v2494
      %v2496 = vpop.f32.mrb[0].mxu0
      %v2497 = vpop.f32.mrb[0].mxu0
      %v2498 = vadd.f32 0.0, %v2497
      %v2499 = vpop.f32.mrb[0].mxu0
      %2500 = vmatprep.mubr.bf16.mxu0 0
      %2501 = vmatmul.mubr.bf16.gmra.mrb[0].mxu0 %v989
      %v2502 = vpop.f32.mrb[0].mxu0
      %v2503 = vadd.f32 0.0, %v2502
      %v2504 = vpop.f32.mrb[0].mxu0
      %v2505 = vpop.f32.mrb[0].mxu0
      %v2506 = vadd.f32 0.0, %v2505
      %v2507 = vpop.f32.mrb[0].mxu0
      %2508 = vmatprep.mubr.bf16.mxu0 0
      %2509 = vmatmul.mubr.bf16.gmra.mrb[0].mxu0 %v991
      %v2510 = vpop.f32.mrb[0].mxu0
      %v2511 = vadd.f32 0.0, %v2510
      %v2512 = vpop.f32.mrb[0].mxu0
      %v2513 = vpop.f32.mrb[0].mxu0
      %v2514 = vadd.f32 0.0, %v2513
      %v2515 = vpop.f32.mrb[0].mxu0
      %2516 = vmatprep.mubr.bf16.mxu0 0
      %2517 = vmatmul.mubr.bf16.gmra.mrb[0].mxu0 %v993
      %v2518 = vpop.f32.mrb[0].mxu0
      %v2519 = vadd.f32 0.0, %v2518
      %v2520 = vpop.f32.mrb[0].mxu0
      %v2521 = vpop.f32.mrb[0].mxu0
      %v2522 = vadd.f32 0.0, %v2521
      %v2523 = vpop.f32.mrb[0].mxu0
      %2524 = vmatprep.mubr.bf16.mxu0 0
      %2525 = vmatmul.mubr.bf16.gmra.mrb[0].mxu0 %v995
      %v2526 = vpop.f32.mrb[0].mxu0
      %v2527 = vadd.f32 0.0, %v2526
      %v2528 = vpop.f32.mrb[0].mxu0
      %v2529 = vpop.f32.mrb[0].mxu0
      %v2530 = vadd.f32 0.0, %v2529
      %v2531 = vpop.f32.mrb[0].mxu0
      %2532 = vmatprep.mubr.bf16.mxu0 0
      %2533 = vmatmul.mubr.bf16.gmra.mrb[0].mxu0 %v997
      %v2534 = vpop.f32.mrb[0].mxu0
      %v2535 = vadd.f32 0.0, %v2534
      %v2536 = vpop.f32.mrb[0].mxu0
      %v2537 = vpop.f32.mrb[0].mxu0
      %v2538 = vadd.f32 0.0, %v2537
      %v2539 = vpop.f32.mrb[0].mxu0
      %2540 = vmatprep.mubr.bf16.mxu0 0
      %2541 = vmatmul.mubr.bf16.gmra.mrb[0].mxu0 %v999
      %v2542 = vpop.f32.mrb[0].mxu0
      %v2543 = vadd.f32 0.0, %v2542
      %v2544 = vpop.f32.mrb[0].mxu0
      %v2545 = vpop.f32.mrb[0].mxu0
      %v2546 = vadd.f32 0.0, %v2545
      %v2547 = vpop.f32.mrb[0].mxu0
      %2548 = vmatprep.mubr.bf16.mxu0 0
      %2549 = vmatmul.mubr.bf16.gmra.mrb[0].mxu0 %v1001
      %v2550 = vpop.f32.mrb[0].mxu0
      %v2551 = vadd.f32 0.0, %v2550
      %v2552 = vpop.f32.mrb[0].mxu0
      %v2553 = vpop.f32.mrb[0].mxu0
      %v2554 = vadd.f32 0.0, %v2553
      %v2555 = vpop.f32.mrb[0].mxu0
      %2556 = vmatprep.mubr.bf16.mxu0 0
      %2557 = vmatmul.mubr.bf16.gmra.mrb[0].mxu0 %v1003
      %v2558 = vpop.f32.mrb[0].mxu0
      %v2559 = vadd.f32 0.0, %v2558
      %v2560 = vpop.f32.mrb[0].mxu0
      %v2561 = vpop.f32.mrb[0].mxu0
      %v2562 = vadd.f32 0.0, %v2561
      %v2563 = vpop.f32.mrb[0].mxu0
      %2564 = vmatprep.mubr.bf16.mxu0 0
      %2565 = vmatmul.mubr.bf16.gmra.mrb[0].mxu0 %v1005
      %v2566 = vpop.f32.mrb[0].mxu0
      %v2567 = vadd.f32 0.0, %v2566
      %v2568 = vpop.f32.mrb[0].mxu0
      %v2569 = vpop.f32.mrb[0].mxu0
      %v2570 = vadd.f32 0.0, %v2569
      %v2571 = vpop.f32.mrb[0].mxu0
      %2572 = vmatprep.mubr.bf16.mxu0 0
      %2573 = vmatmul.mubr.bf16.gmra.mrb[0].mxu0 %v1827
      %v2574 = vpop.f32.mrb[0].mxu0
      %v2575 = vadd.f32 0.0, %v2574
      %v2576 = vpop.f32.mrb[0].mxu0
      %v2577 = vpop.f32.mrb[0].mxu0
      %v2578 = vadd.f32 0.0, %v2577
      %v2579 = vpop.f32.mrb[0].mxu0
      %2580 = vmatprep.mubr.bf16.mxu0 0
      %2581 = vmatmul.mubr.bf16.gmra.mrb[0].mxu0 %v2423
      %v2582 = vpop.f32.mrb[0].mxu0
      %v2583 = vadd.f32 0.0, %v2582
      %v2584 = vpop.f32.mrb[0].mxu0
      %v2585 = vpop.f32.mrb[0].mxu0
      %v2586 = vadd.f32 0.0, %v2585
      %v2587 = vpop.f32.mrb[0].mxu0
      %2588 = vdwg.mxu0
      %v2589 = vadd.f32 %v2391, %v2463
      %v2590 = vadd.f32 %v2392, %v2466
      %v2591 = vadd.f32 %v2393, %v2471
      %v2592 = vadd.f32 %v2394, %v2474
      %v2593 = vadd.f32 %v2395, %v2479
      %v2594 = vadd.f32 %v2396, %v2482
      %v2595 = vadd.f32 %v2397, %v2487
      %v2596 = vadd.f32 %v2398, %v2490
      %v2597 = vadd.f32 %v2399, %v2495
      %v2598 = vadd.f32 %v2400, %v2498
      %v2599 = vadd.f32 %v2401, %v2503
      %v2600 = vadd.f32 %v2402, %v2506
      %v2601 = vadd.f32 %v2403, %v2511
      %v2602 = vadd.f32 %v2404, %v2514
      %v2603 = vadd.f32 %v2405, %v2519
      %v2604 = vadd.f32 %v2406, %v2522
      %v2605 = vadd.f32 %v2407, %v2527
      %v2606 = vadd.f32 %v2408, %v2530
      %v2607 = vadd.f32 %v2409, %v2535
      %v2608 = vadd.f32 %v2410, %v2538
      %v2609 = vadd.f32 %v2411, %v2543
      %v2610 = vadd.f32 %v2412, %v2546
      %v2611 = vadd.f32 %v2413, %v2551
      %v2612 = vadd.f32 %v2414, %v2554
      %v2613 = vadd.f32 %v2415, %v2559
      %v2614 = vadd.f32 %v2416, %v2562
      %v2615 = vadd.f32 %v2417, %v2567
      %v2616 = vadd.f32 %v2418, %v2570
      %v2617 = vadd.f32 %v2419, %v2575
      %v2618 = vadd.f32 %v2420, %v2578
      %v2619 = vadd.f32 %v2421, %v2583
      %v2620 = vadd.f32 %v2422, %v2586
      %v2622 = vsel %vm974, %v964, 0
      %v2625 = vsel %vm1007, %v973, 0
      %2627 = vmatprep.subr.bf16.mxu0 0
      %2628 = vmatpush1.bf16.msra.mxu0 %v2625
      %2629 = vmatprep.subr.bf16.mxu0 0
      %2630 = vmatpush1.bf16.msra.mxu0 0
      %2631 = vmatprep.subr.bf16.mxu0 0
      %2632 = vmatpush1.bf16.msra.mxu0 0
      %2633 = vmatprep.subr.bf16.mxu0 0
      %2634 = vmatpush1.bf16.msra.mxu0 0
      %2635 = vmatprep.subr.bf16.mxu0 0
      %2636 = vmatpush1.bf16.msra.mxu0 0
      %2637 = vmatprep.subr.bf16.mxu0 0
      %2638 = vmatpush1.bf16.msra.mxu0 0
      %2639 = vmatprep.subr.bf16.mxu0 0
      %2640 = vmatpush1.bf16.msra.mxu0 0
      %2641 = vmatprep.subr.bf16.mxu0 0
      %2642 = vmatpush1.bf16.msra.mxu0 0
      %2643 = vmatprep.subr.bf16.mxu0 0
      %2644 = vmatpush1.bf16.msra.mxu0 0
      %2645 = vmatprep.subr.bf16.mxu0 0
      %2646 = vmatpush1.bf16.msra.mxu0 0
      %2647 = vmatprep.subr.bf16.mxu0 0
      %2648 = vmatpush1.bf16.msra.mxu0 0
      %2649 = vmatprep.subr.bf16.mxu0 0
      %2650 = vmatpush1.bf16.msra.mxu0 0
      %2651 = vmatprep.subr.bf16.mxu0 0
      %2652 = vmatpush1.bf16.msra.mxu0 0
      %2653 = vmatprep.subr.bf16.mxu0 0
      %2654 = vmatpush1.bf16.msra.mxu0 0
      %2655 = vmatprep.subr.bf16.mxu0 0
      %2656 = vmatpush1.bf16.msra.mxu0 0
      %2657 = vmatprep.subr.bf16.mxu0 0
      %2658 = vmatpush1.bf16.msra.mxu0 0
      %2659 = vmatprep.mubr.bf16.mxu0 0
      %2660 = vmatmul.mubr.bf16.gmra.mrb[0].mxu0 %v1391
      %v2661 = vpop.f32.mrb[0].mxu0
      %v2662 = vadd.f32 0.0, %v2661
      %v2663 = vpop.f32.mrb[0].mxu0
      %v2664 = vpop.f32.mrb[0].mxu0
      %v2665 = vadd.f32 0.0, %v2664
      %v2666 = vpop.f32.mrb[0].mxu0
      %2667 = vmatprep.mubr.bf16.mxu0 0
      %2668 = vmatmul.mubr.bf16.gmra.mrb[0].mxu0 %v1394
      %v2669 = vpop.f32.mrb[0].mxu0
      %v2670 = vadd.f32 0.0, %v2669
      %v2671 = vpop.f32.mrb[0].mxu0
      %v2672 = vpop.f32.mrb[0].mxu0
      %v2673 = vadd.f32 0.0, %v2672
      %v2674 = vpop.f32.mrb[0].mxu0
      %2675 = vmatprep.mubr.bf16.mxu0 0
      %2676 = vmatmul.mubr.bf16.gmra.mrb[0].mxu0 %v1397
      %v2677 = vpop.f32.mrb[0].mxu0
      %v2678 = vadd.f32 0.0, %v2677
      %v2679 = vpop.f32.mrb[0].mxu0
      %v2680 = vpop.f32.mrb[0].mxu0
      %v2681 = vadd.f32 0.0, %v2680
      %v2682 = vpop.f32.mrb[0].mxu0
      %2683 = vmatprep.mubr.bf16.mxu0 0
      %2684 = vmatmul.mubr.bf16.gmra.mrb[0].mxu0 %v1400
      %v2685 = vpop.f32.mrb[0].mxu0
      %v2686 = vadd.f32 0.0, %v2685
      %v2687 = vpop.f32.mrb[0].mxu0
      %v2688 = vpop.f32.mrb[0].mxu0
      %v2689 = vadd.f32 0.0, %v2688
      %v2690 = vpop.f32.mrb[0].mxu0
      %2691 = vmatprep.mubr.bf16.mxu0 0
      %2692 = vmatmul.mubr.bf16.gmra.mrb[0].mxu0 %v1403
      %v2693 = vpop.f32.mrb[0].mxu0
      %v2694 = vadd.f32 0.0, %v2693
      %v2695 = vpop.f32.mrb[0].mxu0
      %v2696 = vpop.f32.mrb[0].mxu0
      %v2697 = vadd.f32 0.0, %v2696
      %v2698 = vpop.f32.mrb[0].mxu0
      %2699 = vmatprep.mubr.bf16.mxu0 0
      %2700 = vmatmul.mubr.bf16.gmra.mrb[0].mxu0 %v1406
      %v2701 = vpop.f32.mrb[0].mxu0
      %v2702 = vadd.f32 0.0, %v2701
      %v2703 = vpop.f32.mrb[0].mxu0
      %v2704 = vpop.f32.mrb[0].mxu0
      %v2705 = vadd.f32 0.0, %v2704
      %v2706 = vpop.f32.mrb[0].mxu0
      %2707 = vmatprep.mubr.bf16.mxu0 0
      %2708 = vmatmul.mubr.bf16.gmra.mrb[0].mxu0 %v1409
      %v2709 = vpop.f32.mrb[0].mxu0
      %v2710 = vadd.f32 0.0, %v2709
      %v2711 = vpop.f32.mrb[0].mxu0
      %v2712 = vpop.f32.mrb[0].mxu0
      %v2713 = vadd.f32 0.0, %v2712
      %v2714 = vpop.f32.mrb[0].mxu0
      %2715 = vmatprep.mubr.bf16.mxu0 0
      %2716 = vmatmul.mubr.bf16.gmra.mrb[0].mxu0 %v1412
      %v2717 = vpop.f32.mrb[0].mxu0
      %v2718 = vadd.f32 0.0, %v2717
      %v2719 = vpop.f32.mrb[0].mxu0
      %v2720 = vpop.f32.mrb[0].mxu0
      %v2721 = vadd.f32 0.0, %v2720
      %v2722 = vpop.f32.mrb[0].mxu0
      %2723 = vmatprep.mubr.bf16.mxu0 0
      %2724 = vmatmul.mubr.bf16.gmra.mrb[0].mxu0 %v1415
      %v2725 = vpop.f32.mrb[0].mxu0
      %v2726 = vadd.f32 0.0, %v2725
      %v2727 = vpop.f32.mrb[0].mxu0
      %v2728 = vpop.f32.mrb[0].mxu0
      %v2729 = vadd.f32 0.0, %v2728
      %v2730 = vpop.f32.mrb[0].mxu0
      %2731 = vmatprep.mubr.bf16.mxu0 0
      %2732 = vmatmul.mubr.bf16.gmra.mrb[0].mxu0 %v1418
      %v2733 = vpop.f32.mrb[0].mxu0
      %v2734 = vadd.f32 0.0, %v2733
      %v2735 = vpop.f32.mrb[0].mxu0
      %v2736 = vpop.f32.mrb[0].mxu0
      %v2737 = vadd.f32 0.0, %v2736
      %v2738 = vpop.f32.mrb[0].mxu0
      %2739 = vmatprep.mubr.bf16.mxu0 0
      %2740 = vmatmul.mubr.bf16.gmra.mrb[0].mxu0 %v1421
      %v2741 = vpop.f32.mrb[0].mxu0
      %v2742 = vadd.f32 0.0, %v2741
      %v2743 = vpop.f32.mrb[0].mxu0
      %v2744 = vpop.f32.mrb[0].mxu0
      %v2745 = vadd.f32 0.0, %v2744
      %v2746 = vpop.f32.mrb[0].mxu0
      %2747 = vmatprep.mubr.bf16.mxu0 0
      %2748 = vmatmul.mubr.bf16.gmra.mrb[0].mxu0 %v1424
      %v2749 = vpop.f32.mrb[0].mxu0
      %v2750 = vadd.f32 0.0, %v2749
      %v2751 = vpop.f32.mrb[0].mxu0
      %v2752 = vpop.f32.mrb[0].mxu0
      %v2753 = vadd.f32 0.0, %v2752
      %v2754 = vpop.f32.mrb[0].mxu0
      %2755 = vmatprep.mubr.bf16.mxu0 0
      %2756 = vmatmul.mubr.bf16.gmra.mrb[0].mxu0 %v1427
      %v2757 = vpop.f32.mrb[0].mxu0
      %v2758 = vadd.f32 0.0, %v2757
      %v2759 = vpop.f32.mrb[0].mxu0
      %v2760 = vpop.f32.mrb[0].mxu0
      %v2761 = vadd.f32 0.0, %v2760
      %v2762 = vpop.f32.mrb[0].mxu0
      %2763 = vmatprep.mubr.bf16.mxu0 0
      %2764 = vmatmul.mubr.bf16.gmra.mrb[0].mxu0 %v1430
      %v2765 = vpop.f32.mrb[0].mxu0
      %v2766 = vadd.f32 0.0, %v2765
      %v2767 = vpop.f32.mrb[0].mxu0
      %v2768 = vpop.f32.mrb[0].mxu0
      %v2769 = vadd.f32 0.0, %v2768
      %v2770 = vpop.f32.mrb[0].mxu0
      %2771 = vmatprep.mubr.bf16.mxu0 0
      %2772 = vmatmul.mubr.bf16.gmra.mrb[0].mxu0 %v2026
      %v2773 = vpop.f32.mrb[0].mxu0
      %v2774 = vadd.f32 0.0, %v2773
      %v2775 = vpop.f32.mrb[0].mxu0
      %v2776 = vpop.f32.mrb[0].mxu0
      %v2777 = vadd.f32 0.0, %v2776
      %v2778 = vpop.f32.mrb[0].mxu0
      %2779 = vmatprep.mubr.bf16.mxu0 0
      %2780 = vmatmul.mubr.bf16.gmra.mrb[0].mxu0 %v2622
      %v2781 = vpop.f32.mrb[0].mxu0
      %v2782 = vadd.f32 0.0, %v2781
      %v2783 = vpop.f32.mrb[0].mxu0
      %v2784 = vpop.f32.mrb[0].mxu0
      %v2785 = vadd.f32 0.0, %v2784
      %v2786 = vpop.f32.mrb[0].mxu0
      %2787 = vdwg.mxu0
      %v2788 = vadd.f32 %v2589, %v2662
      %v2789 = vadd.f32 %v2590, %v2665
      %v2790 = vadd.f32 %v2591, %v2670
      %v2791 = vadd.f32 %v2592, %v2673
      %v2792 = vadd.f32 %v2593, %v2678
      %v2793 = vadd.f32 %v2594, %v2681
      %v2794 = vadd.f32 %v2595, %v2686
      %v2795 = vadd.f32 %v2596, %v2689
      %v2796 = vadd.f32 %v2597, %v2694
      %v2797 = vadd.f32 %v2598, %v2697
      %v2798 = vadd.f32 %v2599, %v2702
      %v2799 = vadd.f32 %v2600, %v2705
      %v2800 = vadd.f32 %v2601, %v2710
      %v2801 = vadd.f32 %v2602, %v2713
      %v2802 = vadd.f32 %v2603, %v2718
      %v2803 = vadd.f32 %v2604, %v2721
      %v2804 = vadd.f32 %v2605, %v2726
      %v2805 = vadd.f32 %v2606, %v2729
      %v2806 = vadd.f32 %v2607, %v2734
      %v2807 = vadd.f32 %v2608, %v2737
      %v2808 = vadd.f32 %v2609, %v2742
      %v2809 = vadd.f32 %v2610, %v2745
      %v2810 = vadd.f32 %v2611, %v2750
      %v2811 = vadd.f32 %v2612, %v2753
      %v2812 = vadd.f32 %v2613, %v2758
      %v2813 = vadd.f32 %v2614, %v2761
      %v2814 = vadd.f32 %v2615, %v2766
      %v2815 = vadd.f32 %v2616, %v2769
      %v2816 = vadd.f32 %v2617, %v2774
      %v2817 = vadd.f32 %v2618, %v2777
      %v2818 = vadd.f32 %v2619, %v2782
      %v2819 = vadd.f32 %v2620, %v2785
      %v2820 = vsel %vm974, %v2788, 0.0
      %v2821 = vsel %vm974, %v2789, 0.0
      %v2822 = vadd.f32 %v2820, %v2821
      %v2823 = vsel %vm974, %v2790, 0.0
      %v2824 = vadd.f32 %v2822, %v2823
      %v2825 = vsel %vm974, %v2791, 0.0
      %v2826 = vadd.f32 %v2824, %v2825
      %v2827 = vsel %vm974, %v2792, 0.0
      %v2828 = vadd.f32 %v2826, %v2827
      %v2829 = vsel %vm974, %v2793, 0.0
      %v2830 = vadd.f32 %v2828, %v2829
      %v2831 = vsel %vm974, %v2794, 0.0
      %v2832 = vadd.f32 %v2830, %v2831
      %v2833 = vsel %vm974, %v2795, 0.0
      %v2834 = vadd.f32 %v2832, %v2833
      %v2835 = vsel %vm974, %v2796, 0.0
      %v2836 = vadd.f32 %v2834, %v2835
      %v2837 = vsel %vm974, %v2797, 0.0
      %v2838 = vadd.f32 %v2836, %v2837
      %v2839 = vsel %vm974, %v2798, 0.0
      %v2840 = vadd.f32 %v2838, %v2839
      %v2841 = vsel %vm974, %v2799, 0.0
      %v2842 = vadd.f32 %v2840, %v2841
      %v2843 = vsel %vm974, %v2800, 0.0
      %v2844 = vadd.f32 %v2842, %v2843
      %v2845 = vsel %vm974, %v2801, 0.0
      %v2846 = vadd.f32 %v2844, %v2845
      %v2847 = vsel %vm974, %v2802, 0.0
      %v2848 = vadd.f32 %v2846, %v2847
      %v2849 = vsel %vm974, %v2803, 0.0
      %v2850 = vadd.f32 %v2848, %v2849
      %v2851 = vsel %vm974, %v2804, 0.0
      %v2852 = vadd.f32 %v2850, %v2851
      %v2853 = vsel %vm974, %v2805, 0.0
      %v2854 = vadd.f32 %v2852, %v2853
      %v2855 = vsel %vm974, %v2806, 0.0
      %v2856 = vadd.f32 %v2854, %v2855
      %v2857 = vsel %vm974, %v2807, 0.0
      %v2858 = vadd.f32 %v2856, %v2857
      %v2859 = vsel %vm974, %v2808, 0.0
      %v2860 = vadd.f32 %v2858, %v2859
      %v2861 = vsel %vm974, %v2809, 0.0
      %v2862 = vadd.f32 %v2860, %v2861
      %v2863 = vsel %vm974, %v2810, 0.0
      %v2864 = vadd.f32 %v2862, %v2863
      %v2865 = vsel %vm974, %v2811, 0.0
      %v2866 = vadd.f32 %v2864, %v2865
      %v2867 = vsel %vm974, %v2812, 0.0
      %v2868 = vadd.f32 %v2866, %v2867
      %v2869 = vsel %vm974, %v2813, 0.0
      %v2870 = vadd.f32 %v2868, %v2869
      %v2871 = vsel %vm974, %v2814, 0.0
      %v2872 = vadd.f32 %v2870, %v2871
      %v2873 = vsel %vm974, %v2815, 0.0
      %v2874 = vadd.f32 %v2872, %v2873
      %v2875 = vsel %vm974, %v2816, 0.0
      %v2876 = vadd.f32 %v2874, %v2875
      %v2877 = vsel %vm974, %v2817, 0.0
      %v2878 = vadd.f32 %v2876, %v2877
      %v2879 = vsel %vm974, %v2818, 0.0
      %v2880 = vadd.f32 %v2878, %v2879
      %v2881 = vsel %vm974, %v2819, 0.0
      %v2882 = vadd.f32 %v2880, %v2881
      %v2883 = vrot.slane %v2882, 4
      %v2884 = vadd.f32 %v2882, %v2883
      %v2885 = vrot.slane %v2884, 2
      %v2886 = vadd.f32 %v2884, %v2885
      %v2887 = vrot.slane %v2886, 1
      %v2888 = vadd.f32 %v2886, %v2887
      %v2889 = vmul.f32 %v2888, 0.00390625
      %v2890 = vsub.f32 %v2788, %v2889
      %v2891 = vsub.f32 %v2789, %v2889
      %v2892 = vsub.f32 %v2790, %v2889
      %v2893 = vsub.f32 %v2791, %v2889
      %v2894 = vsub.f32 %v2792, %v2889
      %v2895 = vsub.f32 %v2793, %v2889
      %v2896 = vsub.f32 %v2794, %v2889
      %v2897 = vsub.f32 %v2795, %v2889
      %v2898 = vsub.f32 %v2796, %v2889
      %v2899 = vsub.f32 %v2797, %v2889
      %v2900 = vsub.f32 %v2798, %v2889
      %v2901 = vsub.f32 %v2799, %v2889
      %v2902 = vsub.f32 %v2800, %v2889
      %v2903 = vsub.f32 %v2801, %v2889
      %v2904 = vsub.f32 %v2802, %v2889
      %v2905 = vsub.f32 %v2803, %v2889
      %v2906 = vsub.f32 %v2804, %v2889
      %v2907 = vsub.f32 %v2805, %v2889
      %v2908 = vsub.f32 %v2806, %v2889
      %v2909 = vsub.f32 %v2807, %v2889
      %v2910 = vsub.f32 %v2808, %v2889
      %v2911 = vsub.f32 %v2809, %v2889
      %v2912 = vsub.f32 %v2810, %v2889
      %v2913 = vsub.f32 %v2811, %v2889
      %v2914 = vsub.f32 %v2812, %v2889
      %v2915 = vsub.f32 %v2813, %v2889
      %v2916 = vsub.f32 %v2814, %v2889
      %v2917 = vsub.f32 %v2815, %v2889
      %v2918 = vsub.f32 %v2816, %v2889
      %v2919 = vsub.f32 %v2817, %v2889
      %v2920 = vsub.f32 %v2818, %v2889
      %v2921 = vsub.f32 %v2819, %v2889
      %v2922 = vmul.f32 %v2890, %v2890
      %v2923 = vmul.f32 %v2891, %v2891
      %v2924 = vmul.f32 %v2892, %v2892
      %v2925 = vmul.f32 %v2893, %v2893
      %v2926 = vmul.f32 %v2894, %v2894
      %v2927 = vmul.f32 %v2895, %v2895
      %v2928 = vmul.f32 %v2896, %v2896
      %v2929 = vmul.f32 %v2897, %v2897
      %v2930 = vmul.f32 %v2898, %v2898
      %v2931 = vmul.f32 %v2899, %v2899
      %v2932 = vmul.f32 %v2900, %v2900
      %v2933 = vmul.f32 %v2901, %v2901
      %v2934 = vmul.f32 %v2902, %v2902
      %v2935 = vmul.f32 %v2903, %v2903
      %v2936 = vmul.f32 %v2904, %v2904
      %v2937 = vmul.f32 %v2905, %v2905
      %v2938 = vmul.f32 %v2906, %v2906
      %v2939 = vmul.f32 %v2907, %v2907
      %v2940 = vmul.f32 %v2908, %v2908
      %v2941 = vmul.f32 %v2909, %v2909
      %v2942 = vmul.f32 %v2910, %v2910
      %v2943 = vmul.f32 %v2911, %v2911
      %v2944 = vmul.f32 %v2912, %v2912
      %v2945 = vmul.f32 %v2913, %v2913
      %v2946 = vmul.f32 %v2914, %v2914
      %v2947 = vmul.f32 %v2915, %v2915
      %v2948 = vmul.f32 %v2916, %v2916
      %v2949 = vmul.f32 %v2917, %v2917
      %v2950 = vmul.f32 %v2918, %v2918
      %v2951 = vmul.f32 %v2919, %v2919
      %v2952 = vmul.f32 %v2920, %v2920
      %v2953 = vmul.f32 %v2921, %v2921
      %v2954 = vsel %vm974, %v2922, 0.0
      %v2955 = vsel %vm974, %v2923, 0.0
      %v2956 = vadd.f32 %v2954, %v2955
      %v2957 = vsel %vm974, %v2924, 0.0
      %v2958 = vadd.f32 %v2956, %v2957
      %v2959 = vsel %vm974, %v2925, 0.0
      %v2960 = vadd.f32 %v2958, %v2959
      %v2961 = vsel %vm974, %v2926, 0.0
      %v2962 = vadd.f32 %v2960, %v2961
      %v2963 = vsel %vm974, %v2927, 0.0
      %v2964 = vadd.f32 %v2962, %v2963
      %v2965 = vsel %vm974, %v2928, 0.0
      %v2966 = vadd.f32 %v2964, %v2965
      %v2967 = vsel %vm974, %v2929, 0.0
      %v2968 = vadd.f32 %v2966, %v2967
      %v2969 = vsel %vm974, %v2930, 0.0
      %v2970 = vadd.f32 %v2968, %v2969
      %v2971 = vsel %vm974, %v2931, 0.0
      %v2972 = vadd.f32 %v2970, %v2971
      %v2973 = vsel %vm974, %v2932, 0.0
      %v2974 = vadd.f32 %v2972, %v2973
      %v2975 = vsel %vm974, %v2933, 0.0
      %v2976 = vadd.f32 %v2974, %v2975
      %v2977 = vsel %vm974, %v2934, 0.0
      %v2978 = vadd.f32 %v2976, %v2977
      %v2979 = vsel %vm974, %v2935, 0.0
      %v2980 = vadd.f32 %v2978, %v2979
      %v2981 = vsel %vm974, %v2936, 0.0
      %v2982 = vadd.f32 %v2980, %v2981
      %v2983 = vsel %vm974, %v2937, 0.0
      %v2984 = vadd.f32 %v2982, %v2983
      %v2985 = vsel %vm974, %v2938, 0.0
      %v2986 = vadd.f32 %v2984, %v2985
      %v2987 = vsel %vm974, %v2939, 0.0
      %v2988 = vadd.f32 %v2986, %v2987
      %v2989 = vsel %vm974, %v2940, 0.0
      %v2990 = vadd.f32 %v2988, %v2989
      %v2991 = vsel %vm974, %v2941, 0.0
      %v2992 = vadd.f32 %v2990, %v2991
      %v2993 = vsel %vm974, %v2942, 0.0
      %v2994 = vadd.f32 %v2992, %v2993
      %v2995 = vsel %vm974, %v2943, 0.0
      %v2996 = vadd.f32 %v2994, %v2995
      %v2997 = vsel %vm974, %v2944, 0.0
      %v2998 = vadd.f32 %v2996, %v2997
      %v2999 = vsel %vm974, %v2945, 0.0
      %v3000 = vadd.f32 %v2998, %v2999
      %v3001 = vsel %vm974, %v2946, 0.0
      %v3002 = vadd.f32 %v3000, %v3001
      %v3003 = vsel %vm974, %v2947, 0.0
      %v3004 = vadd.f32 %v3002, %v3003
      %v3005 = vsel %vm974, %v2948, 0.0
      %v3006 = vadd.f32 %v3004, %v3005
      %v3007 = vsel %vm974, %v2949, 0.0
      %v3008 = vadd.f32 %v3006, %v3007
      %v3009 = vsel %vm974, %v2950, 0.0
      %v3010 = vadd.f32 %v3008, %v3009
      %v3011 = vsel %vm974, %v2951, 0.0
      %v3012 = vadd.f32 %v3010, %v3011
      %v3013 = vsel %vm974, %v2952, 0.0
      %v3014 = vadd.f32 %v3012, %v3013
      %v3015 = vsel %vm974, %v2953, 0.0
      %v3016 = vadd.f32 %v3014, %v3015
      %v3017 = vrot.slane %v3016, 4
      %v3018 = vadd.f32 %v3016, %v3017
      %v3019 = vrot.slane %v3018, 2
      %v3020 = vadd.f32 %v3018, %v3019
      %v3021 = vrot.slane %v3020, 1
      %v3022 = vadd.f32 %v3020, %v3021
      %vm3023 = vcmask 57344
      %3024 = vst.msk [vmem:[%s505] sm:$0x1] %vm3023, %v2888
      %3025 = vst.msk [vmem:[%s505 + $0x1] sm:$0x1] %vm3023, %v3022
      %v3026 = vpack.c.bf16 %v2789, %v2788
      %v3027 = vpack.c.bf16 %v2791, %v2790
      %v3028 = vpack.c.bf16 %v2793, %v2792
      %v3029 = vpack.c.bf16 %v2795, %v2794
      %v3030 = vpack.c.bf16 %v2797, %v2796
      %v3031 = vpack.c.bf16 %v2799, %v2798
      %v3032 = vpack.c.bf16 %v2801, %v2800
      %v3033 = vpack.c.bf16 %v2803, %v2802
      %v3034 = vpack.c.bf16 %v2805, %v2804
      %v3035 = vpack.c.bf16 %v2807, %v2806
      %v3036 = vpack.c.bf16 %v2809, %v2808
      %v3037 = vpack.c.bf16 %v2811, %v2810
      %v3038 = vpack.c.bf16 %v2813, %v2812
      %v3039 = vpack.c.bf16 %v2815, %v2814
      %v3040 = vpack.c.bf16 %v2817, %v2816
      %v3041 = vpack.c.bf16 %v2819, %v2818
      %v3058 = vunpack.c.l.b16 %v3026
      %v3059 = vunpack.c.h.b16 %v3026
      %v3060 = vunpack.c.l.b16 %v3027
      %v3061 = vunpack.c.h.b16 %v3027
      %v3062 = vunpack.c.l.b16 %v3028
      %v3063 = vunpack.c.h.b16 %v3028
      %v3064 = vunpack.c.l.b16 %v3029
      %v3065 = vunpack.c.h.b16 %v3029
      %v3066 = vunpack.c.l.b16 %v3030
      %v3067 = vunpack.c.h.b16 %v3030
      %v3068 = vunpack.c.l.b16 %v3031
      %v3069 = vunpack.c.h.b16 %v3031
      %v3070 = vunpack.c.l.b16 %v3032
      %v3071 = vunpack.c.h.b16 %v3032
      %v3072 = vunpack.c.l.b16 %v3033
      %v3073 = vunpack.c.h.b16 %v3033
      %v3074 = vunpack.c.l.b16 %v3034
      %v3075 = vunpack.c.h.b16 %v3034
      %v3076 = vunpack.c.l.b16 %v3035
      %v3077 = vunpack.c.h.b16 %v3035
      %v3078 = vunpack.c.l.b16 %v3036
      %v3079 = vunpack.c.h.b16 %v3036
      %v3080 = vunpack.c.l.b16 %v3037
      %v3081 = vunpack.c.h.b16 %v3037
      %v3082 = vunpack.c.l.b16 %v3038
      %v3083 = vunpack.c.h.b16 %v3038
      %v3084 = vunpack.c.l.b16 %v3039
      %v3085 = vunpack.c.h.b16 %v3039
      %v3086 = vunpack.c.l.b16 %v3040
      %v3087 = vunpack.c.h.b16 %v3040
      %v3088 = vunpack.c.l.b16 %v3041
      %v3089 = vunpack.c.h.b16 %v3041
      %v3090 = vpack.c.b16 %v3058, %v3058
      %v3091 = vpack.c.b16 %v3059, %v3059
      %v3092 = vpack.c.b16 %v3060, %v3060
      %v3093 = vpack.c.b16 %v3061, %v3061
      %v3094 = vpack.c.b16 %v3062, %v3062
      %v3095 = vpack.c.b16 %v3063, %v3063
      %v3096 = vpack.c.b16 %v3064, %v3064
      %v3097 = vpack.c.b16 %v3065, %v3065
      %v3098 = vpack.c.b16 %v3066, %v3066
      %v3099 = vpack.c.b16 %v3067, %v3067
      %v3100 = vpack.c.b16 %v3068, %v3068
      %v3101 = vpack.c.b16 %v3069, %v3069
      %v3102 = vpack.c.b16 %v3070, %v3070
      %v3103 = vpack.c.b16 %v3071, %v3071
      %v3104 = vpack.c.b16 %v3072, %v3072
      %v3105 = vpack.c.b16 %v3073, %v3073
      %v3106 = vpack.c.b16 %v3074, %v3074
      %v3107 = vpack.c.b16 %v3075, %v3075
      %v3108 = vpack.c.b16 %v3076, %v3076
      %v3109 = vpack.c.b16 %v3077, %v3077
      %v3110 = vpack.c.b16 %v3078, %v3078
      %v3111 = vpack.c.b16 %v3079, %v3079
      %v3112 = vpack.c.b16 %v3080, %v3080
      %v3113 = vpack.c.b16 %v3081, %v3081
      %v3114 = vpack.c.b16 %v3082, %v3082
      %v3115 = vpack.c.b16 %v3083, %v3083
      %v3116 = vpack.c.b16 %v3084, %v3084
      %v3117 = vpack.c.b16 %v3085, %v3085
      %v3118 = vpack.c.b16 %v3086, %v3086
      %v3119 = vpack.c.b16 %v3087, %v3087
      %v3120 = vpack.c.b16 %v3088, %v3088
      %v3121 = vpack.c.b16 %v3089, %v3089
      %vm3154 = vcmask 60416
      %3155 = vst.msk [vmem:[%s494] sm:$0xf] %vm3154, %v3090
      %3156 = vst.msk [vmem:[%s494 + $0x4] sm:$0xf] %vm3154, %v3091
      %3157 = vst.msk [vmem:[%s494 + $0x8] sm:$0xf] %vm3154, %v3092
      %3158 = vst.msk [vmem:[%s494 + $0xc] sm:$0xf] %vm3154, %v3093
      %3159 = vst.msk [vmem:[%s494 + $0x10] sm:$0xf] %vm3154, %v3094
      %3160 = vst.msk [vmem:[%s494 + $0x14] sm:$0xf] %vm3154, %v3095
      %3161 = vst.msk [vmem:[%s494 + $0x18] sm:$0xf] %vm3154, %v3096
      %3162 = vst.msk [vmem:[%s494 + $0x1c] sm:$0xf] %vm3154, %v3097
      %3163 = vst.msk [vmem:[%s494 + $0x20] sm:$0xf] %vm3154, %v3098
      %3164 = vst.msk [vmem:[%s494 + $0x24] sm:$0xf] %vm3154, %v3099
      %3165 = vst.msk [vmem:[%s494 + $0x28] sm:$0xf] %vm3154, %v3100
      %3166 = vst.msk [vmem:[%s494 + $0x2c] sm:$0xf] %vm3154, %v3101
      %3167 = vst.msk [vmem:[%s494 + $0x30] sm:$0xf] %vm3154, %v3102
      %3168 = vst.msk [vmem:[%s494 + $0x34] sm:$0xf] %vm3154, %v3103
      %3169 = vst.msk [vmem:[%s494 + $0x38] sm:$0xf] %vm3154, %v3104
      %3170 = vst.msk [vmem:[%s494 + $0x3c] sm:$0xf] %vm3154, %v3105
      %3171 = vst.msk [vmem:[%s494 + $0x40] sm:$0xf] %vm3154, %v3106
      %3172 = vst.msk [vmem:[%s494 + $0x44] sm:$0xf] %vm3154, %v3107
      %3173 = vst.msk [vmem:[%s494 + $0x48] sm:$0xf] %vm3154, %v3108
      %3174 = vst.msk [vmem:[%s494 + $0x4c] sm:$0xf] %vm3154, %v3109
      %3175 = vst.msk [vmem:[%s494 + $0x50] sm:$0xf] %vm3154, %v3110
      %3176 = vst.msk [vmem:[%s494 + $0x54] sm:$0xf] %vm3154, %v3111
      %3177 = vst.msk [vmem:[%s494 + $0x58] sm:$0xf] %vm3154, %v3112
      %3178 = vst.msk [vmem:[%s494 + $0x5c] sm:$0xf] %vm3154, %v3113
      %3179 = vst.msk [vmem:[%s494 + $0x60] sm:$0xf] %vm3154, %v3114
      %3180 = vst.msk [vmem:[%s494 + $0x64] sm:$0xf] %vm3154, %v3115
      %3181 = vst.msk [vmem:[%s494 + $0x68] sm:$0xf] %vm3154, %v3116
      %3182 = vst.msk [vmem:[%s494 + $0x6c] sm:$0xf] %vm3154, %v3117
      %3183 = vst.msk [vmem:[%s494 + $0x70] sm:$0xf] %vm3154, %v3118
      %3184 = vst.msk [vmem:[%s494 + $0x74] sm:$0xf] %vm3154, %v3119
      %3185 = vst.msk [vmem:[%s494 + $0x78] sm:$0xf] %vm3154, %v3120
      %3186 = vst.msk [vmem:[%s494 + $0x7c] sm:$0xf] %vm3154, %v3121
      %s3187 = smul.u32 16, %s25
      %p3188 = scmp.lt.s32.totalorder %s24, 1
      %s3189 = scalar_select %p3188, %s24, 1
      %p3190 = scmp.lt.s32.totalorder %s3187, 15
      %s3191 = scalar_select %p3190, %s3187, 15
      %p3192 = scmp.lt.s32.totalorder %s26, 0
      %s3193 = scalar_select %p3192, %s26, 0
      %s3194 = smul.addr %s3191, 2
      %s3195 = sadd.s32 %s3193, %s3194
      %s3196 = smul.addr %s3189, 32
      %s3197 = sadd.s32 %s3195, %s3196
      %s3198 = smul.addr %s3197, 4
      %s3199 = scalar_lea.vmem %s6, %s3198
      %p3200 = scmp.lt.s32.totalorder %s24, 1
      %s3201 = scalar_select %p3200, %s24, 1
      %p3202 = scmp.lt.s32.totalorder %s25, 0
      %s3203 = scalar_select %p3202, %s25, 0
      %p3204 = scmp.lt.s32.totalorder %s26, 0
      %s3205 = scalar_select %p3204, %s26, 0
      %s3206 = sadd.s32 %s3205, %s3203
      %s3207 = sadd.s32 %s3206, %s3201
      %s3208 = smul.addr %s3207, 2
      %s3209 = scalar_lea.vmem %s7, %s3208
      // Predicated region
      $region45: #{downsample_forward.4} parent=43 // pred_check
        %p3210 = pneg %p228
      $region46: #{downsample_forward.4} parent=43 // pred_check_branch
        %3212 = sbr.rel (%p3210) target = $region48
      $region47: #{downsample_forward.4} parent=43 // pred_region
        %s3213 = smul.u32 16, %s25
      $region48: #{downsample_forward.4} parent=43 // pred_fallthru
        _
      // Predicated region
      $region49: #{downsample_forward.4} parent=43 // pred_check
        %p3214 = pneg %p258
      $region50: #{downsample_forward.4} parent=43 // pred_check_branch
        %3216 = sbr.rel (%p3214) target = $region52
      $region51: #{downsample_forward.4} parent=43 // pred_region
        _
      $region52: #{downsample_forward.4} parent=43 // pred_fallthru
        _
    $region44: #{downsample_forward.4} parent=5 // pred_fallthru
      _
    %p3217 = scmp.le.s32.totalorder 2, %s14
    // Predicated region
    $region53: #{downsample_forward.4} parent=5 // pred_check
      %p3218 = pneg %p3217
    $region54: #{downsample_forward.4} parent=5 // pred_check_branch
      %3220 = sbr.rel (%p3218) target = $region56
    $region55: #{downsample_forward.4} parent=5 // pred_region
      %s3221 = ssub.s32 %s14, 2
      // Predicated region
      $region57: #{downsample_forward.4} parent=55 // pred_check
        %p3222 = pneg %p234
      $region58: #{downsample_forward.4} parent=55 // pred_check_branch
        %3224 = sbr.rel (%p3222) target = $region60
      $region59: #{downsample_forward.4} parent=55 // pred_region
        %s3225 = smul.u32 16, %s28
        %p3226 = scmp.lt.s32.totalorder %s27, 1
        %s3227 = scalar_select %p3226, %s27, 1
        %p3228 = scmp.lt.s32.totalorder %s3225, 15
        %s3229 = scalar_select %p3228, %s3225, 15
        %p3230 = scmp.lt.s32.totalorder %s29, 0
        %s3231 = scalar_select %p3230, %s29, 0
        %s3232 = smul.addr %s3229, 2
        %s3233 = sadd.s32 %s3231, %s3232
        %s3234 = smul.addr %s3227, 32
        %s3235 = sadd.s32 %s3233, %s3234
        %s3236 = smul.addr %s3235, 4
        %s3237 = scalar_lea.vmem %s6, %s3236
      $region60: #{downsample_forward.4} parent=55 // pred_fallthru
        _
      // Predicated region
      $region61: #{downsample_forward.4} parent=55 // pred_check
        %p3238 = pneg %p264
      $region62: #{downsample_forward.4} parent=55 // pred_check_branch
        %3240 = sbr.rel (%p3238) target = $region64
      $region63: #{downsample_forward.4} parent=55 // pred_region
        %p3241 = scmp.lt.s32.totalorder %s27, 1
        %s3242 = scalar_select %p3241, %s27, 1
        %p3243 = scmp.lt.s32.totalorder %s28, 0
        %s3244 = scalar_select %p3243, %s28, 0
        %p3245 = scmp.lt.s32.totalorder %s29, 0
        %s3246 = scalar_select %p3245, %s29, 0
        %s3247 = sadd.s32 %s3246, %s3244
        %s3248 = sadd.s32 %s3247, %s3242
        %s3249 = smul.addr %s3248, 2
        %s3250 = scalar_lea.vmem %s7, %s3249
      $region64: #{downsample_forward.4} parent=55 // pred_fallthru
        _
    $region56: #{downsample_forward.4} parent=5 // pred_fallthru
      _
  $region6: #{downsample_forward.4} parent=0 // loop_footer
    %s18 = sadd.s32 1, %s14
  $region7: #{downsample_forward.4} parent=0 // loop_footer_branch
    %13 = sbr.rel target = $region3
  $region8: #{downsample_forward.4} parent=0 // loop_exit
    _

</llo_original>
